<compile_context>
chip_gen: v7x
topology: tpu7x:2x2x1
jax: 0.10.0
libtpu: 0.0.40
codegen_flags: <defaults>
</compile_context>

<pallas_src>
import math

import jax
import jax.numpy as jnp
from jax.experimental import pallas as pl
from jax.experimental.pallas import tpu as pltpu


# ----------------------------------------------------------------------------
# Fused Block kernel: conv3x3(valid)+ReLU -> conv3x3(valid)+ReLU, one image/step
# ----------------------------------------------------------------------------
def _block_kernel(x_ref, w1_ref, b1_ref, w2_ref, b2_ref, o_ref):
    """
    x_ref : (1, H, W, Cin)        f32   NHWC image block
    w1_ref: (9*Cin, Cout)         bf16  weights packed as [(kh*3+kw)*Cin + cin, cout]
    b1_ref: (1, Cout)             f32
    w2_ref: (9*Cout, Cout)        bf16
    b2_ref: (1, Cout)             f32
    o_ref : (1, Ho2*Wo2, Cout)    f32   flattened-spatial NHWC output
    """
    x = x_ref[0]  # (H, W, Cin), stays in VMEM

    def conv3x3_bias_relu(inp, w, b):
        # inp: (Hi, Wi, Ci) f32 value in VMEM; w: (9*Ci, Cout) bf16; b: (1, Cout) f32
        hi, wi, ci = inp.shape
        cout = w.shape[-1]
        ho, wo = hi - 2, wi - 2
        acc = jnp.zeros((ho * wo, cout), jnp.float32)
        # 9 shifted bf16 MXU matmuls accumulated in f32 (im2col never touches HBM).
        for kh in range(3):
            for kw in range(3):
                patch = inp[kh:kh + ho, kw:kw + wo, :].reshape(ho * wo, ci)
                tap = (kh * 3 + kw) * ci
                wk = w[tap:tap + ci, :]
                acc = acc + jnp.dot(patch.astype(jnp.bfloat16), wk,
                                    preferred_element_type=jnp.float32)
        return jnp.maximum(acc + b, 0.0), ho, wo  # (ho*wo, cout) f32

    cout = b1_ref.shape[1]

    a1, h1, w1 = conv3x3_bias_relu(x, w1_ref[...], b1_ref[...])
    a1 = a1.reshape(h1, w1, cout)                 # intermediate stays in VMEM
    a2, h2, w2 = conv3x3_bias_relu(a1, w2_ref[...], b2_ref[...])

    o_ref[0] = a2.astype(o_ref.dtype)             # (h2*w2, cout)


# ----------------------------------------------------------------------------
# Wrapper: NCHW in / NCHW out (PyTorch convention), weights in PyTorch layout
# ----------------------------------------------------------------------------
def block_forward(params, x_nchw):
    w1, b1, w2, b2 = params["w1"], params["b1"], params["w2"], params["b2"]
    n, cin, h, w = x_nchw.shape
    cout = w1.shape[0]
    ho1, wo1 = h - 2, w - 2
    ho2, wo2 = ho1 - 2, wo1 - 2

    # NCHW -> NHWC so channels land on the TPU lane dim.
    x = jnp.transpose(x_nchw, (0, 2, 3, 1)).astype(jnp.float32)

    # Pack conv weights once to im2col order [(kh*3+kw)*Cin + cin, cout]; bf16 feeds MXU.
    w1m = jnp.transpose(w1, (2, 3, 1, 0)).reshape(9 * cin, cout).astype(jnp.bfloat16)
    w2m = jnp.transpose(w2, (2, 3, 1, 0)).reshape(9 * cout, cout).astype(jnp.bfloat16)
    b1r = b1.reshape(1, cout).astype(jnp.float32)
    b2r = b2.reshape(1, cout).astype(jnp.float32)

    out = pl.pallas_call(
        _block_kernel,
        out_shape=jax.ShapeDtypeStruct((n, ho2 * wo2, cout), jnp.float32),
        grid=(n,),
        in_specs=[
            pl.BlockSpec((1, h, w, cin), lambda i: (i, 0, 0, 0)),
            pl.BlockSpec((9 * cin, cout), lambda i: (0, 0)),   # weights: resident
            pl.BlockSpec((1, cout), lambda i: (0, 0)),
            pl.BlockSpec((9 * cout, cout), lambda i: (0, 0)),
            pl.BlockSpec((1, cout), lambda i: (0, 0)),
        ],
        out_specs=pl.BlockSpec((1, ho2 * wo2, cout), lambda i: (i, 0, 0)),
        compiler_params=pltpu.CompilerParams(
            dimension_semantics=("parallel",),   # shard batch across TCs on v7x
        ),
    )(x, w1m, b1r, w2m, b2r)

    out = out.reshape(n, ho2, wo2, cout)          # free metadata reshape
    return jnp.transpose(out, (0, 3, 1, 2))       # NHWC -> NCHW


# ----------------------------------------------------------------------------
# Deterministic parameter init (PyTorch Conv2d-like shapes / ranges)
# ----------------------------------------------------------------------------
def init_params(key, cin, cout):
    k1, k2, k3, k4 = jax.random.split(key, 4)
    bound1 = 1.0 / math.sqrt(cin * 9)
    bound2 = 1.0 / math.sqrt(cout * 9)
    return {
        "w1": jax.random.uniform(k1, (cout, cin, 3, 3), jnp.float32, -bound1, bound1),
        "b1": jax.random.uniform(k2, (cout,), jnp.float32, -bound1, bound1),
        "w2": jax.random.uniform(k3, (cout, cout, 3, 3), jnp.float32, -bound2, bound2),
        "b2": jax.random.uniform(k4, (cout,), jnp.float32, -bound2, bound2),
    }


# ----------------------------------------------------------------------------
# Pure-XLA reference (f32 NCHW, mirrors the torch module) for a sanity check
# ----------------------------------------------------------------------------
def block_ref(params, x_nchw):
    dn = ("NCHW", "OIHW", "NCHW")
    y = jax.lax.conv_general_dilated(
        x_nchw, params["w1"], (1, 1), "VALID",
        dimension_numbers=jax.lax.conv_dimension_numbers(
            x_nchw.shape, params["w1"].shape, dn))
    y = jax.nn.relu(y + params["b1"][None, :, None, None])
    y = jax.lax.conv_general_dilated(
        y, params["w2"], (1, 1), "VALID",
        dimension_numbers=jax.lax.conv_dimension_numbers(
            y.shape, params["w2"].shape, dn))
    return jax.nn.relu(y + params["b2"][None, :, None, None])


# ----------------------------------------------------------------------------
if __name__ == "__main__":
    key = jax.random.PRNGKey(0)
    pkey, xkey = jax.random.split(key)

    N, CIN, H, W = 2, 4, 16, 16
    COUT = 32

    params = init_params(pkey, CIN, COUT)
    x = jax.random.normal(xkey, (N, CIN, H, W), jnp.float32)

    fwd = jax.jit(block_forward)
    out = jax.block_until_ready(fwd(params, x))

    assert out.shape == (N, COUT, H - 4, W - 4), out.shape
    assert out.dtype == jnp.float32

    # Sanity check vs. pure-XLA f32 reference (kernel uses bf16 MXU inputs with
    # f32 accumulation, so allow a small numerical tolerance).
    ref = jax.block_until_ready(block_ref(params, x))
    max_err = float(jnp.max(jnp.abs(out - ref)))
    assert max_err < 5e-2, f"max abs error {max_err}"

    print("KERNEL_OK")
</pallas_src>

<mosaic_0001>
module attributes {stable_mosaic.version = 11 : i64} {
  func.func @_block_kernel(%arg0: i32, %arg1: memref<1x16x16x4xf32, #tpu.memory_space<vmem>>, %arg2: memref<36x32xbf16, #tpu.memory_space<vmem>>, %arg3: memref<1x32xf32, #tpu.memory_space<vmem>>, %arg4: memref<288x32xbf16, #tpu.memory_space<vmem>>, %arg5: memref<1x32xf32, #tpu.memory_space<vmem>>, %arg6: memref<1x144x32xf32, #tpu.memory_space<vmem>>) attributes {dimension_semantics = [#tpu.dimension_semantics<parallel>], iteration_bounds = array<i64: 2>, scalar_prefetch = 0 : i64, scratch_operands = 0 : i64, tpu.core_type = #tpu.core_type<tc>, window_params = [{transform_indices = @transform_0, window_bounds = array<i64: 1, 16, 16, 4>}, {pipeline_mode = #tpu.pipeline_mode<synchronous>, transform_indices = @transform_1, window_bounds = array<i64: 36, 32>}, {pipeline_mode = #tpu.pipeline_mode<synchronous>, transform_indices = @transform_2, window_bounds = array<i64: 1, 32>}, {pipeline_mode = #tpu.pipeline_mode<synchronous>, transform_indices = @transform_3, window_bounds = array<i64: 288, 32>}, {pipeline_mode = #tpu.pipeline_mode<synchronous>, transform_indices = @transform_4, window_bounds = array<i64: 1, 32>}, {transform_indices = @transform_5, window_bounds = array<i64: 1, 144, 32>}]} {
    %c0 = arith.constant 0 : index
    %c0_0 = arith.constant 0 : index
    %c0_1 = arith.constant 0 : index
    %c0_2 = arith.constant 0 : index
    %0 = vector.load %arg1[%c0, %c0_0, %c0_1, %c0_2] : memref<1x16x16x4xf32, #tpu.memory_space<vmem>>, vector<1x16x16x4xf32>
    %1 = vector.shape_cast %0 : vector<1x16x16x4xf32> to vector<16x16x4xf32>
    %c0_3 = arith.constant 0 : index
    %c0_4 = arith.constant 0 : index
    %2 = vector.load %arg2[%c0_3, %c0_4] : memref<36x32xbf16, #tpu.memory_space<vmem>>, vector<36x32xbf16>
    %c0_5 = arith.constant 0 : index
    %c0_6 = arith.constant 0 : index
    %3 = vector.load %arg3[%c0_5, %c0_6] : memref<1x32xf32, #tpu.memory_space<vmem>>, vector<1x32xf32>
    %cst = arith.constant 0.000000e+00 : f32
    %4 = vector.broadcast %cst : f32 to vector<196x32xf32>
    %5 = vector.extract_strided_slice %1 {offsets = [0, 0, 0], sizes = [14, 14, 4], strides = [1, 1, 1]} : vector<16x16x4xf32> to vector<14x14x4xf32>
    %6 = vector.shape_cast %5 : vector<14x14x4xf32> to vector<196x4xf32>
    %7 = vector.extract_strided_slice %2 {offsets = [0, 0], sizes = [4, 32], strides = [1, 1]} : vector<36x32xbf16> to vector<4x32xbf16>
    %8 = arith.truncf %6 : vector<196x4xf32> to vector<196x4xbf16>
    %cst_7 = arith.constant dense<0.000000e+00> : vector<196x32xf32>
    %9 = tpu.matmul %8, %7, %cst_7 {dimension_numbers = #tpu.dot_dimension_numbers<[1], [0], [0], [1], [0, 0, 1, 1], [], []>} : vector<196x4xbf16>, vector<4x32xbf16>, vector<196x32xf32> -> vector<196x32xf32>
    %10 = arith.addf %4, %9 : vector<196x32xf32>
    %11 = vector.extract_strided_slice %1 {offsets = [0, 1, 0], sizes = [14, 14, 4], strides = [1, 1, 1]} : vector<16x16x4xf32> to vector<14x14x4xf32>
    %12 = vector.shape_cast %11 : vector<14x14x4xf32> to vector<196x4xf32>
    %13 = vector.extract_strided_slice %2 {offsets = [4, 0], sizes = [4, 32], strides = [1, 1]} : vector<36x32xbf16> to vector<4x32xbf16>
    %14 = arith.truncf %12 : vector<196x4xf32> to vector<196x4xbf16>
    %cst_8 = arith.constant dense<0.000000e+00> : vector<196x32xf32>
    %15 = tpu.matmul %14, %13, %cst_8 {dimension_numbers = #tpu.dot_dimension_numbers<[1], [0], [0], [1], [0, 0, 1, 1], [], []>} : vector<196x4xbf16>, vector<4x32xbf16>, vector<196x32xf32> -> vector<196x32xf32>
    %16 = arith.addf %10, %15 : vector<196x32xf32>
    %17 = vector.extract_strided_slice %1 {offsets = [0, 2, 0], sizes = [14, 14, 4], strides = [1, 1, 1]} : vector<16x16x4xf32> to vector<14x14x4xf32>
    %18 = vector.shape_cast %17 : vector<14x14x4xf32> to vector<196x4xf32>
    %19 = vector.extract_strided_slice %2 {offsets = [8, 0], sizes = [4, 32], strides = [1, 1]} : vector<36x32xbf16> to vector<4x32xbf16>
    %20 = arith.truncf %18 : vector<196x4xf32> to vector<196x4xbf16>
    %cst_9 = arith.constant dense<0.000000e+00> : vector<196x32xf32>
    %21 = tpu.matmul %20, %19, %cst_9 {dimension_numbers = #tpu.dot_dimension_numbers<[1], [0], [0], [1], [0, 0, 1, 1], [], []>} : vector<196x4xbf16>, vector<4x32xbf16>, vector<196x32xf32> -> vector<196x32xf32>
    %22 = arith.addf %16, %21 : vector<196x32xf32>
    %23 = vector.extract_strided_slice %1 {offsets = [1, 0, 0], sizes = [14, 14, 4], strides = [1, 1, 1]} : vector<16x16x4xf32> to vector<14x14x4xf32>
    %24 = vector.shape_cast %23 : vector<14x14x4xf32> to vector<196x4xf32>
    %25 = vector.extract_strided_slice %2 {offsets = [12, 0], sizes = [4, 32], strides = [1, 1]} : vector<36x32xbf16> to vector<4x32xbf16>
    %26 = arith.truncf %24 : vector<196x4xf32> to vector<196x4xbf16>
    %cst_10 = arith.constant dense<0.000000e+00> : vector<196x32xf32>
    %27 = tpu.matmul %26, %25, %cst_10 {dimension_numbers = #tpu.dot_dimension_numbers<[1], [0], [0], [1], [0, 0, 1, 1], [], []>} : vector<196x4xbf16>, vector<4x32xbf16>, vector<196x32xf32> -> vector<196x32xf32>
    %28 = arith.addf %22, %27 : vector<196x32xf32>
    %29 = vector.extract_strided_slice %1 {offsets = [1, 1, 0], sizes = [14, 14, 4], strides = [1, 1, 1]} : vector<16x16x4xf32> to vector<14x14x4xf32>
    %30 = vector.shape_cast %29 : vector<14x14x4xf32> to vector<196x4xf32>
    %31 = vector.extract_strided_slice %2 {offsets = [16, 0], sizes = [4, 32], strides = [1, 1]} : vector<36x32xbf16> to vector<4x32xbf16>
    %32 = arith.truncf %30 : vector<196x4xf32> to vector<196x4xbf16>
    %cst_11 = arith.constant dense<0.000000e+00> : vector<196x32xf32>
    %33 = tpu.matmul %32, %31, %cst_11 {dimension_numbers = #tpu.dot_dimension_numbers<[1], [0], [0], [1], [0, 0, 1, 1], [], []>} : vector<196x4xbf16>, vector<4x32xbf16>, vector<196x32xf32> -> vector<196x32xf32>
    %34 = arith.addf %28, %33 : vector<196x32xf32>
    %35 = vector.extract_strided_slice %1 {offsets = [1, 2, 0], sizes = [14, 14, 4], strides = [1, 1, 1]} : vector<16x16x4xf32> to vector<14x14x4xf32>
    %36 = vector.shape_cast %35 : vector<14x14x4xf32> to vector<196x4xf32>
    %37 = vector.extract_strided_slice %2 {offsets = [20, 0], sizes = [4, 32], strides = [1, 1]} : vector<36x32xbf16> to vector<4x32xbf16>
    %38 = arith.truncf %36 : vector<196x4xf32> to vector<196x4xbf16>
    %cst_12 = arith.constant dense<0.000000e+00> : vector<196x32xf32>
    %39 = tpu.matmul %38, %37, %cst_12 {dimension_numbers = #tpu.dot_dimension_numbers<[1], [0], [0], [1], [0, 0, 1, 1], [], []>} : vector<196x4xbf16>, vector<4x32xbf16>, vector<196x32xf32> -> vector<196x32xf32>
    %40 = arith.addf %34, %39 : vector<196x32xf32>
    %41 = vector.extract_strided_slice %1 {offsets = [2, 0, 0], sizes = [14, 14, 4], strides = [1, 1, 1]} : vector<16x16x4xf32> to vector<14x14x4xf32>
    %42 = vector.shape_cast %41 : vector<14x14x4xf32> to vector<196x4xf32>
    %43 = vector.extract_strided_slice %2 {offsets = [24, 0], sizes = [4, 32], strides = [1, 1]} : vector<36x32xbf16> to vector<4x32xbf16>
    %44 = arith.truncf %42 : vector<196x4xf32> to vector<196x4xbf16>
    %cst_13 = arith.constant dense<0.000000e+00> : vector<196x32xf32>
    %45 = tpu.matmul %44, %43, %cst_13 {dimension_numbers = #tpu.dot_dimension_numbers<[1], [0], [0], [1], [0, 0, 1, 1], [], []>} : vector<196x4xbf16>, vector<4x32xbf16>, vector<196x32xf32> -> vector<196x32xf32>
    %46 = arith.addf %40, %45 : vector<196x32xf32>
    %47 = vector.extract_strided_slice %1 {offsets = [2, 1, 0], sizes = [14, 14, 4], strides = [1, 1, 1]} : vector<16x16x4xf32> to vector<14x14x4xf32>
    %48 = vector.shape_cast %47 : vector<14x14x4xf32> to vector<196x4xf32>
    %49 = vector.extract_strided_slice %2 {offsets = [28, 0], sizes = [4, 32], strides = [1, 1]} : vector<36x32xbf16> to vector<4x32xbf16>
    %50 = arith.truncf %48 : vector<196x4xf32> to vector<196x4xbf16>
    %cst_14 = arith.constant dense<0.000000e+00> : vector<196x32xf32>
    %51 = tpu.matmul %50, %49, %cst_14 {dimension_numbers = #tpu.dot_dimension_numbers<[1], [0], [0], [1], [0, 0, 1, 1], [], []>} : vector<196x4xbf16>, vector<4x32xbf16>, vector<196x32xf32> -> vector<196x32xf32>
    %52 = arith.addf %46, %51 : vector<196x32xf32>
    %53 = vector.extract_strided_slice %1 {offsets = [2, 2, 0], sizes = [14, 14, 4], strides = [1, 1, 1]} : vector<16x16x4xf32> to vector<14x14x4xf32>
    %54 = vector.shape_cast %53 : vector<14x14x4xf32> to vector<196x4xf32>
    %55 = vector.extract_strided_slice %2 {offsets = [32, 0], sizes = [4, 32], strides = [1, 1]} : vector<36x32xbf16> to vector<4x32xbf16>
    %56 = arith.truncf %54 : vector<196x4xf32> to vector<196x4xbf16>
    %cst_15 = arith.constant dense<0.000000e+00> : vector<196x32xf32>
    %57 = tpu.matmul %56, %55, %cst_15 {dimension_numbers = #tpu.dot_dimension_numbers<[1], [0], [0], [1], [0, 0, 1, 1], [], []>} : vector<196x4xbf16>, vector<4x32xbf16>, vector<196x32xf32> -> vector<196x32xf32>
    %58 = arith.addf %52, %57 : vector<196x32xf32>
    %59 = vector.broadcast %3 : vector<1x32xf32> to vector<196x32xf32>
    %60 = arith.addf %58, %59 : vector<196x32xf32>
    %cst_16 = arith.constant 0.000000e+00 : f32
    %61 = vector.broadcast %cst_16 : f32 to vector<196x32xf32>
    %62 = arith.maximumf %60, %61 : vector<196x32xf32>
    %63 = vector.shape_cast %62 : vector<196x32xf32> to vector<14x14x32xf32>
    %c0_17 = arith.constant 0 : index
    %c0_18 = arith.constant 0 : index
    %64 = vector.load %arg4[%c0_17, %c0_18] : memref<288x32xbf16, #tpu.memory_space<vmem>>, vector<288x32xbf16>
    %c0_19 = arith.constant 0 : index
    %c0_20 = arith.constant 0 : index
    %65 = vector.load %arg5[%c0_19, %c0_20] : memref<1x32xf32, #tpu.memory_space<vmem>>, vector<1x32xf32>
    %cst_21 = arith.constant 0.000000e+00 : f32
    %66 = vector.broadcast %cst_21 : f32 to vector<144x32xf32>
    %67 = vector.extract_strided_slice %63 {offsets = [0, 0, 0], sizes = [12, 12, 32], strides = [1, 1, 1]} : vector<14x14x32xf32> to vector<12x12x32xf32>
    %68 = vector.shape_cast %67 : vector<12x12x32xf32> to vector<144x32xf32>
    %69 = vector.extract_strided_slice %64 {offsets = [0, 0], sizes = [32, 32], strides = [1, 1]} : vector<288x32xbf16> to vector<32x32xbf16>
    %70 = arith.truncf %68 : vector<144x32xf32> to vector<144x32xbf16>
    %cst_22 = arith.constant dense<0.000000e+00> : vector<144x32xf32>
    %71 = tpu.matmul %70, %69, %cst_22 {dimension_numbers = #tpu.dot_dimension_numbers<[1], [0], [0], [1], [0, 0, 1, 1], [], []>} : vector<144x32xbf16>, vector<32x32xbf16>, vector<144x32xf32> -> vector<144x32xf32>
    %72 = arith.addf %66, %71 : vector<144x32xf32>
    %73 = vector.extract_strided_slice %63 {offsets = [0, 1, 0], sizes = [12, 12, 32], strides = [1, 1, 1]} : vector<14x14x32xf32> to vector<12x12x32xf32>
    %74 = vector.shape_cast %73 : vector<12x12x32xf32> to vector<144x32xf32>
    %75 = vector.extract_strided_slice %64 {offsets = [32, 0], sizes = [32, 32], strides = [1, 1]} : vector<288x32xbf16> to vector<32x32xbf16>
    %76 = arith.truncf %74 : vector<144x32xf32> to vector<144x32xbf16>
    %cst_23 = arith.constant dense<0.000000e+00> : vector<144x32xf32>
    %77 = tpu.matmul %76, %75, %cst_23 {dimension_numbers = #tpu.dot_dimension_numbers<[1], [0], [0], [1], [0, 0, 1, 1], [], []>} : vector<144x32xbf16>, vector<32x32xbf16>, vector<144x32xf32> -> vector<144x32xf32>
    %78 = arith.addf %72, %77 : vector<144x32xf32>
    %79 = vector.extract_strided_slice %63 {offsets = [0, 2, 0], sizes = [12, 12, 32], strides = [1, 1, 1]} : vector<14x14x32xf32> to vector<12x12x32xf32>
    %80 = vector.shape_cast %79 : vector<12x12x32xf32> to vector<144x32xf32>
    %81 = vector.extract_strided_slice %64 {offsets = [64, 0], sizes = [32, 32], strides = [1, 1]} : vector<288x32xbf16> to vector<32x32xbf16>
    %82 = arith.truncf %80 : vector<144x32xf32> to vector<144x32xbf16>
    %cst_24 = arith.constant dense<0.000000e+00> : vector<144x32xf32>
    %83 = tpu.matmul %82, %81, %cst_24 {dimension_numbers = #tpu.dot_dimension_numbers<[1], [0], [0], [1], [0, 0, 1, 1], [], []>} : vector<144x32xbf16>, vector<32x32xbf16>, vector<144x32xf32> -> vector<144x32xf32>
    %84 = arith.addf %78, %83 : vector<144x32xf32>
    %85 = vector.extract_strided_slice %63 {offsets = [1, 0, 0], sizes = [12, 12, 32], strides = [1, 1, 1]} : vector<14x14x32xf32> to vector<12x12x32xf32>
    %86 = vector.shape_cast %85 : vector<12x12x32xf32> to vector<144x32xf32>
    %87 = vector.extract_strided_slice %64 {offsets = [96, 0], sizes = [32, 32], strides = [1, 1]} : vector<288x32xbf16> to vector<32x32xbf16>
    %88 = arith.truncf %86 : vector<144x32xf32> to vector<144x32xbf16>
    %cst_25 = arith.constant dense<0.000000e+00> : vector<144x32xf32>
    %89 = tpu.matmul %88, %87, %cst_25 {dimension_numbers = #tpu.dot_dimension_numbers<[1], [0], [0], [1], [0, 0, 1, 1], [], []>} : vector<144x32xbf16>, vector<32x32xbf16>, vector<144x32xf32> -> vector<144x32xf32>
    %90 = arith.addf %84, %89 : vector<144x32xf32>
    %91 = vector.extract_strided_slice %63 {offsets = [1, 1, 0], sizes = [12, 12, 32], strides = [1, 1, 1]} : vector<14x14x32xf32> to vector<12x12x32xf32>
    %92 = vector.shape_cast %91 : vector<12x12x32xf32> to vector<144x32xf32>
    %93 = vector.extract_strided_slice %64 {offsets = [128, 0], sizes = [32, 32], strides = [1, 1]} : vector<288x32xbf16> to vector<32x32xbf16>
    %94 = arith.truncf %92 : vector<144x32xf32> to vector<144x32xbf16>
    %cst_26 = arith.constant dense<0.000000e+00> : vector<144x32xf32>
    %95 = tpu.matmul %94, %93, %cst_26 {dimension_numbers = #tpu.dot_dimension_numbers<[1], [0], [0], [1], [0, 0, 1, 1], [], []>} : vector<144x32xbf16>, vector<32x32xbf16>, vector<144x32xf32> -> vector<144x32xf32>
    %96 = arith.addf %90, %95 : vector<144x32xf32>
    %97 = vector.extract_strided_slice %63 {offsets = [1, 2, 0], sizes = [12, 12, 32], strides = [1, 1, 1]} : vector<14x14x32xf32> to vector<12x12x32xf32>
    %98 = vector.shape_cast %97 : vector<12x12x32xf32> to vector<144x32xf32>
    %99 = vector.extract_strided_slice %64 {offsets = [160, 0], sizes = [32, 32], strides = [1, 1]} : vector<288x32xbf16> to vector<32x32xbf16>
    %100 = arith.truncf %98 : vector<144x32xf32> to vector<144x32xbf16>
    %cst_27 = arith.constant dense<0.000000e+00> : vector<144x32xf32>
    %101 = tpu.matmul %100, %99, %cst_27 {dimension_numbers = #tpu.dot_dimension_numbers<[1], [0], [0], [1], [0, 0, 1, 1], [], []>} : vector<144x32xbf16>, vector<32x32xbf16>, vector<144x32xf32> -> vector<144x32xf32>
    %102 = arith.addf %96, %101 : vector<144x32xf32>
    %103 = vector.extract_strided_slice %63 {offsets = [2, 0, 0], sizes = [12, 12, 32], strides = [1, 1, 1]} : vector<14x14x32xf32> to vector<12x12x32xf32>
    %104 = vector.shape_cast %103 : vector<12x12x32xf32> to vector<144x32xf32>
    %105 = vector.extract_strided_slice %64 {offsets = [192, 0], sizes = [32, 32], strides = [1, 1]} : vector<288x32xbf16> to vector<32x32xbf16>
    %106 = arith.truncf %104 : vector<144x32xf32> to vector<144x32xbf16>
    %cst_28 = arith.constant dense<0.000000e+00> : vector<144x32xf32>
    %107 = tpu.matmul %106, %105, %cst_28 {dimension_numbers = #tpu.dot_dimension_numbers<[1], [0], [0], [1], [0, 0, 1, 1], [], []>} : vector<144x32xbf16>, vector<32x32xbf16>, vector<144x32xf32> -> vector<144x32xf32>
    %108 = arith.addf %102, %107 : vector<144x32xf32>
    %109 = vector.extract_strided_slice %63 {offsets = [2, 1, 0], sizes = [12, 12, 32], strides = [1, 1, 1]} : vector<14x14x32xf32> to vector<12x12x32xf32>
    %110 = vector.shape_cast %109 : vector<12x12x32xf32> to vector<144x32xf32>
    %111 = vector.extract_strided_slice %64 {offsets = [224, 0], sizes = [32, 32], strides = [1, 1]} : vector<288x32xbf16> to vector<32x32xbf16>
    %112 = arith.truncf %110 : vector<144x32xf32> to vector<144x32xbf16>
    %cst_29 = arith.constant dense<0.000000e+00> : vector<144x32xf32>
    %113 = tpu.matmul %112, %111, %cst_29 {dimension_numbers = #tpu.dot_dimension_numbers<[1], [0], [0], [1], [0, 0, 1, 1], [], []>} : vector<144x32xbf16>, vector<32x32xbf16>, vector<144x32xf32> -> vector<144x32xf32>
    %114 = arith.addf %108, %113 : vector<144x32xf32>
    %115 = vector.extract_strided_slice %63 {offsets = [2, 2, 0], sizes = [12, 12, 32], strides = [1, 1, 1]} : vector<14x14x32xf32> to vector<12x12x32xf32>
    %116 = vector.shape_cast %115 : vector<12x12x32xf32> to vector<144x32xf32>
    %117 = vector.extract_strided_slice %64 {offsets = [256, 0], sizes = [32, 32], strides = [1, 1]} : vector<288x32xbf16> to vector<32x32xbf16>
    %118 = arith.truncf %116 : vector<144x32xf32> to vector<144x32xbf16>
    %cst_30 = arith.constant dense<0.000000e+00> : vector<144x32xf32>
    %119 = tpu.matmul %118, %117, %cst_30 {dimension_numbers = #tpu.dot_dimension_numbers<[1], [0], [0], [1], [0, 0, 1, 1], [], []>} : vector<144x32xbf16>, vector<32x32xbf16>, vector<144x32xf32> -> vector<144x32xf32>
    %120 = arith.addf %114, %119 : vector<144x32xf32>
    %121 = vector.broadcast %65 : vector<1x32xf32> to vector<144x32xf32>
    %122 = arith.addf %120, %121 : vector<144x32xf32>
    %cst_31 = arith.constant 0.000000e+00 : f32
    %123 = vector.broadcast %cst_31 : f32 to vector<144x32xf32>
    %124 = arith.maximumf %122, %123 : vector<144x32xf32>
    %c0_32 = arith.constant 0 : index
    %c0_33 = arith.constant 0 : index
    %c0_34 = arith.constant 0 : index
    %125 = vector.load %arg6[%c0_32, %c0_33, %c0_34] : memref<1x144x32xf32, #tpu.memory_space<vmem>>, vector<1x144x32xf32>
    %126 = vector.shape_cast %125 : vector<1x144x32xf32> to vector<144x32xf32>
    %127 = vector.shape_cast %124 : vector<144x32xf32> to vector<1x144x32xf32>
    tpu.vector_store %arg6[%c0_32, %c0_33, %c0_34], %127 {strides = array<i32>} : memref<1x144x32xf32, #tpu.memory_space<vmem>>, vector<1x144x32xf32>,
    return
  }
  func.func @transform_0(%arg0: i32) -> (i32, i32, i32, i32) {
    %c0_i32 = arith.constant 0 : i32
    %c0_i32_0 = arith.constant 0 : i32
    %c0_i32_1 = arith.constant 0 : i32
    %c0_i32_2 = arith.constant 0 : i32
    return %arg0, %c0_i32, %c0_i32_0, %c0_i32_1 : i32, i32, i32, i32
  }
  func.func @transform_1(%arg0: i32) -> (i32, i32) {
    %c0_i32 = arith.constant 0 : i32
    %c0_i32_0 = arith.constant 0 : i32
    %c0_i32_1 = arith.constant 0 : i32
    return %c0_i32, %c0_i32_0 : i32, i32
  }
  func.func @transform_2(%arg0: i32) -> (i32, i32) {
    %c0_i32 = arith.constant 0 : i32
    %c0_i32_0 = arith.constant 0 : i32
    %c0_i32_1 = arith.constant 0 : i32
    return %c0_i32, %c0_i32_0 : i32, i32
  }
  func.func @transform_3(%arg0: i32) -> (i32, i32) {
    %c0_i32 = arith.constant 0 : i32
    %c0_i32_0 = arith.constant 0 : i32
    %c0_i32_1 = arith.constant 0 : i32
    return %c0_i32, %c0_i32_0 : i32, i32
  }
  func.func @transform_4(%arg0: i32) -> (i32, i32) {
    %c0_i32 = arith.constant 0 : i32
    %c0_i32_0 = arith.constant 0 : i32
    %c0_i32_1 = arith.constant 0 : i32
    return %c0_i32, %c0_i32_0 : i32, i32
  }
  func.func @transform_5(%arg0: i32) -> (i32, i32, i32) {
    %c0_i32 = arith.constant 0 : i32
    %c0_i32_0 = arith.constant 0 : i32
    %c0_i32_1 = arith.constant 0 : i32
    return %arg0, %c0_i32, %c0_i32_0 : i32, i32, i32
  }
}

</mosaic_0001>

<llo_original>
// kernel: block_forward.1
$region0: #{block_forward.1}
  #allocation0 [shape = 'u32[]', space=smem, size = 0x4, offset = 0x4, fixed_abs, tag = 'smem constant byte address 0x4 - core index']
  #allocation1 [shape = 'u32[144,128]{1,0:T(1,128)}', space=vmem, size = 0x12000, scoped, tag = 'internal scratch']
  %s0 = inlined_call_operand.vmem [shape: f32[2,16,16,4], index: 0, kind: input, shape index: {}]
  %s1 = inlined_call_operand.vmem [shape: bf16[36,32], index: 1, kind: input, shape index: {}]
  %s2 = inlined_call_operand.vmem [shape: f32[1,32], index: 2, kind: input, shape index: {}]
  %s3 = inlined_call_operand.vmem [shape: bf16[288,32], index: 3, kind: input, shape index: {}]
  %s4 = inlined_call_operand.vmem [shape: f32[1,32], index: 4, kind: input, shape index: {}]
  %s5 = inlined_call_operand.vmem [shape: f32[2,144,32], index: 5, kind: output, shape index: {}]
  %s6 = sld [smem:[#allocation0]]
  $region53: #{block_forward.1} parent=0
    _
  %s8 = ssub.s32 1, %s6
  %s9 = scalar_select 0, %s8, %s6
  loop: start=0, step=1, limit=4
  $region2: #{block_forward.1} parent=0 // loop_pre_header
    _
  $region3: #{block_forward.1} parent=0 // loop_header
    %s11 = sphi 0, %s15
    %p12 = scmp.ge.s32.totalorder %s11, 4
    %s21 = sphi 0, %s23
    %s24 = sphi 0, %s21
    %s25 = sphi 0, %s24
    %s41 = sphi 0, %s25
    %s45 = sphi 0, %s45
    %s47 = sphi 0, %s45
    %s48 = sphi 0, %s47
    %s62 = sphi 0, %s48
    %s66 = sphi 0, %s66
    %s68 = sphi 0, %s66
    %s69 = sphi 0, %s68
    %s83 = sphi 0, %s69
    %s87 = sphi 0, %s87
    %s89 = sphi 0, %s87
    %s90 = sphi 0, %s89
    %s104 = sphi 0, %s90
    %s108 = sphi 0, %s108
    %s110 = sphi 0, %s108
    %s111 = sphi 0, %s110
    %s125 = sphi 0, %s111
    %s131 = sphi 0, %s133
    %s134 = sphi 0, %s131
    %s135 = sphi 0, %s134
    %s151 = sphi 0, %s135
  $region4: #{block_forward.1} parent=0 // loop_header_branch
    %14 = sbr.rel (%p12) target = $region8
  $region5: #{block_forward.1} parent=0 // loop_body
    %s16 = ssub.s32 %s11, 1
    %s17 = ssub.s32 %s11, 2
    %s18 = sadd.s32 %s11, 1
    %s19 = ssub.s32 %s11, %s18
    %p20 = scmp.eq.s32.totalorder %s19, 0
    %s22 = sadd.s32 %s21, 1
    %s23 = scalar_select %p20, %s21, %s22
    %p26 = pneg %p20
    %p27 = scmp.eq.s32.totalorder %s11, 1
    %p28 = por %p26, %p27
    %p29 = scmp.ne.s32.totalorder %s21, %s24
    %p30 = scmp.eq.s32.totalorder %s11, 0
    %p31 = por %p29, %p30
    %p32 = scmp.ne.s32.totalorder %s21, %s24
    %p33 = scmp.eq.s32.totalorder %s16, 1
    %p34 = por %p32, %p33
    %p35 = scmp.ne.s32.totalorder %s24, %s25
    %p36 = scmp.eq.s32.totalorder %s16, 0
    %p37 = por %p35, %p36
    %p38 = scmp.ne.s32.totalorder %s24, %s25
    %p39 = scmp.eq.s32.totalorder %s17, 1
    %p40 = por %p38, %p39
    %p42 = scmp.ne.s32.totalorder %s25, %s41
    %p43 = scmp.eq.s32.totalorder %s17, 0
    %p44 = por %p42, %p43
    %s46 = sadd.s32 %s45, 1
    %p49 = scmp.eq.s32.totalorder %s11, 1
    %p50 = scmp.ne.s32.totalorder %s45, %s47
    %p51 = scmp.eq.s32.totalorder %s11, 0
    %p52 = por %p50, %p51
    %p53 = scmp.ne.s32.totalorder %s45, %s47
    %p54 = scmp.eq.s32.totalorder %s16, 1
    %p55 = por %p53, %p54
    %p56 = scmp.ne.s32.totalorder %s47, %s48
    %p57 = scmp.eq.s32.totalorder %s16, 0
    %p58 = por %p56, %p57
    %p59 = scmp.ne.s32.totalorder %s47, %s48
    %p60 = scmp.eq.s32.totalorder %s17, 1
    %p61 = por %p59, %p60
    %p63 = scmp.ne.s32.totalorder %s48, %s62
    %p64 = scmp.eq.s32.totalorder %s17, 0
    %p65 = por %p63, %p64
    %s67 = sadd.s32 %s66, 1
    %p70 = scmp.eq.s32.totalorder %s11, 1
    %p71 = scmp.ne.s32.totalorder %s66, %s68
    %p72 = scmp.eq.s32.totalorder %s11, 0
    %p73 = por %p71, %p72
    %p74 = scmp.ne.s32.totalorder %s66, %s68
    %p75 = scmp.eq.s32.totalorder %s16, 1
    %p76 = por %p74, %p75
    %p77 = scmp.ne.s32.totalorder %s68, %s69
    %p78 = scmp.eq.s32.totalorder %s16, 0
    %p79 = por %p77, %p78
    %p80 = scmp.ne.s32.totalorder %s68, %s69
    %p81 = scmp.eq.s32.totalorder %s17, 1
    %p82 = por %p80, %p81
    %p84 = scmp.ne.s32.totalorder %s69, %s83
    %p85 = scmp.eq.s32.totalorder %s17, 0
    %p86 = por %p84, %p85
    %s88 = sadd.s32 %s87, 1
    %p91 = scmp.eq.s32.totalorder %s11, 1
    %p92 = scmp.ne.s32.totalorder %s87, %s89
    %p93 = scmp.eq.s32.totalorder %s11, 0
    %p94 = por %p92, %p93
    %p95 = scmp.ne.s32.totalorder %s87, %s89
    %p96 = scmp.eq.s32.totalorder %s16, 1
    %p97 = por %p95, %p96
    %p98 = scmp.ne.s32.totalorder %s89, %s90
    %p99 = scmp.eq.s32.totalorder %s16, 0
    %p100 = por %p98, %p99
    %p101 = scmp.ne.s32.totalorder %s89, %s90
    %p102 = scmp.eq.s32.totalorder %s17, 1
    %p103 = por %p101, %p102
    %p105 = scmp.ne.s32.totalorder %s90, %s104
    %p106 = scmp.eq.s32.totalorder %s17, 0
    %p107 = por %p105, %p106
    %s109 = sadd.s32 %s108, 1
    %p112 = scmp.eq.s32.totalorder %s11, 1
    %p113 = scmp.ne.s32.totalorder %s108, %s110
    %p114 = scmp.eq.s32.totalorder %s11, 0
    %p115 = por %p113, %p114
    %p116 = scmp.ne.s32.totalorder %s108, %s110
    %p117 = scmp.eq.s32.totalorder %s16, 1
    %p118 = por %p116, %p117
    %p119 = scmp.ne.s32.totalorder %s110, %s111
    %p120 = scmp.eq.s32.totalorder %s16, 0
    %p121 = por %p119, %p120
    %p122 = scmp.ne.s32.totalorder %s110, %s111
    %p123 = scmp.eq.s32.totalorder %s17, 1
    %p124 = por %p122, %p123
    %p126 = scmp.ne.s32.totalorder %s111, %s125
    %p127 = scmp.eq.s32.totalorder %s17, 0
    %p128 = por %p126, %p127
    %s129 = ssub.s32 %s11, %s18
    %p130 = scmp.eq.s32.totalorder %s129, 0
    %s132 = sadd.s32 %s131, 1
    %s133 = scalar_select %p130, %s131, %s132
    %p136 = pneg %p130
    %p137 = scmp.eq.s32.totalorder %s11, 1
    %p138 = por %p136, %p137
    %p139 = scmp.ne.s32.totalorder %s131, %s134
    %p140 = scmp.eq.s32.totalorder %s11, 0
    %p141 = por %p139, %p140
    %p142 = scmp.ne.s32.totalorder %s131, %s134
    %p143 = scmp.eq.s32.totalorder %s16, 1
    %p144 = por %p142, %p143
    %p145 = scmp.ne.s32.totalorder %s134, %s135
    %p146 = scmp.eq.s32.totalorder %s16, 0
    %p147 = por %p145, %p146
    %p148 = scmp.ne.s32.totalorder %s134, %s135
    %p149 = scmp.eq.s32.totalorder %s17, 1
    %p150 = por %p148, %p149
    %p152 = scmp.ne.s32.totalorder %s135, %s151
    %p153 = scmp.eq.s32.totalorder %s17, 0
    %p154 = por %p152, %p153
    %p155 = scmp.le.s32.totalorder 1, %s11
    %p156 = scmp.lt.s32.totalorder %s11, 3
    %p157 = pnand %p155, %p156
    %p158 = pneg %p157
    // Predicated region
    $region9: #{block_forward.1} parent=5 // pred_check
      _
    $region10: #{block_forward.1} parent=5 // pred_check_branch
      %160 = sbr.rel (%p157) target = $region12
    $region11: #{block_forward.1} parent=5 // pred_region
      %s161 = ssub.s32 %s11, 1
      // Predicated region
      $region13: #{block_forward.1} parent=11 // pred_check
        %p162 = pneg %p58
      $region14: #{block_forward.1} parent=11 // pred_check_branch
        %164 = sbr.rel (%p162) target = $region16
      $region15: #{block_forward.1} parent=11 // pred_region
        _
      $region16: #{block_forward.1} parent=11 // pred_fallthru
        _
      // Predicated region
      $region17: #{block_forward.1} parent=11 // pred_check
        %p165 = pneg %p79
      $region18: #{block_forward.1} parent=11 // pred_check_branch
        %167 = sbr.rel (%p165) target = $region20
      $region19: #{block_forward.1} parent=11 // pred_region
        _
      $region20: #{block_forward.1} parent=11 // pred_fallthru
        _
      // Predicated region
      $region21: #{block_forward.1} parent=11 // pred_check
        %p168 = pneg %p100
      $region22: #{block_forward.1} parent=11 // pred_check_branch
        %170 = sbr.rel (%p168) target = $region24
      $region23: #{block_forward.1} parent=11 // pred_region
        _
      $region24: #{block_forward.1} parent=11 // pred_fallthru
        _
      // Predicated region
      $region25: #{block_forward.1} parent=11 // pred_check
        %p171 = pneg %p121
      $region26: #{block_forward.1} parent=11 // pred_check_branch
        %173 = sbr.rel (%p171) target = $region28
      $region27: #{block_forward.1} parent=11 // pred_region
        _
      $region28: #{block_forward.1} parent=11 // pred_fallthru
        _
    $region12: #{block_forward.1} parent=5 // pred_fallthru
      _
    %p174 = scmp.lt.s32.totalorder %s11, 2
    // Predicated region
    $region29: #{block_forward.1} parent=5 // pred_check
      %p175 = pneg %p174
    $region30: #{block_forward.1} parent=5 // pred_check_branch
      %177 = sbr.rel (%p175) target = $region32
    $region31: #{block_forward.1} parent=5 // pred_region
      // Predicated region
      $region33: #{block_forward.1} parent=31 // pred_check
        %p178 = pneg %p31
      $region34: #{block_forward.1} parent=31 // pred_check_branch
        %180 = sbr.rel (%p178) target = $region36
      $region35: #{block_forward.1} parent=31 // pred_region
        %p181 = scmp.lt.s32.totalorder %s11, 1
        %s182 = scalar_select %p181, %s11, 1
        %s183 = smul.addr %s182, 32
        %s184 = smul.addr %s183, 8
        %s185 = scalar_lea.vmem %s0, %s184
      $region36: #{block_forward.1} parent=31 // pred_fallthru
        _
    $region32: #{block_forward.1} parent=5 // pred_fallthru
      _
    %p186 = scmp.le.s32.totalorder 1, %s11
    %p187 = scmp.lt.s32.totalorder %s11, 3
    %p188 = pnand %p186, %p187
    %p189 = pneg %p188
    // Predicated region
    $region37: #{block_forward.1} parent=5 // pred_check
      _
    $region38: #{block_forward.1} parent=5 // pred_check_branch
      %191 = sbr.rel (%p188) target = $region40
    $region39: #{block_forward.1} parent=5 // pred_region
      %s192 = ssub.s32 %s11, 1
      %p193 = scmp.lt.s32.totalorder %s16, 1
      %s194 = scalar_select %p193, %s16, 1
      %s195 = smul.addr %s194, 32
      %s196 = smul.addr %s195, 8
      %s197 = scalar_lea.vmem %s0, %s196
      %p198 = pneg %p37
      %p199 = pneg %p34
      %p200 = pneg %p58
      %p201 = pneg %p55
      %p202 = pneg %p79
      %p203 = pneg %p76
      %p204 = pneg %p100
      %p205 = pneg %p97
      %p206 = pneg %p121
      %p207 = pneg %p118
      %p208 = pneg %p147
      %p209 = pneg %p144
      %p210 = scmp.lt.s32.totalorder %s16, 1
      %s211 = scalar_select %p210, %s16, 1
      %s212 = smul.addr %s211, 18
      %s213 = smul.addr %s212, 8
      %s214 = scalar_lea.vmem %s5, %s213
      %p215 = scmp.lt.s32.totalorder %s16, 1
      %s216 = scalar_select %p215, %s16, 1
      %s217 = smul.addr %s216, 32
      %s218 = smul.addr %s217, 8
      %s219 = scalar_lea.vmem %s0, %s218
      %p220 = scmp.lt.s32.totalorder %s16, 1
      %s221 = scalar_select %p220, %s16, 1
      %s222 = smul.addr %s221, 18
      %s223 = smul.addr %s222, 8
      %s224 = scalar_lea.vmem %s5, %s223
      %v226 = vld [vmem:[%s219] sm:$0xff]
      %v227 = vld [vmem:[%s219 + $0x8] sm:$0xff]
      %v228 = vld [vmem:[%s219 + $0x10] sm:$0xff]
      %v229 = vld [vmem:[%s219 + $0x18] sm:$0xff]
      %v230 = vld [vmem:[%s219 + $0x20] sm:$0xff]
      %v231 = vld [vmem:[%s219 + $0x28] sm:$0xff]
      %v232 = vld [vmem:[%s219 + $0x30] sm:$0xff]
      %v233 = vld [vmem:[%s219 + $0x38] sm:$0xff]
      %v234 = vld [vmem:[%s219 + $0x40] sm:$0xff]
      %v235 = vld [vmem:[%s219 + $0x48] sm:$0xff]
      %v236 = vld [vmem:[%s219 + $0x50] sm:$0xff]
      %v237 = vld [vmem:[%s219 + $0x58] sm:$0xff]
      %v238 = vld [vmem:[%s219 + $0x60] sm:$0xff]
      %v239 = vld [vmem:[%s219 + $0x68] sm:$0xff]
      %v240 = vld [vmem:[%s219 + $0x70] sm:$0xff]
      %v241 = vld [vmem:[%s219 + $0x78] sm:$0xff]
      %v242 = vld [vmem:[%s219 + $0x80] sm:$0xff]
      %v243 = vld [vmem:[%s219 + $0x88] sm:$0xff]
      %v244 = vld [vmem:[%s219 + $0x90] sm:$0xff]
      %v245 = vld [vmem:[%s219 + $0x98] sm:$0xff]
      %v246 = vld [vmem:[%s219 + $0xa0] sm:$0xff]
      %v247 = vld [vmem:[%s219 + $0xa8] sm:$0xff]
      %v248 = vld [vmem:[%s219 + $0xb0] sm:$0xff]
      %v249 = vld [vmem:[%s219 + $0xb8] sm:$0xff]
      %v250 = vld [vmem:[%s219 + $0xc0] sm:$0xff]
      %v251 = vld [vmem:[%s219 + $0xc8] sm:$0xff]
      %v252 = vld [vmem:[%s219 + $0xd0] sm:$0xff]
      %v253 = vld [vmem:[%s219 + $0xd8] sm:$0xff]
      %v254 = vld [vmem:[%s219 + $0xe0] sm:$0xff]
      %v255 = vld [vmem:[%s219 + $0xe8] sm:$0xff]
      %v256 = vld [vmem:[%s219 + $0xf0] sm:$0xff]
      %v257 = vld [vmem:[%s219 + $0xf8] sm:$0xff]
      %v258 = vld [vmem:[%s1] sm:$0xf]
      %v259 = vld [vmem:[%s1 + $0x4] sm:$0xf]
      %v260 = vld [vmem:[%s1 + $0x8] sm:$0xf]
      %v261 = vld [vmem:[%s1 + $0xc] sm:$0xf]
      %v262 = vld [vmem:[%s1 + $0x10] sm:$0x3]
      %v263 = vld [vmem:[%s2] sm:$0x1]
      %v292 = vcombine.high %v226, %v226
      %v294 = vunpack.c.l.s4 1983009808
      %v295 = vunpack.c.0.s8 %v294
      %v296 = vlaneseq
      %v297 = vshrl.u32 %v296, 7
      %v298 = vsub.s32 %v295, %v297
      %v299 = vrot.slane %v226, %v298
      %v301 = vunpack.c.l.s4 1983009808
      %v302 = vunpack.c.0.s8 %v301
      %v303 = vlaneseq
      %v304 = vshrl.u32 %v303, 7
      %v305 = vsub.s32 %v302, %v304
      %v306 = vrot.slane %v292, %v305
      %v307 = vcombine.high %v299, %v299
      %v308 = vcombine.high %v306, %v306
      %v309 = vcombine.high %v227, %v227
      %v311 = vunpack.c.l.s4 1983009808
      %v312 = vunpack.c.0.s8 %v311
      %v313 = vlaneseq
      %v314 = vshrl.u32 %v313, 7
      %v315 = vsub.s32 %v312, %v314
      %v316 = vrot.slane %v227, %v315
      %v318 = vunpack.c.l.s4 1983009808
      %v319 = vunpack.c.0.s8 %v318
      %v320 = vlaneseq
      %v321 = vshrl.u32 %v320, 7
      %v322 = vsub.s32 %v319, %v321
      %v323 = vrot.slane %v309, %v322
      %v324 = vcombine.high %v316, %v316
      %v325 = vcombine.high %v228, %v228
      %v327 = vunpack.c.l.s4 1983009808
      %v328 = vunpack.c.0.s8 %v327
      %v329 = vlaneseq
      %v330 = vshrl.u32 %v329, 7
      %v331 = vsub.s32 %v328, %v330
      %v332 = vrot.slane %v228, %v331
      %v334 = vunpack.c.l.s4 1983009808
      %v335 = vunpack.c.0.s8 %v334
      %v336 = vlaneseq
      %v337 = vshrl.u32 %v336, 7
      %v338 = vsub.s32 %v335, %v337
      %v339 = vrot.slane %v325, %v338
      %v340 = vcombine.high %v332, %v332
      %v341 = vcombine.high %v339, %v339
      %v342 = vcombine.high %v229, %v229
      %v344 = vunpack.c.l.s4 1983009808
      %v345 = vunpack.c.0.s8 %v344
      %v346 = vlaneseq
      %v347 = vshrl.u32 %v346, 7
      %v348 = vsub.s32 %v345, %v347
      %v349 = vrot.slane %v229, %v348
      %v351 = vunpack.c.l.s4 1983009808
      %v352 = vunpack.c.0.s8 %v351
      %v353 = vlaneseq
      %v354 = vshrl.u32 %v353, 7
      %v355 = vsub.s32 %v352, %v354
      %v356 = vrot.slane %v342, %v355
      %v357 = vcombine.high %v349, %v349
      %v358 = vcombine.high %v230, %v230
      %v360 = vunpack.c.l.s4 1983009808
      %v361 = vunpack.c.0.s8 %v360
      %v362 = vlaneseq
      %v363 = vshrl.u32 %v362, 7
      %v364 = vsub.s32 %v361, %v363
      %v365 = vrot.slane %v230, %v364
      %v367 = vunpack.c.l.s4 1983009808
      %v368 = vunpack.c.0.s8 %v367
      %v369 = vlaneseq
      %v370 = vshrl.u32 %v369, 7
      %v371 = vsub.s32 %v368, %v370
      %v372 = vrot.slane %v358, %v371
      %v373 = vcombine.high %v365, %v365
      %v374 = vcombine.high %v372, %v372
      %v375 = vcombine.high %v231, %v231
      %v377 = vunpack.c.l.s4 1983009808
      %v378 = vunpack.c.0.s8 %v377
      %v379 = vlaneseq
      %v380 = vshrl.u32 %v379, 7
      %v381 = vsub.s32 %v378, %v380
      %v382 = vrot.slane %v231, %v381
      %v384 = vunpack.c.l.s4 1983009808
      %v385 = vunpack.c.0.s8 %v384
      %v386 = vlaneseq
      %v387 = vshrl.u32 %v386, 7
      %v388 = vsub.s32 %v385, %v387
      %v389 = vrot.slane %v375, %v388
      %v390 = vcombine.high %v382, %v382
      %v391 = vcombine.high %v232, %v232
      %v393 = vunpack.c.l.s4 1983009808
      %v394 = vunpack.c.0.s8 %v393
      %v395 = vlaneseq
      %v396 = vshrl.u32 %v395, 7
      %v397 = vsub.s32 %v394, %v396
      %v398 = vrot.slane %v232, %v397
      %v400 = vunpack.c.l.s4 1983009808
      %v401 = vunpack.c.0.s8 %v400
      %v402 = vlaneseq
      %v403 = vshrl.u32 %v402, 7
      %v404 = vsub.s32 %v401, %v403
      %v405 = vrot.slane %v391, %v404
      %v406 = vcombine.high %v398, %v398
      %v407 = vcombine.high %v405, %v405
      %v408 = vcombine.high %v233, %v233
      %v410 = vunpack.c.l.s4 1983009808
      %v411 = vunpack.c.0.s8 %v410
      %v412 = vlaneseq
      %v413 = vshrl.u32 %v412, 7
      %v414 = vsub.s32 %v411, %v413
      %v415 = vrot.slane %v233, %v414
      %v417 = vunpack.c.l.s4 1983009808
      %v418 = vunpack.c.0.s8 %v417
      %v419 = vlaneseq
      %v420 = vshrl.u32 %v419, 7
      %v421 = vsub.s32 %v418, %v420
      %v422 = vrot.slane %v408, %v421
      %v423 = vcombine.high %v415, %v415
      %v424 = vcombine.high %v234, %v234
      %v426 = vunpack.c.l.s4 1983009808
      %v427 = vunpack.c.0.s8 %v426
      %v428 = vlaneseq
      %v429 = vshrl.u32 %v428, 7
      %v430 = vsub.s32 %v427, %v429
      %v431 = vrot.slane %v234, %v430
      %v433 = vunpack.c.l.s4 1983009808
      %v434 = vunpack.c.0.s8 %v433
      %v435 = vlaneseq
      %v436 = vshrl.u32 %v435, 7
      %v437 = vsub.s32 %v434, %v436
      %v438 = vrot.slane %v424, %v437
      %v439 = vcombine.high %v431, %v431
      %v440 = vcombine.high %v438, %v438
      %v441 = vcombine.high %v235, %v235
      %v443 = vunpack.c.l.s4 1983009808
      %v444 = vunpack.c.0.s8 %v443
      %v445 = vlaneseq
      %v446 = vshrl.u32 %v445, 7
      %v447 = vsub.s32 %v444, %v446
      %v448 = vrot.slane %v235, %v447
      %v450 = vunpack.c.l.s4 1983009808
      %v451 = vunpack.c.0.s8 %v450
      %v452 = vlaneseq
      %v453 = vshrl.u32 %v452, 7
      %v454 = vsub.s32 %v451, %v453
      %v455 = vrot.slane %v441, %v454
      %v456 = vcombine.high %v448, %v448
      %v457 = vcombine.high %v236, %v236
      %v459 = vunpack.c.l.s4 1983009808
      %v460 = vunpack.c.0.s8 %v459
      %v461 = vlaneseq
      %v462 = vshrl.u32 %v461, 7
      %v463 = vsub.s32 %v460, %v462
      %v464 = vrot.slane %v236, %v463
      %v466 = vunpack.c.l.s4 1983009808
      %v467 = vunpack.c.0.s8 %v466
      %v468 = vlaneseq
      %v469 = vshrl.u32 %v468, 7
      %v470 = vsub.s32 %v467, %v469
      %v471 = vrot.slane %v457, %v470
      %v472 = vcombine.high %v464, %v464
      %v473 = vcombine.high %v471, %v471
      %v474 = vcombine.high %v237, %v237
      %v476 = vunpack.c.l.s4 1983009808
      %v477 = vunpack.c.0.s8 %v476
      %v478 = vlaneseq
      %v479 = vshrl.u32 %v478, 7
      %v480 = vsub.s32 %v477, %v479
      %v481 = vrot.slane %v237, %v480
      %v483 = vunpack.c.l.s4 1983009808
      %v484 = vunpack.c.0.s8 %v483
      %v485 = vlaneseq
      %v486 = vshrl.u32 %v485, 7
      %v487 = vsub.s32 %v484, %v486
      %v488 = vrot.slane %v474, %v487
      %v489 = vcombine.high %v481, %v481
      %v490 = vcombine.high %v238, %v238
      %v492 = vunpack.c.l.s4 1983009808
      %v493 = vunpack.c.0.s8 %v492
      %v494 = vlaneseq
      %v495 = vshrl.u32 %v494, 7
      %v496 = vsub.s32 %v493, %v495
      %v497 = vrot.slane %v238, %v496
      %v499 = vunpack.c.l.s4 1983009808
      %v500 = vunpack.c.0.s8 %v499
      %v501 = vlaneseq
      %v502 = vshrl.u32 %v501, 7
      %v503 = vsub.s32 %v500, %v502
      %v504 = vrot.slane %v490, %v503
      %v505 = vcombine.high %v497, %v497
      %v506 = vcombine.high %v504, %v504
      %v507 = vcombine.high %v239, %v239
      %v509 = vunpack.c.l.s4 1983009808
      %v510 = vunpack.c.0.s8 %v509
      %v511 = vlaneseq
      %v512 = vshrl.u32 %v511, 7
      %v513 = vsub.s32 %v510, %v512
      %v514 = vrot.slane %v239, %v513
      %v516 = vunpack.c.l.s4 1983009808
      %v517 = vunpack.c.0.s8 %v516
      %v518 = vlaneseq
      %v519 = vshrl.u32 %v518, 7
      %v520 = vsub.s32 %v517, %v519
      %v521 = vrot.slane %v507, %v520
      %v522 = vcombine.high %v514, %v514
      %v523 = vcombine.high %v240, %v240
      %v525 = vunpack.c.l.s4 1983009808
      %v526 = vunpack.c.0.s8 %v525
      %v527 = vlaneseq
      %v528 = vshrl.u32 %v527, 7
      %v529 = vsub.s32 %v526, %v528
      %v530 = vrot.slane %v240, %v529
      %v532 = vunpack.c.l.s4 1983009808
      %v533 = vunpack.c.0.s8 %v532
      %v534 = vlaneseq
      %v535 = vshrl.u32 %v534, 7
      %v536 = vsub.s32 %v533, %v535
      %v537 = vrot.slane %v523, %v536
      %v538 = vcombine.high %v530, %v530
      %v539 = vcombine.high %v537, %v537
      %v540 = vcombine.high %v241, %v241
      %v542 = vunpack.c.l.s4 1983009808
      %v543 = vunpack.c.0.s8 %v542
      %v544 = vlaneseq
      %v545 = vshrl.u32 %v544, 7
      %v546 = vsub.s32 %v543, %v545
      %v547 = vrot.slane %v241, %v546
      %v549 = vunpack.c.l.s4 1983009808
      %v550 = vunpack.c.0.s8 %v549
      %v551 = vlaneseq
      %v552 = vshrl.u32 %v551, 7
      %v553 = vsub.s32 %v550, %v552
      %v554 = vrot.slane %v540, %v553
      %v555 = vcombine.high %v547, %v547
      %v556 = vcombine.high %v242, %v242
      %v558 = vunpack.c.l.s4 1983009808
      %v559 = vunpack.c.0.s8 %v558
      %v560 = vlaneseq
      %v561 = vshrl.u32 %v560, 7
      %v562 = vsub.s32 %v559, %v561
      %v563 = vrot.slane %v242, %v562
      %v565 = vunpack.c.l.s4 1983009808
      %v566 = vunpack.c.0.s8 %v565
      %v567 = vlaneseq
      %v568 = vshrl.u32 %v567, 7
      %v569 = vsub.s32 %v566, %v568
      %v570 = vrot.slane %v556, %v569
      %v571 = vcombine.high %v563, %v563
      %v572 = vcombine.high %v570, %v570
      %v573 = vcombine.high %v243, %v243
      %v575 = vunpack.c.l.s4 1983009808
      %v576 = vunpack.c.0.s8 %v575
      %v577 = vlaneseq
      %v578 = vshrl.u32 %v577, 7
      %v579 = vsub.s32 %v576, %v578
      %v580 = vrot.slane %v243, %v579
      %v582 = vunpack.c.l.s4 1983009808
      %v583 = vunpack.c.0.s8 %v582
      %v584 = vlaneseq
      %v585 = vshrl.u32 %v584, 7
      %v586 = vsub.s32 %v583, %v585
      %v587 = vrot.slane %v573, %v586
      %v588 = vcombine.high %v580, %v580
      %v589 = vcombine.high %v244, %v244
      %v591 = vunpack.c.l.s4 1983009808
      %v592 = vunpack.c.0.s8 %v591
      %v593 = vlaneseq
      %v594 = vshrl.u32 %v593, 7
      %v595 = vsub.s32 %v592, %v594
      %v596 = vrot.slane %v244, %v595
      %v598 = vunpack.c.l.s4 1983009808
      %v599 = vunpack.c.0.s8 %v598
      %v600 = vlaneseq
      %v601 = vshrl.u32 %v600, 7
      %v602 = vsub.s32 %v599, %v601
      %v603 = vrot.slane %v589, %v602
      %v604 = vcombine.high %v596, %v596
      %v605 = vcombine.high %v603, %v603
      %v606 = vcombine.high %v245, %v245
      %v608 = vunpack.c.l.s4 1983009808
      %v609 = vunpack.c.0.s8 %v608
      %v610 = vlaneseq
      %v611 = vshrl.u32 %v610, 7
      %v612 = vsub.s32 %v609, %v611
      %v613 = vrot.slane %v245, %v612
      %v615 = vunpack.c.l.s4 1983009808
      %v616 = vunpack.c.0.s8 %v615
      %v617 = vlaneseq
      %v618 = vshrl.u32 %v617, 7
      %v619 = vsub.s32 %v616, %v618
      %v620 = vrot.slane %v606, %v619
      %v621 = vcombine.high %v613, %v613
      %v622 = vcombine.high %v246, %v246
      %v624 = vunpack.c.l.s4 1983009808
      %v625 = vunpack.c.0.s8 %v624
      %v626 = vlaneseq
      %v627 = vshrl.u32 %v626, 7
      %v628 = vsub.s32 %v625, %v627
      %v629 = vrot.slane %v246, %v628
      %v631 = vunpack.c.l.s4 1983009808
      %v632 = vunpack.c.0.s8 %v631
      %v633 = vlaneseq
      %v634 = vshrl.u32 %v633, 7
      %v635 = vsub.s32 %v632, %v634
      %v636 = vrot.slane %v622, %v635
      %v637 = vcombine.high %v629, %v629
      %v638 = vcombine.high %v636, %v636
      %v639 = vcombine.high %v247, %v247
      %v641 = vunpack.c.l.s4 1983009808
      %v642 = vunpack.c.0.s8 %v641
      %v643 = vlaneseq
      %v644 = vshrl.u32 %v643, 7
      %v645 = vsub.s32 %v642, %v644
      %v646 = vrot.slane %v247, %v645
      %v648 = vunpack.c.l.s4 1983009808
      %v649 = vunpack.c.0.s8 %v648
      %v650 = vlaneseq
      %v651 = vshrl.u32 %v650, 7
      %v652 = vsub.s32 %v649, %v651
      %v653 = vrot.slane %v639, %v652
      %v654 = vcombine.high %v646, %v646
      %v655 = vcombine.high %v248, %v248
      %v657 = vunpack.c.l.s4 1983009808
      %v658 = vunpack.c.0.s8 %v657
      %v659 = vlaneseq
      %v660 = vshrl.u32 %v659, 7
      %v661 = vsub.s32 %v658, %v660
      %v662 = vrot.slane %v248, %v661
      %v664 = vunpack.c.l.s4 1983009808
      %v665 = vunpack.c.0.s8 %v664
      %v666 = vlaneseq
      %v667 = vshrl.u32 %v666, 7
      %v668 = vsub.s32 %v665, %v667
      %v669 = vrot.slane %v655, %v668
      %v670 = vcombine.high %v662, %v662
      %v671 = vcombine.high %v669, %v669
      %v672 = vcombine.high %v249, %v249
      %v674 = vunpack.c.l.s4 1983009808
      %v675 = vunpack.c.0.s8 %v674
      %v676 = vlaneseq
      %v677 = vshrl.u32 %v676, 7
      %v678 = vsub.s32 %v675, %v677
      %v679 = vrot.slane %v249, %v678
      %v681 = vunpack.c.l.s4 1983009808
      %v682 = vunpack.c.0.s8 %v681
      %v683 = vlaneseq
      %v684 = vshrl.u32 %v683, 7
      %v685 = vsub.s32 %v682, %v684
      %v686 = vrot.slane %v672, %v685
      %v687 = vcombine.high %v679, %v679
      %v688 = vcombine.high %v250, %v250
      %v690 = vunpack.c.l.s4 1983009808
      %v691 = vunpack.c.0.s8 %v690
      %v692 = vlaneseq
      %v693 = vshrl.u32 %v692, 7
      %v694 = vsub.s32 %v691, %v693
      %v695 = vrot.slane %v250, %v694
      %v697 = vunpack.c.l.s4 1983009808
      %v698 = vunpack.c.0.s8 %v697
      %v699 = vlaneseq
      %v700 = vshrl.u32 %v699, 7
      %v701 = vsub.s32 %v698, %v700
      %v702 = vrot.slane %v688, %v701
      %v703 = vcombine.high %v695, %v695
      %v704 = vcombine.high %v702, %v702
      %v705 = vcombine.high %v251, %v251
      %v707 = vunpack.c.l.s4 1983009808
      %v708 = vunpack.c.0.s8 %v707
      %v709 = vlaneseq
      %v710 = vshrl.u32 %v709, 7
      %v711 = vsub.s32 %v708, %v710
      %v712 = vrot.slane %v251, %v711
      %v714 = vunpack.c.l.s4 1983009808
      %v715 = vunpack.c.0.s8 %v714
      %v716 = vlaneseq
      %v717 = vshrl.u32 %v716, 7
      %v718 = vsub.s32 %v715, %v717
      %v719 = vrot.slane %v705, %v718
      %v720 = vcombine.high %v712, %v712
      %v721 = vcombine.high %v252, %v252
      %v723 = vunpack.c.l.s4 1983009808
      %v724 = vunpack.c.0.s8 %v723
      %v725 = vlaneseq
      %v726 = vshrl.u32 %v725, 7
      %v727 = vsub.s32 %v724, %v726
      %v728 = vrot.slane %v252, %v727
      %v730 = vunpack.c.l.s4 1983009808
      %v731 = vunpack.c.0.s8 %v730
      %v732 = vlaneseq
      %v733 = vshrl.u32 %v732, 7
      %v734 = vsub.s32 %v731, %v733
      %v735 = vrot.slane %v721, %v734
      %v736 = vcombine.high %v728, %v728
      %v737 = vcombine.high %v735, %v735
      %v738 = vcombine.high %v253, %v253
      %v740 = vunpack.c.l.s4 1983009808
      %v741 = vunpack.c.0.s8 %v740
      %v742 = vlaneseq
      %v743 = vshrl.u32 %v742, 7
      %v744 = vsub.s32 %v741, %v743
      %v745 = vrot.slane %v253, %v744
      %v747 = vunpack.c.l.s4 1983009808
      %v748 = vunpack.c.0.s8 %v747
      %v749 = vlaneseq
      %v750 = vshrl.u32 %v749, 7
      %v751 = vsub.s32 %v748, %v750
      %v752 = vrot.slane %v738, %v751
      %v753 = vcombine.high %v745, %v745
      %v754 = vcombine.low %v299, %v307
      %v755 = vcombine.low %v306, %v308
      %v757 = vunpack.c.l.s4 1983009808
      %v758 = vunpack.c.0.s8 %v757
      %v759 = vlaneseq
      %v760 = vshrl.u32 %v759, 7
      %v761 = vsub.s32 %v758, %v760
      %v762 = vrot.slane %v754, %v761
      %v764 = vunpack.c.l.s4 1983009808
      %v765 = vunpack.c.0.s8 %v764
      %v766 = vlaneseq
      %v767 = vshrl.u32 %v766, 7
      %v768 = vsub.s32 %v765, %v767
      %v769 = vrot.slane %v755, %v768
      %v770 = vcombine.low %v762, %v769
      %v771 = vcombine.low %v316, %v324
      %v772 = vcombine.low %v323, %v332
      %v774 = vunpack.c.l.s4 1983009808
      %v775 = vunpack.c.0.s8 %v774
      %v776 = vlaneseq
      %v777 = vshrl.u32 %v776, 7
      %v778 = vsub.s32 %v775, %v777
      %v779 = vrot.slane %v771, %v778
      %v781 = vunpack.c.l.s4 1983009808
      %v782 = vunpack.c.0.s8 %v781
      %v783 = vlaneseq
      %v784 = vshrl.u32 %v783, 7
      %v785 = vsub.s32 %v782, %v784
      %v786 = vrot.slane %v772, %v785
      %v787 = vcombine.low %v779, %v786
      %v788 = vcombine.low %v340, %v339
      %v789 = vcombine.low %v341, %v349
      %v791 = vunpack.c.l.s4 1983009808
      %v792 = vunpack.c.0.s8 %v791
      %v793 = vlaneseq
      %v794 = vshrl.u32 %v793, 7
      %v795 = vsub.s32 %v792, %v794
      %v796 = vrot.slane %v788, %v795
      %v798 = vunpack.c.l.s4 1983009808
      %v799 = vunpack.c.0.s8 %v798
      %v800 = vlaneseq
      %v801 = vshrl.u32 %v800, 7
      %v802 = vsub.s32 %v799, %v801
      %v803 = vrot.slane %v789, %v802
      %v804 = vcombine.low %v796, %v803
      %v805 = vcombine.low %v357, %v356
      %v806 = vcombine.low %v365, %v373
      %v808 = vunpack.c.l.s4 1983009808
      %v809 = vunpack.c.0.s8 %v808
      %v810 = vlaneseq
      %v811 = vshrl.u32 %v810, 7
      %v812 = vsub.s32 %v809, %v811
      %v813 = vrot.slane %v805, %v812
      %v815 = vunpack.c.l.s4 1983009808
      %v816 = vunpack.c.0.s8 %v815
      %v817 = vlaneseq
      %v818 = vshrl.u32 %v817, 7
      %v819 = vsub.s32 %v816, %v818
      %v820 = vrot.slane %v806, %v819
      %v821 = vcombine.low %v813, %v820
      %v822 = vcombine.low %v372, %v374
      %v823 = vcombine.low %v382, %v390
      %v825 = vunpack.c.l.s4 1983009808
      %v826 = vunpack.c.0.s8 %v825
      %v827 = vlaneseq
      %v828 = vshrl.u32 %v827, 7
      %v829 = vsub.s32 %v826, %v828
      %v830 = vrot.slane %v822, %v829
      %v832 = vunpack.c.l.s4 1983009808
      %v833 = vunpack.c.0.s8 %v832
      %v834 = vlaneseq
      %v835 = vshrl.u32 %v834, 7
      %v836 = vsub.s32 %v833, %v835
      %v837 = vrot.slane %v823, %v836
      %v838 = vcombine.low %v830, %v837
      %v839 = vcombine.low %v389, %v398
      %v840 = vcombine.low %v406, %v405
      %v842 = vunpack.c.l.s4 1983009808
      %v843 = vunpack.c.0.s8 %v842
      %v844 = vlaneseq
      %v845 = vshrl.u32 %v844, 7
      %v846 = vsub.s32 %v843, %v845
      %v847 = vrot.slane %v839, %v846
      %v849 = vunpack.c.l.s4 1983009808
      %v850 = vunpack.c.0.s8 %v849
      %v851 = vlaneseq
      %v852 = vshrl.u32 %v851, 7
      %v853 = vsub.s32 %v850, %v852
      %v854 = vrot.slane %v840, %v853
      %v855 = vcombine.low %v847, %v854
      %v856 = vcombine.low %v407, %v415
      %v857 = vcombine.low %v423, %v422
      %v859 = vunpack.c.l.s4 1983009808
      %v860 = vunpack.c.0.s8 %v859
      %v861 = vlaneseq
      %v862 = vshrl.u32 %v861, 7
      %v863 = vsub.s32 %v860, %v862
      %v864 = vrot.slane %v856, %v863
      %v866 = vunpack.c.l.s4 1983009808
      %v867 = vunpack.c.0.s8 %v866
      %v868 = vlaneseq
      %v869 = vshrl.u32 %v868, 7
      %v870 = vsub.s32 %v867, %v869
      %v871 = vrot.slane %v857, %v870
      %v872 = vcombine.low %v864, %v871
      %v873 = vcombine.low %v431, %v439
      %v874 = vcombine.low %v438, %v440
      %v876 = vunpack.c.l.s4 1983009808
      %v877 = vunpack.c.0.s8 %v876
      %v878 = vlaneseq
      %v879 = vshrl.u32 %v878, 7
      %v880 = vsub.s32 %v877, %v879
      %v881 = vrot.slane %v873, %v880
      %v883 = vunpack.c.l.s4 1983009808
      %v884 = vunpack.c.0.s8 %v883
      %v885 = vlaneseq
      %v886 = vshrl.u32 %v885, 7
      %v887 = vsub.s32 %v884, %v886
      %v888 = vrot.slane %v874, %v887
      %v889 = vcombine.low %v881, %v888
      %v890 = vcombine.low %v448, %v456
      %v891 = vcombine.low %v455, %v464
      %v893 = vunpack.c.l.s4 1983009808
      %v894 = vunpack.c.0.s8 %v893
      %v895 = vlaneseq
      %v896 = vshrl.u32 %v895, 7
      %v897 = vsub.s32 %v894, %v896
      %v898 = vrot.slane %v890, %v897
      %v900 = vunpack.c.l.s4 1983009808
      %v901 = vunpack.c.0.s8 %v900
      %v902 = vlaneseq
      %v903 = vshrl.u32 %v902, 7
      %v904 = vsub.s32 %v901, %v903
      %v905 = vrot.slane %v891, %v904
      %v906 = vcombine.low %v898, %v905
      %v907 = vcombine.low %v472, %v471
      %v908 = vcombine.low %v473, %v481
      %v910 = vunpack.c.l.s4 1983009808
      %v911 = vunpack.c.0.s8 %v910
      %v912 = vlaneseq
      %v913 = vshrl.u32 %v912, 7
      %v914 = vsub.s32 %v911, %v913
      %v915 = vrot.slane %v907, %v914
      %v917 = vunpack.c.l.s4 1983009808
      %v918 = vunpack.c.0.s8 %v917
      %v919 = vlaneseq
      %v920 = vshrl.u32 %v919, 7
      %v921 = vsub.s32 %v918, %v920
      %v922 = vrot.slane %v908, %v921
      %v923 = vcombine.low %v915, %v922
      %v924 = vcombine.low %v489, %v488
      %v925 = vcombine.low %v497, %v505
      %v927 = vunpack.c.l.s4 1983009808
      %v928 = vunpack.c.0.s8 %v927
      %v929 = vlaneseq
      %v930 = vshrl.u32 %v929, 7
      %v931 = vsub.s32 %v928, %v930
      %v932 = vrot.slane %v924, %v931
      %v934 = vunpack.c.l.s4 1983009808
      %v935 = vunpack.c.0.s8 %v934
      %v936 = vlaneseq
      %v937 = vshrl.u32 %v936, 7
      %v938 = vsub.s32 %v935, %v937
      %v939 = vrot.slane %v925, %v938
      %v940 = vcombine.low %v932, %v939
      %v941 = vcombine.low %v504, %v506
      %v942 = vcombine.low %v514, %v522
      %v944 = vunpack.c.l.s4 1983009808
      %v945 = vunpack.c.0.s8 %v944
      %v946 = vlaneseq
      %v947 = vshrl.u32 %v946, 7
      %v948 = vsub.s32 %v945, %v947
      %v949 = vrot.slane %v941, %v948
      %v951 = vunpack.c.l.s4 1983009808
      %v952 = vunpack.c.0.s8 %v951
      %v953 = vlaneseq
      %v954 = vshrl.u32 %v953, 7
      %v955 = vsub.s32 %v952, %v954
      %v956 = vrot.slane %v942, %v955
      %v957 = vcombine.low %v949, %v956
      %v958 = vcombine.low %v521, %v530
      %v959 = vcombine.low %v538, %v537
      %v961 = vunpack.c.l.s4 1983009808
      %v962 = vunpack.c.0.s8 %v961
      %v963 = vlaneseq
      %v964 = vshrl.u32 %v963, 7
      %v965 = vsub.s32 %v962, %v964
      %v966 = vrot.slane %v958, %v965
      %v968 = vunpack.c.l.s4 1983009808
      %v969 = vunpack.c.0.s8 %v968
      %v970 = vlaneseq
      %v971 = vshrl.u32 %v970, 7
      %v972 = vsub.s32 %v969, %v971
      %v973 = vrot.slane %v959, %v972
      %v974 = vcombine.low %v966, %v973
      %v975 = vcombine.low %v539, %v547
      %v976 = vcombine.low %v555, %v554
      %v978 = vunpack.c.l.s4 1983009808
      %v979 = vunpack.c.0.s8 %v978
      %v980 = vlaneseq
      %v981 = vshrl.u32 %v980, 7
      %v982 = vsub.s32 %v979, %v981
      %v983 = vrot.slane %v975, %v982
      %v985 = vunpack.c.l.s4 1983009808
      %v986 = vunpack.c.0.s8 %v985
      %v987 = vlaneseq
      %v988 = vshrl.u32 %v987, 7
      %v989 = vsub.s32 %v986, %v988
      %v990 = vrot.slane %v976, %v989
      %v991 = vcombine.low %v983, %v990
      %v992 = vcombine.low %v563, %v571
      %v993 = vcombine.low %v570, %v572
      %v995 = vunpack.c.l.s4 1983009808
      %v996 = vunpack.c.0.s8 %v995
      %v997 = vlaneseq
      %v998 = vshrl.u32 %v997, 7
      %v999 = vsub.s32 %v996, %v998
      %v1000 = vrot.slane %v992, %v999
      %v1002 = vunpack.c.l.s4 1983009808
      %v1003 = vunpack.c.0.s8 %v1002
      %v1004 = vlaneseq
      %v1005 = vshrl.u32 %v1004, 7
      %v1006 = vsub.s32 %v1003, %v1005
      %v1007 = vrot.slane %v993, %v1006
      %v1008 = vcombine.low %v1000, %v1007
      %v1009 = vcombine.low %v580, %v588
      %v1010 = vcombine.low %v587, %v596
      %v1012 = vunpack.c.l.s4 1983009808
      %v1013 = vunpack.c.0.s8 %v1012
      %v1014 = vlaneseq
      %v1015 = vshrl.u32 %v1014, 7
      %v1016 = vsub.s32 %v1013, %v1015
      %v1017 = vrot.slane %v1009, %v1016
      %v1019 = vunpack.c.l.s4 1983009808
      %v1020 = vunpack.c.0.s8 %v1019
      %v1021 = vlaneseq
      %v1022 = vshrl.u32 %v1021, 7
      %v1023 = vsub.s32 %v1020, %v1022
      %v1024 = vrot.slane %v1010, %v1023
      %v1025 = vcombine.low %v1017, %v1024
      %v1026 = vcombine.low %v604, %v603
      %v1027 = vcombine.low %v605, %v613
      %v1029 = vunpack.c.l.s4 1983009808
      %v1030 = vunpack.c.0.s8 %v1029
      %v1031 = vlaneseq
      %v1032 = vshrl.u32 %v1031, 7
      %v1033 = vsub.s32 %v1030, %v1032
      %v1034 = vrot.slane %v1026, %v1033
      %v1036 = vunpack.c.l.s4 1983009808
      %v1037 = vunpack.c.0.s8 %v1036
      %v1038 = vlaneseq
      %v1039 = vshrl.u32 %v1038, 7
      %v1040 = vsub.s32 %v1037, %v1039
      %v1041 = vrot.slane %v1027, %v1040
      %v1042 = vcombine.low %v1034, %v1041
      %v1043 = vcombine.low %v621, %v620
      %v1044 = vcombine.low %v629, %v637
      %v1046 = vunpack.c.l.s4 1983009808
      %v1047 = vunpack.c.0.s8 %v1046
      %v1048 = vlaneseq
      %v1049 = vshrl.u32 %v1048, 7
      %v1050 = vsub.s32 %v1047, %v1049
      %v1051 = vrot.slane %v1043, %v1050
      %v1053 = vunpack.c.l.s4 1983009808
      %v1054 = vunpack.c.0.s8 %v1053
      %v1055 = vlaneseq
      %v1056 = vshrl.u32 %v1055, 7
      %v1057 = vsub.s32 %v1054, %v1056
      %v1058 = vrot.slane %v1044, %v1057
      %v1059 = vcombine.low %v1051, %v1058
      %v1060 = vcombine.low %v636, %v638
      %v1061 = vcombine.low %v646, %v654
      %v1063 = vunpack.c.l.s4 1983009808
      %v1064 = vunpack.c.0.s8 %v1063
      %v1065 = vlaneseq
      %v1066 = vshrl.u32 %v1065, 7
      %v1067 = vsub.s32 %v1064, %v1066
      %v1068 = vrot.slane %v1060, %v1067
      %v1070 = vunpack.c.l.s4 1983009808
      %v1071 = vunpack.c.0.s8 %v1070
      %v1072 = vlaneseq
      %v1073 = vshrl.u32 %v1072, 7
      %v1074 = vsub.s32 %v1071, %v1073
      %v1075 = vrot.slane %v1061, %v1074
      %v1076 = vcombine.low %v1068, %v1075
      %v1077 = vcombine.low %v653, %v662
      %v1078 = vcombine.low %v670, %v669
      %v1080 = vunpack.c.l.s4 1983009808
      %v1081 = vunpack.c.0.s8 %v1080
      %v1082 = vlaneseq
      %v1083 = vshrl.u32 %v1082, 7
      %v1084 = vsub.s32 %v1081, %v1083
      %v1085 = vrot.slane %v1077, %v1084
      %v1087 = vunpack.c.l.s4 1983009808
      %v1088 = vunpack.c.0.s8 %v1087
      %v1089 = vlaneseq
      %v1090 = vshrl.u32 %v1089, 7
      %v1091 = vsub.s32 %v1088, %v1090
      %v1092 = vrot.slane %v1078, %v1091
      %v1093 = vcombine.low %v1085, %v1092
      %v1094 = vcombine.low %v671, %v679
      %v1095 = vcombine.low %v687, %v686
      %v1097 = vunpack.c.l.s4 1983009808
      %v1098 = vunpack.c.0.s8 %v1097
      %v1099 = vlaneseq
      %v1100 = vshrl.u32 %v1099, 7
      %v1101 = vsub.s32 %v1098, %v1100
      %v1102 = vrot.slane %v1094, %v1101
      %v1104 = vunpack.c.l.s4 1983009808
      %v1105 = vunpack.c.0.s8 %v1104
      %v1106 = vlaneseq
      %v1107 = vshrl.u32 %v1106, 7
      %v1108 = vsub.s32 %v1105, %v1107
      %v1109 = vrot.slane %v1095, %v1108
      %v1110 = vcombine.low %v1102, %v1109
      %v1111 = vcombine.low %v695, %v703
      %v1112 = vcombine.low %v702, %v704
      %v1114 = vunpack.c.l.s4 1983009808
      %v1115 = vunpack.c.0.s8 %v1114
      %v1116 = vlaneseq
      %v1117 = vshrl.u32 %v1116, 7
      %v1118 = vsub.s32 %v1115, %v1117
      %v1119 = vrot.slane %v1111, %v1118
      %v1121 = vunpack.c.l.s4 1983009808
      %v1122 = vunpack.c.0.s8 %v1121
      %v1123 = vlaneseq
      %v1124 = vshrl.u32 %v1123, 7
      %v1125 = vsub.s32 %v1122, %v1124
      %v1126 = vrot.slane %v1112, %v1125
      %v1127 = vcombine.low %v1119, %v1126
      %v1128 = vcombine.low %v712, %v720
      %v1129 = vcombine.low %v719, %v728
      %v1131 = vunpack.c.l.s4 1983009808
      %v1132 = vunpack.c.0.s8 %v1131
      %v1133 = vlaneseq
      %v1134 = vshrl.u32 %v1133, 7
      %v1135 = vsub.s32 %v1132, %v1134
      %v1136 = vrot.slane %v1128, %v1135
      %v1138 = vunpack.c.l.s4 1983009808
      %v1139 = vunpack.c.0.s8 %v1138
      %v1140 = vlaneseq
      %v1141 = vshrl.u32 %v1140, 7
      %v1142 = vsub.s32 %v1139, %v1141
      %v1143 = vrot.slane %v1129, %v1142
      %v1144 = vcombine.low %v1136, %v1143
      %v1145 = vcombine.low %v736, %v735
      %v1146 = vcombine.low %v737, %v745
      %v1148 = vunpack.c.l.s4 1983009808
      %v1149 = vunpack.c.0.s8 %v1148
      %v1150 = vlaneseq
      %v1151 = vshrl.u32 %v1150, 7
      %v1152 = vsub.s32 %v1149, %v1151
      %v1153 = vrot.slane %v1145, %v1152
      %v1155 = vunpack.c.l.s4 1983009808
      %v1156 = vunpack.c.0.s8 %v1155
      %v1157 = vlaneseq
      %v1158 = vshrl.u32 %v1157, 7
      %v1159 = vsub.s32 %v1156, %v1158
      %v1160 = vrot.slane %v1146, %v1159
      %v1161 = vcombine.low %v1153, %v1160
      %v1162 = vcombine.low %v753, %v752
      %v1164 = vunpack.c.l.s4 1983009808
      %v1165 = vunpack.c.0.s8 %v1164
      %v1166 = vlaneseq
      %v1167 = vshrl.u32 %v1166, 7
      %v1168 = vsub.s32 %v1165, %v1167
      %v1169 = vrot.slane %v1162, %v1168
      %v1195 = vpack.c.bf16 %v787, %v770
      %v1196 = vpack.c.bf16 %v821, %v804
      %v1197 = vpack.c.bf16 %v855, %v838
      %v1198 = vpack.c.bf16 %v889, %v872
      %v1199 = vpack.c.bf16 %v923, %v906
      %v1200 = vpack.c.bf16 %v957, %v940
      %v1201 = vpack.c.bf16 %v991, %v974
      %v1202 = vpack.c.bf16 %v1025, %v1008
      %v1203 = vpack.c.bf16 %v1059, %v1042
      %v1204 = vpack.c.bf16 %v1093, %v1076
      %v1205 = vpack.c.bf16 %v1127, %v1110
      %v1206 = vpack.c.bf16 %v1161, %v1144
      %v1207 = vpack.c.bf16 %v1169, %v1169
      %v1208 = vcombine.high %v323, %v323
      %v1209 = vcombine.high %v356, %v356
      %v1210 = vcombine.high %v389, %v389
      %v1211 = vcombine.high %v422, %v422
      %v1212 = vcombine.high %v455, %v455
      %v1213 = vcombine.high %v488, %v488
      %v1214 = vcombine.high %v521, %v521
      %v1215 = vcombine.high %v554, %v554
      %v1216 = vcombine.high %v587, %v587
      %v1217 = vcombine.high %v620, %v620
      %v1218 = vcombine.high %v653, %v653
      %v1219 = vcombine.high %v686, %v686
      %v1220 = vcombine.high %v719, %v719
      %v1221 = vcombine.high %v752, %v752
      %vm1222 = vcmask 1040384
      %vm1223 = vcmask 1042434
      %vm1224 = vmor %vm1222, %vm1223
      %vm1225 = vcmask 1044484
      %vm1226 = vmor %vm1224, %vm1225
      %vm1227 = vcmask 1046534
      %vm1228 = vmor %vm1226, %vm1227
      %v1229 = vrot.slane %v299, 7
      %v1230 = vrot.slane %v1229, 2
      %v1231 = vrot.slane %v307, 7
      %v1232 = vsel %vm1228, %v1230, %v1231
      %v1233 = vrot.slane %v1231, 2
      %v1234 = vrot.slane %v306, 7
      %v1235 = vsel %vm1228, %v1233, %v1234
      %v1236 = vrot.slane %v1234, 2
      %v1237 = vrot.slane %v308, 7
      %v1238 = vsel %vm1228, %v1236, %v1237
      %v1239 = vrot.slane %v1237, 2
      %v1240 = vrot.slane %v316, 7
      %v1241 = vsel %vm1228, %v1239, %v1240
      %v1242 = vrot.slane %v1240, 2
      %v1243 = vrot.slane %v324, 7
      %v1244 = vsel %vm1228, %v1242, %v1243
      %v1245 = vrot.slane %v1243, 2
      %v1246 = vrot.slane %v323, 7
      %v1247 = vsel %vm1228, %v1245, %v1246
      %v1248 = vrot.slane %v1246, 2
      %v1249 = vrot.slane %v1208, 7
      %v1250 = vsel %vm1228, %v1248, %v1249
      %v1251 = vrot.slane %v332, 7
      %v1252 = vrot.slane %v1251, 2
      %v1253 = vrot.slane %v340, 7
      %v1254 = vsel %vm1228, %v1252, %v1253
      %v1255 = vrot.slane %v1253, 2
      %v1256 = vrot.slane %v339, 7
      %v1257 = vsel %vm1228, %v1255, %v1256
      %v1258 = vrot.slane %v1256, 2
      %v1259 = vrot.slane %v341, 7
      %v1260 = vsel %vm1228, %v1258, %v1259
      %v1261 = vrot.slane %v1259, 2
      %v1262 = vrot.slane %v349, 7
      %v1263 = vsel %vm1228, %v1261, %v1262
      %v1264 = vrot.slane %v1262, 2
      %v1265 = vrot.slane %v357, 7
      %v1266 = vsel %vm1228, %v1264, %v1265
      %v1267 = vrot.slane %v1265, 2
      %v1268 = vrot.slane %v356, 7
      %v1269 = vsel %vm1228, %v1267, %v1268
      %v1270 = vrot.slane %v1268, 2
      %v1271 = vrot.slane %v1209, 7
      %v1272 = vsel %vm1228, %v1270, %v1271
      %v1273 = vrot.slane %v365, 7
      %v1274 = vrot.slane %v1273, 2
      %v1275 = vrot.slane %v373, 7
      %v1276 = vsel %vm1228, %v1274, %v1275
      %v1277 = vrot.slane %v1275, 2
      %v1278 = vrot.slane %v372, 7
      %v1279 = vsel %vm1228, %v1277, %v1278
      %v1280 = vrot.slane %v1278, 2
      %v1281 = vrot.slane %v374, 7
      %v1282 = vsel %vm1228, %v1280, %v1281
      %v1283 = vrot.slane %v1281, 2
      %v1284 = vrot.slane %v382, 7
      %v1285 = vsel %vm1228, %v1283, %v1284
      %v1286 = vrot.slane %v1284, 2
      %v1287 = vrot.slane %v390, 7
      %v1288 = vsel %vm1228, %v1286, %v1287
      %v1289 = vrot.slane %v1287, 2
      %v1290 = vrot.slane %v389, 7
      %v1291 = vsel %vm1228, %v1289, %v1290
      %v1292 = vrot.slane %v1290, 2
      %v1293 = vrot.slane %v1210, 7
      %v1294 = vsel %vm1228, %v1292, %v1293
      %v1295 = vrot.slane %v398, 7
      %v1296 = vrot.slane %v1295, 2
      %v1297 = vrot.slane %v406, 7
      %v1298 = vsel %vm1228, %v1296, %v1297
      %v1299 = vrot.slane %v1297, 2
      %v1300 = vrot.slane %v405, 7
      %v1301 = vsel %vm1228, %v1299, %v1300
      %v1302 = vrot.slane %v1300, 2
      %v1303 = vrot.slane %v407, 7
      %v1304 = vsel %vm1228, %v1302, %v1303
      %v1305 = vrot.slane %v1303, 2
      %v1306 = vrot.slane %v415, 7
      %v1307 = vsel %vm1228, %v1305, %v1306
      %v1308 = vrot.slane %v1306, 2
      %v1309 = vrot.slane %v423, 7
      %v1310 = vsel %vm1228, %v1308, %v1309
      %v1311 = vrot.slane %v1309, 2
      %v1312 = vrot.slane %v422, 7
      %v1313 = vsel %vm1228, %v1311, %v1312
      %v1314 = vrot.slane %v1312, 2
      %v1315 = vrot.slane %v1211, 7
      %v1316 = vsel %vm1228, %v1314, %v1315
      %v1317 = vrot.slane %v431, 7
      %v1318 = vrot.slane %v1317, 2
      %v1319 = vrot.slane %v439, 7
      %v1320 = vsel %vm1228, %v1318, %v1319
      %v1321 = vrot.slane %v1319, 2
      %v1322 = vrot.slane %v438, 7
      %v1323 = vsel %vm1228, %v1321, %v1322
      %v1324 = vrot.slane %v1322, 2
      %v1325 = vrot.slane %v440, 7
      %v1326 = vsel %vm1228, %v1324, %v1325
      %v1327 = vrot.slane %v1325, 2
      %v1328 = vrot.slane %v448, 7
      %v1329 = vsel %vm1228, %v1327, %v1328
      %v1330 = vrot.slane %v1328, 2
      %v1331 = vrot.slane %v456, 7
      %v1332 = vsel %vm1228, %v1330, %v1331
      %v1333 = vrot.slane %v1331, 2
      %v1334 = vrot.slane %v455, 7
      %v1335 = vsel %vm1228, %v1333, %v1334
      %v1336 = vrot.slane %v1334, 2
      %v1337 = vrot.slane %v1212, 7
      %v1338 = vsel %vm1228, %v1336, %v1337
      %v1339 = vrot.slane %v464, 7
      %v1340 = vrot.slane %v1339, 2
      %v1341 = vrot.slane %v472, 7
      %v1342 = vsel %vm1228, %v1340, %v1341
      %v1343 = vrot.slane %v1341, 2
      %v1344 = vrot.slane %v471, 7
      %v1345 = vsel %vm1228, %v1343, %v1344
      %v1346 = vrot.slane %v1344, 2
      %v1347 = vrot.slane %v473, 7
      %v1348 = vsel %vm1228, %v1346, %v1347
      %v1349 = vrot.slane %v1347, 2
      %v1350 = vrot.slane %v481, 7
      %v1351 = vsel %vm1228, %v1349, %v1350
      %v1352 = vrot.slane %v1350, 2
      %v1353 = vrot.slane %v489, 7
      %v1354 = vsel %vm1228, %v1352, %v1353
      %v1355 = vrot.slane %v1353, 2
      %v1356 = vrot.slane %v488, 7
      %v1357 = vsel %vm1228, %v1355, %v1356
      %v1358 = vrot.slane %v1356, 2
      %v1359 = vrot.slane %v1213, 7
      %v1360 = vsel %vm1228, %v1358, %v1359
      %v1361 = vrot.slane %v497, 7
      %v1362 = vrot.slane %v1361, 2
      %v1363 = vrot.slane %v505, 7
      %v1364 = vsel %vm1228, %v1362, %v1363
      %v1365 = vrot.slane %v1363, 2
      %v1366 = vrot.slane %v504, 7
      %v1367 = vsel %vm1228, %v1365, %v1366
      %v1368 = vrot.slane %v1366, 2
      %v1369 = vrot.slane %v506, 7
      %v1370 = vsel %vm1228, %v1368, %v1369
      %v1371 = vrot.slane %v1369, 2
      %v1372 = vrot.slane %v514, 7
      %v1373 = vsel %vm1228, %v1371, %v1372
      %v1374 = vrot.slane %v1372, 2
      %v1375 = vrot.slane %v522, 7
      %v1376 = vsel %vm1228, %v1374, %v1375
      %v1377 = vrot.slane %v1375, 2
      %v1378 = vrot.slane %v521, 7
      %v1379 = vsel %vm1228, %v1377, %v1378
      %v1380 = vrot.slane %v1378, 2
      %v1381 = vrot.slane %v1214, 7
      %v1382 = vsel %vm1228, %v1380, %v1381
      %v1383 = vrot.slane %v530, 7
      %v1384 = vrot.slane %v1383, 2
      %v1385 = vrot.slane %v538, 7
      %v1386 = vsel %vm1228, %v1384, %v1385
      %v1387 = vrot.slane %v1385, 2
      %v1388 = vrot.slane %v537, 7
      %v1389 = vsel %vm1228, %v1387, %v1388
      %v1390 = vrot.slane %v1388, 2
      %v1391 = vrot.slane %v539, 7
      %v1392 = vsel %vm1228, %v1390, %v1391
      %v1393 = vrot.slane %v1391, 2
      %v1394 = vrot.slane %v547, 7
      %v1395 = vsel %vm1228, %v1393, %v1394
      %v1396 = vrot.slane %v1394, 2
      %v1397 = vrot.slane %v555, 7
      %v1398 = vsel %vm1228, %v1396, %v1397
      %v1399 = vrot.slane %v1397, 2
      %v1400 = vrot.slane %v554, 7
      %v1401 = vsel %vm1228, %v1399, %v1400
      %v1402 = vrot.slane %v1400, 2
      %v1403 = vrot.slane %v1215, 7
      %v1404 = vsel %vm1228, %v1402, %v1403
      %v1405 = vrot.slane %v563, 7
      %v1406 = vrot.slane %v1405, 2
      %v1407 = vrot.slane %v571, 7
      %v1408 = vsel %vm1228, %v1406, %v1407
      %v1409 = vrot.slane %v1407, 2
      %v1410 = vrot.slane %v570, 7
      %v1411 = vsel %vm1228, %v1409, %v1410
      %v1412 = vrot.slane %v1410, 2
      %v1413 = vrot.slane %v572, 7
      %v1414 = vsel %vm1228, %v1412, %v1413
      %v1415 = vrot.slane %v1413, 2
      %v1416 = vrot.slane %v580, 7
      %v1417 = vsel %vm1228, %v1415, %v1416
      %v1418 = vrot.slane %v1416, 2
      %v1419 = vrot.slane %v588, 7
      %v1420 = vsel %vm1228, %v1418, %v1419
      %v1421 = vrot.slane %v1419, 2
      %v1422 = vrot.slane %v587, 7
      %v1423 = vsel %vm1228, %v1421, %v1422
      %v1424 = vrot.slane %v1422, 2
      %v1425 = vrot.slane %v1216, 7
      %v1426 = vsel %vm1228, %v1424, %v1425
      %v1427 = vrot.slane %v596, 7
      %v1428 = vrot.slane %v1427, 2
      %v1429 = vrot.slane %v604, 7
      %v1430 = vsel %vm1228, %v1428, %v1429
      %v1431 = vrot.slane %v1429, 2
      %v1432 = vrot.slane %v603, 7
      %v1433 = vsel %vm1228, %v1431, %v1432
      %v1434 = vrot.slane %v1432, 2
      %v1435 = vrot.slane %v605, 7
      %v1436 = vsel %vm1228, %v1434, %v1435
      %v1437 = vrot.slane %v1435, 2
      %v1438 = vrot.slane %v613, 7
      %v1439 = vsel %vm1228, %v1437, %v1438
      %v1440 = vrot.slane %v1438, 2
      %v1441 = vrot.slane %v621, 7
      %v1442 = vsel %vm1228, %v1440, %v1441
      %v1443 = vrot.slane %v1441, 2
      %v1444 = vrot.slane %v620, 7
      %v1445 = vsel %vm1228, %v1443, %v1444
      %v1446 = vrot.slane %v1444, 2
      %v1447 = vrot.slane %v1217, 7
      %v1448 = vsel %vm1228, %v1446, %v1447
      %v1449 = vrot.slane %v629, 7
      %v1450 = vrot.slane %v1449, 2
      %v1451 = vrot.slane %v637, 7
      %v1452 = vsel %vm1228, %v1450, %v1451
      %v1453 = vrot.slane %v1451, 2
      %v1454 = vrot.slane %v636, 7
      %v1455 = vsel %vm1228, %v1453, %v1454
      %v1456 = vrot.slane %v1454, 2
      %v1457 = vrot.slane %v638, 7
      %v1458 = vsel %vm1228, %v1456, %v1457
      %v1459 = vrot.slane %v1457, 2
      %v1460 = vrot.slane %v646, 7
      %v1461 = vsel %vm1228, %v1459, %v1460
      %v1462 = vrot.slane %v1460, 2
      %v1463 = vrot.slane %v654, 7
      %v1464 = vsel %vm1228, %v1462, %v1463
      %v1465 = vrot.slane %v1463, 2
      %v1466 = vrot.slane %v653, 7
      %v1467 = vsel %vm1228, %v1465, %v1466
      %v1468 = vrot.slane %v1466, 2
      %v1469 = vrot.slane %v1218, 7
      %v1470 = vsel %vm1228, %v1468, %v1469
      %v1471 = vrot.slane %v662, 7
      %v1472 = vrot.slane %v1471, 2
      %v1473 = vrot.slane %v670, 7
      %v1474 = vsel %vm1228, %v1472, %v1473
      %v1475 = vrot.slane %v1473, 2
      %v1476 = vrot.slane %v669, 7
      %v1477 = vsel %vm1228, %v1475, %v1476
      %v1478 = vrot.slane %v1476, 2
      %v1479 = vrot.slane %v671, 7
      %v1480 = vsel %vm1228, %v1478, %v1479
      %v1481 = vrot.slane %v1479, 2
      %v1482 = vrot.slane %v679, 7
      %v1483 = vsel %vm1228, %v1481, %v1482
      %v1484 = vrot.slane %v1482, 2
      %v1485 = vrot.slane %v687, 7
      %v1486 = vsel %vm1228, %v1484, %v1485
      %v1487 = vrot.slane %v1485, 2
      %v1488 = vrot.slane %v686, 7
      %v1489 = vsel %vm1228, %v1487, %v1488
      %v1490 = vrot.slane %v1488, 2
      %v1491 = vrot.slane %v1219, 7
      %v1492 = vsel %vm1228, %v1490, %v1491
      %v1493 = vrot.slane %v695, 7
      %v1494 = vrot.slane %v1493, 2
      %v1495 = vrot.slane %v703, 7
      %v1496 = vsel %vm1228, %v1494, %v1495
      %v1497 = vrot.slane %v1495, 2
      %v1498 = vrot.slane %v702, 7
      %v1499 = vsel %vm1228, %v1497, %v1498
      %v1500 = vrot.slane %v1498, 2
      %v1501 = vrot.slane %v704, 7
      %v1502 = vsel %vm1228, %v1500, %v1501
      %v1503 = vrot.slane %v1501, 2
      %v1504 = vrot.slane %v712, 7
      %v1505 = vsel %vm1228, %v1503, %v1504
      %v1506 = vrot.slane %v1504, 2
      %v1507 = vrot.slane %v720, 7
      %v1508 = vsel %vm1228, %v1506, %v1507
      %v1509 = vrot.slane %v1507, 2
      %v1510 = vrot.slane %v719, 7
      %v1511 = vsel %vm1228, %v1509, %v1510
      %v1512 = vrot.slane %v1510, 2
      %v1513 = vrot.slane %v1220, 7
      %v1514 = vsel %vm1228, %v1512, %v1513
      %v1515 = vrot.slane %v728, 7
      %v1516 = vrot.slane %v1515, 2
      %v1517 = vrot.slane %v736, 7
      %v1518 = vsel %vm1228, %v1516, %v1517
      %v1519 = vrot.slane %v1517, 2
      %v1520 = vrot.slane %v735, 7
      %v1521 = vsel %vm1228, %v1519, %v1520
      %v1522 = vrot.slane %v1520, 2
      %v1523 = vrot.slane %v737, 7
      %v1524 = vsel %vm1228, %v1522, %v1523
      %v1525 = vrot.slane %v1523, 2
      %v1526 = vrot.slane %v745, 7
      %v1527 = vsel %vm1228, %v1525, %v1526
      %v1528 = vrot.slane %v1526, 2
      %v1529 = vrot.slane %v753, 7
      %v1530 = vsel %vm1228, %v1528, %v1529
      %v1531 = vrot.slane %v1529, 2
      %v1532 = vrot.slane %v752, 7
      %v1533 = vsel %vm1228, %v1531, %v1532
      %v1534 = vrot.slane %v1532, 2
      %v1535 = vrot.slane %v1221, 7
      %v1536 = vsel %vm1228, %v1534, %v1535
      %v1537 = vcombine.low %v1232, %v1235
      %v1538 = vcombine.low %v1238, %v1241
      %v1540 = vunpack.c.l.s4 1983009808
      %v1541 = vunpack.c.0.s8 %v1540
      %v1542 = vlaneseq
      %v1543 = vshrl.u32 %v1542, 7
      %v1544 = vsub.s32 %v1541, %v1543
      %v1545 = vrot.slane %v1537, %v1544
      %v1547 = vunpack.c.l.s4 1983009808
      %v1548 = vunpack.c.0.s8 %v1547
      %v1549 = vlaneseq
      %v1550 = vshrl.u32 %v1549, 7
      %v1551 = vsub.s32 %v1548, %v1550
      %v1552 = vrot.slane %v1538, %v1551
      %v1553 = vcombine.low %v1545, %v1552
      %v1554 = vcombine.low %v1244, %v1247
      %v1555 = vcombine.low %v1250, %v1254
      %v1557 = vunpack.c.l.s4 1983009808
      %v1558 = vunpack.c.0.s8 %v1557
      %v1559 = vlaneseq
      %v1560 = vshrl.u32 %v1559, 7
      %v1561 = vsub.s32 %v1558, %v1560
      %v1562 = vrot.slane %v1554, %v1561
      %v1564 = vunpack.c.l.s4 1983009808
      %v1565 = vunpack.c.0.s8 %v1564
      %v1566 = vlaneseq
      %v1567 = vshrl.u32 %v1566, 7
      %v1568 = vsub.s32 %v1565, %v1567
      %v1569 = vrot.slane %v1555, %v1568
      %v1570 = vcombine.low %v1562, %v1569
      %v1571 = vcombine.low %v1257, %v1260
      %v1572 = vcombine.low %v1263, %v1266
      %v1574 = vunpack.c.l.s4 1983009808
      %v1575 = vunpack.c.0.s8 %v1574
      %v1576 = vlaneseq
      %v1577 = vshrl.u32 %v1576, 7
      %v1578 = vsub.s32 %v1575, %v1577
      %v1579 = vrot.slane %v1571, %v1578
      %v1581 = vunpack.c.l.s4 1983009808
      %v1582 = vunpack.c.0.s8 %v1581
      %v1583 = vlaneseq
      %v1584 = vshrl.u32 %v1583, 7
      %v1585 = vsub.s32 %v1582, %v1584
      %v1586 = vrot.slane %v1572, %v1585
      %v1587 = vcombine.low %v1579, %v1586
      %v1588 = vcombine.low %v1269, %v1272
      %v1589 = vcombine.low %v1276, %v1279
      %v1591 = vunpack.c.l.s4 1983009808
      %v1592 = vunpack.c.0.s8 %v1591
      %v1593 = vlaneseq
      %v1594 = vshrl.u32 %v1593, 7
      %v1595 = vsub.s32 %v1592, %v1594
      %v1596 = vrot.slane %v1588, %v1595
      %v1598 = vunpack.c.l.s4 1983009808
      %v1599 = vunpack.c.0.s8 %v1598
      %v1600 = vlaneseq
      %v1601 = vshrl.u32 %v1600, 7
      %v1602 = vsub.s32 %v1599, %v1601
      %v1603 = vrot.slane %v1589, %v1602
      %v1604 = vcombine.low %v1596, %v1603
      %v1605 = vcombine.low %v1282, %v1285
      %v1606 = vcombine.low %v1288, %v1291
      %v1608 = vunpack.c.l.s4 1983009808
      %v1609 = vunpack.c.0.s8 %v1608
      %v1610 = vlaneseq
      %v1611 = vshrl.u32 %v1610, 7
      %v1612 = vsub.s32 %v1609, %v1611
      %v1613 = vrot.slane %v1605, %v1612
      %v1615 = vunpack.c.l.s4 1983009808
      %v1616 = vunpack.c.0.s8 %v1615
      %v1617 = vlaneseq
      %v1618 = vshrl.u32 %v1617, 7
      %v1619 = vsub.s32 %v1616, %v1618
      %v1620 = vrot.slane %v1606, %v1619
      %v1621 = vcombine.low %v1613, %v1620
      %v1622 = vcombine.low %v1294, %v1298
      %v1623 = vcombine.low %v1301, %v1304
      %v1625 = vunpack.c.l.s4 1983009808
      %v1626 = vunpack.c.0.s8 %v1625
      %v1627 = vlaneseq
      %v1628 = vshrl.u32 %v1627, 7
      %v1629 = vsub.s32 %v1626, %v1628
      %v1630 = vrot.slane %v1622, %v1629
      %v1632 = vunpack.c.l.s4 1983009808
      %v1633 = vunpack.c.0.s8 %v1632
      %v1634 = vlaneseq
      %v1635 = vshrl.u32 %v1634, 7
      %v1636 = vsub.s32 %v1633, %v1635
      %v1637 = vrot.slane %v1623, %v1636
      %v1638 = vcombine.low %v1630, %v1637
      %v1639 = vcombine.low %v1307, %v1310
      %v1640 = vcombine.low %v1313, %v1316
      %v1642 = vunpack.c.l.s4 1983009808
      %v1643 = vunpack.c.0.s8 %v1642
      %v1644 = vlaneseq
      %v1645 = vshrl.u32 %v1644, 7
      %v1646 = vsub.s32 %v1643, %v1645
      %v1647 = vrot.slane %v1639, %v1646
      %v1649 = vunpack.c.l.s4 1983009808
      %v1650 = vunpack.c.0.s8 %v1649
      %v1651 = vlaneseq
      %v1652 = vshrl.u32 %v1651, 7
      %v1653 = vsub.s32 %v1650, %v1652
      %v1654 = vrot.slane %v1640, %v1653
      %v1655 = vcombine.low %v1647, %v1654
      %v1656 = vcombine.low %v1320, %v1323
      %v1657 = vcombine.low %v1326, %v1329
      %v1659 = vunpack.c.l.s4 1983009808
      %v1660 = vunpack.c.0.s8 %v1659
      %v1661 = vlaneseq
      %v1662 = vshrl.u32 %v1661, 7
      %v1663 = vsub.s32 %v1660, %v1662
      %v1664 = vrot.slane %v1656, %v1663
      %v1666 = vunpack.c.l.s4 1983009808
      %v1667 = vunpack.c.0.s8 %v1666
      %v1668 = vlaneseq
      %v1669 = vshrl.u32 %v1668, 7
      %v1670 = vsub.s32 %v1667, %v1669
      %v1671 = vrot.slane %v1657, %v1670
      %v1672 = vcombine.low %v1664, %v1671
      %v1673 = vcombine.low %v1332, %v1335
      %v1674 = vcombine.low %v1338, %v1342
      %v1676 = vunpack.c.l.s4 1983009808
      %v1677 = vunpack.c.0.s8 %v1676
      %v1678 = vlaneseq
      %v1679 = vshrl.u32 %v1678, 7
      %v1680 = vsub.s32 %v1677, %v1679
      %v1681 = vrot.slane %v1673, %v1680
      %v1683 = vunpack.c.l.s4 1983009808
      %v1684 = vunpack.c.0.s8 %v1683
      %v1685 = vlaneseq
      %v1686 = vshrl.u32 %v1685, 7
      %v1687 = vsub.s32 %v1684, %v1686
      %v1688 = vrot.slane %v1674, %v1687
      %v1689 = vcombine.low %v1681, %v1688
      %v1690 = vcombine.low %v1345, %v1348
      %v1691 = vcombine.low %v1351, %v1354
      %v1693 = vunpack.c.l.s4 1983009808
      %v1694 = vunpack.c.0.s8 %v1693
      %v1695 = vlaneseq
      %v1696 = vshrl.u32 %v1695, 7
      %v1697 = vsub.s32 %v1694, %v1696
      %v1698 = vrot.slane %v1690, %v1697
      %v1700 = vunpack.c.l.s4 1983009808
      %v1701 = vunpack.c.0.s8 %v1700
      %v1702 = vlaneseq
      %v1703 = vshrl.u32 %v1702, 7
      %v1704 = vsub.s32 %v1701, %v1703
      %v1705 = vrot.slane %v1691, %v1704
      %v1706 = vcombine.low %v1698, %v1705
      %v1707 = vcombine.low %v1357, %v1360
      %v1708 = vcombine.low %v1364, %v1367
      %v1710 = vunpack.c.l.s4 1983009808
      %v1711 = vunpack.c.0.s8 %v1710
      %v1712 = vlaneseq
      %v1713 = vshrl.u32 %v1712, 7
      %v1714 = vsub.s32 %v1711, %v1713
      %v1715 = vrot.slane %v1707, %v1714
      %v1717 = vunpack.c.l.s4 1983009808
      %v1718 = vunpack.c.0.s8 %v1717
      %v1719 = vlaneseq
      %v1720 = vshrl.u32 %v1719, 7
      %v1721 = vsub.s32 %v1718, %v1720
      %v1722 = vrot.slane %v1708, %v1721
      %v1723 = vcombine.low %v1715, %v1722
      %v1724 = vcombine.low %v1370, %v1373
      %v1725 = vcombine.low %v1376, %v1379
      %v1727 = vunpack.c.l.s4 1983009808
      %v1728 = vunpack.c.0.s8 %v1727
      %v1729 = vlaneseq
      %v1730 = vshrl.u32 %v1729, 7
      %v1731 = vsub.s32 %v1728, %v1730
      %v1732 = vrot.slane %v1724, %v1731
      %v1734 = vunpack.c.l.s4 1983009808
      %v1735 = vunpack.c.0.s8 %v1734
      %v1736 = vlaneseq
      %v1737 = vshrl.u32 %v1736, 7
      %v1738 = vsub.s32 %v1735, %v1737
      %v1739 = vrot.slane %v1725, %v1738
      %v1740 = vcombine.low %v1732, %v1739
      %v1741 = vcombine.low %v1382, %v1386
      %v1742 = vcombine.low %v1389, %v1392
      %v1744 = vunpack.c.l.s4 1983009808
      %v1745 = vunpack.c.0.s8 %v1744
      %v1746 = vlaneseq
      %v1747 = vshrl.u32 %v1746, 7
      %v1748 = vsub.s32 %v1745, %v1747
      %v1749 = vrot.slane %v1741, %v1748
      %v1751 = vunpack.c.l.s4 1983009808
      %v1752 = vunpack.c.0.s8 %v1751
      %v1753 = vlaneseq
      %v1754 = vshrl.u32 %v1753, 7
      %v1755 = vsub.s32 %v1752, %v1754
      %v1756 = vrot.slane %v1742, %v1755
      %v1757 = vcombine.low %v1749, %v1756
      %v1758 = vcombine.low %v1395, %v1398
      %v1759 = vcombine.low %v1401, %v1404
      %v1761 = vunpack.c.l.s4 1983009808
      %v1762 = vunpack.c.0.s8 %v1761
      %v1763 = vlaneseq
      %v1764 = vshrl.u32 %v1763, 7
      %v1765 = vsub.s32 %v1762, %v1764
      %v1766 = vrot.slane %v1758, %v1765
      %v1768 = vunpack.c.l.s4 1983009808
      %v1769 = vunpack.c.0.s8 %v1768
      %v1770 = vlaneseq
      %v1771 = vshrl.u32 %v1770, 7
      %v1772 = vsub.s32 %v1769, %v1771
      %v1773 = vrot.slane %v1759, %v1772
      %v1774 = vcombine.low %v1766, %v1773
      %v1775 = vcombine.low %v1408, %v1411
      %v1776 = vcombine.low %v1414, %v1417
      %v1778 = vunpack.c.l.s4 1983009808
      %v1779 = vunpack.c.0.s8 %v1778
      %v1780 = vlaneseq
      %v1781 = vshrl.u32 %v1780, 7
      %v1782 = vsub.s32 %v1779, %v1781
      %v1783 = vrot.slane %v1775, %v1782
      %v1785 = vunpack.c.l.s4 1983009808
      %v1786 = vunpack.c.0.s8 %v1785
      %v1787 = vlaneseq
      %v1788 = vshrl.u32 %v1787, 7
      %v1789 = vsub.s32 %v1786, %v1788
      %v1790 = vrot.slane %v1776, %v1789
      %v1791 = vcombine.low %v1783, %v1790
      %v1792 = vcombine.low %v1420, %v1423
      %v1793 = vcombine.low %v1426, %v1430
      %v1795 = vunpack.c.l.s4 1983009808
      %v1796 = vunpack.c.0.s8 %v1795
      %v1797 = vlaneseq
      %v1798 = vshrl.u32 %v1797, 7
      %v1799 = vsub.s32 %v1796, %v1798
      %v1800 = vrot.slane %v1792, %v1799
      %v1802 = vunpack.c.l.s4 1983009808
      %v1803 = vunpack.c.0.s8 %v1802
      %v1804 = vlaneseq
      %v1805 = vshrl.u32 %v1804, 7
      %v1806 = vsub.s32 %v1803, %v1805
      %v1807 = vrot.slane %v1793, %v1806
      %v1808 = vcombine.low %v1800, %v1807
      %v1809 = vcombine.low %v1433, %v1436
      %v1810 = vcombine.low %v1439, %v1442
      %v1812 = vunpack.c.l.s4 1983009808
      %v1813 = vunpack.c.0.s8 %v1812
      %v1814 = vlaneseq
      %v1815 = vshrl.u32 %v1814, 7
      %v1816 = vsub.s32 %v1813, %v1815
      %v1817 = vrot.slane %v1809, %v1816
      %v1819 = vunpack.c.l.s4 1983009808
      %v1820 = vunpack.c.0.s8 %v1819
      %v1821 = vlaneseq
      %v1822 = vshrl.u32 %v1821, 7
      %v1823 = vsub.s32 %v1820, %v1822
      %v1824 = vrot.slane %v1810, %v1823
      %v1825 = vcombine.low %v1817, %v1824
      %v1826 = vcombine.low %v1445, %v1448
      %v1827 = vcombine.low %v1452, %v1455
      %v1829 = vunpack.c.l.s4 1983009808
      %v1830 = vunpack.c.0.s8 %v1829
      %v1831 = vlaneseq
      %v1832 = vshrl.u32 %v1831, 7
      %v1833 = vsub.s32 %v1830, %v1832
      %v1834 = vrot.slane %v1826, %v1833
      %v1836 = vunpack.c.l.s4 1983009808
      %v1837 = vunpack.c.0.s8 %v1836
      %v1838 = vlaneseq
      %v1839 = vshrl.u32 %v1838, 7
      %v1840 = vsub.s32 %v1837, %v1839
      %v1841 = vrot.slane %v1827, %v1840
      %v1842 = vcombine.low %v1834, %v1841
      %v1843 = vcombine.low %v1458, %v1461
      %v1844 = vcombine.low %v1464, %v1467
      %v1846 = vunpack.c.l.s4 1983009808
      %v1847 = vunpack.c.0.s8 %v1846
      %v1848 = vlaneseq
      %v1849 = vshrl.u32 %v1848, 7
      %v1850 = vsub.s32 %v1847, %v1849
      %v1851 = vrot.slane %v1843, %v1850
      %v1853 = vunpack.c.l.s4 1983009808
      %v1854 = vunpack.c.0.s8 %v1853
      %v1855 = vlaneseq
      %v1856 = vshrl.u32 %v1855, 7
      %v1857 = vsub.s32 %v1854, %v1856
      %v1858 = vrot.slane %v1844, %v1857
      %v1859 = vcombine.low %v1851, %v1858
      %v1860 = vcombine.low %v1470, %v1474
      %v1861 = vcombine.low %v1477, %v1480
      %v1863 = vunpack.c.l.s4 1983009808
      %v1864 = vunpack.c.0.s8 %v1863
      %v1865 = vlaneseq
      %v1866 = vshrl.u32 %v1865, 7
      %v1867 = vsub.s32 %v1864, %v1866
      %v1868 = vrot.slane %v1860, %v1867
      %v1870 = vunpack.c.l.s4 1983009808
      %v1871 = vunpack.c.0.s8 %v1870
      %v1872 = vlaneseq
      %v1873 = vshrl.u32 %v1872, 7
      %v1874 = vsub.s32 %v1871, %v1873
      %v1875 = vrot.slane %v1861, %v1874
      %v1876 = vcombine.low %v1868, %v1875
      %v1877 = vcombine.low %v1483, %v1486
      %v1878 = vcombine.low %v1489, %v1492
      %v1880 = vunpack.c.l.s4 1983009808
      %v1881 = vunpack.c.0.s8 %v1880
      %v1882 = vlaneseq
      %v1883 = vshrl.u32 %v1882, 7
      %v1884 = vsub.s32 %v1881, %v1883
      %v1885 = vrot.slane %v1877, %v1884
      %v1887 = vunpack.c.l.s4 1983009808
      %v1888 = vunpack.c.0.s8 %v1887
      %v1889 = vlaneseq
      %v1890 = vshrl.u32 %v1889, 7
      %v1891 = vsub.s32 %v1888, %v1890
      %v1892 = vrot.slane %v1878, %v1891
      %v1893 = vcombine.low %v1885, %v1892
      %v1894 = vcombine.low %v1496, %v1499
      %v1895 = vcombine.low %v1502, %v1505
      %v1897 = vunpack.c.l.s4 1983009808
      %v1898 = vunpack.c.0.s8 %v1897
      %v1899 = vlaneseq
      %v1900 = vshrl.u32 %v1899, 7
      %v1901 = vsub.s32 %v1898, %v1900
      %v1902 = vrot.slane %v1894, %v1901
      %v1904 = vunpack.c.l.s4 1983009808
      %v1905 = vunpack.c.0.s8 %v1904
      %v1906 = vlaneseq
      %v1907 = vshrl.u32 %v1906, 7
      %v1908 = vsub.s32 %v1905, %v1907
      %v1909 = vrot.slane %v1895, %v1908
      %v1910 = vcombine.low %v1902, %v1909
      %v1911 = vcombine.low %v1508, %v1511
      %v1912 = vcombine.low %v1514, %v1518
      %v1914 = vunpack.c.l.s4 1983009808
      %v1915 = vunpack.c.0.s8 %v1914
      %v1916 = vlaneseq
      %v1917 = vshrl.u32 %v1916, 7
      %v1918 = vsub.s32 %v1915, %v1917
      %v1919 = vrot.slane %v1911, %v1918
      %v1921 = vunpack.c.l.s4 1983009808
      %v1922 = vunpack.c.0.s8 %v1921
      %v1923 = vlaneseq
      %v1924 = vshrl.u32 %v1923, 7
      %v1925 = vsub.s32 %v1922, %v1924
      %v1926 = vrot.slane %v1912, %v1925
      %v1927 = vcombine.low %v1919, %v1926
      %v1928 = vcombine.low %v1521, %v1524
      %v1929 = vcombine.low %v1527, %v1530
      %v1931 = vunpack.c.l.s4 1983009808
      %v1932 = vunpack.c.0.s8 %v1931
      %v1933 = vlaneseq
      %v1934 = vshrl.u32 %v1933, 7
      %v1935 = vsub.s32 %v1932, %v1934
      %v1936 = vrot.slane %v1928, %v1935
      %v1938 = vunpack.c.l.s4 1983009808
      %v1939 = vunpack.c.0.s8 %v1938
      %v1940 = vlaneseq
      %v1941 = vshrl.u32 %v1940, 7
      %v1942 = vsub.s32 %v1939, %v1941
      %v1943 = vrot.slane %v1929, %v1942
      %v1944 = vcombine.low %v1936, %v1943
      %v1945 = vcombine.low %v1533, %v1536
      %v1947 = vunpack.c.l.s4 1983009808
      %v1948 = vunpack.c.0.s8 %v1947
      %v1949 = vlaneseq
      %v1950 = vshrl.u32 %v1949, 7
      %v1951 = vsub.s32 %v1948, %v1950
      %v1952 = vrot.slane %v1945, %v1951
      %v1978 = vpack.c.bf16 %v1570, %v1553
      %v1979 = vpack.c.bf16 %v1604, %v1587
      %v1980 = vpack.c.bf16 %v1638, %v1621
      %v1981 = vpack.c.bf16 %v1672, %v1655
      %v1982 = vpack.c.bf16 %v1706, %v1689
      %v1983 = vpack.c.bf16 %v1740, %v1723
      %v1984 = vpack.c.bf16 %v1774, %v1757
      %v1985 = vpack.c.bf16 %v1808, %v1791
      %v1986 = vpack.c.bf16 %v1842, %v1825
      %v1987 = vpack.c.bf16 %v1876, %v1859
      %v1988 = vpack.c.bf16 %v1910, %v1893
      %v1989 = vpack.c.bf16 %v1944, %v1927
      %v1990 = vpack.c.bf16 %v1952, %v1952
      %v1992 = vunpack.c.l.b16 %v258
      %v1993 = vpack.c.b16 %v1992, %v1992
      %v1994 = vrot.slane %v1993, 2
      %vm1995 = vcmask 31744
      %v1997 = vsel %vm1995, %v1978, 0
      %v2000 = vsel %vm1995, %v1979, 0
      %v2003 = vsel %vm1995, %v1980, 0
      %v2006 = vsel %vm1995, %v1981, 0
      %v2009 = vsel %vm1995, %v1982, 0
      %v2012 = vsel %vm1995, %v1983, 0
      %v2015 = vsel %vm1995, %v1984, 0
      %v2018 = vsel %vm1995, %v1985, 0
      %v2021 = vsel %vm1995, %v1986, 0
      %v2024 = vsel %vm1995, %v1987, 0
      %v2027 = vsel %vm1995, %v1988, 0
      %v2030 = vsel %vm1995, %v1989, 0
      %v2033 = vsel %vm1995, %v1990, 0
      %vm2035 = vcmask 1041408
      %v2037 = vsel %vm2035, %v1994, 0
      %2039 = vmatprep.subr.bf16.mxu0 0
      %2040 = vmatpush1.bf16.msra.mxu0 %v2037
      %2041 = vmatprep.subr.bf16.mxu0 0
      %2042 = vmatpush1.bf16.msra.mxu0 0
      %2043 = vmatprep.subr.bf16.mxu0 0
      %2044 = vmatpush1.bf16.msra.mxu0 0
      %2045 = vmatprep.subr.bf16.mxu0 0
      %2046 = vmatpush1.bf16.msra.mxu0 0
      %2047 = vmatprep.subr.bf16.mxu0 0
      %2048 = vmatpush1.bf16.msra.mxu0 0
      %2049 = vmatprep.subr.bf16.mxu0 0
      %2050 = vmatpush1.bf16.msra.mxu0 0
      %2051 = vmatprep.subr.bf16.mxu0 0
      %2052 = vmatpush1.bf16.msra.mxu0 0
      %2053 = vmatprep.subr.bf16.mxu0 0
      %2054 = vmatpush1.bf16.msra.mxu0 0
      %2055 = vmatprep.subr.bf16.mxu0 0
      %2056 = vmatpush1.bf16.msra.mxu0 0
      %2057 = vmatprep.subr.bf16.mxu0 0
      %2058 = vmatpush1.bf16.msra.mxu0 0
      %2059 = vmatprep.subr.bf16.mxu0 0
      %2060 = vmatpush1.bf16.msra.mxu0 0
      %2061 = vmatprep.subr.bf16.mxu0 0
      %2062 = vmatpush1.bf16.msra.mxu0 0
      %2063 = vmatprep.subr.bf16.mxu0 0
      %2064 = vmatpush1.bf16.msra.mxu0 0
      %2065 = vmatprep.subr.bf16.mxu0 0
      %2066 = vmatpush1.bf16.msra.mxu0 0
      %2067 = vmatprep.subr.bf16.mxu0 0
      %2068 = vmatpush1.bf16.msra.mxu0 0
      %2069 = vmatprep.subr.bf16.mxu0 0
      %2070 = vmatpush1.bf16.msra.mxu0 0
      %2071 = vmatprep.mubr.bf16.mxu0 0
      %2072 = vmatmul.mubr.bf16.gmra.mrb[0].mxu0 %v1997
      %v2073 = vpop.f32.mrb[0].mxu0
      %v2074 = vadd.f32 0.0, %v2073
      %v2075 = vpop.f32.mrb[0].mxu0
      %v2076 = vpop.f32.mrb[0].mxu0
      %v2077 = vadd.f32 0.0, %v2076
      %v2078 = vpop.f32.mrb[0].mxu0
      %2079 = vmatprep.mubr.bf16.mxu0 0
      %2080 = vmatmul.mubr.bf16.gmra.mrb[0].mxu0 %v2000
      %v2081 = vpop.f32.mrb[0].mxu0
      %v2082 = vadd.f32 0.0, %v2081
      %v2083 = vpop.f32.mrb[0].mxu0
      %v2084 = vpop.f32.mrb[0].mxu0
      %v2085 = vadd.f32 0.0, %v2084
      %v2086 = vpop.f32.mrb[0].mxu0
      %2087 = vmatprep.mubr.bf16.mxu0 0
      %2088 = vmatmul.mubr.bf16.gmra.mrb[0].mxu0 %v2003
      %v2089 = vpop.f32.mrb[0].mxu0
      %v2090 = vadd.f32 0.0, %v2089
      %v2091 = vpop.f32.mrb[0].mxu0
      %v2092 = vpop.f32.mrb[0].mxu0
      %v2093 = vadd.f32 0.0, %v2092
      %v2094 = vpop.f32.mrb[0].mxu0
      %2095 = vmatprep.mubr.bf16.mxu0 0
      %2096 = vmatmul.mubr.bf16.gmra.mrb[0].mxu0 %v2006
      %v2097 = vpop.f32.mrb[0].mxu0
      %v2098 = vadd.f32 0.0, %v2097
      %v2099 = vpop.f32.mrb[0].mxu0
      %v2100 = vpop.f32.mrb[0].mxu0
      %v2101 = vadd.f32 0.0, %v2100
      %v2102 = vpop.f32.mrb[0].mxu0
      %2103 = vmatprep.mubr.bf16.mxu0 0
      %2104 = vmatmul.mubr.bf16.gmra.mrb[0].mxu0 %v2009
      %v2105 = vpop.f32.mrb[0].mxu0
      %v2106 = vadd.f32 0.0, %v2105
      %v2107 = vpop.f32.mrb[0].mxu0
      %v2108 = vpop.f32.mrb[0].mxu0
      %v2109 = vadd.f32 0.0, %v2108
      %v2110 = vpop.f32.mrb[0].mxu0
      %2111 = vmatprep.mubr.bf16.mxu0 0
      %2112 = vmatmul.mubr.bf16.gmra.mrb[0].mxu0 %v2012
      %v2113 = vpop.f32.mrb[0].mxu0
      %v2114 = vadd.f32 0.0, %v2113
      %v2115 = vpop.f32.mrb[0].mxu0
      %v2116 = vpop.f32.mrb[0].mxu0
      %v2117 = vadd.f32 0.0, %v2116
      %v2118 = vpop.f32.mrb[0].mxu0
      %2119 = vmatprep.mubr.bf16.mxu0 0
      %2120 = vmatmul.mubr.bf16.gmra.mrb[0].mxu0 %v2015
      %v2121 = vpop.f32.mrb[0].mxu0
      %v2122 = vadd.f32 0.0, %v2121
      %v2123 = vpop.f32.mrb[0].mxu0
      %v2124 = vpop.f32.mrb[0].mxu0
      %v2125 = vadd.f32 0.0, %v2124
      %v2126 = vpop.f32.mrb[0].mxu0
      %2127 = vmatprep.mubr.bf16.mxu0 0
      %2128 = vmatmul.mubr.bf16.gmra.mrb[0].mxu0 %v2018
      %v2129 = vpop.f32.mrb[0].mxu0
      %v2130 = vadd.f32 0.0, %v2129
      %v2131 = vpop.f32.mrb[0].mxu0
      %v2132 = vpop.f32.mrb[0].mxu0
      %v2133 = vadd.f32 0.0, %v2132
      %v2134 = vpop.f32.mrb[0].mxu0
      %2135 = vmatprep.mubr.bf16.mxu0 0
      %2136 = vmatmul.mubr.bf16.gmra.mrb[0].mxu0 %v2021
      %v2137 = vpop.f32.mrb[0].mxu0
      %v2138 = vadd.f32 0.0, %v2137
      %v2139 = vpop.f32.mrb[0].mxu0
      %v2140 = vpop.f32.mrb[0].mxu0
      %v2141 = vadd.f32 0.0, %v2140
      %v2142 = vpop.f32.mrb[0].mxu0
      %2143 = vmatprep.mubr.bf16.mxu0 0
      %2144 = vmatmul.mubr.bf16.gmra.mrb[0].mxu0 %v2024
      %v2145 = vpop.f32.mrb[0].mxu0
      %v2146 = vadd.f32 0.0, %v2145
      %v2147 = vpop.f32.mrb[0].mxu0
      %v2148 = vpop.f32.mrb[0].mxu0
      %v2149 = vadd.f32 0.0, %v2148
      %v2150 = vpop.f32.mrb[0].mxu0
      %2151 = vmatprep.mubr.bf16.mxu0 0
      %2152 = vmatmul.mubr.bf16.gmra.mrb[0].mxu0 %v2027
      %v2153 = vpop.f32.mrb[0].mxu0
      %v2154 = vadd.f32 0.0, %v2153
      %v2155 = vpop.f32.mrb[0].mxu0
      %v2156 = vpop.f32.mrb[0].mxu0
      %v2157 = vadd.f32 0.0, %v2156
      %v2158 = vpop.f32.mrb[0].mxu0
      %2159 = vmatprep.mubr.bf16.mxu0 0
      %2160 = vmatmul.mubr.bf16.gmra.mrb[0].mxu0 %v2030
      %v2161 = vpop.f32.mrb[0].mxu0
      %v2162 = vadd.f32 0.0, %v2161
      %v2163 = vpop.f32.mrb[0].mxu0
      %v2164 = vpop.f32.mrb[0].mxu0
      %v2165 = vadd.f32 0.0, %v2164
      %v2166 = vpop.f32.mrb[0].mxu0
      %2167 = vmatprep.mubr.bf16.mxu0 0
      %2168 = vmatmul.mubr.bf16.gmra.mrb[0].mxu0 %v2033
      %v2169 = vpop.f32.mrb[0].mxu0
      %v2170 = vadd.f32 0.0, %v2169
      %v2171 = vpop.f32.mrb[0].mxu0
      %v2172 = vpop.f32.mrb[0].mxu0
      %v2173 = vpop.f32.mrb[0].mxu0
      %2174 = vdwg.mxu0
      %v2176 = vsel %vm1995, %v1195, 0
      %v2179 = vsel %vm1995, %v1196, 0
      %v2182 = vsel %vm1995, %v1197, 0
      %v2185 = vsel %vm1995, %v1198, 0
      %v2188 = vsel %vm1995, %v1199, 0
      %v2191 = vsel %vm1995, %v1200, 0
      %v2194 = vsel %vm1995, %v1201, 0
      %v2197 = vsel %vm1995, %v1202, 0
      %v2200 = vsel %vm1995, %v1203, 0
      %v2203 = vsel %vm1995, %v1204, 0
      %v2206 = vsel %vm1995, %v1205, 0
      %v2209 = vsel %vm1995, %v1206, 0
      %v2212 = vsel %vm1995, %v1207, 0
      %v2215 = vsel %vm2035, %v258, 0
      %2217 = vmatprep.subr.bf16.mxu0 0
      %2218 = vmatpush1.bf16.msra.mxu0 %v2215
      %2219 = vmatprep.subr.bf16.mxu0 0
      %2220 = vmatpush1.bf16.msra.mxu0 0
      %2221 = vmatprep.subr.bf16.mxu0 0
      %2222 = vmatpush1.bf16.msra.mxu0 0
      %2223 = vmatprep.subr.bf16.mxu0 0
      %2224 = vmatpush1.bf16.msra.mxu0 0
      %2225 = vmatprep.subr.bf16.mxu0 0
      %2226 = vmatpush1.bf16.msra.mxu0 0
      %2227 = vmatprep.subr.bf16.mxu0 0
      %2228 = vmatpush1.bf16.msra.mxu0 0
      %2229 = vmatprep.subr.bf16.mxu0 0
      %2230 = vmatpush1.bf16.msra.mxu0 0
      %2231 = vmatprep.subr.bf16.mxu0 0
      %2232 = vmatpush1.bf16.msra.mxu0 0
      %2233 = vmatprep.subr.bf16.mxu0 0
      %2234 = vmatpush1.bf16.msra.mxu0 0
      %2235 = vmatprep.subr.bf16.mxu0 0
      %2236 = vmatpush1.bf16.msra.mxu0 0
      %2237 = vmatprep.subr.bf16.mxu0 0
      %2238 = vmatpush1.bf16.msra.mxu0 0
      %2239 = vmatprep.subr.bf16.mxu0 0
      %2240 = vmatpush1.bf16.msra.mxu0 0
      %2241 = vmatprep.subr.bf16.mxu0 0
      %2242 = vmatpush1.bf16.msra.mxu0 0
      %2243 = vmatprep.subr.bf16.mxu0 0
      %2244 = vmatpush1.bf16.msra.mxu0 0
      %2245 = vmatprep.subr.bf16.mxu0 0
      %2246 = vmatpush1.bf16.msra.mxu0 0
      %2247 = vmatprep.subr.bf16.mxu0 0
      %2248 = vmatpush1.bf16.msra.mxu0 0
      %2249 = vmatprep.mubr.bf16.mxu0 0
      %2250 = vmatmul.mubr.bf16.gmra.mrb[0].mxu0 %v2176
      %v2251 = vpop.f32.mrb[0].mxu0
      %v2252 = vadd.f32 %v2074, %v2251
      %v2253 = vpop.f32.mrb[0].mxu0
      %v2254 = vpop.f32.mrb[0].mxu0
      %v2255 = vadd.f32 %v2077, %v2254
      %v2256 = vpop.f32.mrb[0].mxu0
      %2257 = vmatprep.mubr.bf16.mxu0 0
      %2258 = vmatmul.mubr.bf16.gmra.mrb[0].mxu0 %v2179
      %v2259 = vpop.f32.mrb[0].mxu0
      %v2260 = vadd.f32 %v2082, %v2259
      %v2261 = vpop.f32.mrb[0].mxu0
      %v2262 = vpop.f32.mrb[0].mxu0
      %v2263 = vadd.f32 %v2085, %v2262
      %v2264 = vpop.f32.mrb[0].mxu0
      %2265 = vmatprep.mubr.bf16.mxu0 0
      %2266 = vmatmul.mubr.bf16.gmra.mrb[0].mxu0 %v2182
      %v2267 = vpop.f32.mrb[0].mxu0
      %v2268 = vadd.f32 %v2090, %v2267
      %v2269 = vpop.f32.mrb[0].mxu0
      %v2270 = vpop.f32.mrb[0].mxu0
      %v2271 = vadd.f32 %v2093, %v2270
      %v2272 = vpop.f32.mrb[0].mxu0
      %2273 = vmatprep.mubr.bf16.mxu0 0
      %2274 = vmatmul.mubr.bf16.gmra.mrb[0].mxu0 %v2185
      %v2275 = vpop.f32.mrb[0].mxu0
      %v2276 = vadd.f32 %v2098, %v2275
      %v2277 = vpop.f32.mrb[0].mxu0
      %v2278 = vpop.f32.mrb[0].mxu0
      %v2279 = vadd.f32 %v2101, %v2278
      %v2280 = vpop.f32.mrb[0].mxu0
      %2281 = vmatprep.mubr.bf16.mxu0 0
      %2282 = vmatmul.mubr.bf16.gmra.mrb[0].mxu0 %v2188
      %v2283 = vpop.f32.mrb[0].mxu0
      %v2284 = vadd.f32 %v2106, %v2283
      %v2285 = vpop.f32.mrb[0].mxu0
      %v2286 = vpop.f32.mrb[0].mxu0
      %v2287 = vadd.f32 %v2109, %v2286
      %v2288 = vpop.f32.mrb[0].mxu0
      %2289 = vmatprep.mubr.bf16.mxu0 0
      %2290 = vmatmul.mubr.bf16.gmra.mrb[0].mxu0 %v2191
      %v2291 = vpop.f32.mrb[0].mxu0
      %v2292 = vadd.f32 %v2114, %v2291
      %v2293 = vpop.f32.mrb[0].mxu0
      %v2294 = vpop.f32.mrb[0].mxu0
      %v2295 = vadd.f32 %v2117, %v2294
      %v2296 = vpop.f32.mrb[0].mxu0
      %2297 = vmatprep.mubr.bf16.mxu0 0
      %2298 = vmatmul.mubr.bf16.gmra.mrb[0].mxu0 %v2194
      %v2299 = vpop.f32.mrb[0].mxu0
      %v2300 = vadd.f32 %v2122, %v2299
      %v2301 = vpop.f32.mrb[0].mxu0
      %v2302 = vpop.f32.mrb[0].mxu0
      %v2303 = vadd.f32 %v2125, %v2302
      %v2304 = vpop.f32.mrb[0].mxu0
      %2305 = vmatprep.mubr.bf16.mxu0 0
      %2306 = vmatmul.mubr.bf16.gmra.mrb[0].mxu0 %v2197
      %v2307 = vpop.f32.mrb[0].mxu0
      %v2308 = vadd.f32 %v2130, %v2307
      %v2309 = vpop.f32.mrb[0].mxu0
      %v2310 = vpop.f32.mrb[0].mxu0
      %v2311 = vadd.f32 %v2133, %v2310
      %v2312 = vpop.f32.mrb[0].mxu0
      %2313 = vmatprep.mubr.bf16.mxu0 0
      %2314 = vmatmul.mubr.bf16.gmra.mrb[0].mxu0 %v2200
      %v2315 = vpop.f32.mrb[0].mxu0
      %v2316 = vadd.f32 %v2138, %v2315
      %v2317 = vpop.f32.mrb[0].mxu0
      %v2318 = vpop.f32.mrb[0].mxu0
      %v2319 = vadd.f32 %v2141, %v2318
      %v2320 = vpop.f32.mrb[0].mxu0
      %2321 = vmatprep.mubr.bf16.mxu0 0
      %2322 = vmatmul.mubr.bf16.gmra.mrb[0].mxu0 %v2203
      %v2323 = vpop.f32.mrb[0].mxu0
      %v2324 = vadd.f32 %v2146, %v2323
      %v2325 = vpop.f32.mrb[0].mxu0
      %v2326 = vpop.f32.mrb[0].mxu0
      %v2327 = vadd.f32 %v2149, %v2326
      %v2328 = vpop.f32.mrb[0].mxu0
      %2329 = vmatprep.mubr.bf16.mxu0 0
      %2330 = vmatmul.mubr.bf16.gmra.mrb[0].mxu0 %v2206
      %v2331 = vpop.f32.mrb[0].mxu0
      %v2332 = vadd.f32 %v2154, %v2331
      %v2333 = vpop.f32.mrb[0].mxu0
      %v2334 = vpop.f32.mrb[0].mxu0
      %v2335 = vadd.f32 %v2157, %v2334
      %v2336 = vpop.f32.mrb[0].mxu0
      %2337 = vmatprep.mubr.bf16.mxu0 0
      %2338 = vmatmul.mubr.bf16.gmra.mrb[0].mxu0 %v2209
      %v2339 = vpop.f32.mrb[0].mxu0
      %v2340 = vadd.f32 %v2162, %v2339
      %v2341 = vpop.f32.mrb[0].mxu0
      %v2342 = vpop.f32.mrb[0].mxu0
      %v2343 = vadd.f32 %v2165, %v2342
      %v2344 = vpop.f32.mrb[0].mxu0
      %2345 = vmatprep.mubr.bf16.mxu0 0
      %2346 = vmatmul.mubr.bf16.gmra.mrb[0].mxu0 %v2212
      %v2347 = vpop.f32.mrb[0].mxu0
      %v2348 = vadd.f32 %v2170, %v2347
      %v2349 = vpop.f32.mrb[0].mxu0
      %v2350 = vpop.f32.mrb[0].mxu0
      %v2351 = vpop.f32.mrb[0].mxu0
      %2352 = vdwg.mxu0
      %v2353 = vcombine.low %v307, %v306
      %v2354 = vcombine.low %v308, %v316
      %v2356 = vunpack.c.l.s4 1983009808
      %v2357 = vunpack.c.0.s8 %v2356
      %v2358 = vlaneseq
      %v2359 = vshrl.u32 %v2358, 7
      %v2360 = vsub.s32 %v2357, %v2359
      %v2361 = vrot.slane %v2353, %v2360
      %v2363 = vunpack.c.l.s4 1983009808
      %v2364 = vunpack.c.0.s8 %v2363
      %v2365 = vlaneseq
      %v2366 = vshrl.u32 %v2365, 7
      %v2367 = vsub.s32 %v2364, %v2366
      %v2368 = vrot.slane %v2354, %v2367
      %v2369 = vcombine.low %v2361, %v2368
      %v2370 = vcombine.low %v324, %v323
      %v2371 = vcombine.low %v1208, %v340
      %v2373 = vunpack.c.l.s4 1983009808
      %v2374 = vunpack.c.0.s8 %v2373
      %v2375 = vlaneseq
      %v2376 = vshrl.u32 %v2375, 7
      %v2377 = vsub.s32 %v2374, %v2376
      %v2378 = vrot.slane %v2370, %v2377
      %v2380 = vunpack.c.l.s4 1983009808
      %v2381 = vunpack.c.0.s8 %v2380
      %v2382 = vlaneseq
      %v2383 = vshrl.u32 %v2382, 7
      %v2384 = vsub.s32 %v2381, %v2383
      %v2385 = vrot.slane %v2371, %v2384
      %v2386 = vcombine.low %v2378, %v2385
      %v2387 = vcombine.low %v339, %v341
      %v2388 = vcombine.low %v349, %v357
      %v2390 = vunpack.c.l.s4 1983009808
      %v2391 = vunpack.c.0.s8 %v2390
      %v2392 = vlaneseq
      %v2393 = vshrl.u32 %v2392, 7
      %v2394 = vsub.s32 %v2391, %v2393
      %v2395 = vrot.slane %v2387, %v2394
      %v2397 = vunpack.c.l.s4 1983009808
      %v2398 = vunpack.c.0.s8 %v2397
      %v2399 = vlaneseq
      %v2400 = vshrl.u32 %v2399, 7
      %v2401 = vsub.s32 %v2398, %v2400
      %v2402 = vrot.slane %v2388, %v2401
      %v2403 = vcombine.low %v2395, %v2402
      %v2404 = vcombine.low %v356, %v1209
      %v2405 = vcombine.low %v373, %v372
      %v2407 = vunpack.c.l.s4 1983009808
      %v2408 = vunpack.c.0.s8 %v2407
      %v2409 = vlaneseq
      %v2410 = vshrl.u32 %v2409, 7
      %v2411 = vsub.s32 %v2408, %v2410
      %v2412 = vrot.slane %v2404, %v2411
      %v2414 = vunpack.c.l.s4 1983009808
      %v2415 = vunpack.c.0.s8 %v2414
      %v2416 = vlaneseq
      %v2417 = vshrl.u32 %v2416, 7
      %v2418 = vsub.s32 %v2415, %v2417
      %v2419 = vrot.slane %v2405, %v2418
      %v2420 = vcombine.low %v2412, %v2419
      %v2421 = vcombine.low %v374, %v382
      %v2422 = vcombine.low %v390, %v389
      %v2424 = vunpack.c.l.s4 1983009808
      %v2425 = vunpack.c.0.s8 %v2424
      %v2426 = vlaneseq
      %v2427 = vshrl.u32 %v2426, 7
      %v2428 = vsub.s32 %v2425, %v2427
      %v2429 = vrot.slane %v2421, %v2428
      %v2431 = vunpack.c.l.s4 1983009808
      %v2432 = vunpack.c.0.s8 %v2431
      %v2433 = vlaneseq
      %v2434 = vshrl.u32 %v2433, 7
      %v2435 = vsub.s32 %v2432, %v2434
      %v2436 = vrot.slane %v2422, %v2435
      %v2437 = vcombine.low %v2429, %v2436
      %v2438 = vcombine.low %v1210, %v406
      %v2439 = vcombine.low %v405, %v407
      %v2441 = vunpack.c.l.s4 1983009808
      %v2442 = vunpack.c.0.s8 %v2441
      %v2443 = vlaneseq
      %v2444 = vshrl.u32 %v2443, 7
      %v2445 = vsub.s32 %v2442, %v2444
      %v2446 = vrot.slane %v2438, %v2445
      %v2448 = vunpack.c.l.s4 1983009808
      %v2449 = vunpack.c.0.s8 %v2448
      %v2450 = vlaneseq
      %v2451 = vshrl.u32 %v2450, 7
      %v2452 = vsub.s32 %v2449, %v2451
      %v2453 = vrot.slane %v2439, %v2452
      %v2454 = vcombine.low %v2446, %v2453
      %v2455 = vcombine.low %v415, %v423
      %v2456 = vcombine.low %v422, %v1211
      %v2458 = vunpack.c.l.s4 1983009808
      %v2459 = vunpack.c.0.s8 %v2458
      %v2460 = vlaneseq
      %v2461 = vshrl.u32 %v2460, 7
      %v2462 = vsub.s32 %v2459, %v2461
      %v2463 = vrot.slane %v2455, %v2462
      %v2465 = vunpack.c.l.s4 1983009808
      %v2466 = vunpack.c.0.s8 %v2465
      %v2467 = vlaneseq
      %v2468 = vshrl.u32 %v2467, 7
      %v2469 = vsub.s32 %v2466, %v2468
      %v2470 = vrot.slane %v2456, %v2469
      %v2471 = vcombine.low %v2463, %v2470
      %v2472 = vcombine.low %v439, %v438
      %v2473 = vcombine.low %v440, %v448
      %v2475 = vunpack.c.l.s4 1983009808
      %v2476 = vunpack.c.0.s8 %v2475
      %v2477 = vlaneseq
      %v2478 = vshrl.u32 %v2477, 7
      %v2479 = vsub.s32 %v2476, %v2478
      %v2480 = vrot.slane %v2472, %v2479
      %v2482 = vunpack.c.l.s4 1983009808
      %v2483 = vunpack.c.0.s8 %v2482
      %v2484 = vlaneseq
      %v2485 = vshrl.u32 %v2484, 7
      %v2486 = vsub.s32 %v2483, %v2485
      %v2487 = vrot.slane %v2473, %v2486
      %v2488 = vcombine.low %v2480, %v2487
      %v2489 = vcombine.low %v456, %v455
      %v2490 = vcombine.low %v1212, %v472
      %v2492 = vunpack.c.l.s4 1983009808
      %v2493 = vunpack.c.0.s8 %v2492
      %v2494 = vlaneseq
      %v2495 = vshrl.u32 %v2494, 7
      %v2496 = vsub.s32 %v2493, %v2495
      %v2497 = vrot.slane %v2489, %v2496
      %v2499 = vunpack.c.l.s4 1983009808
      %v2500 = vunpack.c.0.s8 %v2499
      %v2501 = vlaneseq
      %v2502 = vshrl.u32 %v2501, 7
      %v2503 = vsub.s32 %v2500, %v2502
      %v2504 = vrot.slane %v2490, %v2503
      %v2505 = vcombine.low %v2497, %v2504
      %v2506 = vcombine.low %v471, %v473
      %v2507 = vcombine.low %v481, %v489
      %v2509 = vunpack.c.l.s4 1983009808
      %v2510 = vunpack.c.0.s8 %v2509
      %v2511 = vlaneseq
      %v2512 = vshrl.u32 %v2511, 7
      %v2513 = vsub.s32 %v2510, %v2512
      %v2514 = vrot.slane %v2506, %v2513
      %v2516 = vunpack.c.l.s4 1983009808
      %v2517 = vunpack.c.0.s8 %v2516
      %v2518 = vlaneseq
      %v2519 = vshrl.u32 %v2518, 7
      %v2520 = vsub.s32 %v2517, %v2519
      %v2521 = vrot.slane %v2507, %v2520
      %v2522 = vcombine.low %v2514, %v2521
      %v2523 = vcombine.low %v488, %v1213
      %v2524 = vcombine.low %v505, %v504
      %v2526 = vunpack.c.l.s4 1983009808
      %v2527 = vunpack.c.0.s8 %v2526
      %v2528 = vlaneseq
      %v2529 = vshrl.u32 %v2528, 7
      %v2530 = vsub.s32 %v2527, %v2529
      %v2531 = vrot.slane %v2523, %v2530
      %v2533 = vunpack.c.l.s4 1983009808
      %v2534 = vunpack.c.0.s8 %v2533
      %v2535 = vlaneseq
      %v2536 = vshrl.u32 %v2535, 7
      %v2537 = vsub.s32 %v2534, %v2536
      %v2538 = vrot.slane %v2524, %v2537
      %v2539 = vcombine.low %v2531, %v2538
      %v2540 = vcombine.low %v506, %v514
      %v2541 = vcombine.low %v522, %v521
      %v2543 = vunpack.c.l.s4 1983009808
      %v2544 = vunpack.c.0.s8 %v2543
      %v2545 = vlaneseq
      %v2546 = vshrl.u32 %v2545, 7
      %v2547 = vsub.s32 %v2544, %v2546
      %v2548 = vrot.slane %v2540, %v2547
      %v2550 = vunpack.c.l.s4 1983009808
      %v2551 = vunpack.c.0.s8 %v2550
      %v2552 = vlaneseq
      %v2553 = vshrl.u32 %v2552, 7
      %v2554 = vsub.s32 %v2551, %v2553
      %v2555 = vrot.slane %v2541, %v2554
      %v2556 = vcombine.low %v2548, %v2555
      %v2557 = vcombine.low %v1214, %v538
      %v2558 = vcombine.low %v537, %v539
      %v2560 = vunpack.c.l.s4 1983009808
      %v2561 = vunpack.c.0.s8 %v2560
      %v2562 = vlaneseq
      %v2563 = vshrl.u32 %v2562, 7
      %v2564 = vsub.s32 %v2561, %v2563
      %v2565 = vrot.slane %v2557, %v2564
      %v2567 = vunpack.c.l.s4 1983009808
      %v2568 = vunpack.c.0.s8 %v2567
      %v2569 = vlaneseq
      %v2570 = vshrl.u32 %v2569, 7
      %v2571 = vsub.s32 %v2568, %v2570
      %v2572 = vrot.slane %v2558, %v2571
      %v2573 = vcombine.low %v2565, %v2572
      %v2574 = vcombine.low %v547, %v555
      %v2575 = vcombine.low %v554, %v1215
      %v2577 = vunpack.c.l.s4 1983009808
      %v2578 = vunpack.c.0.s8 %v2577
      %v2579 = vlaneseq
      %v2580 = vshrl.u32 %v2579, 7
      %v2581 = vsub.s32 %v2578, %v2580
      %v2582 = vrot.slane %v2574, %v2581
      %v2584 = vunpack.c.l.s4 1983009808
      %v2585 = vunpack.c.0.s8 %v2584
      %v2586 = vlaneseq
      %v2587 = vshrl.u32 %v2586, 7
      %v2588 = vsub.s32 %v2585, %v2587
      %v2589 = vrot.slane %v2575, %v2588
      %v2590 = vcombine.low %v2582, %v2589
      %v2591 = vcombine.low %v571, %v570
      %v2592 = vcombine.low %v572, %v580
      %v2594 = vunpack.c.l.s4 1983009808
      %v2595 = vunpack.c.0.s8 %v2594
      %v2596 = vlaneseq
      %v2597 = vshrl.u32 %v2596, 7
      %v2598 = vsub.s32 %v2595, %v2597
      %v2599 = vrot.slane %v2591, %v2598
      %v2601 = vunpack.c.l.s4 1983009808
      %v2602 = vunpack.c.0.s8 %v2601
      %v2603 = vlaneseq
      %v2604 = vshrl.u32 %v2603, 7
      %v2605 = vsub.s32 %v2602, %v2604
      %v2606 = vrot.slane %v2592, %v2605
      %v2607 = vcombine.low %v2599, %v2606
      %v2608 = vcombine.low %v588, %v587
      %v2609 = vcombine.low %v1216, %v604
      %v2611 = vunpack.c.l.s4 1983009808
      %v2612 = vunpack.c.0.s8 %v2611
      %v2613 = vlaneseq
      %v2614 = vshrl.u32 %v2613, 7
      %v2615 = vsub.s32 %v2612, %v2614
      %v2616 = vrot.slane %v2608, %v2615
      %v2618 = vunpack.c.l.s4 1983009808
      %v2619 = vunpack.c.0.s8 %v2618
      %v2620 = vlaneseq
      %v2621 = vshrl.u32 %v2620, 7
      %v2622 = vsub.s32 %v2619, %v2621
      %v2623 = vrot.slane %v2609, %v2622
      %v2624 = vcombine.low %v2616, %v2623
      %v2625 = vcombine.low %v603, %v605
      %v2626 = vcombine.low %v613, %v621
      %v2628 = vunpack.c.l.s4 1983009808
      %v2629 = vunpack.c.0.s8 %v2628
      %v2630 = vlaneseq
      %v2631 = vshrl.u32 %v2630, 7
      %v2632 = vsub.s32 %v2629, %v2631
      %v2633 = vrot.slane %v2625, %v2632
      %v2635 = vunpack.c.l.s4 1983009808
      %v2636 = vunpack.c.0.s8 %v2635
      %v2637 = vlaneseq
      %v2638 = vshrl.u32 %v2637, 7
      %v2639 = vsub.s32 %v2636, %v2638
      %v2640 = vrot.slane %v2626, %v2639
      %v2641 = vcombine.low %v2633, %v2640
      %v2642 = vcombine.low %v620, %v1217
      %v2643 = vcombine.low %v637, %v636
      %v2645 = vunpack.c.l.s4 1983009808
      %v2646 = vunpack.c.0.s8 %v2645
      %v2647 = vlaneseq
      %v2648 = vshrl.u32 %v2647, 7
      %v2649 = vsub.s32 %v2646, %v2648
      %v2650 = vrot.slane %v2642, %v2649
      %v2652 = vunpack.c.l.s4 1983009808
      %v2653 = vunpack.c.0.s8 %v2652
      %v2654 = vlaneseq
      %v2655 = vshrl.u32 %v2654, 7
      %v2656 = vsub.s32 %v2653, %v2655
      %v2657 = vrot.slane %v2643, %v2656
      %v2658 = vcombine.low %v2650, %v2657
      %v2659 = vcombine.low %v638, %v646
      %v2660 = vcombine.low %v654, %v653
      %v2662 = vunpack.c.l.s4 1983009808
      %v2663 = vunpack.c.0.s8 %v2662
      %v2664 = vlaneseq
      %v2665 = vshrl.u32 %v2664, 7
      %v2666 = vsub.s32 %v2663, %v2665
      %v2667 = vrot.slane %v2659, %v2666
      %v2669 = vunpack.c.l.s4 1983009808
      %v2670 = vunpack.c.0.s8 %v2669
      %v2671 = vlaneseq
      %v2672 = vshrl.u32 %v2671, 7
      %v2673 = vsub.s32 %v2670, %v2672
      %v2674 = vrot.slane %v2660, %v2673
      %v2675 = vcombine.low %v2667, %v2674
      %v2676 = vcombine.low %v1218, %v670
      %v2677 = vcombine.low %v669, %v671
      %v2679 = vunpack.c.l.s4 1983009808
      %v2680 = vunpack.c.0.s8 %v2679
      %v2681 = vlaneseq
      %v2682 = vshrl.u32 %v2681, 7
      %v2683 = vsub.s32 %v2680, %v2682
      %v2684 = vrot.slane %v2676, %v2683
      %v2686 = vunpack.c.l.s4 1983009808
      %v2687 = vunpack.c.0.s8 %v2686
      %v2688 = vlaneseq
      %v2689 = vshrl.u32 %v2688, 7
      %v2690 = vsub.s32 %v2687, %v2689
      %v2691 = vrot.slane %v2677, %v2690
      %v2692 = vcombine.low %v2684, %v2691
      %v2693 = vcombine.low %v679, %v687
      %v2694 = vcombine.low %v686, %v1219
      %v2696 = vunpack.c.l.s4 1983009808
      %v2697 = vunpack.c.0.s8 %v2696
      %v2698 = vlaneseq
      %v2699 = vshrl.u32 %v2698, 7
      %v2700 = vsub.s32 %v2697, %v2699
      %v2701 = vrot.slane %v2693, %v2700
      %v2703 = vunpack.c.l.s4 1983009808
      %v2704 = vunpack.c.0.s8 %v2703
      %v2705 = vlaneseq
      %v2706 = vshrl.u32 %v2705, 7
      %v2707 = vsub.s32 %v2704, %v2706
      %v2708 = vrot.slane %v2694, %v2707
      %v2709 = vcombine.low %v2701, %v2708
      %v2710 = vcombine.low %v703, %v702
      %v2711 = vcombine.low %v704, %v712
      %v2713 = vunpack.c.l.s4 1983009808
      %v2714 = vunpack.c.0.s8 %v2713
      %v2715 = vlaneseq
      %v2716 = vshrl.u32 %v2715, 7
      %v2717 = vsub.s32 %v2714, %v2716
      %v2718 = vrot.slane %v2710, %v2717
      %v2720 = vunpack.c.l.s4 1983009808
      %v2721 = vunpack.c.0.s8 %v2720
      %v2722 = vlaneseq
      %v2723 = vshrl.u32 %v2722, 7
      %v2724 = vsub.s32 %v2721, %v2723
      %v2725 = vrot.slane %v2711, %v2724
      %v2726 = vcombine.low %v2718, %v2725
      %v2727 = vcombine.low %v720, %v719
      %v2728 = vcombine.low %v1220, %v736
      %v2730 = vunpack.c.l.s4 1983009808
      %v2731 = vunpack.c.0.s8 %v2730
      %v2732 = vlaneseq
      %v2733 = vshrl.u32 %v2732, 7
      %v2734 = vsub.s32 %v2731, %v2733
      %v2735 = vrot.slane %v2727, %v2734
      %v2737 = vunpack.c.l.s4 1983009808
      %v2738 = vunpack.c.0.s8 %v2737
      %v2739 = vlaneseq
      %v2740 = vshrl.u32 %v2739, 7
      %v2741 = vsub.s32 %v2738, %v2740
      %v2742 = vrot.slane %v2728, %v2741
      %v2743 = vcombine.low %v2735, %v2742
      %v2744 = vcombine.low %v735, %v737
      %v2745 = vcombine.low %v745, %v753
      %v2747 = vunpack.c.l.s4 1983009808
      %v2748 = vunpack.c.0.s8 %v2747
      %v2749 = vlaneseq
      %v2750 = vshrl.u32 %v2749, 7
      %v2751 = vsub.s32 %v2748, %v2750
      %v2752 = vrot.slane %v2744, %v2751
      %v2754 = vunpack.c.l.s4 1983009808
      %v2755 = vunpack.c.0.s8 %v2754
      %v2756 = vlaneseq
      %v2757 = vshrl.u32 %v2756, 7
      %v2758 = vsub.s32 %v2755, %v2757
      %v2759 = vrot.slane %v2745, %v2758
      %v2760 = vcombine.low %v2752, %v2759
      %v2761 = vcombine.low %v752, %v1221
      %v2763 = vunpack.c.l.s4 1983009808
      %v2764 = vunpack.c.0.s8 %v2763
      %v2765 = vlaneseq
      %v2766 = vshrl.u32 %v2765, 7
      %v2767 = vsub.s32 %v2764, %v2766
      %v2768 = vrot.slane %v2761, %v2767
      %v2794 = vpack.c.bf16 %v2386, %v2369
      %v2795 = vpack.c.bf16 %v2420, %v2403
      %v2796 = vpack.c.bf16 %v2454, %v2437
      %v2797 = vpack.c.bf16 %v2488, %v2471
      %v2798 = vpack.c.bf16 %v2522, %v2505
      %v2799 = vpack.c.bf16 %v2556, %v2539
      %v2800 = vpack.c.bf16 %v2590, %v2573
      %v2801 = vpack.c.bf16 %v2624, %v2607
      %v2802 = vpack.c.bf16 %v2658, %v2641
      %v2803 = vpack.c.bf16 %v2692, %v2675
      %v2804 = vpack.c.bf16 %v2726, %v2709
      %v2805 = vpack.c.bf16 %v2760, %v2743
      %v2806 = vpack.c.bf16 %v2768, %v2768
      %v2808 = vsel %vm1995, %v2794, 0
      %v2811 = vsel %vm1995, %v2795, 0
      %v2814 = vsel %vm1995, %v2796, 0
      %v2817 = vsel %vm1995, %v2797, 0
      %v2820 = vsel %vm1995, %v2798, 0
      %v2823 = vsel %vm1995, %v2799, 0
      %v2826 = vsel %vm1995, %v2800, 0
      %v2829 = vsel %vm1995, %v2801, 0
      %v2832 = vsel %vm1995, %v2802, 0
      %v2835 = vsel %vm1995, %v2803, 0
      %v2838 = vsel %vm1995, %v2804, 0
      %v2841 = vsel %vm1995, %v2805, 0
      %v2844 = vsel %vm1995, %v2806, 0
      %v2847 = vsel %vm2035, %v259, 0
      %2849 = vmatprep.subr.bf16.mxu0 0
      %2850 = vmatpush1.bf16.msra.mxu0 %v2847
      %2851 = vmatprep.subr.bf16.mxu0 0
      %2852 = vmatpush1.bf16.msra.mxu0 0
      %2853 = vmatprep.subr.bf16.mxu0 0
      %2854 = vmatpush1.bf16.msra.mxu0 0
      %2855 = vmatprep.subr.bf16.mxu0 0
      %2856 = vmatpush1.bf16.msra.mxu0 0
      %2857 = vmatprep.subr.bf16.mxu0 0
      %2858 = vmatpush1.bf16.msra.mxu0 0
      %2859 = vmatprep.subr.bf16.mxu0 0
      %2860 = vmatpush1.bf16.msra.mxu0 0
      %2861 = vmatprep.subr.bf16.mxu0 0
      %2862 = vmatpush1.bf16.msra.mxu0 0
      %2863 = vmatprep.subr.bf16.mxu0 0
      %2864 = vmatpush1.bf16.msra.mxu0 0
      %2865 = vmatprep.subr.bf16.mxu0 0
      %2866 = vmatpush1.bf16.msra.mxu0 0
      %2867 = vmatprep.subr.bf16.mxu0 0
      %2868 = vmatpush1.bf16.msra.mxu0 0
      %2869 = vmatprep.subr.bf16.mxu0 0
      %2870 = vmatpush1.bf16.msra.mxu0 0
      %2871 = vmatprep.subr.bf16.mxu0 0
      %2872 = vmatpush1.bf16.msra.mxu0 0
      %2873 = vmatprep.subr.bf16.mxu0 0
      %2874 = vmatpush1.bf16.msra.mxu0 0
      %2875 = vmatprep.subr.bf16.mxu0 0
      %2876 = vmatpush1.bf16.msra.mxu0 0
      %2877 = vmatprep.subr.bf16.mxu0 0
      %2878 = vmatpush1.bf16.msra.mxu0 0
      %2879 = vmatprep.subr.bf16.mxu0 0
      %2880 = vmatpush1.bf16.msra.mxu0 0
      %2881 = vmatprep.mubr.bf16.mxu0 0
      %2882 = vmatmul.mubr.bf16.gmra.mrb[0].mxu0 %v2808
      %v2883 = vpop.f32.mrb[0].mxu0
      %v2884 = vadd.f32 0.0, %v2883
      %v2885 = vpop.f32.mrb[0].mxu0
      %v2886 = vpop.f32.mrb[0].mxu0
      %v2887 = vadd.f32 0.0, %v2886
      %v2888 = vpop.f32.mrb[0].mxu0
      %2889 = vmatprep.mubr.bf16.mxu0 0
      %2890 = vmatmul.mubr.bf16.gmra.mrb[0].mxu0 %v2811
      %v2891 = vpop.f32.mrb[0].mxu0
      %v2892 = vadd.f32 0.0, %v2891
      %v2893 = vpop.f32.mrb[0].mxu0
      %v2894 = vpop.f32.mrb[0].mxu0
      %v2895 = vadd.f32 0.0, %v2894
      %v2896 = vpop.f32.mrb[0].mxu0
      %2897 = vmatprep.mubr.bf16.mxu0 0
      %2898 = vmatmul.mubr.bf16.gmra.mrb[0].mxu0 %v2814
      %v2899 = vpop.f32.mrb[0].mxu0
      %v2900 = vadd.f32 0.0, %v2899
      %v2901 = vpop.f32.mrb[0].mxu0
      %v2902 = vpop.f32.mrb[0].mxu0
      %v2903 = vadd.f32 0.0, %v2902
      %v2904 = vpop.f32.mrb[0].mxu0
      %2905 = vmatprep.mubr.bf16.mxu0 0
      %2906 = vmatmul.mubr.bf16.gmra.mrb[0].mxu0 %v2817
      %v2907 = vpop.f32.mrb[0].mxu0
      %v2908 = vadd.f32 0.0, %v2907
      %v2909 = vpop.f32.mrb[0].mxu0
      %v2910 = vpop.f32.mrb[0].mxu0
      %v2911 = vadd.f32 0.0, %v2910
      %v2912 = vpop.f32.mrb[0].mxu0
      %2913 = vmatprep.mubr.bf16.mxu0 0
      %2914 = vmatmul.mubr.bf16.gmra.mrb[0].mxu0 %v2820
      %v2915 = vpop.f32.mrb[0].mxu0
      %v2916 = vadd.f32 0.0, %v2915
      %v2917 = vpop.f32.mrb[0].mxu0
      %v2918 = vpop.f32.mrb[0].mxu0
      %v2919 = vadd.f32 0.0, %v2918
      %v2920 = vpop.f32.mrb[0].mxu0
      %2921 = vmatprep.mubr.bf16.mxu0 0
      %2922 = vmatmul.mubr.bf16.gmra.mrb[0].mxu0 %v2823
      %v2923 = vpop.f32.mrb[0].mxu0
      %v2924 = vadd.f32 0.0, %v2923
      %v2925 = vpop.f32.mrb[0].mxu0
      %v2926 = vpop.f32.mrb[0].mxu0
      %v2927 = vadd.f32 0.0, %v2926
      %v2928 = vpop.f32.mrb[0].mxu0
      %2929 = vmatprep.mubr.bf16.mxu0 0
      %2930 = vmatmul.mubr.bf16.gmra.mrb[0].mxu0 %v2826
      %v2931 = vpop.f32.mrb[0].mxu0
      %v2932 = vadd.f32 0.0, %v2931
      %v2933 = vpop.f32.mrb[0].mxu0
      %v2934 = vpop.f32.mrb[0].mxu0
      %v2935 = vadd.f32 0.0, %v2934
      %v2936 = vpop.f32.mrb[0].mxu0
      %2937 = vmatprep.mubr.bf16.mxu0 0
      %2938 = vmatmul.mubr.bf16.gmra.mrb[0].mxu0 %v2829
      %v2939 = vpop.f32.mrb[0].mxu0
      %v2940 = vadd.f32 0.0, %v2939
      %v2941 = vpop.f32.mrb[0].mxu0
      %v2942 = vpop.f32.mrb[0].mxu0
      %v2943 = vadd.f32 0.0, %v2942
      %v2944 = vpop.f32.mrb[0].mxu0
      %2945 = vmatprep.mubr.bf16.mxu0 0
      %2946 = vmatmul.mubr.bf16.gmra.mrb[0].mxu0 %v2832
      %v2947 = vpop.f32.mrb[0].mxu0
      %v2948 = vadd.f32 0.0, %v2947
      %v2949 = vpop.f32.mrb[0].mxu0
      %v2950 = vpop.f32.mrb[0].mxu0
      %v2951 = vadd.f32 0.0, %v2950
      %v2952 = vpop.f32.mrb[0].mxu0
      %2953 = vmatprep.mubr.bf16.mxu0 0
      %2954 = vmatmul.mubr.bf16.gmra.mrb[0].mxu0 %v2835
      %v2955 = vpop.f32.mrb[0].mxu0
      %v2956 = vadd.f32 0.0, %v2955
      %v2957 = vpop.f32.mrb[0].mxu0
      %v2958 = vpop.f32.mrb[0].mxu0
      %v2959 = vadd.f32 0.0, %v2958
      %v2960 = vpop.f32.mrb[0].mxu0
      %2961 = vmatprep.mubr.bf16.mxu0 0
      %2962 = vmatmul.mubr.bf16.gmra.mrb[0].mxu0 %v2838
      %v2963 = vpop.f32.mrb[0].mxu0
      %v2964 = vadd.f32 0.0, %v2963
      %v2965 = vpop.f32.mrb[0].mxu0
      %v2966 = vpop.f32.mrb[0].mxu0
      %v2967 = vadd.f32 0.0, %v2966
      %v2968 = vpop.f32.mrb[0].mxu0
      %2969 = vmatprep.mubr.bf16.mxu0 0
      %2970 = vmatmul.mubr.bf16.gmra.mrb[0].mxu0 %v2841
      %v2971 = vpop.f32.mrb[0].mxu0
      %v2972 = vadd.f32 0.0, %v2971
      %v2973 = vpop.f32.mrb[0].mxu0
      %v2974 = vpop.f32.mrb[0].mxu0
      %v2975 = vadd.f32 0.0, %v2974
      %v2976 = vpop.f32.mrb[0].mxu0
      %2977 = vmatprep.mubr.bf16.mxu0 0
      %2978 = vmatmul.mubr.bf16.gmra.mrb[0].mxu0 %v2844
      %v2979 = vpop.f32.mrb[0].mxu0
      %v2980 = vadd.f32 0.0, %v2979
      %v2981 = vpop.f32.mrb[0].mxu0
      %v2982 = vpop.f32.mrb[0].mxu0
      %v2983 = vpop.f32.mrb[0].mxu0
      %2984 = vdwg.mxu0
      %v2985 = vadd.f32 %v2252, %v2884
      %v2986 = vadd.f32 %v2255, %v2887
      %v2987 = vadd.f32 %v2260, %v2892
      %v2988 = vadd.f32 %v2263, %v2895
      %v2989 = vadd.f32 %v2268, %v2900
      %v2990 = vadd.f32 %v2271, %v2903
      %v2991 = vadd.f32 %v2276, %v2908
      %v2992 = vadd.f32 %v2279, %v2911
      %v2993 = vadd.f32 %v2284, %v2916
      %v2994 = vadd.f32 %v2287, %v2919
      %v2995 = vadd.f32 %v2292, %v2924
      %v2996 = vadd.f32 %v2295, %v2927
      %v2997 = vadd.f32 %v2300, %v2932
      %v2998 = vadd.f32 %v2303, %v2935
      %v2999 = vadd.f32 %v2308, %v2940
      %v3000 = vadd.f32 %v2311, %v2943
      %v3001 = vadd.f32 %v2316, %v2948
      %v3002 = vadd.f32 %v2319, %v2951
      %v3003 = vadd.f32 %v2324, %v2956
      %v3004 = vadd.f32 %v2327, %v2959
      %v3005 = vadd.f32 %v2332, %v2964
      %v3006 = vadd.f32 %v2335, %v2967
      %v3007 = vadd.f32 %v2340, %v2972
      %v3008 = vadd.f32 %v2343, %v2975
      %v3009 = vadd.f32 %v2348, %v2980
      %v3012 = vcombine.high %v254, %v254
      %v3014 = vunpack.c.l.s4 1983009808
      %v3015 = vunpack.c.0.s8 %v3014
      %v3016 = vlaneseq
      %v3017 = vshrl.u32 %v3016, 7
      %v3018 = vsub.s32 %v3015, %v3017
      %v3019 = vrot.slane %v254, %v3018
      %v3021 = vunpack.c.l.s4 1983009808
      %v3022 = vunpack.c.0.s8 %v3021
      %v3023 = vlaneseq
      %v3024 = vshrl.u32 %v3023, 7
      %v3025 = vsub.s32 %v3022, %v3024
      %v3026 = vrot.slane %v3012, %v3025
      %v3027 = vcombine.high %v3019, %v3019
      %v3028 = vcombine.high %v3026, %v3026
      %v3029 = vcombine.high %v255, %v255
      %v3031 = vunpack.c.l.s4 1983009808
      %v3032 = vunpack.c.0.s8 %v3031
      %v3033 = vlaneseq
      %v3034 = vshrl.u32 %v3033, 7
      %v3035 = vsub.s32 %v3032, %v3034
      %v3036 = vrot.slane %v255, %v3035
      %v3038 = vunpack.c.l.s4 1983009808
      %v3039 = vunpack.c.0.s8 %v3038
      %v3040 = vlaneseq
      %v3041 = vshrl.u32 %v3040, 7
      %v3042 = vsub.s32 %v3039, %v3041
      %v3043 = vrot.slane %v3029, %v3042
      %v3044 = vcombine.high %v3036, %v3036
      %v3045 = vcombine.low %v332, %v340
      %v3047 = vunpack.c.l.s4 1983009808
      %v3048 = vunpack.c.0.s8 %v3047
      %v3049 = vlaneseq
      %v3050 = vshrl.u32 %v3049, 7
      %v3051 = vsub.s32 %v3048, %v3050
      %v3052 = vrot.slane %v3045, %v3051
      %v3053 = vcombine.low %v3052, %v2395
      %v3054 = vcombine.low %v356, %v365
      %v3056 = vunpack.c.l.s4 1983009808
      %v3057 = vunpack.c.0.s8 %v3056
      %v3058 = vlaneseq
      %v3059 = vshrl.u32 %v3058, 7
      %v3060 = vsub.s32 %v3057, %v3059
      %v3061 = vrot.slane %v3054, %v3060
      %v3062 = vcombine.low %v2402, %v3061
      %v3063 = vcombine.low %v2419, %v2429
      %v3064 = vcombine.low %v398, %v406
      %v3066 = vunpack.c.l.s4 1983009808
      %v3067 = vunpack.c.0.s8 %v3066
      %v3068 = vlaneseq
      %v3069 = vshrl.u32 %v3068, 7
      %v3070 = vsub.s32 %v3067, %v3069
      %v3071 = vrot.slane %v3064, %v3070
      %v3072 = vcombine.low %v2436, %v3071
      %v3073 = vcombine.low %v2453, %v2463
      %v3074 = vcombine.low %v422, %v431
      %v3076 = vunpack.c.l.s4 1983009808
      %v3077 = vunpack.c.0.s8 %v3076
      %v3078 = vlaneseq
      %v3079 = vshrl.u32 %v3078, 7
      %v3080 = vsub.s32 %v3077, %v3079
      %v3081 = vrot.slane %v3074, %v3080
      %v3082 = vcombine.low %v3081, %v2480
      %v3083 = vcombine.low %v2487, %v2497
      %v3084 = vcombine.low %v464, %v472
      %v3086 = vunpack.c.l.s4 1983009808
      %v3087 = vunpack.c.0.s8 %v3086
      %v3088 = vlaneseq
      %v3089 = vshrl.u32 %v3088, 7
      %v3090 = vsub.s32 %v3087, %v3089
      %v3091 = vrot.slane %v3084, %v3090
      %v3092 = vcombine.low %v3091, %v2514
      %v3093 = vcombine.low %v488, %v497
      %v3095 = vunpack.c.l.s4 1983009808
      %v3096 = vunpack.c.0.s8 %v3095
      %v3097 = vlaneseq
      %v3098 = vshrl.u32 %v3097, 7
      %v3099 = vsub.s32 %v3096, %v3098
      %v3100 = vrot.slane %v3093, %v3099
      %v3101 = vcombine.low %v2521, %v3100
      %v3102 = vcombine.low %v2538, %v2548
      %v3103 = vcombine.low %v530, %v538
      %v3105 = vunpack.c.l.s4 1983009808
      %v3106 = vunpack.c.0.s8 %v3105
      %v3107 = vlaneseq
      %v3108 = vshrl.u32 %v3107, 7
      %v3109 = vsub.s32 %v3106, %v3108
      %v3110 = vrot.slane %v3103, %v3109
      %v3111 = vcombine.low %v2555, %v3110
      %v3112 = vcombine.low %v2572, %v2582
      %v3113 = vcombine.low %v554, %v563
      %v3115 = vunpack.c.l.s4 1983009808
      %v3116 = vunpack.c.0.s8 %v3115
      %v3117 = vlaneseq
      %v3118 = vshrl.u32 %v3117, 7
      %v3119 = vsub.s32 %v3116, %v3118
      %v3120 = vrot.slane %v3113, %v3119
      %v3121 = vcombine.low %v3120, %v2599
      %v3122 = vcombine.low %v2606, %v2616
      %v3123 = vcombine.low %v596, %v604
      %v3125 = vunpack.c.l.s4 1983009808
      %v3126 = vunpack.c.0.s8 %v3125
      %v3127 = vlaneseq
      %v3128 = vshrl.u32 %v3127, 7
      %v3129 = vsub.s32 %v3126, %v3128
      %v3130 = vrot.slane %v3123, %v3129
      %v3131 = vcombine.low %v3130, %v2633
      %v3132 = vcombine.low %v620, %v629
      %v3134 = vunpack.c.l.s4 1983009808
      %v3135 = vunpack.c.0.s8 %v3134
      %v3136 = vlaneseq
      %v3137 = vshrl.u32 %v3136, 7
      %v3138 = vsub.s32 %v3135, %v3137
      %v3139 = vrot.slane %v3132, %v3138
      %v3140 = vcombine.low %v2640, %v3139
      %v3141 = vcombine.low %v2657, %v2667
      %v3142 = vcombine.low %v662, %v670
      %v3144 = vunpack.c.l.s4 1983009808
      %v3145 = vunpack.c.0.s8 %v3144
      %v3146 = vlaneseq
      %v3147 = vshrl.u32 %v3146, 7
      %v3148 = vsub.s32 %v3145, %v3147
      %v3149 = vrot.slane %v3142, %v3148
      %v3150 = vcombine.low %v2674, %v3149
      %v3151 = vcombine.low %v2691, %v2701
      %v3152 = vcombine.low %v686, %v695
      %v3154 = vunpack.c.l.s4 1983009808
      %v3155 = vunpack.c.0.s8 %v3154
      %v3156 = vlaneseq
      %v3157 = vshrl.u32 %v3156, 7
      %v3158 = vsub.s32 %v3155, %v3157
      %v3159 = vrot.slane %v3152, %v3158
      %v3160 = vcombine.low %v3159, %v2718
      %v3161 = vcombine.low %v2725, %v2735
      %v3162 = vcombine.low %v728, %v736
      %v3164 = vunpack.c.l.s4 1983009808
      %v3165 = vunpack.c.0.s8 %v3164
      %v3166 = vlaneseq
      %v3167 = vshrl.u32 %v3166, 7
      %v3168 = vsub.s32 %v3165, %v3167
      %v3169 = vrot.slane %v3162, %v3168
      %v3170 = vcombine.low %v3169, %v2752
      %v3171 = vcombine.low %v752, %v3019
      %v3173 = vunpack.c.l.s4 1983009808
      %v3174 = vunpack.c.0.s8 %v3173
      %v3175 = vlaneseq
      %v3176 = vshrl.u32 %v3175, 7
      %v3177 = vsub.s32 %v3174, %v3176
      %v3178 = vrot.slane %v3171, %v3177
      %v3179 = vcombine.low %v2759, %v3178
      %v3180 = vcombine.low %v3027, %v3026
      %v3181 = vcombine.low %v3028, %v3036
      %v3183 = vunpack.c.l.s4 1983009808
      %v3184 = vunpack.c.0.s8 %v3183
      %v3185 = vlaneseq
      %v3186 = vshrl.u32 %v3185, 7
      %v3187 = vsub.s32 %v3184, %v3186
      %v3188 = vrot.slane %v3180, %v3187
      %v3190 = vunpack.c.l.s4 1983009808
      %v3191 = vunpack.c.0.s8 %v3190
      %v3192 = vlaneseq
      %v3193 = vshrl.u32 %v3192, 7
      %v3194 = vsub.s32 %v3191, %v3193
      %v3195 = vrot.slane %v3181, %v3194
      %v3196 = vcombine.low %v3188, %v3195
      %v3197 = vcombine.low %v3044, %v3043
      %v3199 = vunpack.c.l.s4 1983009808
      %v3200 = vunpack.c.0.s8 %v3199
      %v3201 = vlaneseq
      %v3202 = vshrl.u32 %v3201, 7
      %v3203 = vsub.s32 %v3200, %v3202
      %v3204 = vrot.slane %v3197, %v3203
      %v3230 = vpack.c.bf16 %v3062, %v3053
      %v3231 = vpack.c.bf16 %v3072, %v3063
      %v3232 = vpack.c.bf16 %v3082, %v3073
      %v3233 = vpack.c.bf16 %v3092, %v3083
      %v3234 = vpack.c.bf16 %v3102, %v3101
      %v3235 = vpack.c.bf16 %v3112, %v3111
      %v3236 = vpack.c.bf16 %v3122, %v3121
      %v3237 = vpack.c.bf16 %v3140, %v3131
      %v3238 = vpack.c.bf16 %v3150, %v3141
      %v3239 = vpack.c.bf16 %v3160, %v3151
      %v3240 = vpack.c.bf16 %v3170, %v3161
      %v3241 = vpack.c.bf16 %v3196, %v3179
      %v3242 = vpack.c.bf16 %v3204, %v3204
      %v3244 = vunpack.c.l.b16 %v259
      %v3245 = vpack.c.b16 %v3244, %v3244
      %v3246 = vrot.slane %v3245, 2
      %v3248 = vsel %vm1995, %v3230, 0
      %v3251 = vsel %vm1995, %v3231, 0
      %v3254 = vsel %vm1995, %v3232, 0
      %v3257 = vsel %vm1995, %v3233, 0
      %v3260 = vsel %vm1995, %v3234, 0
      %v3263 = vsel %vm1995, %v3235, 0
      %v3266 = vsel %vm1995, %v3236, 0
      %v3269 = vsel %vm1995, %v3237, 0
      %v3272 = vsel %vm1995, %v3238, 0
      %v3275 = vsel %vm1995, %v3239, 0
      %v3278 = vsel %vm1995, %v3240, 0
      %v3281 = vsel %vm1995, %v3241, 0
      %v3284 = vsel %vm1995, %v3242, 0
      %v3287 = vsel %vm2035, %v3246, 0
      %3289 = vmatprep.subr.bf16.mxu0 0
      %3290 = vmatpush1.bf16.msra.mxu0 %v3287
      %3291 = vmatprep.subr.bf16.mxu0 0
      %3292 = vmatpush1.bf16.msra.mxu0 0
      %3293 = vmatprep.subr.bf16.mxu0 0
      %3294 = vmatpush1.bf16.msra.mxu0 0
      %3295 = vmatprep.subr.bf16.mxu0 0
      %3296 = vmatpush1.bf16.msra.mxu0 0
      %3297 = vmatprep.subr.bf16.mxu0 0
      %3298 = vmatpush1.bf16.msra.mxu0 0
      %3299 = vmatprep.subr.bf16.mxu0 0
      %3300 = vmatpush1.bf16.msra.mxu0 0
      %3301 = vmatprep.subr.bf16.mxu0 0
      %3302 = vmatpush1.bf16.msra.mxu0 0
      %3303 = vmatprep.subr.bf16.mxu0 0
      %3304 = vmatpush1.bf16.msra.mxu0 0
      %3305 = vmatprep.subr.bf16.mxu0 0
      %3306 = vmatpush1.bf16.msra.mxu0 0
      %3307 = vmatprep.subr.bf16.mxu0 0
      %3308 = vmatpush1.bf16.msra.mxu0 0
      %3309 = vmatprep.subr.bf16.mxu0 0
      %3310 = vmatpush1.bf16.msra.mxu0 0
      %3311 = vmatprep.subr.bf16.mxu0 0
      %3312 = vmatpush1.bf16.msra.mxu0 0
      %3313 = vmatprep.subr.bf16.mxu0 0
      %3314 = vmatpush1.bf16.msra.mxu0 0
      %3315 = vmatprep.subr.bf16.mxu0 0
      %3316 = vmatpush1.bf16.msra.mxu0 0
      %3317 = vmatprep.subr.bf16.mxu0 0
      %3318 = vmatpush1.bf16.msra.mxu0 0
      %3319 = vmatprep.subr.bf16.mxu0 0
      %3320 = vmatpush1.bf16.msra.mxu0 0
      %3321 = vmatprep.mubr.bf16.mxu0 0
      %3322 = vmatmul.mubr.bf16.gmra.mrb[0].mxu0 %v3248
      %v3323 = vpop.f32.mrb[0].mxu0
      %v3324 = vadd.f32 0.0, %v3323
      %v3325 = vpop.f32.mrb[0].mxu0
      %v3326 = vpop.f32.mrb[0].mxu0
      %v3327 = vadd.f32 0.0, %v3326
      %v3328 = vpop.f32.mrb[0].mxu0
      %3329 = vmatprep.mubr.bf16.mxu0 0
      %3330 = vmatmul.mubr.bf16.gmra.mrb[0].mxu0 %v3251
      %v3331 = vpop.f32.mrb[0].mxu0
      %v3332 = vadd.f32 0.0, %v3331
      %v3333 = vpop.f32.mrb[0].mxu0
      %v3334 = vpop.f32.mrb[0].mxu0
      %v3335 = vadd.f32 0.0, %v3334
      %v3336 = vpop.f32.mrb[0].mxu0
      %3337 = vmatprep.mubr.bf16.mxu0 0
      %3338 = vmatmul.mubr.bf16.gmra.mrb[0].mxu0 %v3254
      %v3339 = vpop.f32.mrb[0].mxu0
      %v3340 = vadd.f32 0.0, %v3339
      %v3341 = vpop.f32.mrb[0].mxu0
      %v3342 = vpop.f32.mrb[0].mxu0
      %v3343 = vadd.f32 0.0, %v3342
      %v3344 = vpop.f32.mrb[0].mxu0
      %3345 = vmatprep.mubr.bf16.mxu0 0
      %3346 = vmatmul.mubr.bf16.gmra.mrb[0].mxu0 %v3257
      %v3347 = vpop.f32.mrb[0].mxu0
      %v3348 = vadd.f32 0.0, %v3347
      %v3349 = vpop.f32.mrb[0].mxu0
      %v3350 = vpop.f32.mrb[0].mxu0
      %v3351 = vadd.f32 0.0, %v3350
      %v3352 = vpop.f32.mrb[0].mxu0
      %3353 = vmatprep.mubr.bf16.mxu0 0
      %3354 = vmatmul.mubr.bf16.gmra.mrb[0].mxu0 %v3260
      %v3355 = vpop.f32.mrb[0].mxu0
      %v3356 = vadd.f32 0.0, %v3355
      %v3357 = vpop.f32.mrb[0].mxu0
      %v3358 = vpop.f32.mrb[0].mxu0
      %v3359 = vadd.f32 0.0, %v3358
      %v3360 = vpop.f32.mrb[0].mxu0
      %3361 = vmatprep.mubr.bf16.mxu0 0
      %3362 = vmatmul.mubr.bf16.gmra.mrb[0].mxu0 %v3263
      %v3363 = vpop.f32.mrb[0].mxu0
      %v3364 = vadd.f32 0.0, %v3363
      %v3365 = vpop.f32.mrb[0].mxu0
      %v3366 = vpop.f32.mrb[0].mxu0
      %v3367 = vadd.f32 0.0, %v3366
      %v3368 = vpop.f32.mrb[0].mxu0
      %3369 = vmatprep.mubr.bf16.mxu0 0
      %3370 = vmatmul.mubr.bf16.gmra.mrb[0].mxu0 %v3266
      %v3371 = vpop.f32.mrb[0].mxu0
      %v3372 = vadd.f32 0.0, %v3371
      %v3373 = vpop.f32.mrb[0].mxu0
      %v3374 = vpop.f32.mrb[0].mxu0
      %v3375 = vadd.f32 0.0, %v3374
      %v3376 = vpop.f32.mrb[0].mxu0
      %3377 = vmatprep.mubr.bf16.mxu0 0
      %3378 = vmatmul.mubr.bf16.gmra.mrb[0].mxu0 %v3269
      %v3379 = vpop.f32.mrb[0].mxu0
      %v3380 = vadd.f32 0.0, %v3379
      %v3381 = vpop.f32.mrb[0].mxu0
      %v3382 = vpop.f32.mrb[0].mxu0
      %v3383 = vadd.f32 0.0, %v3382
      %v3384 = vpop.f32.mrb[0].mxu0
      %3385 = vmatprep.mubr.bf16.mxu0 0
      %3386 = vmatmul.mubr.bf16.gmra.mrb[0].mxu0 %v3272
      %v3387 = vpop.f32.mrb[0].mxu0
      %v3388 = vadd.f32 0.0, %v3387
      %v3389 = vpop.f32.mrb[0].mxu0
      %v3390 = vpop.f32.mrb[0].mxu0
      %v3391 = vadd.f32 0.0, %v3390
      %v3392 = vpop.f32.mrb[0].mxu0
      %3393 = vmatprep.mubr.bf16.mxu0 0
      %3394 = vmatmul.mubr.bf16.gmra.mrb[0].mxu0 %v3275
      %v3395 = vpop.f32.mrb[0].mxu0
      %v3396 = vadd.f32 0.0, %v3395
      %v3397 = vpop.f32.mrb[0].mxu0
      %v3398 = vpop.f32.mrb[0].mxu0
      %v3399 = vadd.f32 0.0, %v3398
      %v3400 = vpop.f32.mrb[0].mxu0
      %3401 = vmatprep.mubr.bf16.mxu0 0
      %3402 = vmatmul.mubr.bf16.gmra.mrb[0].mxu0 %v3278
      %v3403 = vpop.f32.mrb[0].mxu0
      %v3404 = vadd.f32 0.0, %v3403
      %v3405 = vpop.f32.mrb[0].mxu0
      %v3406 = vpop.f32.mrb[0].mxu0
      %v3407 = vadd.f32 0.0, %v3406
      %v3408 = vpop.f32.mrb[0].mxu0
      %3409 = vmatprep.mubr.bf16.mxu0 0
      %3410 = vmatmul.mubr.bf16.gmra.mrb[0].mxu0 %v3281
      %v3411 = vpop.f32.mrb[0].mxu0
      %v3412 = vadd.f32 0.0, %v3411
      %v3413 = vpop.f32.mrb[0].mxu0
      %v3414 = vpop.f32.mrb[0].mxu0
      %v3415 = vadd.f32 0.0, %v3414
      %v3416 = vpop.f32.mrb[0].mxu0
      %3417 = vmatprep.mubr.bf16.mxu0 0
      %3418 = vmatmul.mubr.bf16.gmra.mrb[0].mxu0 %v3284
      %v3419 = vpop.f32.mrb[0].mxu0
      %v3420 = vadd.f32 0.0, %v3419
      %v3421 = vpop.f32.mrb[0].mxu0
      %v3422 = vpop.f32.mrb[0].mxu0
      %v3423 = vpop.f32.mrb[0].mxu0
      %3424 = vdwg.mxu0
      %v3425 = vadd.f32 %v2985, %v3324
      %v3426 = vadd.f32 %v2986, %v3327
      %v3427 = vadd.f32 %v2987, %v3332
      %v3428 = vadd.f32 %v2988, %v3335
      %v3429 = vadd.f32 %v2989, %v3340
      %v3430 = vadd.f32 %v2990, %v3343
      %v3431 = vadd.f32 %v2991, %v3348
      %v3432 = vadd.f32 %v2992, %v3351
      %v3433 = vadd.f32 %v2993, %v3356
      %v3434 = vadd.f32 %v2994, %v3359
      %v3435 = vadd.f32 %v2995, %v3364
      %v3436 = vadd.f32 %v2996, %v3367
      %v3437 = vadd.f32 %v2997, %v3372
      %v3438 = vadd.f32 %v2998, %v3375
      %v3439 = vadd.f32 %v2999, %v3380
      %v3440 = vadd.f32 %v3000, %v3383
      %v3441 = vadd.f32 %v3001, %v3388
      %v3442 = vadd.f32 %v3002, %v3391
      %v3443 = vadd.f32 %v3003, %v3396
      %v3444 = vadd.f32 %v3004, %v3399
      %v3445 = vadd.f32 %v3005, %v3404
      %v3446 = vadd.f32 %v3006, %v3407
      %v3447 = vadd.f32 %v3007, %v3412
      %v3448 = vadd.f32 %v3008, %v3415
      %v3449 = vadd.f32 %v3009, %v3420
      %v3450 = vcombine.high %v3043, %v3043
      %v3451 = vrot.slane %v3019, 7
      %v3452 = vrot.slane %v3451, 2
      %v3453 = vrot.slane %v3027, 7
      %v3454 = vsel %vm1228, %v3452, %v3453
      %v3455 = vrot.slane %v3453, 2
      %v3456 = vrot.slane %v3026, 7
      %v3457 = vsel %vm1228, %v3455, %v3456
      %v3458 = vrot.slane %v3456, 2
      %v3459 = vrot.slane %v3028, 7
      %v3460 = vsel %vm1228, %v3458, %v3459
      %v3461 = vrot.slane %v3459, 2
      %v3462 = vrot.slane %v3036, 7
      %v3463 = vsel %vm1228, %v3461, %v3462
      %v3464 = vrot.slane %v3462, 2
      %v3465 = vrot.slane %v3044, 7
      %v3466 = vsel %vm1228, %v3464, %v3465
      %v3467 = vrot.slane %v3465, 2
      %v3468 = vrot.slane %v3043, 7
      %v3469 = vsel %vm1228, %v3467, %v3468
      %v3470 = vrot.slane %v3468, 2
      %v3471 = vrot.slane %v3450, 7
      %v3472 = vsel %vm1228, %v3470, %v3471
      %v3473 = vcombine.low %v1254, %v1257
      %v3474 = vcombine.low %v1260, %v1263
      %v3476 = vunpack.c.l.s4 1983009808
      %v3477 = vunpack.c.0.s8 %v3476
      %v3478 = vlaneseq
      %v3479 = vshrl.u32 %v3478, 7
      %v3480 = vsub.s32 %v3477, %v3479
      %v3481 = vrot.slane %v3473, %v3480
      %v3483 = vunpack.c.l.s4 1983009808
      %v3484 = vunpack.c.0.s8 %v3483
      %v3485 = vlaneseq
      %v3486 = vshrl.u32 %v3485, 7
      %v3487 = vsub.s32 %v3484, %v3486
      %v3488 = vrot.slane %v3474, %v3487
      %v3489 = vcombine.low %v3481, %v3488
      %v3490 = vcombine.low %v1266, %v1269
      %v3491 = vcombine.low %v1272, %v1276
      %v3493 = vunpack.c.l.s4 1983009808
      %v3494 = vunpack.c.0.s8 %v3493
      %v3495 = vlaneseq
      %v3496 = vshrl.u32 %v3495, 7
      %v3497 = vsub.s32 %v3494, %v3496
      %v3498 = vrot.slane %v3490, %v3497
      %v3500 = vunpack.c.l.s4 1983009808
      %v3501 = vunpack.c.0.s8 %v3500
      %v3502 = vlaneseq
      %v3503 = vshrl.u32 %v3502, 7
      %v3504 = vsub.s32 %v3501, %v3503
      %v3505 = vrot.slane %v3491, %v3504
      %v3506 = vcombine.low %v3498, %v3505
      %v3507 = vcombine.low %v1279, %v1282
      %v3508 = vcombine.low %v1285, %v1288
      %v3510 = vunpack.c.l.s4 1983009808
      %v3511 = vunpack.c.0.s8 %v3510
      %v3512 = vlaneseq
      %v3513 = vshrl.u32 %v3512, 7
      %v3514 = vsub.s32 %v3511, %v3513
      %v3515 = vrot.slane %v3507, %v3514
      %v3517 = vunpack.c.l.s4 1983009808
      %v3518 = vunpack.c.0.s8 %v3517
      %v3519 = vlaneseq
      %v3520 = vshrl.u32 %v3519, 7
      %v3521 = vsub.s32 %v3518, %v3520
      %v3522 = vrot.slane %v3508, %v3521
      %v3523 = vcombine.low %v3515, %v3522
      %v3524 = vcombine.low %v1291, %v1294
      %v3525 = vcombine.low %v1298, %v1301
      %v3527 = vunpack.c.l.s4 1983009808
      %v3528 = vunpack.c.0.s8 %v3527
      %v3529 = vlaneseq
      %v3530 = vshrl.u32 %v3529, 7
      %v3531 = vsub.s32 %v3528, %v3530
      %v3532 = vrot.slane %v3524, %v3531
      %v3534 = vunpack.c.l.s4 1983009808
      %v3535 = vunpack.c.0.s8 %v3534
      %v3536 = vlaneseq
      %v3537 = vshrl.u32 %v3536, 7
      %v3538 = vsub.s32 %v3535, %v3537
      %v3539 = vrot.slane %v3525, %v3538
      %v3540 = vcombine.low %v3532, %v3539
      %v3541 = vcombine.low %v1304, %v1307
      %v3542 = vcombine.low %v1310, %v1313
      %v3544 = vunpack.c.l.s4 1983009808
      %v3545 = vunpack.c.0.s8 %v3544
      %v3546 = vlaneseq
      %v3547 = vshrl.u32 %v3546, 7
      %v3548 = vsub.s32 %v3545, %v3547
      %v3549 = vrot.slane %v3541, %v3548
      %v3551 = vunpack.c.l.s4 1983009808
      %v3552 = vunpack.c.0.s8 %v3551
      %v3553 = vlaneseq
      %v3554 = vshrl.u32 %v3553, 7
      %v3555 = vsub.s32 %v3552, %v3554
      %v3556 = vrot.slane %v3542, %v3555
      %v3557 = vcombine.low %v3549, %v3556
      %v3558 = vcombine.low %v1316, %v1320
      %v3559 = vcombine.low %v1323, %v1326
      %v3561 = vunpack.c.l.s4 1983009808
      %v3562 = vunpack.c.0.s8 %v3561
      %v3563 = vlaneseq
      %v3564 = vshrl.u32 %v3563, 7
      %v3565 = vsub.s32 %v3562, %v3564
      %v3566 = vrot.slane %v3558, %v3565
      %v3568 = vunpack.c.l.s4 1983009808
      %v3569 = vunpack.c.0.s8 %v3568
      %v3570 = vlaneseq
      %v3571 = vshrl.u32 %v3570, 7
      %v3572 = vsub.s32 %v3569, %v3571
      %v3573 = vrot.slane %v3559, %v3572
      %v3574 = vcombine.low %v3566, %v3573
      %v3575 = vcombine.low %v1329, %v1332
      %v3576 = vcombine.low %v1335, %v1338
      %v3578 = vunpack.c.l.s4 1983009808
      %v3579 = vunpack.c.0.s8 %v3578
      %v3580 = vlaneseq
      %v3581 = vshrl.u32 %v3580, 7
      %v3582 = vsub.s32 %v3579, %v3581
      %v3583 = vrot.slane %v3575, %v3582
      %v3585 = vunpack.c.l.s4 1983009808
      %v3586 = vunpack.c.0.s8 %v3585
      %v3587 = vlaneseq
      %v3588 = vshrl.u32 %v3587, 7
      %v3589 = vsub.s32 %v3586, %v3588
      %v3590 = vrot.slane %v3576, %v3589
      %v3591 = vcombine.low %v3583, %v3590
      %v3592 = vcombine.low %v1342, %v1345
      %v3593 = vcombine.low %v1348, %v1351
      %v3595 = vunpack.c.l.s4 1983009808
      %v3596 = vunpack.c.0.s8 %v3595
      %v3597 = vlaneseq
      %v3598 = vshrl.u32 %v3597, 7
      %v3599 = vsub.s32 %v3596, %v3598
      %v3600 = vrot.slane %v3592, %v3599
      %v3602 = vunpack.c.l.s4 1983009808
      %v3603 = vunpack.c.0.s8 %v3602
      %v3604 = vlaneseq
      %v3605 = vshrl.u32 %v3604, 7
      %v3606 = vsub.s32 %v3603, %v3605
      %v3607 = vrot.slane %v3593, %v3606
      %v3608 = vcombine.low %v3600, %v3607
      %v3609 = vcombine.low %v1354, %v1357
      %v3610 = vcombine.low %v1360, %v1364
      %v3612 = vunpack.c.l.s4 1983009808
      %v3613 = vunpack.c.0.s8 %v3612
      %v3614 = vlaneseq
      %v3615 = vshrl.u32 %v3614, 7
      %v3616 = vsub.s32 %v3613, %v3615
      %v3617 = vrot.slane %v3609, %v3616
      %v3619 = vunpack.c.l.s4 1983009808
      %v3620 = vunpack.c.0.s8 %v3619
      %v3621 = vlaneseq
      %v3622 = vshrl.u32 %v3621, 7
      %v3623 = vsub.s32 %v3620, %v3622
      %v3624 = vrot.slane %v3610, %v3623
      %v3625 = vcombine.low %v3617, %v3624
      %v3626 = vcombine.low %v1367, %v1370
      %v3627 = vcombine.low %v1373, %v1376
      %v3629 = vunpack.c.l.s4 1983009808
      %v3630 = vunpack.c.0.s8 %v3629
      %v3631 = vlaneseq
      %v3632 = vshrl.u32 %v3631, 7
      %v3633 = vsub.s32 %v3630, %v3632
      %v3634 = vrot.slane %v3626, %v3633
      %v3636 = vunpack.c.l.s4 1983009808
      %v3637 = vunpack.c.0.s8 %v3636
      %v3638 = vlaneseq
      %v3639 = vshrl.u32 %v3638, 7
      %v3640 = vsub.s32 %v3637, %v3639
      %v3641 = vrot.slane %v3627, %v3640
      %v3642 = vcombine.low %v3634, %v3641
      %v3643 = vcombine.low %v1379, %v1382
      %v3644 = vcombine.low %v1386, %v1389
      %v3646 = vunpack.c.l.s4 1983009808
      %v3647 = vunpack.c.0.s8 %v3646
      %v3648 = vlaneseq
      %v3649 = vshrl.u32 %v3648, 7
      %v3650 = vsub.s32 %v3647, %v3649
      %v3651 = vrot.slane %v3643, %v3650
      %v3653 = vunpack.c.l.s4 1983009808
      %v3654 = vunpack.c.0.s8 %v3653
      %v3655 = vlaneseq
      %v3656 = vshrl.u32 %v3655, 7
      %v3657 = vsub.s32 %v3654, %v3656
      %v3658 = vrot.slane %v3644, %v3657
      %v3659 = vcombine.low %v3651, %v3658
      %v3660 = vcombine.low %v1392, %v1395
      %v3661 = vcombine.low %v1398, %v1401
      %v3663 = vunpack.c.l.s4 1983009808
      %v3664 = vunpack.c.0.s8 %v3663
      %v3665 = vlaneseq
      %v3666 = vshrl.u32 %v3665, 7
      %v3667 = vsub.s32 %v3664, %v3666
      %v3668 = vrot.slane %v3660, %v3667
      %v3670 = vunpack.c.l.s4 1983009808
      %v3671 = vunpack.c.0.s8 %v3670
      %v3672 = vlaneseq
      %v3673 = vshrl.u32 %v3672, 7
      %v3674 = vsub.s32 %v3671, %v3673
      %v3675 = vrot.slane %v3661, %v3674
      %v3676 = vcombine.low %v3668, %v3675
      %v3677 = vcombine.low %v1404, %v1408
      %v3678 = vcombine.low %v1411, %v1414
      %v3680 = vunpack.c.l.s4 1983009808
      %v3681 = vunpack.c.0.s8 %v3680
      %v3682 = vlaneseq
      %v3683 = vshrl.u32 %v3682, 7
      %v3684 = vsub.s32 %v3681, %v3683
      %v3685 = vrot.slane %v3677, %v3684
      %v3687 = vunpack.c.l.s4 1983009808
      %v3688 = vunpack.c.0.s8 %v3687
      %v3689 = vlaneseq
      %v3690 = vshrl.u32 %v3689, 7
      %v3691 = vsub.s32 %v3688, %v3690
      %v3692 = vrot.slane %v3678, %v3691
      %v3693 = vcombine.low %v3685, %v3692
      %v3694 = vcombine.low %v1417, %v1420
      %v3695 = vcombine.low %v1423, %v1426
      %v3697 = vunpack.c.l.s4 1983009808
      %v3698 = vunpack.c.0.s8 %v3697
      %v3699 = vlaneseq
      %v3700 = vshrl.u32 %v3699, 7
      %v3701 = vsub.s32 %v3698, %v3700
      %v3702 = vrot.slane %v3694, %v3701
      %v3704 = vunpack.c.l.s4 1983009808
      %v3705 = vunpack.c.0.s8 %v3704
      %v3706 = vlaneseq
      %v3707 = vshrl.u32 %v3706, 7
      %v3708 = vsub.s32 %v3705, %v3707
      %v3709 = vrot.slane %v3695, %v3708
      %v3710 = vcombine.low %v3702, %v3709
      %v3711 = vcombine.low %v1430, %v1433
      %v3712 = vcombine.low %v1436, %v1439
      %v3714 = vunpack.c.l.s4 1983009808
      %v3715 = vunpack.c.0.s8 %v3714
      %v3716 = vlaneseq
      %v3717 = vshrl.u32 %v3716, 7
      %v3718 = vsub.s32 %v3715, %v3717
      %v3719 = vrot.slane %v3711, %v3718
      %v3721 = vunpack.c.l.s4 1983009808
      %v3722 = vunpack.c.0.s8 %v3721
      %v3723 = vlaneseq
      %v3724 = vshrl.u32 %v3723, 7
      %v3725 = vsub.s32 %v3722, %v3724
      %v3726 = vrot.slane %v3712, %v3725
      %v3727 = vcombine.low %v3719, %v3726
      %v3728 = vcombine.low %v1442, %v1445
      %v3729 = vcombine.low %v1448, %v1452
      %v3731 = vunpack.c.l.s4 1983009808
      %v3732 = vunpack.c.0.s8 %v3731
      %v3733 = vlaneseq
      %v3734 = vshrl.u32 %v3733, 7
      %v3735 = vsub.s32 %v3732, %v3734
      %v3736 = vrot.slane %v3728, %v3735
      %v3738 = vunpack.c.l.s4 1983009808
      %v3739 = vunpack.c.0.s8 %v3738
      %v3740 = vlaneseq
      %v3741 = vshrl.u32 %v3740, 7
      %v3742 = vsub.s32 %v3739, %v3741
      %v3743 = vrot.slane %v3729, %v3742
      %v3744 = vcombine.low %v3736, %v3743
      %v3745 = vcombine.low %v1455, %v1458
      %v3746 = vcombine.low %v1461, %v1464
      %v3748 = vunpack.c.l.s4 1983009808
      %v3749 = vunpack.c.0.s8 %v3748
      %v3750 = vlaneseq
      %v3751 = vshrl.u32 %v3750, 7
      %v3752 = vsub.s32 %v3749, %v3751
      %v3753 = vrot.slane %v3745, %v3752
      %v3755 = vunpack.c.l.s4 1983009808
      %v3756 = vunpack.c.0.s8 %v3755
      %v3757 = vlaneseq
      %v3758 = vshrl.u32 %v3757, 7
      %v3759 = vsub.s32 %v3756, %v3758
      %v3760 = vrot.slane %v3746, %v3759
      %v3761 = vcombine.low %v3753, %v3760
      %v3762 = vcombine.low %v1467, %v1470
      %v3763 = vcombine.low %v1474, %v1477
      %v3765 = vunpack.c.l.s4 1983009808
      %v3766 = vunpack.c.0.s8 %v3765
      %v3767 = vlaneseq
      %v3768 = vshrl.u32 %v3767, 7
      %v3769 = vsub.s32 %v3766, %v3768
      %v3770 = vrot.slane %v3762, %v3769
      %v3772 = vunpack.c.l.s4 1983009808
      %v3773 = vunpack.c.0.s8 %v3772
      %v3774 = vlaneseq
      %v3775 = vshrl.u32 %v3774, 7
      %v3776 = vsub.s32 %v3773, %v3775
      %v3777 = vrot.slane %v3763, %v3776
      %v3778 = vcombine.low %v3770, %v3777
      %v3779 = vcombine.low %v1480, %v1483
      %v3780 = vcombine.low %v1486, %v1489
      %v3782 = vunpack.c.l.s4 1983009808
      %v3783 = vunpack.c.0.s8 %v3782
      %v3784 = vlaneseq
      %v3785 = vshrl.u32 %v3784, 7
      %v3786 = vsub.s32 %v3783, %v3785
      %v3787 = vrot.slane %v3779, %v3786
      %v3789 = vunpack.c.l.s4 1983009808
      %v3790 = vunpack.c.0.s8 %v3789
      %v3791 = vlaneseq
      %v3792 = vshrl.u32 %v3791, 7
      %v3793 = vsub.s32 %v3790, %v3792
      %v3794 = vrot.slane %v3780, %v3793
      %v3795 = vcombine.low %v3787, %v3794
      %v3796 = vcombine.low %v1492, %v1496
      %v3797 = vcombine.low %v1499, %v1502
      %v3799 = vunpack.c.l.s4 1983009808
      %v3800 = vunpack.c.0.s8 %v3799
      %v3801 = vlaneseq
      %v3802 = vshrl.u32 %v3801, 7
      %v3803 = vsub.s32 %v3800, %v3802
      %v3804 = vrot.slane %v3796, %v3803
      %v3806 = vunpack.c.l.s4 1983009808
      %v3807 = vunpack.c.0.s8 %v3806
      %v3808 = vlaneseq
      %v3809 = vshrl.u32 %v3808, 7
      %v3810 = vsub.s32 %v3807, %v3809
      %v3811 = vrot.slane %v3797, %v3810
      %v3812 = vcombine.low %v3804, %v3811
      %v3813 = vcombine.low %v1505, %v1508
      %v3814 = vcombine.low %v1511, %v1514
      %v3816 = vunpack.c.l.s4 1983009808
      %v3817 = vunpack.c.0.s8 %v3816
      %v3818 = vlaneseq
      %v3819 = vshrl.u32 %v3818, 7
      %v3820 = vsub.s32 %v3817, %v3819
      %v3821 = vrot.slane %v3813, %v3820
      %v3823 = vunpack.c.l.s4 1983009808
      %v3824 = vunpack.c.0.s8 %v3823
      %v3825 = vlaneseq
      %v3826 = vshrl.u32 %v3825, 7
      %v3827 = vsub.s32 %v3824, %v3826
      %v3828 = vrot.slane %v3814, %v3827
      %v3829 = vcombine.low %v3821, %v3828
      %v3830 = vcombine.low %v1518, %v1521
      %v3831 = vcombine.low %v1524, %v1527
      %v3833 = vunpack.c.l.s4 1983009808
      %v3834 = vunpack.c.0.s8 %v3833
      %v3835 = vlaneseq
      %v3836 = vshrl.u32 %v3835, 7
      %v3837 = vsub.s32 %v3834, %v3836
      %v3838 = vrot.slane %v3830, %v3837
      %v3840 = vunpack.c.l.s4 1983009808
      %v3841 = vunpack.c.0.s8 %v3840
      %v3842 = vlaneseq
      %v3843 = vshrl.u32 %v3842, 7
      %v3844 = vsub.s32 %v3841, %v3843
      %v3845 = vrot.slane %v3831, %v3844
      %v3846 = vcombine.low %v3838, %v3845
      %v3847 = vcombine.low %v1530, %v1533
      %v3848 = vcombine.low %v1536, %v3454
      %v3850 = vunpack.c.l.s4 1983009808
      %v3851 = vunpack.c.0.s8 %v3850
      %v3852 = vlaneseq
      %v3853 = vshrl.u32 %v3852, 7
      %v3854 = vsub.s32 %v3851, %v3853
      %v3855 = vrot.slane %v3847, %v3854
      %v3857 = vunpack.c.l.s4 1983009808
      %v3858 = vunpack.c.0.s8 %v3857
      %v3859 = vlaneseq
      %v3860 = vshrl.u32 %v3859, 7
      %v3861 = vsub.s32 %v3858, %v3860
      %v3862 = vrot.slane %v3848, %v3861
      %v3863 = vcombine.low %v3855, %v3862
      %v3864 = vcombine.low %v3457, %v3460
      %v3865 = vcombine.low %v3463, %v3466
      %v3867 = vunpack.c.l.s4 1983009808
      %v3868 = vunpack.c.0.s8 %v3867
      %v3869 = vlaneseq
      %v3870 = vshrl.u32 %v3869, 7
      %v3871 = vsub.s32 %v3868, %v3870
      %v3872 = vrot.slane %v3864, %v3871
      %v3874 = vunpack.c.l.s4 1983009808
      %v3875 = vunpack.c.0.s8 %v3874
      %v3876 = vlaneseq
      %v3877 = vshrl.u32 %v3876, 7
      %v3878 = vsub.s32 %v3875, %v3877
      %v3879 = vrot.slane %v3865, %v3878
      %v3880 = vcombine.low %v3872, %v3879
      %v3881 = vcombine.low %v3469, %v3472
      %v3883 = vunpack.c.l.s4 1983009808
      %v3884 = vunpack.c.0.s8 %v3883
      %v3885 = vlaneseq
      %v3886 = vshrl.u32 %v3885, 7
      %v3887 = vsub.s32 %v3884, %v3886
      %v3888 = vrot.slane %v3881, %v3887
      %v3914 = vpack.c.bf16 %v3506, %v3489
      %v3915 = vpack.c.bf16 %v3540, %v3523
      %v3916 = vpack.c.bf16 %v3574, %v3557
      %v3917 = vpack.c.bf16 %v3608, %v3591
      %v3918 = vpack.c.bf16 %v3642, %v3625
      %v3919 = vpack.c.bf16 %v3676, %v3659
      %v3920 = vpack.c.bf16 %v3710, %v3693
      %v3921 = vpack.c.bf16 %v3744, %v3727
      %v3922 = vpack.c.bf16 %v3778, %v3761
      %v3923 = vpack.c.bf16 %v3812, %v3795
      %v3924 = vpack.c.bf16 %v3846, %v3829
      %v3925 = vpack.c.bf16 %v3880, %v3863
      %v3926 = vpack.c.bf16 %v3888, %v3888
      %v3928 = vsel %vm1995, %v3914, 0
      %v3931 = vsel %vm1995, %v3915, 0
      %v3934 = vsel %vm1995, %v3916, 0
      %v3937 = vsel %vm1995, %v3917, 0
      %v3940 = vsel %vm1995, %v3918, 0
      %v3943 = vsel %vm1995, %v3919, 0
      %v3946 = vsel %vm1995, %v3920, 0
      %v3949 = vsel %vm1995, %v3921, 0
      %v3952 = vsel %vm1995, %v3922, 0
      %v3955 = vsel %vm1995, %v3923, 0
      %v3958 = vsel %vm1995, %v3924, 0
      %v3961 = vsel %vm1995, %v3925, 0
      %v3964 = vsel %vm1995, %v3926, 0
      %v3967 = vsel %vm2035, %v260, 0
      %3969 = vmatprep.subr.bf16.mxu0 0
      %3970 = vmatpush1.bf16.msra.mxu0 %v3967
      %3971 = vmatprep.subr.bf16.mxu0 0
      %3972 = vmatpush1.bf16.msra.mxu0 0
      %3973 = vmatprep.subr.bf16.mxu0 0
      %3974 = vmatpush1.bf16.msra.mxu0 0
      %3975 = vmatprep.subr.bf16.mxu0 0
      %3976 = vmatpush1.bf16.msra.mxu0 0
      %3977 = vmatprep.subr.bf16.mxu0 0
      %3978 = vmatpush1.bf16.msra.mxu0 0
      %3979 = vmatprep.subr.bf16.mxu0 0
      %3980 = vmatpush1.bf16.msra.mxu0 0
      %3981 = vmatprep.subr.bf16.mxu0 0
      %3982 = vmatpush1.bf16.msra.mxu0 0
      %3983 = vmatprep.subr.bf16.mxu0 0
      %3984 = vmatpush1.bf16.msra.mxu0 0
      %3985 = vmatprep.subr.bf16.mxu0 0
      %3986 = vmatpush1.bf16.msra.mxu0 0
      %3987 = vmatprep.subr.bf16.mxu0 0
      %3988 = vmatpush1.bf16.msra.mxu0 0
      %3989 = vmatprep.subr.bf16.mxu0 0
      %3990 = vmatpush1.bf16.msra.mxu0 0
      %3991 = vmatprep.subr.bf16.mxu0 0
      %3992 = vmatpush1.bf16.msra.mxu0 0
      %3993 = vmatprep.subr.bf16.mxu0 0
      %3994 = vmatpush1.bf16.msra.mxu0 0
      %3995 = vmatprep.subr.bf16.mxu0 0
      %3996 = vmatpush1.bf16.msra.mxu0 0
      %3997 = vmatprep.subr.bf16.mxu0 0
      %3998 = vmatpush1.bf16.msra.mxu0 0
      %3999 = vmatprep.subr.bf16.mxu0 0
      %4000 = vmatpush1.bf16.msra.mxu0 0
      %4001 = vmatprep.mubr.bf16.mxu0 0
      %4002 = vmatmul.mubr.bf16.gmra.mrb[0].mxu0 %v3928
      %v4003 = vpop.f32.mrb[0].mxu0
      %v4004 = vadd.f32 0.0, %v4003
      %v4005 = vpop.f32.mrb[0].mxu0
      %v4006 = vpop.f32.mrb[0].mxu0
      %v4007 = vadd.f32 0.0, %v4006
      %v4008 = vpop.f32.mrb[0].mxu0
      %4009 = vmatprep.mubr.bf16.mxu0 0
      %4010 = vmatmul.mubr.bf16.gmra.mrb[0].mxu0 %v3931
      %v4011 = vpop.f32.mrb[0].mxu0
      %v4012 = vadd.f32 0.0, %v4011
      %v4013 = vpop.f32.mrb[0].mxu0
      %v4014 = vpop.f32.mrb[0].mxu0
      %v4015 = vadd.f32 0.0, %v4014
      %v4016 = vpop.f32.mrb[0].mxu0
      %4017 = vmatprep.mubr.bf16.mxu0 0
      %4018 = vmatmul.mubr.bf16.gmra.mrb[0].mxu0 %v3934
      %v4019 = vpop.f32.mrb[0].mxu0
      %v4020 = vadd.f32 0.0, %v4019
      %v4021 = vpop.f32.mrb[0].mxu0
      %v4022 = vpop.f32.mrb[0].mxu0
      %v4023 = vadd.f32 0.0, %v4022
      %v4024 = vpop.f32.mrb[0].mxu0
      %4025 = vmatprep.mubr.bf16.mxu0 0
      %4026 = vmatmul.mubr.bf16.gmra.mrb[0].mxu0 %v3937
      %v4027 = vpop.f32.mrb[0].mxu0
      %v4028 = vadd.f32 0.0, %v4027
      %v4029 = vpop.f32.mrb[0].mxu0
      %v4030 = vpop.f32.mrb[0].mxu0
      %v4031 = vadd.f32 0.0, %v4030
      %v4032 = vpop.f32.mrb[0].mxu0
      %4033 = vmatprep.mubr.bf16.mxu0 0
      %4034 = vmatmul.mubr.bf16.gmra.mrb[0].mxu0 %v3940
      %v4035 = vpop.f32.mrb[0].mxu0
      %v4036 = vadd.f32 0.0, %v4035
      %v4037 = vpop.f32.mrb[0].mxu0
      %v4038 = vpop.f32.mrb[0].mxu0
      %v4039 = vadd.f32 0.0, %v4038
      %v4040 = vpop.f32.mrb[0].mxu0
      %4041 = vmatprep.mubr.bf16.mxu0 0
      %4042 = vmatmul.mubr.bf16.gmra.mrb[0].mxu0 %v3943
      %v4043 = vpop.f32.mrb[0].mxu0
      %v4044 = vadd.f32 0.0, %v4043
      %v4045 = vpop.f32.mrb[0].mxu0
      %v4046 = vpop.f32.mrb[0].mxu0
      %v4047 = vadd.f32 0.0, %v4046
      %v4048 = vpop.f32.mrb[0].mxu0
      %4049 = vmatprep.mubr.bf16.mxu0 0
      %4050 = vmatmul.mubr.bf16.gmra.mrb[0].mxu0 %v3946
      %v4051 = vpop.f32.mrb[0].mxu0
      %v4052 = vadd.f32 0.0, %v4051
      %v4053 = vpop.f32.mrb[0].mxu0
      %v4054 = vpop.f32.mrb[0].mxu0
      %v4055 = vadd.f32 0.0, %v4054
      %v4056 = vpop.f32.mrb[0].mxu0
      %4057 = vmatprep.mubr.bf16.mxu0 0
      %4058 = vmatmul.mubr.bf16.gmra.mrb[0].mxu0 %v3949
      %v4059 = vpop.f32.mrb[0].mxu0
      %v4060 = vadd.f32 0.0, %v4059
      %v4061 = vpop.f32.mrb[0].mxu0
      %v4062 = vpop.f32.mrb[0].mxu0
      %v4063 = vadd.f32 0.0, %v4062
      %v4064 = vpop.f32.mrb[0].mxu0
      %4065 = vmatprep.mubr.bf16.mxu0 0
      %4066 = vmatmul.mubr.bf16.gmra.mrb[0].mxu0 %v3952
      %v4067 = vpop.f32.mrb[0].mxu0
      %v4068 = vadd.f32 0.0, %v4067
      %v4069 = vpop.f32.mrb[0].mxu0
      %v4070 = vpop.f32.mrb[0].mxu0
      %v4071 = vadd.f32 0.0, %v4070
      %v4072 = vpop.f32.mrb[0].mxu0
      %4073 = vmatprep.mubr.bf16.mxu0 0
      %4074 = vmatmul.mubr.bf16.gmra.mrb[0].mxu0 %v3955
      %v4075 = vpop.f32.mrb[0].mxu0
      %v4076 = vadd.f32 0.0, %v4075
      %v4077 = vpop.f32.mrb[0].mxu0
      %v4078 = vpop.f32.mrb[0].mxu0
      %v4079 = vadd.f32 0.0, %v4078
      %v4080 = vpop.f32.mrb[0].mxu0
      %4081 = vmatprep.mubr.bf16.mxu0 0
      %4082 = vmatmul.mubr.bf16.gmra.mrb[0].mxu0 %v3958
      %v4083 = vpop.f32.mrb[0].mxu0
      %v4084 = vadd.f32 0.0, %v4083
      %v4085 = vpop.f32.mrb[0].mxu0
      %v4086 = vpop.f32.mrb[0].mxu0
      %v4087 = vadd.f32 0.0, %v4086
      %v4088 = vpop.f32.mrb[0].mxu0
      %4089 = vmatprep.mubr.bf16.mxu0 0
      %4090 = vmatmul.mubr.bf16.gmra.mrb[0].mxu0 %v3961
      %v4091 = vpop.f32.mrb[0].mxu0
      %v4092 = vadd.f32 0.0, %v4091
      %v4093 = vpop.f32.mrb[0].mxu0
      %v4094 = vpop.f32.mrb[0].mxu0
      %v4095 = vadd.f32 0.0, %v4094
      %v4096 = vpop.f32.mrb[0].mxu0
      %4097 = vmatprep.mubr.bf16.mxu0 0
      %4098 = vmatmul.mubr.bf16.gmra.mrb[0].mxu0 %v3964
      %v4099 = vpop.f32.mrb[0].mxu0
      %v4100 = vadd.f32 0.0, %v4099
      %v4101 = vpop.f32.mrb[0].mxu0
      %v4102 = vpop.f32.mrb[0].mxu0
      %v4103 = vpop.f32.mrb[0].mxu0
      %4104 = vdwg.mxu0
      %v4105 = vadd.f32 %v3425, %v4004
      %v4106 = vadd.f32 %v3426, %v4007
      %v4107 = vadd.f32 %v3427, %v4012
      %v4108 = vadd.f32 %v3428, %v4015
      %v4109 = vadd.f32 %v3429, %v4020
      %v4110 = vadd.f32 %v3430, %v4023
      %v4111 = vadd.f32 %v3431, %v4028
      %v4112 = vadd.f32 %v3432, %v4031
      %v4113 = vadd.f32 %v3433, %v4036
      %v4114 = vadd.f32 %v3434, %v4039
      %v4115 = vadd.f32 %v3435, %v4044
      %v4116 = vadd.f32 %v3436, %v4047
      %v4117 = vadd.f32 %v3437, %v4052
      %v4118 = vadd.f32 %v3438, %v4055
      %v4119 = vadd.f32 %v3439, %v4060
      %v4120 = vadd.f32 %v3440, %v4063
      %v4121 = vadd.f32 %v3441, %v4068
      %v4122 = vadd.f32 %v3442, %v4071
      %v4123 = vadd.f32 %v3443, %v4076
      %v4124 = vadd.f32 %v3444, %v4079
      %v4125 = vadd.f32 %v3445, %v4084
      %v4126 = vadd.f32 %v3446, %v4087
      %v4127 = vadd.f32 %v3447, %v4092
      %v4128 = vadd.f32 %v3448, %v4095
      %v4129 = vadd.f32 %v3449, %v4100
      %v4130 = vcombine.low %v1209, %v373
      %v4132 = vunpack.c.l.s4 1983009808
      %v4133 = vunpack.c.0.s8 %v4132
      %v4134 = vlaneseq
      %v4135 = vshrl.u32 %v4134, 7
      %v4136 = vsub.s32 %v4133, %v4135
      %v4137 = vrot.slane %v4130, %v4136
      %v4138 = vcombine.low %v813, %v4137
      %v4139 = vcombine.low %v389, %v1210
      %v4141 = vunpack.c.l.s4 1983009808
      %v4142 = vunpack.c.0.s8 %v4141
      %v4143 = vlaneseq
      %v4144 = vshrl.u32 %v4143, 7
      %v4145 = vsub.s32 %v4142, %v4144
      %v4146 = vrot.slane %v4139, %v4145
      %v4147 = vcombine.low %v4146, %v854
      %v4148 = vcombine.low %v1211, %v439
      %v4150 = vunpack.c.l.s4 1983009808
      %v4151 = vunpack.c.0.s8 %v4150
      %v4152 = vlaneseq
      %v4153 = vshrl.u32 %v4152, 7
      %v4154 = vsub.s32 %v4151, %v4153
      %v4155 = vrot.slane %v4148, %v4154
      %v4156 = vcombine.low %v4155, %v888
      %v4157 = vcombine.low %v455, %v1212
      %v4159 = vunpack.c.l.s4 1983009808
      %v4160 = vunpack.c.0.s8 %v4159
      %v4161 = vlaneseq
      %v4162 = vshrl.u32 %v4161, 7
      %v4163 = vsub.s32 %v4160, %v4162
      %v4164 = vrot.slane %v4157, %v4163
      %v4165 = vcombine.low %v898, %v4164
      %v4166 = vcombine.low %v1213, %v505
      %v4168 = vunpack.c.l.s4 1983009808
      %v4169 = vunpack.c.0.s8 %v4168
      %v4170 = vlaneseq
      %v4171 = vshrl.u32 %v4170, 7
      %v4172 = vsub.s32 %v4169, %v4171
      %v4173 = vrot.slane %v4166, %v4172
      %v4174 = vcombine.low %v932, %v4173
      %v4175 = vcombine.low %v521, %v1214
      %v4177 = vunpack.c.l.s4 1983009808
      %v4178 = vunpack.c.0.s8 %v4177
      %v4179 = vlaneseq
      %v4180 = vshrl.u32 %v4179, 7
      %v4181 = vsub.s32 %v4178, %v4180
      %v4182 = vrot.slane %v4175, %v4181
      %v4183 = vcombine.low %v4182, %v973
      %v4184 = vcombine.low %v1215, %v571
      %v4186 = vunpack.c.l.s4 1983009808
      %v4187 = vunpack.c.0.s8 %v4186
      %v4188 = vlaneseq
      %v4189 = vshrl.u32 %v4188, 7
      %v4190 = vsub.s32 %v4187, %v4189
      %v4191 = vrot.slane %v4184, %v4190
      %v4192 = vcombine.low %v4191, %v1007
      %v4193 = vcombine.low %v587, %v1216
      %v4195 = vunpack.c.l.s4 1983009808
      %v4196 = vunpack.c.0.s8 %v4195
      %v4197 = vlaneseq
      %v4198 = vshrl.u32 %v4197, 7
      %v4199 = vsub.s32 %v4196, %v4198
      %v4200 = vrot.slane %v4193, %v4199
      %v4201 = vcombine.low %v1017, %v4200
      %v4202 = vcombine.low %v1217, %v637
      %v4204 = vunpack.c.l.s4 1983009808
      %v4205 = vunpack.c.0.s8 %v4204
      %v4206 = vlaneseq
      %v4207 = vshrl.u32 %v4206, 7
      %v4208 = vsub.s32 %v4205, %v4207
      %v4209 = vrot.slane %v4202, %v4208
      %v4210 = vcombine.low %v1051, %v4209
      %v4211 = vcombine.low %v653, %v1218
      %v4213 = vunpack.c.l.s4 1983009808
      %v4214 = vunpack.c.0.s8 %v4213
      %v4215 = vlaneseq
      %v4216 = vshrl.u32 %v4215, 7
      %v4217 = vsub.s32 %v4214, %v4216
      %v4218 = vrot.slane %v4211, %v4217
      %v4219 = vcombine.low %v4218, %v1092
      %v4220 = vcombine.low %v1219, %v703
      %v4222 = vunpack.c.l.s4 1983009808
      %v4223 = vunpack.c.0.s8 %v4222
      %v4224 = vlaneseq
      %v4225 = vshrl.u32 %v4224, 7
      %v4226 = vsub.s32 %v4223, %v4225
      %v4227 = vrot.slane %v4220, %v4226
      %v4228 = vcombine.low %v4227, %v1126
      %v4229 = vcombine.low %v719, %v1220
      %v4231 = vunpack.c.l.s4 1983009808
      %v4232 = vunpack.c.0.s8 %v4231
      %v4233 = vlaneseq
      %v4234 = vshrl.u32 %v4233, 7
      %v4235 = vsub.s32 %v4232, %v4234
      %v4236 = vrot.slane %v4229, %v4235
      %v4237 = vcombine.low %v1136, %v4236
      %v4238 = vcombine.low %v1221, %v3027
      %v4240 = vunpack.c.l.s4 1983009808
      %v4241 = vunpack.c.0.s8 %v4240
      %v4242 = vlaneseq
      %v4243 = vshrl.u32 %v4242, 7
      %v4244 = vsub.s32 %v4241, %v4243
      %v4245 = vrot.slane %v4238, %v4244
      %v4246 = vcombine.low %v1169, %v4245
      %v4247 = vcombine.low %v3026, %v3028
      %v4248 = vcombine.low %v3036, %v3044
      %v4250 = vunpack.c.l.s4 1983009808
      %v4251 = vunpack.c.0.s8 %v4250
      %v4252 = vlaneseq
      %v4253 = vshrl.u32 %v4252, 7
      %v4254 = vsub.s32 %v4251, %v4253
      %v4255 = vrot.slane %v4247, %v4254
      %v4257 = vunpack.c.l.s4 1983009808
      %v4258 = vunpack.c.0.s8 %v4257
      %v4259 = vlaneseq
      %v4260 = vshrl.u32 %v4259, 7
      %v4261 = vsub.s32 %v4258, %v4260
      %v4262 = vrot.slane %v4248, %v4261
      %v4263 = vcombine.low %v4255, %v4262
      %v4264 = vcombine.low %v3043, %v3450
      %v4266 = vunpack.c.l.s4 1983009808
      %v4267 = vunpack.c.0.s8 %v4266
      %v4268 = vlaneseq
      %v4269 = vshrl.u32 %v4268, 7
      %v4270 = vsub.s32 %v4267, %v4269
      %v4271 = vrot.slane %v4264, %v4270
      %v4287 = vpack.c.bf16 %v4138, %v804
      %v4288 = vpack.c.bf16 %v4147, %v838
      %v4289 = vpack.c.bf16 %v4156, %v872
      %v4290 = vpack.c.bf16 %v923, %v4165
      %v4291 = vpack.c.bf16 %v957, %v4174
      %v4292 = vpack.c.bf16 %v991, %v4183
      %v4293 = vpack.c.bf16 %v4201, %v4192
      %v4294 = vpack.c.bf16 %v4210, %v1042
      %v4295 = vpack.c.bf16 %v4219, %v1076
      %v4296 = vpack.c.bf16 %v4228, %v1110
      %v4297 = vpack.c.bf16 %v1161, %v4237
      %v4298 = vpack.c.bf16 %v4263, %v4246
      %v4299 = vpack.c.bf16 %v4271, %v4271
      %v4301 = vunpack.c.l.b16 %v260
      %v4302 = vpack.c.b16 %v4301, %v4301
      %v4303 = vrot.slane %v4302, 2
      %v4305 = vsel %vm1995, %v4287, 0
      %v4308 = vsel %vm1995, %v4288, 0
      %v4311 = vsel %vm1995, %v4289, 0
      %v4314 = vsel %vm1995, %v4290, 0
      %v4317 = vsel %vm1995, %v4291, 0
      %v4320 = vsel %vm1995, %v4292, 0
      %v4323 = vsel %vm1995, %v4293, 0
      %v4326 = vsel %vm1995, %v4294, 0
      %v4329 = vsel %vm1995, %v4295, 0
      %v4332 = vsel %vm1995, %v4296, 0
      %v4335 = vsel %vm1995, %v4297, 0
      %v4338 = vsel %vm1995, %v4298, 0
      %v4341 = vsel %vm1995, %v4299, 0
      %v4344 = vsel %vm2035, %v4303, 0
      %4346 = vmatprep.subr.bf16.mxu0 0
      %4347 = vmatpush1.bf16.msra.mxu0 %v4344
      %4348 = vmatprep.subr.bf16.mxu0 0
      %4349 = vmatpush1.bf16.msra.mxu0 0
      %4350 = vmatprep.subr.bf16.mxu0 0
      %4351 = vmatpush1.bf16.msra.mxu0 0
      %4352 = vmatprep.subr.bf16.mxu0 0
      %4353 = vmatpush1.bf16.msra.mxu0 0
      %4354 = vmatprep.subr.bf16.mxu0 0
      %4355 = vmatpush1.bf16.msra.mxu0 0
      %4356 = vmatprep.subr.bf16.mxu0 0
      %4357 = vmatpush1.bf16.msra.mxu0 0
      %4358 = vmatprep.subr.bf16.mxu0 0
      %4359 = vmatpush1.bf16.msra.mxu0 0
      %4360 = vmatprep.subr.bf16.mxu0 0
      %4361 = vmatpush1.bf16.msra.mxu0 0
      %4362 = vmatprep.subr.bf16.mxu0 0
      %4363 = vmatpush1.bf16.msra.mxu0 0
      %4364 = vmatprep.subr.bf16.mxu0 0
      %4365 = vmatpush1.bf16.msra.mxu0 0
      %4366 = vmatprep.subr.bf16.mxu0 0
      %4367 = vmatpush1.bf16.msra.mxu0 0
      %4368 = vmatprep.subr.bf16.mxu0 0
      %4369 = vmatpush1.bf16.msra.mxu0 0
      %4370 = vmatprep.subr.bf16.mxu0 0
      %4371 = vmatpush1.bf16.msra.mxu0 0
      %4372 = vmatprep.subr.bf16.mxu0 0
      %4373 = vmatpush1.bf16.msra.mxu0 0
      %4374 = vmatprep.subr.bf16.mxu0 0
      %4375 = vmatpush1.bf16.msra.mxu0 0
      %4376 = vmatprep.subr.bf16.mxu0 0
      %4377 = vmatpush1.bf16.msra.mxu0 0
      %4378 = vmatprep.mubr.bf16.mxu0 0
      %4379 = vmatmul.mubr.bf16.gmra.mrb[0].mxu0 %v4305
      %v4380 = vpop.f32.mrb[0].mxu0
      %v4381 = vadd.f32 0.0, %v4380
      %v4382 = vpop.f32.mrb[0].mxu0
      %v4383 = vpop.f32.mrb[0].mxu0
      %v4384 = vadd.f32 0.0, %v4383
      %v4385 = vpop.f32.mrb[0].mxu0
      %4386 = vmatprep.mubr.bf16.mxu0 0
      %4387 = vmatmul.mubr.bf16.gmra.mrb[0].mxu0 %v4308
      %v4388 = vpop.f32.mrb[0].mxu0
      %v4389 = vadd.f32 0.0, %v4388
      %v4390 = vpop.f32.mrb[0].mxu0
      %v4391 = vpop.f32.mrb[0].mxu0
      %v4392 = vadd.f32 0.0, %v4391
      %v4393 = vpop.f32.mrb[0].mxu0
      %4394 = vmatprep.mubr.bf16.mxu0 0
      %4395 = vmatmul.mubr.bf16.gmra.mrb[0].mxu0 %v4311
      %v4396 = vpop.f32.mrb[0].mxu0
      %v4397 = vadd.f32 0.0, %v4396
      %v4398 = vpop.f32.mrb[0].mxu0
      %v4399 = vpop.f32.mrb[0].mxu0
      %v4400 = vadd.f32 0.0, %v4399
      %v4401 = vpop.f32.mrb[0].mxu0
      %4402 = vmatprep.mubr.bf16.mxu0 0
      %4403 = vmatmul.mubr.bf16.gmra.mrb[0].mxu0 %v4314
      %v4404 = vpop.f32.mrb[0].mxu0
      %v4405 = vadd.f32 0.0, %v4404
      %v4406 = vpop.f32.mrb[0].mxu0
      %v4407 = vpop.f32.mrb[0].mxu0
      %v4408 = vadd.f32 0.0, %v4407
      %v4409 = vpop.f32.mrb[0].mxu0
      %4410 = vmatprep.mubr.bf16.mxu0 0
      %4411 = vmatmul.mubr.bf16.gmra.mrb[0].mxu0 %v4317
      %v4412 = vpop.f32.mrb[0].mxu0
      %v4413 = vadd.f32 0.0, %v4412
      %v4414 = vpop.f32.mrb[0].mxu0
      %v4415 = vpop.f32.mrb[0].mxu0
      %v4416 = vadd.f32 0.0, %v4415
      %v4417 = vpop.f32.mrb[0].mxu0
      %4418 = vmatprep.mubr.bf16.mxu0 0
      %4419 = vmatmul.mubr.bf16.gmra.mrb[0].mxu0 %v4320
      %v4420 = vpop.f32.mrb[0].mxu0
      %v4421 = vadd.f32 0.0, %v4420
      %v4422 = vpop.f32.mrb[0].mxu0
      %v4423 = vpop.f32.mrb[0].mxu0
      %v4424 = vadd.f32 0.0, %v4423
      %v4425 = vpop.f32.mrb[0].mxu0
      %4426 = vmatprep.mubr.bf16.mxu0 0
      %4427 = vmatmul.mubr.bf16.gmra.mrb[0].mxu0 %v4323
      %v4428 = vpop.f32.mrb[0].mxu0
      %v4429 = vadd.f32 0.0, %v4428
      %v4430 = vpop.f32.mrb[0].mxu0
      %v4431 = vpop.f32.mrb[0].mxu0
      %v4432 = vadd.f32 0.0, %v4431
      %v4433 = vpop.f32.mrb[0].mxu0
      %4434 = vmatprep.mubr.bf16.mxu0 0
      %4435 = vmatmul.mubr.bf16.gmra.mrb[0].mxu0 %v4326
      %v4436 = vpop.f32.mrb[0].mxu0
      %v4437 = vadd.f32 0.0, %v4436
      %v4438 = vpop.f32.mrb[0].mxu0
      %v4439 = vpop.f32.mrb[0].mxu0
      %v4440 = vadd.f32 0.0, %v4439
      %v4441 = vpop.f32.mrb[0].mxu0
      %4442 = vmatprep.mubr.bf16.mxu0 0
      %4443 = vmatmul.mubr.bf16.gmra.mrb[0].mxu0 %v4329
      %v4444 = vpop.f32.mrb[0].mxu0
      %v4445 = vadd.f32 0.0, %v4444
      %v4446 = vpop.f32.mrb[0].mxu0
      %v4447 = vpop.f32.mrb[0].mxu0
      %v4448 = vadd.f32 0.0, %v4447
      %v4449 = vpop.f32.mrb[0].mxu0
      %4450 = vmatprep.mubr.bf16.mxu0 0
      %4451 = vmatmul.mubr.bf16.gmra.mrb[0].mxu0 %v4332
      %v4452 = vpop.f32.mrb[0].mxu0
      %v4453 = vadd.f32 0.0, %v4452
      %v4454 = vpop.f32.mrb[0].mxu0
      %v4455 = vpop.f32.mrb[0].mxu0
      %v4456 = vadd.f32 0.0, %v4455
      %v4457 = vpop.f32.mrb[0].mxu0
      %4458 = vmatprep.mubr.bf16.mxu0 0
      %4459 = vmatmul.mubr.bf16.gmra.mrb[0].mxu0 %v4335
      %v4460 = vpop.f32.mrb[0].mxu0
      %v4461 = vadd.f32 0.0, %v4460
      %v4462 = vpop.f32.mrb[0].mxu0
      %v4463 = vpop.f32.mrb[0].mxu0
      %v4464 = vadd.f32 0.0, %v4463
      %v4465 = vpop.f32.mrb[0].mxu0
      %4466 = vmatprep.mubr.bf16.mxu0 0
      %4467 = vmatmul.mubr.bf16.gmra.mrb[0].mxu0 %v4338
      %v4468 = vpop.f32.mrb[0].mxu0
      %v4469 = vadd.f32 0.0, %v4468
      %v4470 = vpop.f32.mrb[0].mxu0
      %v4471 = vpop.f32.mrb[0].mxu0
      %v4472 = vadd.f32 0.0, %v4471
      %v4473 = vpop.f32.mrb[0].mxu0
      %4474 = vmatprep.mubr.bf16.mxu0 0
      %4475 = vmatmul.mubr.bf16.gmra.mrb[0].mxu0 %v4341
      %v4476 = vpop.f32.mrb[0].mxu0
      %v4477 = vadd.f32 0.0, %v4476
      %v4478 = vpop.f32.mrb[0].mxu0
      %v4479 = vpop.f32.mrb[0].mxu0
      %v4480 = vpop.f32.mrb[0].mxu0
      %4481 = vdwg.mxu0
      %v4482 = vadd.f32 %v4105, %v4381
      %v4483 = vadd.f32 %v4106, %v4384
      %v4484 = vadd.f32 %v4107, %v4389
      %v4485 = vadd.f32 %v4108, %v4392
      %v4486 = vadd.f32 %v4109, %v4397
      %v4487 = vadd.f32 %v4110, %v4400
      %v4488 = vadd.f32 %v4111, %v4405
      %v4489 = vadd.f32 %v4112, %v4408
      %v4490 = vadd.f32 %v4113, %v4413
      %v4491 = vadd.f32 %v4114, %v4416
      %v4492 = vadd.f32 %v4115, %v4421
      %v4493 = vadd.f32 %v4116, %v4424
      %v4494 = vadd.f32 %v4117, %v4429
      %v4495 = vadd.f32 %v4118, %v4432
      %v4496 = vadd.f32 %v4119, %v4437
      %v4497 = vadd.f32 %v4120, %v4440
      %v4498 = vadd.f32 %v4121, %v4445
      %v4499 = vadd.f32 %v4122, %v4448
      %v4500 = vadd.f32 %v4123, %v4453
      %v4501 = vadd.f32 %v4124, %v4456
      %v4502 = vadd.f32 %v4125, %v4461
      %v4503 = vadd.f32 %v4126, %v4464
      %v4504 = vadd.f32 %v4127, %v4469
      %v4505 = vadd.f32 %v4128, %v4472
      %v4506 = vadd.f32 %v4129, %v4477
      %v4509 = vcombine.high %v256, %v256
      %v4511 = vunpack.c.l.s4 1983009808
      %v4512 = vunpack.c.0.s8 %v4511
      %v4513 = vlaneseq
      %v4514 = vshrl.u32 %v4513, 7
      %v4515 = vsub.s32 %v4512, %v4514
      %v4516 = vrot.slane %v256, %v4515
      %v4518 = vunpack.c.l.s4 1983009808
      %v4519 = vunpack.c.0.s8 %v4518
      %v4520 = vlaneseq
      %v4521 = vshrl.u32 %v4520, 7
      %v4522 = vsub.s32 %v4519, %v4521
      %v4523 = vrot.slane %v4509, %v4522
      %v4524 = vcombine.high %v4516, %v4516
      %v4525 = vcombine.high %v4523, %v4523
      %v4526 = vcombine.high %v257, %v257
      %v4528 = vunpack.c.l.s4 1983009808
      %v4529 = vunpack.c.0.s8 %v4528
      %v4530 = vlaneseq
      %v4531 = vshrl.u32 %v4530, 7
      %v4532 = vsub.s32 %v4529, %v4531
      %v4533 = vrot.slane %v257, %v4532
      %v4535 = vunpack.c.l.s4 1983009808
      %v4536 = vunpack.c.0.s8 %v4535
      %v4537 = vlaneseq
      %v4538 = vshrl.u32 %v4537, 7
      %v4539 = vsub.s32 %v4536, %v4538
      %v4540 = vrot.slane %v4526, %v4539
      %v4541 = vcombine.high %v4533, %v4533
      %v4542 = vcombine.low %v820, %v830
      %v4543 = vcombine.low %v837, %v847
      %v4544 = vcombine.low %v854, %v864
      %v4545 = vcombine.low %v871, %v881
      %v4546 = vcombine.low %v888, %v898
      %v4547 = vcombine.low %v905, %v915
      %v4548 = vcombine.low %v922, %v932
      %v4549 = vcombine.low %v939, %v949
      %v4550 = vcombine.low %v956, %v966
      %v4551 = vcombine.low %v973, %v983
      %v4552 = vcombine.low %v990, %v1000
      %v4553 = vcombine.low %v1007, %v1017
      %v4554 = vcombine.low %v1024, %v1034
      %v4555 = vcombine.low %v1041, %v1051
      %v4556 = vcombine.low %v1058, %v1068
      %v4557 = vcombine.low %v1075, %v1085
      %v4558 = vcombine.low %v1092, %v1102
      %v4559 = vcombine.low %v1109, %v1119
      %v4560 = vcombine.low %v1126, %v1136
      %v4561 = vcombine.low %v1143, %v1153
      %v4562 = vcombine.low %v1160, %v1169
      %v4563 = vcombine.low %v3019, %v3027
      %v4565 = vunpack.c.l.s4 1983009808
      %v4566 = vunpack.c.0.s8 %v4565
      %v4567 = vlaneseq
      %v4568 = vshrl.u32 %v4567, 7
      %v4569 = vsub.s32 %v4566, %v4568
      %v4570 = vrot.slane %v4563, %v4569
      %v4571 = vcombine.low %v4570, %v4255
      %v4572 = vcombine.low %v3043, %v4516
      %v4574 = vunpack.c.l.s4 1983009808
      %v4575 = vunpack.c.0.s8 %v4574
      %v4576 = vlaneseq
      %v4577 = vshrl.u32 %v4576, 7
      %v4578 = vsub.s32 %v4575, %v4577
      %v4579 = vrot.slane %v4572, %v4578
      %v4580 = vcombine.low %v4262, %v4579
      %v4581 = vcombine.low %v4524, %v4523
      %v4582 = vcombine.low %v4525, %v4533
      %v4584 = vunpack.c.l.s4 1983009808
      %v4585 = vunpack.c.0.s8 %v4584
      %v4586 = vlaneseq
      %v4587 = vshrl.u32 %v4586, 7
      %v4588 = vsub.s32 %v4585, %v4587
      %v4589 = vrot.slane %v4581, %v4588
      %v4591 = vunpack.c.l.s4 1983009808
      %v4592 = vunpack.c.0.s8 %v4591
      %v4593 = vlaneseq
      %v4594 = vshrl.u32 %v4593, 7
      %v4595 = vsub.s32 %v4592, %v4594
      %v4596 = vrot.slane %v4582, %v4595
      %v4597 = vcombine.low %v4589, %v4596
      %v4598 = vcombine.low %v4541, %v4540
      %v4600 = vunpack.c.l.s4 1983009808
      %v4601 = vunpack.c.0.s8 %v4600
      %v4602 = vlaneseq
      %v4603 = vshrl.u32 %v4602, 7
      %v4604 = vsub.s32 %v4601, %v4603
      %v4605 = vrot.slane %v4598, %v4604
      %v4631 = vpack.c.bf16 %v4543, %v4542
      %v4632 = vpack.c.bf16 %v4545, %v4544
      %v4633 = vpack.c.bf16 %v4547, %v4546
      %v4634 = vpack.c.bf16 %v4549, %v4548
      %v4635 = vpack.c.bf16 %v4551, %v4550
      %v4636 = vpack.c.bf16 %v4553, %v4552
      %v4637 = vpack.c.bf16 %v4555, %v4554
      %v4638 = vpack.c.bf16 %v4557, %v4556
      %v4639 = vpack.c.bf16 %v4559, %v4558
      %v4640 = vpack.c.bf16 %v4561, %v4560
      %v4641 = vpack.c.bf16 %v4571, %v4562
      %v4642 = vpack.c.bf16 %v4597, %v4580
      %v4643 = vpack.c.bf16 %v4605, %v4605
      %v4645 = vsel %vm1995, %v4631, 0
      %v4648 = vsel %vm1995, %v4632, 0
      %v4651 = vsel %vm1995, %v4633, 0
      %v4654 = vsel %vm1995, %v4634, 0
      %v4657 = vsel %vm1995, %v4635, 0
      %v4660 = vsel %vm1995, %v4636, 0
      %v4663 = vsel %vm1995, %v4637, 0
      %v4666 = vsel %vm1995, %v4638, 0
      %v4669 = vsel %vm1995, %v4639, 0
      %v4672 = vsel %vm1995, %v4640, 0
      %v4675 = vsel %vm1995, %v4641, 0
      %v4678 = vsel %vm1995, %v4642, 0
      %v4681 = vsel %vm1995, %v4643, 0
      %v4684 = vsel %vm2035, %v261, 0
      %4686 = vmatprep.subr.bf16.mxu0 0
      %4687 = vmatpush1.bf16.msra.mxu0 %v4684
      %4688 = vmatprep.subr.bf16.mxu0 0
      %4689 = vmatpush1.bf16.msra.mxu0 0
      %4690 = vmatprep.subr.bf16.mxu0 0
      %4691 = vmatpush1.bf16.msra.mxu0 0
      %4692 = vmatprep.subr.bf16.mxu0 0
      %4693 = vmatpush1.bf16.msra.mxu0 0
      %4694 = vmatprep.subr.bf16.mxu0 0
      %4695 = vmatpush1.bf16.msra.mxu0 0
      %4696 = vmatprep.subr.bf16.mxu0 0
      %4697 = vmatpush1.bf16.msra.mxu0 0
      %4698 = vmatprep.subr.bf16.mxu0 0
      %4699 = vmatpush1.bf16.msra.mxu0 0
      %4700 = vmatprep.subr.bf16.mxu0 0
      %4701 = vmatpush1.bf16.msra.mxu0 0
      %4702 = vmatprep.subr.bf16.mxu0 0
      %4703 = vmatpush1.bf16.msra.mxu0 0
      %4704 = vmatprep.subr.bf16.mxu0 0
      %4705 = vmatpush1.bf16.msra.mxu0 0
      %4706 = vmatprep.subr.bf16.mxu0 0
      %4707 = vmatpush1.bf16.msra.mxu0 0
      %4708 = vmatprep.subr.bf16.mxu0 0
      %4709 = vmatpush1.bf16.msra.mxu0 0
      %4710 = vmatprep.subr.bf16.mxu0 0
      %4711 = vmatpush1.bf16.msra.mxu0 0
      %4712 = vmatprep.subr.bf16.mxu0 0
      %4713 = vmatpush1.bf16.msra.mxu0 0
      %4714 = vmatprep.subr.bf16.mxu0 0
      %4715 = vmatpush1.bf16.msra.mxu0 0
      %4716 = vmatprep.subr.bf16.mxu0 0
      %4717 = vmatpush1.bf16.msra.mxu0 0
      %4718 = vmatprep.mubr.bf16.mxu0 0
      %4719 = vmatmul.mubr.bf16.gmra.mrb[0].mxu0 %v4645
      %v4720 = vpop.f32.mrb[0].mxu0
      %v4721 = vadd.f32 0.0, %v4720
      %v4722 = vpop.f32.mrb[0].mxu0
      %v4723 = vpop.f32.mrb[0].mxu0
      %v4724 = vadd.f32 0.0, %v4723
      %v4725 = vpop.f32.mrb[0].mxu0
      %4726 = vmatprep.mubr.bf16.mxu0 0
      %4727 = vmatmul.mubr.bf16.gmra.mrb[0].mxu0 %v4648
      %v4728 = vpop.f32.mrb[0].mxu0
      %v4729 = vadd.f32 0.0, %v4728
      %v4730 = vpop.f32.mrb[0].mxu0
      %v4731 = vpop.f32.mrb[0].mxu0
      %v4732 = vadd.f32 0.0, %v4731
      %v4733 = vpop.f32.mrb[0].mxu0
      %4734 = vmatprep.mubr.bf16.mxu0 0
      %4735 = vmatmul.mubr.bf16.gmra.mrb[0].mxu0 %v4651
      %v4736 = vpop.f32.mrb[0].mxu0
      %v4737 = vadd.f32 0.0, %v4736
      %v4738 = vpop.f32.mrb[0].mxu0
      %v4739 = vpop.f32.mrb[0].mxu0
      %v4740 = vadd.f32 0.0, %v4739
      %v4741 = vpop.f32.mrb[0].mxu0
      %4742 = vmatprep.mubr.bf16.mxu0 0
      %4743 = vmatmul.mubr.bf16.gmra.mrb[0].mxu0 %v4654
      %v4744 = vpop.f32.mrb[0].mxu0
      %v4745 = vadd.f32 0.0, %v4744
      %v4746 = vpop.f32.mrb[0].mxu0
      %v4747 = vpop.f32.mrb[0].mxu0
      %v4748 = vadd.f32 0.0, %v4747
      %v4749 = vpop.f32.mrb[0].mxu0
      %4750 = vmatprep.mubr.bf16.mxu0 0
      %4751 = vmatmul.mubr.bf16.gmra.mrb[0].mxu0 %v4657
      %v4752 = vpop.f32.mrb[0].mxu0
      %v4753 = vadd.f32 0.0, %v4752
      %v4754 = vpop.f32.mrb[0].mxu0
      %v4755 = vpop.f32.mrb[0].mxu0
      %v4756 = vadd.f32 0.0, %v4755
      %v4757 = vpop.f32.mrb[0].mxu0
      %4758 = vmatprep.mubr.bf16.mxu0 0
      %4759 = vmatmul.mubr.bf16.gmra.mrb[0].mxu0 %v4660
      %v4760 = vpop.f32.mrb[0].mxu0
      %v4761 = vadd.f32 0.0, %v4760
      %v4762 = vpop.f32.mrb[0].mxu0
      %v4763 = vpop.f32.mrb[0].mxu0
      %v4764 = vadd.f32 0.0, %v4763
      %v4765 = vpop.f32.mrb[0].mxu0
      %4766 = vmatprep.mubr.bf16.mxu0 0
      %4767 = vmatmul.mubr.bf16.gmra.mrb[0].mxu0 %v4663
      %v4768 = vpop.f32.mrb[0].mxu0
      %v4769 = vadd.f32 0.0, %v4768
      %v4770 = vpop.f32.mrb[0].mxu0
      %v4771 = vpop.f32.mrb[0].mxu0
      %v4772 = vadd.f32 0.0, %v4771
      %v4773 = vpop.f32.mrb[0].mxu0
      %4774 = vmatprep.mubr.bf16.mxu0 0
      %4775 = vmatmul.mubr.bf16.gmra.mrb[0].mxu0 %v4666
      %v4776 = vpop.f32.mrb[0].mxu0
      %v4777 = vadd.f32 0.0, %v4776
      %v4778 = vpop.f32.mrb[0].mxu0
      %v4779 = vpop.f32.mrb[0].mxu0
      %v4780 = vadd.f32 0.0, %v4779
      %v4781 = vpop.f32.mrb[0].mxu0
      %4782 = vmatprep.mubr.bf16.mxu0 0
      %4783 = vmatmul.mubr.bf16.gmra.mrb[0].mxu0 %v4669
      %v4784 = vpop.f32.mrb[0].mxu0
      %v4785 = vadd.f32 0.0, %v4784
      %v4786 = vpop.f32.mrb[0].mxu0
      %v4787 = vpop.f32.mrb[0].mxu0
      %v4788 = vadd.f32 0.0, %v4787
      %v4789 = vpop.f32.mrb[0].mxu0
      %4790 = vmatprep.mubr.bf16.mxu0 0
      %4791 = vmatmul.mubr.bf16.gmra.mrb[0].mxu0 %v4672
      %v4792 = vpop.f32.mrb[0].mxu0
      %v4793 = vadd.f32 0.0, %v4792
      %v4794 = vpop.f32.mrb[0].mxu0
      %v4795 = vpop.f32.mrb[0].mxu0
      %v4796 = vadd.f32 0.0, %v4795
      %v4797 = vpop.f32.mrb[0].mxu0
      %4798 = vmatprep.mubr.bf16.mxu0 0
      %4799 = vmatmul.mubr.bf16.gmra.mrb[0].mxu0 %v4675
      %v4800 = vpop.f32.mrb[0].mxu0
      %v4801 = vadd.f32 0.0, %v4800
      %v4802 = vpop.f32.mrb[0].mxu0
      %v4803 = vpop.f32.mrb[0].mxu0
      %v4804 = vadd.f32 0.0, %v4803
      %v4805 = vpop.f32.mrb[0].mxu0
      %4806 = vmatprep.mubr.bf16.mxu0 0
      %4807 = vmatmul.mubr.bf16.gmra.mrb[0].mxu0 %v4678
      %v4808 = vpop.f32.mrb[0].mxu0
      %v4809 = vadd.f32 0.0, %v4808
      %v4810 = vpop.f32.mrb[0].mxu0
      %v4811 = vpop.f32.mrb[0].mxu0
      %v4812 = vadd.f32 0.0, %v4811
      %v4813 = vpop.f32.mrb[0].mxu0
      %4814 = vmatprep.mubr.bf16.mxu0 0
      %4815 = vmatmul.mubr.bf16.gmra.mrb[0].mxu0 %v4681
      %v4816 = vpop.f32.mrb[0].mxu0
      %v4817 = vadd.f32 0.0, %v4816
      %v4818 = vpop.f32.mrb[0].mxu0
      %v4819 = vpop.f32.mrb[0].mxu0
      %v4820 = vpop.f32.mrb[0].mxu0
      %4821 = vdwg.mxu0
      %v4822 = vadd.f32 %v4482, %v4721
      %v4823 = vadd.f32 %v4483, %v4724
      %v4824 = vadd.f32 %v4484, %v4729
      %v4825 = vadd.f32 %v4485, %v4732
      %v4826 = vadd.f32 %v4486, %v4737
      %v4827 = vadd.f32 %v4487, %v4740
      %v4828 = vadd.f32 %v4488, %v4745
      %v4829 = vadd.f32 %v4489, %v4748
      %v4830 = vadd.f32 %v4490, %v4753
      %v4831 = vadd.f32 %v4491, %v4756
      %v4832 = vadd.f32 %v4492, %v4761
      %v4833 = vadd.f32 %v4493, %v4764
      %v4834 = vadd.f32 %v4494, %v4769
      %v4835 = vadd.f32 %v4495, %v4772
      %v4836 = vadd.f32 %v4496, %v4777
      %v4837 = vadd.f32 %v4497, %v4780
      %v4838 = vadd.f32 %v4498, %v4785
      %v4839 = vadd.f32 %v4499, %v4788
      %v4840 = vadd.f32 %v4500, %v4793
      %v4841 = vadd.f32 %v4501, %v4796
      %v4842 = vadd.f32 %v4502, %v4801
      %v4843 = vadd.f32 %v4503, %v4804
      %v4844 = vadd.f32 %v4504, %v4809
      %v4845 = vadd.f32 %v4505, %v4812
      %v4846 = vadd.f32 %v4506, %v4817
      %v4847 = vcombine.high %v4540, %v4540
      %v4848 = vrot.slane %v4516, 7
      %v4849 = vrot.slane %v4848, 2
      %v4850 = vrot.slane %v4524, 7
      %v4851 = vsel %vm1228, %v4849, %v4850
      %v4852 = vrot.slane %v4850, 2
      %v4853 = vrot.slane %v4523, 7
      %v4854 = vsel %vm1228, %v4852, %v4853
      %v4855 = vrot.slane %v4853, 2
      %v4856 = vrot.slane %v4525, 7
      %v4857 = vsel %vm1228, %v4855, %v4856
      %v4858 = vrot.slane %v4856, 2
      %v4859 = vrot.slane %v4533, 7
      %v4860 = vsel %vm1228, %v4858, %v4859
      %v4861 = vrot.slane %v4859, 2
      %v4862 = vrot.slane %v4541, 7
      %v4863 = vsel %vm1228, %v4861, %v4862
      %v4864 = vrot.slane %v4862, 2
      %v4865 = vrot.slane %v4540, 7
      %v4866 = vsel %vm1228, %v4864, %v4865
      %v4867 = vrot.slane %v4865, 2
      %v4868 = vrot.slane %v4847, 7
      %v4869 = vsel %vm1228, %v4867, %v4868
      %v4870 = vcombine.low %v1603, %v1613
      %v4871 = vcombine.low %v1620, %v1630
      %v4872 = vcombine.low %v1637, %v1647
      %v4873 = vcombine.low %v1654, %v1664
      %v4874 = vcombine.low %v1671, %v1681
      %v4875 = vcombine.low %v1688, %v1698
      %v4876 = vcombine.low %v1705, %v1715
      %v4877 = vcombine.low %v1722, %v1732
      %v4878 = vcombine.low %v1739, %v1749
      %v4879 = vcombine.low %v1756, %v1766
      %v4880 = vcombine.low %v1773, %v1783
      %v4881 = vcombine.low %v1790, %v1800
      %v4882 = vcombine.low %v1807, %v1817
      %v4883 = vcombine.low %v1824, %v1834
      %v4884 = vcombine.low %v1841, %v1851
      %v4885 = vcombine.low %v1858, %v1868
      %v4886 = vcombine.low %v1875, %v1885
      %v4887 = vcombine.low %v1892, %v1902
      %v4888 = vcombine.low %v1909, %v1919
      %v4889 = vcombine.low %v1926, %v1936
      %v4890 = vcombine.low %v1943, %v1952
      %v4891 = vcombine.low %v3454, %v3457
      %v4892 = vcombine.low %v3460, %v3463
      %v4894 = vunpack.c.l.s4 1983009808
      %v4895 = vunpack.c.0.s8 %v4894
      %v4896 = vlaneseq
      %v4897 = vshrl.u32 %v4896, 7
      %v4898 = vsub.s32 %v4895, %v4897
      %v4899 = vrot.slane %v4891, %v4898
      %v4901 = vunpack.c.l.s4 1983009808
      %v4902 = vunpack.c.0.s8 %v4901
      %v4903 = vlaneseq
      %v4904 = vshrl.u32 %v4903, 7
      %v4905 = vsub.s32 %v4902, %v4904
      %v4906 = vrot.slane %v4892, %v4905
      %v4907 = vcombine.low %v4899, %v4906
      %v4908 = vcombine.low %v3466, %v3469
      %v4909 = vcombine.low %v3472, %v4851
      %v4911 = vunpack.c.l.s4 1983009808
      %v4912 = vunpack.c.0.s8 %v4911
      %v4913 = vlaneseq
      %v4914 = vshrl.u32 %v4913, 7
      %v4915 = vsub.s32 %v4912, %v4914
      %v4916 = vrot.slane %v4908, %v4915
      %v4918 = vunpack.c.l.s4 1983009808
      %v4919 = vunpack.c.0.s8 %v4918
      %v4920 = vlaneseq
      %v4921 = vshrl.u32 %v4920, 7
      %v4922 = vsub.s32 %v4919, %v4921
      %v4923 = vrot.slane %v4909, %v4922
      %v4924 = vcombine.low %v4916, %v4923
      %v4925 = vcombine.low %v4854, %v4857
      %v4926 = vcombine.low %v4860, %v4863
      %v4928 = vunpack.c.l.s4 1983009808
      %v4929 = vunpack.c.0.s8 %v4928
      %v4930 = vlaneseq
      %v4931 = vshrl.u32 %v4930, 7
      %v4932 = vsub.s32 %v4929, %v4931
      %v4933 = vrot.slane %v4925, %v4932
      %v4935 = vunpack.c.l.s4 1983009808
      %v4936 = vunpack.c.0.s8 %v4935
      %v4937 = vlaneseq
      %v4938 = vshrl.u32 %v4937, 7
      %v4939 = vsub.s32 %v4936, %v4938
      %v4940 = vrot.slane %v4926, %v4939
      %v4941 = vcombine.low %v4933, %v4940
      %v4942 = vcombine.low %v4866, %v4869
      %v4944 = vunpack.c.l.s4 1983009808
      %v4945 = vunpack.c.0.s8 %v4944
      %v4946 = vlaneseq
      %v4947 = vshrl.u32 %v4946, 7
      %v4948 = vsub.s32 %v4945, %v4947
      %v4949 = vrot.slane %v4942, %v4948
      %v4975 = vpack.c.bf16 %v4871, %v4870
      %v4976 = vpack.c.bf16 %v4873, %v4872
      %v4977 = vpack.c.bf16 %v4875, %v4874
      %v4978 = vpack.c.bf16 %v4877, %v4876
      %v4979 = vpack.c.bf16 %v4879, %v4878
      %v4980 = vpack.c.bf16 %v4881, %v4880
      %v4981 = vpack.c.bf16 %v4883, %v4882
      %v4982 = vpack.c.bf16 %v4885, %v4884
      %v4983 = vpack.c.bf16 %v4887, %v4886
      %v4984 = vpack.c.bf16 %v4889, %v4888
      %v4985 = vpack.c.bf16 %v4907, %v4890
      %v4986 = vpack.c.bf16 %v4941, %v4924
      %v4987 = vpack.c.bf16 %v4949, %v4949
      %v4989 = vunpack.c.l.b16 %v261
      %v4990 = vpack.c.b16 %v4989, %v4989
      %v4991 = vrot.slane %v4990, 2
      %v4993 = vsel %vm1995, %v4975, 0
      %v4996 = vsel %vm1995, %v4976, 0
      %v4999 = vsel %vm1995, %v4977, 0
      %v5002 = vsel %vm1995, %v4978, 0
      %v5005 = vsel %vm1995, %v4979, 0
      %v5008 = vsel %vm1995, %v4980, 0
      %v5011 = vsel %vm1995, %v4981, 0
      %v5014 = vsel %vm1995, %v4982, 0
      %v5017 = vsel %vm1995, %v4983, 0
      %v5020 = vsel %vm1995, %v4984, 0
      %v5023 = vsel %vm1995, %v4985, 0
      %v5026 = vsel %vm1995, %v4986, 0
      %v5029 = vsel %vm1995, %v4987, 0
      %v5032 = vsel %vm2035, %v4991, 0
      %5034 = vmatprep.subr.bf16.mxu0 0
      %5035 = vmatpush1.bf16.msra.mxu0 %v5032
      %5036 = vmatprep.subr.bf16.mxu0 0
      %5037 = vmatpush1.bf16.msra.mxu0 0
      %5038 = vmatprep.subr.bf16.mxu0 0
      %5039 = vmatpush1.bf16.msra.mxu0 0
      %5040 = vmatprep.subr.bf16.mxu0 0
      %5041 = vmatpush1.bf16.msra.mxu0 0
      %5042 = vmatprep.subr.bf16.mxu0 0
      %5043 = vmatpush1.bf16.msra.mxu0 0
      %5044 = vmatprep.subr.bf16.mxu0 0
      %5045 = vmatpush1.bf16.msra.mxu0 0
      %5046 = vmatprep.subr.bf16.mxu0 0
      %5047 = vmatpush1.bf16.msra.mxu0 0
      %5048 = vmatprep.subr.bf16.mxu0 0
      %5049 = vmatpush1.bf16.msra.mxu0 0
      %5050 = vmatprep.subr.bf16.mxu0 0
      %5051 = vmatpush1.bf16.msra.mxu0 0
      %5052 = vmatprep.subr.bf16.mxu0 0
      %5053 = vmatpush1.bf16.msra.mxu0 0
      %5054 = vmatprep.subr.bf16.mxu0 0
      %5055 = vmatpush1.bf16.msra.mxu0 0
      %5056 = vmatprep.subr.bf16.mxu0 0
      %5057 = vmatpush1.bf16.msra.mxu0 0
      %5058 = vmatprep.subr.bf16.mxu0 0
      %5059 = vmatpush1.bf16.msra.mxu0 0
      %5060 = vmatprep.subr.bf16.mxu0 0
      %5061 = vmatpush1.bf16.msra.mxu0 0
      %5062 = vmatprep.subr.bf16.mxu0 0
      %5063 = vmatpush1.bf16.msra.mxu0 0
      %5064 = vmatprep.subr.bf16.mxu0 0
      %5065 = vmatpush1.bf16.msra.mxu0 0
      %5066 = vmatprep.mubr.bf16.mxu0 0
      %5067 = vmatmul.mubr.bf16.gmra.mrb[0].mxu0 %v4993
      %v5068 = vpop.f32.mrb[0].mxu0
      %v5069 = vadd.f32 0.0, %v5068
      %v5070 = vpop.f32.mrb[0].mxu0
      %v5071 = vpop.f32.mrb[0].mxu0
      %v5072 = vadd.f32 0.0, %v5071
      %v5073 = vpop.f32.mrb[0].mxu0
      %5074 = vmatprep.mubr.bf16.mxu0 0
      %5075 = vmatmul.mubr.bf16.gmra.mrb[0].mxu0 %v4996
      %v5076 = vpop.f32.mrb[0].mxu0
      %v5077 = vadd.f32 0.0, %v5076
      %v5078 = vpop.f32.mrb[0].mxu0
      %v5079 = vpop.f32.mrb[0].mxu0
      %v5080 = vadd.f32 0.0, %v5079
      %v5081 = vpop.f32.mrb[0].mxu0
      %5082 = vmatprep.mubr.bf16.mxu0 0
      %5083 = vmatmul.mubr.bf16.gmra.mrb[0].mxu0 %v4999
      %v5084 = vpop.f32.mrb[0].mxu0
      %v5085 = vadd.f32 0.0, %v5084
      %v5086 = vpop.f32.mrb[0].mxu0
      %v5087 = vpop.f32.mrb[0].mxu0
      %v5088 = vadd.f32 0.0, %v5087
      %v5089 = vpop.f32.mrb[0].mxu0
      %5090 = vmatprep.mubr.bf16.mxu0 0
      %5091 = vmatmul.mubr.bf16.gmra.mrb[0].mxu0 %v5002
      %v5092 = vpop.f32.mrb[0].mxu0
      %v5093 = vadd.f32 0.0, %v5092
      %v5094 = vpop.f32.mrb[0].mxu0
      %v5095 = vpop.f32.mrb[0].mxu0
      %v5096 = vadd.f32 0.0, %v5095
      %v5097 = vpop.f32.mrb[0].mxu0
      %5098 = vmatprep.mubr.bf16.mxu0 0
      %5099 = vmatmul.mubr.bf16.gmra.mrb[0].mxu0 %v5005
      %v5100 = vpop.f32.mrb[0].mxu0
      %v5101 = vadd.f32 0.0, %v5100
      %v5102 = vpop.f32.mrb[0].mxu0
      %v5103 = vpop.f32.mrb[0].mxu0
      %v5104 = vadd.f32 0.0, %v5103
      %v5105 = vpop.f32.mrb[0].mxu0
      %5106 = vmatprep.mubr.bf16.mxu0 0
      %5107 = vmatmul.mubr.bf16.gmra.mrb[0].mxu0 %v5008
      %v5108 = vpop.f32.mrb[0].mxu0
      %v5109 = vadd.f32 0.0, %v5108
      %v5110 = vpop.f32.mrb[0].mxu0
      %v5111 = vpop.f32.mrb[0].mxu0
      %v5112 = vadd.f32 0.0, %v5111
      %v5113 = vpop.f32.mrb[0].mxu0
      %5114 = vmatprep.mubr.bf16.mxu0 0
      %5115 = vmatmul.mubr.bf16.gmra.mrb[0].mxu0 %v5011
      %v5116 = vpop.f32.mrb[0].mxu0
      %v5117 = vadd.f32 0.0, %v5116
      %v5118 = vpop.f32.mrb[0].mxu0
      %v5119 = vpop.f32.mrb[0].mxu0
      %v5120 = vadd.f32 0.0, %v5119
      %v5121 = vpop.f32.mrb[0].mxu0
      %5122 = vmatprep.mubr.bf16.mxu0 0
      %5123 = vmatmul.mubr.bf16.gmra.mrb[0].mxu0 %v5014
      %v5124 = vpop.f32.mrb[0].mxu0
      %v5125 = vadd.f32 0.0, %v5124
      %v5126 = vpop.f32.mrb[0].mxu0
      %v5127 = vpop.f32.mrb[0].mxu0
      %v5128 = vadd.f32 0.0, %v5127
      %v5129 = vpop.f32.mrb[0].mxu0
      %5130 = vmatprep.mubr.bf16.mxu0 0
      %5131 = vmatmul.mubr.bf16.gmra.mrb[0].mxu0 %v5017
      %v5132 = vpop.f32.mrb[0].mxu0
      %v5133 = vadd.f32 0.0, %v5132
      %v5134 = vpop.f32.mrb[0].mxu0
      %v5135 = vpop.f32.mrb[0].mxu0
      %v5136 = vadd.f32 0.0, %v5135
      %v5137 = vpop.f32.mrb[0].mxu0
      %5138 = vmatprep.mubr.bf16.mxu0 0
      %5139 = vmatmul.mubr.bf16.gmra.mrb[0].mxu0 %v5020
      %v5140 = vpop.f32.mrb[0].mxu0
      %v5141 = vadd.f32 0.0, %v5140
      %v5142 = vpop.f32.mrb[0].mxu0
      %v5143 = vpop.f32.mrb[0].mxu0
      %v5144 = vadd.f32 0.0, %v5143
      %v5145 = vpop.f32.mrb[0].mxu0
      %5146 = vmatprep.mubr.bf16.mxu0 0
      %5147 = vmatmul.mubr.bf16.gmra.mrb[0].mxu0 %v5023
      %v5148 = vpop.f32.mrb[0].mxu0
      %v5149 = vadd.f32 0.0, %v5148
      %v5150 = vpop.f32.mrb[0].mxu0
      %v5151 = vpop.f32.mrb[0].mxu0
      %v5152 = vadd.f32 0.0, %v5151
      %v5153 = vpop.f32.mrb[0].mxu0
      %5154 = vmatprep.mubr.bf16.mxu0 0
      %5155 = vmatmul.mubr.bf16.gmra.mrb[0].mxu0 %v5026
      %v5156 = vpop.f32.mrb[0].mxu0
      %v5157 = vadd.f32 0.0, %v5156
      %v5158 = vpop.f32.mrb[0].mxu0
      %v5159 = vpop.f32.mrb[0].mxu0
      %v5160 = vadd.f32 0.0, %v5159
      %v5161 = vpop.f32.mrb[0].mxu0
      %5162 = vmatprep.mubr.bf16.mxu0 0
      %5163 = vmatmul.mubr.bf16.gmra.mrb[0].mxu0 %v5029
      %v5164 = vpop.f32.mrb[0].mxu0
      %v5165 = vadd.f32 0.0, %v5164
      %v5166 = vpop.f32.mrb[0].mxu0
      %v5167 = vpop.f32.mrb[0].mxu0
      %v5168 = vpop.f32.mrb[0].mxu0
      %5169 = vdwg.mxu0
      %v5170 = vadd.f32 %v4822, %v5069
      %v5171 = vadd.f32 %v4823, %v5072
      %v5172 = vadd.f32 %v4824, %v5077
      %v5173 = vadd.f32 %v4825, %v5080
      %v5174 = vadd.f32 %v4826, %v5085
      %v5175 = vadd.f32 %v4827, %v5088
      %v5176 = vadd.f32 %v4828, %v5093
      %v5177 = vadd.f32 %v4829, %v5096
      %v5178 = vadd.f32 %v4830, %v5101
      %v5179 = vadd.f32 %v4831, %v5104
      %v5180 = vadd.f32 %v4832, %v5109
      %v5181 = vadd.f32 %v4833, %v5112
      %v5182 = vadd.f32 %v4834, %v5117
      %v5183 = vadd.f32 %v4835, %v5120
      %v5184 = vadd.f32 %v4836, %v5125
      %v5185 = vadd.f32 %v4837, %v5128
      %v5186 = vadd.f32 %v4838, %v5133
      %v5187 = vadd.f32 %v4839, %v5136
      %v5188 = vadd.f32 %v4840, %v5141
      %v5189 = vadd.f32 %v4841, %v5144
      %v5190 = vadd.f32 %v4842, %v5149
      %v5191 = vadd.f32 %v4843, %v5152
      %v5192 = vadd.f32 %v4844, %v5157
      %v5193 = vadd.f32 %v4845, %v5160
      %v5194 = vadd.f32 %v4846, %v5165
      %v5195 = vcombine.low %v2436, %v2446
      %v5196 = vcombine.low %v2470, %v2480
      %v5197 = vcombine.low %v2504, %v2514
      %v5198 = vcombine.low %v2521, %v2531
      %v5199 = vcombine.low %v2555, %v2565
      %v5200 = vcombine.low %v2589, %v2599
      %v5201 = vcombine.low %v2623, %v2633
      %v5202 = vcombine.low %v2640, %v2650
      %v5203 = vcombine.low %v2674, %v2684
      %v5204 = vcombine.low %v2708, %v2718
      %v5205 = vcombine.low %v2742, %v2752
      %v5206 = vcombine.low %v2759, %v2768
      %v5207 = vcombine.low %v3450, %v4524
      %v5209 = vunpack.c.l.s4 1983009808
      %v5210 = vunpack.c.0.s8 %v5209
      %v5211 = vlaneseq
      %v5212 = vshrl.u32 %v5211, 7
      %v5213 = vsub.s32 %v5210, %v5212
      %v5214 = vrot.slane %v5207, %v5213
      %v5215 = vcombine.low %v3204, %v5214
      %v5216 = vcombine.low %v4523, %v4525
      %v5217 = vcombine.low %v4533, %v4541
      %v5219 = vunpack.c.l.s4 1983009808
      %v5220 = vunpack.c.0.s8 %v5219
      %v5221 = vlaneseq
      %v5222 = vshrl.u32 %v5221, 7
      %v5223 = vsub.s32 %v5220, %v5222
      %v5224 = vrot.slane %v5216, %v5223
      %v5226 = vunpack.c.l.s4 1983009808
      %v5227 = vunpack.c.0.s8 %v5226
      %v5228 = vlaneseq
      %v5229 = vshrl.u32 %v5228, 7
      %v5230 = vsub.s32 %v5227, %v5229
      %v5231 = vrot.slane %v5217, %v5230
      %v5232 = vcombine.low %v5224, %v5231
      %v5233 = vcombine.low %v4540, %v4847
      %v5235 = vunpack.c.l.s4 1983009808
      %v5236 = vunpack.c.0.s8 %v5235
      %v5237 = vlaneseq
      %v5238 = vshrl.u32 %v5237, 7
      %v5239 = vsub.s32 %v5236, %v5238
      %v5240 = vrot.slane %v5233, %v5239
      %v5256 = vpack.c.bf16 %v5195, %v3063
      %v5257 = vpack.c.bf16 %v5196, %v3073
      %v5258 = vpack.c.bf16 %v5197, %v3083
      %v5259 = vpack.c.bf16 %v3102, %v5198
      %v5260 = vpack.c.bf16 %v3112, %v5199
      %v5261 = vpack.c.bf16 %v3122, %v5200
      %v5262 = vpack.c.bf16 %v5202, %v5201
      %v5263 = vpack.c.bf16 %v5203, %v3141
      %v5264 = vpack.c.bf16 %v5204, %v3151
      %v5265 = vpack.c.bf16 %v5205, %v3161
      %v5266 = vpack.c.bf16 %v3196, %v5206
      %v5267 = vpack.c.bf16 %v5232, %v5215
      %v5268 = vpack.c.bf16 %v5240, %v5240
      %v5270 = vsel %vm1995, %v5256, 0
      %v5273 = vsel %vm1995, %v5257, 0
      %v5276 = vsel %vm1995, %v5258, 0
      %v5279 = vsel %vm1995, %v5259, 0
      %v5282 = vsel %vm1995, %v5260, 0
      %v5285 = vsel %vm1995, %v5261, 0
      %v5288 = vsel %vm1995, %v5262, 0
      %v5291 = vsel %vm1995, %v5263, 0
      %v5294 = vsel %vm1995, %v5264, 0
      %v5297 = vsel %vm1995, %v5265, 0
      %v5300 = vsel %vm1995, %v5266, 0
      %v5303 = vsel %vm1995, %v5267, 0
      %v5306 = vsel %vm1995, %v5268, 0
      %v5309 = vsel %vm2035, %v262, 0
      %5311 = vmatprep.subr.bf16.mxu0 0
      %5312 = vmatpush1.bf16.msra.mxu0 %v5309
      %5313 = vmatprep.subr.bf16.mxu0 0
      %5314 = vmatpush1.bf16.msra.mxu0 0
      %5315 = vmatprep.subr.bf16.mxu0 0
      %5316 = vmatpush1.bf16.msra.mxu0 0
      %5317 = vmatprep.subr.bf16.mxu0 0
      %5318 = vmatpush1.bf16.msra.mxu0 0
      %5319 = vmatprep.subr.bf16.mxu0 0
      %5320 = vmatpush1.bf16.msra.mxu0 0
      %5321 = vmatprep.subr.bf16.mxu0 0
      %5322 = vmatpush1.bf16.msra.mxu0 0
      %5323 = vmatprep.subr.bf16.mxu0 0
      %5324 = vmatpush1.bf16.msra.mxu0 0
      %5325 = vmatprep.subr.bf16.mxu0 0
      %5326 = vmatpush1.bf16.msra.mxu0 0
      %5327 = vmatprep.subr.bf16.mxu0 0
      %5328 = vmatpush1.bf16.msra.mxu0 0
      %5329 = vmatprep.subr.bf16.mxu0 0
      %5330 = vmatpush1.bf16.msra.mxu0 0
      %5331 = vmatprep.subr.bf16.mxu0 0
      %5332 = vmatpush1.bf16.msra.mxu0 0
      %5333 = vmatprep.subr.bf16.mxu0 0
      %5334 = vmatpush1.bf16.msra.mxu0 0
      %5335 = vmatprep.subr.bf16.mxu0 0
      %5336 = vmatpush1.bf16.msra.mxu0 0
      %5337 = vmatprep.subr.bf16.mxu0 0
      %5338 = vmatpush1.bf16.msra.mxu0 0
      %5339 = vmatprep.subr.bf16.mxu0 0
      %5340 = vmatpush1.bf16.msra.mxu0 0
      %5341 = vmatprep.subr.bf16.mxu0 0
      %5342 = vmatpush1.bf16.msra.mxu0 0
      %5343 = vmatprep.mubr.bf16.mxu0 0
      %5344 = vmatmul.mubr.bf16.gmra.mrb[0].mxu0 %v5270
      %v5345 = vpop.f32.mrb[0].mxu0
      %v5346 = vadd.f32 0.0, %v5345
      %v5347 = vpop.f32.mrb[0].mxu0
      %v5348 = vpop.f32.mrb[0].mxu0
      %v5349 = vadd.f32 0.0, %v5348
      %v5350 = vpop.f32.mrb[0].mxu0
      %5351 = vmatprep.mubr.bf16.mxu0 0
      %5352 = vmatmul.mubr.bf16.gmra.mrb[0].mxu0 %v5273
      %v5353 = vpop.f32.mrb[0].mxu0
      %v5354 = vadd.f32 0.0, %v5353
      %v5355 = vpop.f32.mrb[0].mxu0
      %v5356 = vpop.f32.mrb[0].mxu0
      %v5357 = vadd.f32 0.0, %v5356
      %v5358 = vpop.f32.mrb[0].mxu0
      %5359 = vmatprep.mubr.bf16.mxu0 0
      %5360 = vmatmul.mubr.bf16.gmra.mrb[0].mxu0 %v5276
      %v5361 = vpop.f32.mrb[0].mxu0
      %v5362 = vadd.f32 0.0, %v5361
      %v5363 = vpop.f32.mrb[0].mxu0
      %v5364 = vpop.f32.mrb[0].mxu0
      %v5365 = vadd.f32 0.0, %v5364
      %v5366 = vpop.f32.mrb[0].mxu0
      %5367 = vmatprep.mubr.bf16.mxu0 0
      %5368 = vmatmul.mubr.bf16.gmra.mrb[0].mxu0 %v5279
      %v5369 = vpop.f32.mrb[0].mxu0
      %v5370 = vadd.f32 0.0, %v5369
      %v5371 = vpop.f32.mrb[0].mxu0
      %v5372 = vpop.f32.mrb[0].mxu0
      %v5373 = vadd.f32 0.0, %v5372
      %v5374 = vpop.f32.mrb[0].mxu0
      %5375 = vmatprep.mubr.bf16.mxu0 0
      %5376 = vmatmul.mubr.bf16.gmra.mrb[0].mxu0 %v5282
      %v5377 = vpop.f32.mrb[0].mxu0
      %v5378 = vadd.f32 0.0, %v5377
      %v5379 = vpop.f32.mrb[0].mxu0
      %v5380 = vpop.f32.mrb[0].mxu0
      %v5381 = vadd.f32 0.0, %v5380
      %v5382 = vpop.f32.mrb[0].mxu0
      %5383 = vmatprep.mubr.bf16.mxu0 0
      %5384 = vmatmul.mubr.bf16.gmra.mrb[0].mxu0 %v5285
      %v5385 = vpop.f32.mrb[0].mxu0
      %v5386 = vadd.f32 0.0, %v5385
      %v5387 = vpop.f32.mrb[0].mxu0
      %v5388 = vpop.f32.mrb[0].mxu0
      %v5389 = vadd.f32 0.0, %v5388
      %v5390 = vpop.f32.mrb[0].mxu0
      %5391 = vmatprep.mubr.bf16.mxu0 0
      %5392 = vmatmul.mubr.bf16.gmra.mrb[0].mxu0 %v5288
      %v5393 = vpop.f32.mrb[0].mxu0
      %v5394 = vadd.f32 0.0, %v5393
      %v5395 = vpop.f32.mrb[0].mxu0
      %v5396 = vpop.f32.mrb[0].mxu0
      %v5397 = vadd.f32 0.0, %v5396
      %v5398 = vpop.f32.mrb[0].mxu0
      %5399 = vmatprep.mubr.bf16.mxu0 0
      %5400 = vmatmul.mubr.bf16.gmra.mrb[0].mxu0 %v5291
      %v5401 = vpop.f32.mrb[0].mxu0
      %v5402 = vadd.f32 0.0, %v5401
      %v5403 = vpop.f32.mrb[0].mxu0
      %v5404 = vpop.f32.mrb[0].mxu0
      %v5405 = vadd.f32 0.0, %v5404
      %v5406 = vpop.f32.mrb[0].mxu0
      %5407 = vmatprep.mubr.bf16.mxu0 0
      %5408 = vmatmul.mubr.bf16.gmra.mrb[0].mxu0 %v5294
      %v5409 = vpop.f32.mrb[0].mxu0
      %v5410 = vadd.f32 0.0, %v5409
      %v5411 = vpop.f32.mrb[0].mxu0
      %v5412 = vpop.f32.mrb[0].mxu0
      %v5413 = vadd.f32 0.0, %v5412
      %v5414 = vpop.f32.mrb[0].mxu0
      %5415 = vmatprep.mubr.bf16.mxu0 0
      %5416 = vmatmul.mubr.bf16.gmra.mrb[0].mxu0 %v5297
      %v5417 = vpop.f32.mrb[0].mxu0
      %v5418 = vadd.f32 0.0, %v5417
      %v5419 = vpop.f32.mrb[0].mxu0
      %v5420 = vpop.f32.mrb[0].mxu0
      %v5421 = vadd.f32 0.0, %v5420
      %v5422 = vpop.f32.mrb[0].mxu0
      %5423 = vmatprep.mubr.bf16.mxu0 0
      %5424 = vmatmul.mubr.bf16.gmra.mrb[0].mxu0 %v5300
      %v5425 = vpop.f32.mrb[0].mxu0
      %v5426 = vadd.f32 0.0, %v5425
      %v5427 = vpop.f32.mrb[0].mxu0
      %v5428 = vpop.f32.mrb[0].mxu0
      %v5429 = vadd.f32 0.0, %v5428
      %v5430 = vpop.f32.mrb[0].mxu0
      %5431 = vmatprep.mubr.bf16.mxu0 0
      %5432 = vmatmul.mubr.bf16.gmra.mrb[0].mxu0 %v5303
      %v5433 = vpop.f32.mrb[0].mxu0
      %v5434 = vadd.f32 0.0, %v5433
      %v5435 = vpop.f32.mrb[0].mxu0
      %v5436 = vpop.f32.mrb[0].mxu0
      %v5437 = vadd.f32 0.0, %v5436
      %v5438 = vpop.f32.mrb[0].mxu0
      %5439 = vmatprep.mubr.bf16.mxu0 0
      %5440 = vmatmul.mubr.bf16.gmra.mrb[0].mxu0 %v5306
      %v5441 = vpop.f32.mrb[0].mxu0
      %v5442 = vadd.f32 0.0, %v5441
      %v5443 = vpop.f32.mrb[0].mxu0
      %v5444 = vpop.f32.mrb[0].mxu0
      %v5445 = vpop.f32.mrb[0].mxu0
      %5446 = vdwg.mxu0
      %v5447 = vadd.f32 %v5170, %v5346
      %v5448 = vadd.f32 %v5171, %v5349
      %v5449 = vadd.f32 %v5172, %v5354
      %v5450 = vadd.f32 %v5173, %v5357
      %v5451 = vadd.f32 %v5174, %v5362
      %v5452 = vadd.f32 %v5175, %v5365
      %v5453 = vadd.f32 %v5176, %v5370
      %v5454 = vadd.f32 %v5177, %v5373
      %v5455 = vadd.f32 %v5178, %v5378
      %v5456 = vadd.f32 %v5179, %v5381
      %v5457 = vadd.f32 %v5180, %v5386
      %v5458 = vadd.f32 %v5181, %v5389
      %v5459 = vadd.f32 %v5182, %v5394
      %v5460 = vadd.f32 %v5183, %v5397
      %v5461 = vadd.f32 %v5184, %v5402
      %v5462 = vadd.f32 %v5185, %v5405
      %v5463 = vadd.f32 %v5186, %v5410
      %v5464 = vadd.f32 %v5187, %v5413
      %v5465 = vadd.f32 %v5188, %v5418
      %v5466 = vadd.f32 %v5189, %v5421
      %v5467 = vadd.f32 %v5190, %v5426
      %v5468 = vadd.f32 %v5191, %v5429
      %v5469 = vadd.f32 %v5192, %v5434
      %v5470 = vadd.f32 %v5193, %v5437
      %v5471 = vadd.f32 %v5194, %v5442
      %v5473 = vlaneseq
      %v5474 = vshrl.u32 %v5473, 7
      %v5475 = vsub.s32 0, %v5474
      %v5476 = vrot.slane %v263, %v5475
      %v5478 = vadd.f32 %v5447, %v5476
      %v5479 = vadd.f32 %v5448, %v5476
      %v5480 = vadd.f32 %v5449, %v5476
      %v5481 = vadd.f32 %v5450, %v5476
      %v5482 = vadd.f32 %v5451, %v5476
      %v5483 = vadd.f32 %v5452, %v5476
      %v5484 = vadd.f32 %v5453, %v5476
      %v5485 = vadd.f32 %v5454, %v5476
      %v5486 = vadd.f32 %v5455, %v5476
      %v5487 = vadd.f32 %v5456, %v5476
      %v5488 = vadd.f32 %v5457, %v5476
      %v5489 = vadd.f32 %v5458, %v5476
      %v5490 = vadd.f32 %v5459, %v5476
      %v5491 = vadd.f32 %v5460, %v5476
      %v5492 = vadd.f32 %v5461, %v5476
      %v5493 = vadd.f32 %v5462, %v5476
      %v5494 = vadd.f32 %v5463, %v5476
      %v5495 = vadd.f32 %v5464, %v5476
      %v5496 = vadd.f32 %v5465, %v5476
      %v5497 = vadd.f32 %v5466, %v5476
      %v5498 = vadd.f32 %v5467, %v5476
      %v5499 = vadd.f32 %v5468, %v5476
      %v5500 = vadd.f32 %v5469, %v5476
      %v5501 = vadd.f32 %v5470, %v5476
      %v5502 = vadd.f32 %v5471, %v5476
      %v5503 = vmax.f32 %v5478, 0.0
      %v5504 = vmax.f32 %v5479, 0.0
      %v5505 = vmax.f32 %v5480, 0.0
      %v5506 = vmax.f32 %v5481, 0.0
      %v5507 = vmax.f32 %v5482, 0.0
      %v5508 = vmax.f32 %v5483, 0.0
      %v5509 = vmax.f32 %v5484, 0.0
      %v5510 = vmax.f32 %v5485, 0.0
      %v5511 = vmax.f32 %v5486, 0.0
      %v5512 = vmax.f32 %v5487, 0.0
      %v5513 = vmax.f32 %v5488, 0.0
      %v5514 = vmax.f32 %v5489, 0.0
      %v5515 = vmax.f32 %v5490, 0.0
      %v5516 = vmax.f32 %v5491, 0.0
      %v5517 = vmax.f32 %v5492, 0.0
      %v5518 = vmax.f32 %v5493, 0.0
      %v5519 = vmax.f32 %v5494, 0.0
      %v5520 = vmax.f32 %v5495, 0.0
      %v5521 = vmax.f32 %v5496, 0.0
      %v5522 = vmax.f32 %v5497, 0.0
      %v5523 = vmax.f32 %v5498, 0.0
      %v5524 = vmax.f32 %v5499, 0.0
      %v5525 = vmax.f32 %v5500, 0.0
      %v5526 = vmax.f32 %v5501, 0.0
      %v5527 = vmax.f32 %v5502, 0.0
      %v5553 = vcombine.high %v5503, %v5503
      %v5555 = vunpack.c.l.s4 1983009808
      %v5556 = vunpack.c.0.s8 %v5555
      %v5557 = vlaneseq
      %v5558 = vshrl.u32 %v5557, 7
      %v5559 = vsub.s32 %v5556, %v5558
      %v5560 = vrot.slane %v5503, %v5559
      %v5562 = vunpack.c.l.s4 1983009808
      %v5563 = vunpack.c.0.s8 %v5562
      %v5564 = vlaneseq
      %v5565 = vshrl.u32 %v5564, 7
      %v5566 = vsub.s32 %v5563, %v5565
      %v5567 = vrot.slane %v5553, %v5566
      %v5568 = vcombine.high %v5560, %v5560
      %v5569 = vcombine.high %v5567, %v5567
      %v5570 = vcombine.high %v5504, %v5504
      %v5572 = vunpack.c.l.s4 1983009808
      %v5573 = vunpack.c.0.s8 %v5572
      %v5574 = vlaneseq
      %v5575 = vshrl.u32 %v5574, 7
      %v5576 = vsub.s32 %v5573, %v5575
      %v5577 = vrot.slane %v5504, %v5576
      %v5579 = vunpack.c.l.s4 1983009808
      %v5580 = vunpack.c.0.s8 %v5579
      %v5581 = vlaneseq
      %v5582 = vshrl.u32 %v5581, 7
      %v5583 = vsub.s32 %v5580, %v5582
      %v5584 = vrot.slane %v5570, %v5583
      %v5585 = vcombine.high %v5577, %v5577
      %v5586 = vcombine.high %v5584, %v5584
      %v5587 = vcombine.high %v5505, %v5505
      %v5589 = vunpack.c.l.s4 1983009808
      %v5590 = vunpack.c.0.s8 %v5589
      %v5591 = vlaneseq
      %v5592 = vshrl.u32 %v5591, 7
      %v5593 = vsub.s32 %v5590, %v5592
      %v5594 = vrot.slane %v5505, %v5593
      %v5596 = vunpack.c.l.s4 1983009808
      %v5597 = vunpack.c.0.s8 %v5596
      %v5598 = vlaneseq
      %v5599 = vshrl.u32 %v5598, 7
      %v5600 = vsub.s32 %v5597, %v5599
      %v5601 = vrot.slane %v5587, %v5600
      %v5602 = vcombine.high %v5594, %v5594
      %v5603 = vcombine.high %v5601, %v5601
      %v5604 = vcombine.high %v5506, %v5506
      %v5606 = vunpack.c.l.s4 1983009808
      %v5607 = vunpack.c.0.s8 %v5606
      %v5608 = vlaneseq
      %v5609 = vshrl.u32 %v5608, 7
      %v5610 = vsub.s32 %v5607, %v5609
      %v5611 = vrot.slane %v5506, %v5610
      %v5613 = vunpack.c.l.s4 1983009808
      %v5614 = vunpack.c.0.s8 %v5613
      %v5615 = vlaneseq
      %v5616 = vshrl.u32 %v5615, 7
      %v5617 = vsub.s32 %v5614, %v5616
      %v5618 = vrot.slane %v5604, %v5617
      %v5619 = vcombine.high %v5611, %v5611
      %v5620 = vcombine.high %v5618, %v5618
      %v5621 = vcombine.high %v5507, %v5507
      %v5623 = vunpack.c.l.s4 1983009808
      %v5624 = vunpack.c.0.s8 %v5623
      %v5625 = vlaneseq
      %v5626 = vshrl.u32 %v5625, 7
      %v5627 = vsub.s32 %v5624, %v5626
      %v5628 = vrot.slane %v5507, %v5627
      %v5630 = vunpack.c.l.s4 1983009808
      %v5631 = vunpack.c.0.s8 %v5630
      %v5632 = vlaneseq
      %v5633 = vshrl.u32 %v5632, 7
      %v5634 = vsub.s32 %v5631, %v5633
      %v5635 = vrot.slane %v5621, %v5634
      %v5636 = vcombine.high %v5628, %v5628
      %v5637 = vcombine.high %v5635, %v5635
      %v5638 = vcombine.high %v5508, %v5508
      %v5640 = vunpack.c.l.s4 1983009808
      %v5641 = vunpack.c.0.s8 %v5640
      %v5642 = vlaneseq
      %v5643 = vshrl.u32 %v5642, 7
      %v5644 = vsub.s32 %v5641, %v5643
      %v5645 = vrot.slane %v5508, %v5644
      %v5647 = vunpack.c.l.s4 1983009808
      %v5648 = vunpack.c.0.s8 %v5647
      %v5649 = vlaneseq
      %v5650 = vshrl.u32 %v5649, 7
      %v5651 = vsub.s32 %v5648, %v5650
      %v5652 = vrot.slane %v5638, %v5651
      %v5653 = vcombine.high %v5645, %v5645
      %v5654 = vcombine.high %v5652, %v5652
      %v5655 = vcombine.high %v5509, %v5509
      %v5657 = vunpack.c.l.s4 1983009808
      %v5658 = vunpack.c.0.s8 %v5657
      %v5659 = vlaneseq
      %v5660 = vshrl.u32 %v5659, 7
      %v5661 = vsub.s32 %v5658, %v5660
      %v5662 = vrot.slane %v5509, %v5661
      %v5664 = vunpack.c.l.s4 1983009808
      %v5665 = vunpack.c.0.s8 %v5664
      %v5666 = vlaneseq
      %v5667 = vshrl.u32 %v5666, 7
      %v5668 = vsub.s32 %v5665, %v5667
      %v5669 = vrot.slane %v5655, %v5668
      %v5670 = vcombine.high %v5662, %v5662
      %v5671 = vcombine.high %v5669, %v5669
      %v5672 = vcombine.high %v5510, %v5510
      %v5674 = vunpack.c.l.s4 1983009808
      %v5675 = vunpack.c.0.s8 %v5674
      %v5676 = vlaneseq
      %v5677 = vshrl.u32 %v5676, 7
      %v5678 = vsub.s32 %v5675, %v5677
      %v5679 = vrot.slane %v5510, %v5678
      %v5681 = vunpack.c.l.s4 1983009808
      %v5682 = vunpack.c.0.s8 %v5681
      %v5683 = vlaneseq
      %v5684 = vshrl.u32 %v5683, 7
      %v5685 = vsub.s32 %v5682, %v5684
      %v5686 = vrot.slane %v5672, %v5685
      %v5687 = vcombine.high %v5679, %v5679
      %v5688 = vcombine.high %v5686, %v5686
      %v5689 = vcombine.high %v5511, %v5511
      %v5691 = vunpack.c.l.s4 1983009808
      %v5692 = vunpack.c.0.s8 %v5691
      %v5693 = vlaneseq
      %v5694 = vshrl.u32 %v5693, 7
      %v5695 = vsub.s32 %v5692, %v5694
      %v5696 = vrot.slane %v5511, %v5695
      %v5698 = vunpack.c.l.s4 1983009808
      %v5699 = vunpack.c.0.s8 %v5698
      %v5700 = vlaneseq
      %v5701 = vshrl.u32 %v5700, 7
      %v5702 = vsub.s32 %v5699, %v5701
      %v5703 = vrot.slane %v5689, %v5702
      %v5704 = vcombine.high %v5696, %v5696
      %v5705 = vcombine.high %v5703, %v5703
      %v5706 = vcombine.high %v5512, %v5512
      %v5708 = vunpack.c.l.s4 1983009808
      %v5709 = vunpack.c.0.s8 %v5708
      %v5710 = vlaneseq
      %v5711 = vshrl.u32 %v5710, 7
      %v5712 = vsub.s32 %v5709, %v5711
      %v5713 = vrot.slane %v5512, %v5712
      %v5715 = vunpack.c.l.s4 1983009808
      %v5716 = vunpack.c.0.s8 %v5715
      %v5717 = vlaneseq
      %v5718 = vshrl.u32 %v5717, 7
      %v5719 = vsub.s32 %v5716, %v5718
      %v5720 = vrot.slane %v5706, %v5719
      %v5721 = vcombine.high %v5713, %v5713
      %v5722 = vcombine.high %v5720, %v5720
      %v5723 = vcombine.high %v5513, %v5513
      %v5725 = vunpack.c.l.s4 1983009808
      %v5726 = vunpack.c.0.s8 %v5725
      %v5727 = vlaneseq
      %v5728 = vshrl.u32 %v5727, 7
      %v5729 = vsub.s32 %v5726, %v5728
      %v5730 = vrot.slane %v5513, %v5729
      %v5732 = vunpack.c.l.s4 1983009808
      %v5733 = vunpack.c.0.s8 %v5732
      %v5734 = vlaneseq
      %v5735 = vshrl.u32 %v5734, 7
      %v5736 = vsub.s32 %v5733, %v5735
      %v5737 = vrot.slane %v5723, %v5736
      %v5738 = vcombine.high %v5730, %v5730
      %v5739 = vcombine.high %v5737, %v5737
      %v5740 = vcombine.high %v5514, %v5514
      %v5742 = vunpack.c.l.s4 1983009808
      %v5743 = vunpack.c.0.s8 %v5742
      %v5744 = vlaneseq
      %v5745 = vshrl.u32 %v5744, 7
      %v5746 = vsub.s32 %v5743, %v5745
      %v5747 = vrot.slane %v5514, %v5746
      %v5749 = vunpack.c.l.s4 1983009808
      %v5750 = vunpack.c.0.s8 %v5749
      %v5751 = vlaneseq
      %v5752 = vshrl.u32 %v5751, 7
      %v5753 = vsub.s32 %v5750, %v5752
      %v5754 = vrot.slane %v5740, %v5753
      %v5755 = vcombine.high %v5747, %v5747
      %v5756 = vcombine.high %v5754, %v5754
      %v5757 = vcombine.high %v5515, %v5515
      %v5759 = vunpack.c.l.s4 1983009808
      %v5760 = vunpack.c.0.s8 %v5759
      %v5761 = vlaneseq
      %v5762 = vshrl.u32 %v5761, 7
      %v5763 = vsub.s32 %v5760, %v5762
      %v5764 = vrot.slane %v5515, %v5763
      %v5766 = vunpack.c.l.s4 1983009808
      %v5767 = vunpack.c.0.s8 %v5766
      %v5768 = vlaneseq
      %v5769 = vshrl.u32 %v5768, 7
      %v5770 = vsub.s32 %v5767, %v5769
      %v5771 = vrot.slane %v5757, %v5770
      %v5772 = vcombine.high %v5764, %v5764
      %v5773 = vcombine.high %v5771, %v5771
      %v5774 = vcombine.high %v5516, %v5516
      %v5776 = vunpack.c.l.s4 1983009808
      %v5777 = vunpack.c.0.s8 %v5776
      %v5778 = vlaneseq
      %v5779 = vshrl.u32 %v5778, 7
      %v5780 = vsub.s32 %v5777, %v5779
      %v5781 = vrot.slane %v5516, %v5780
      %v5783 = vunpack.c.l.s4 1983009808
      %v5784 = vunpack.c.0.s8 %v5783
      %v5785 = vlaneseq
      %v5786 = vshrl.u32 %v5785, 7
      %v5787 = vsub.s32 %v5784, %v5786
      %v5788 = vrot.slane %v5774, %v5787
      %v5789 = vcombine.high %v5781, %v5781
      %v5790 = vcombine.high %v5788, %v5788
      %v5791 = vcombine.high %v5517, %v5517
      %v5793 = vunpack.c.l.s4 1983009808
      %v5794 = vunpack.c.0.s8 %v5793
      %v5795 = vlaneseq
      %v5796 = vshrl.u32 %v5795, 7
      %v5797 = vsub.s32 %v5794, %v5796
      %v5798 = vrot.slane %v5517, %v5797
      %v5800 = vunpack.c.l.s4 1983009808
      %v5801 = vunpack.c.0.s8 %v5800
      %v5802 = vlaneseq
      %v5803 = vshrl.u32 %v5802, 7
      %v5804 = vsub.s32 %v5801, %v5803
      %v5805 = vrot.slane %v5791, %v5804
      %v5806 = vcombine.high %v5798, %v5798
      %v5807 = vcombine.high %v5805, %v5805
      %v5808 = vcombine.high %v5518, %v5518
      %v5810 = vunpack.c.l.s4 1983009808
      %v5811 = vunpack.c.0.s8 %v5810
      %v5812 = vlaneseq
      %v5813 = vshrl.u32 %v5812, 7
      %v5814 = vsub.s32 %v5811, %v5813
      %v5815 = vrot.slane %v5518, %v5814
      %v5817 = vunpack.c.l.s4 1983009808
      %v5818 = vunpack.c.0.s8 %v5817
      %v5819 = vlaneseq
      %v5820 = vshrl.u32 %v5819, 7
      %v5821 = vsub.s32 %v5818, %v5820
      %v5822 = vrot.slane %v5808, %v5821
      %v5823 = vcombine.high %v5815, %v5815
      %v5824 = vcombine.high %v5822, %v5822
      %v5825 = vcombine.high %v5519, %v5519
      %v5827 = vunpack.c.l.s4 1983009808
      %v5828 = vunpack.c.0.s8 %v5827
      %v5829 = vlaneseq
      %v5830 = vshrl.u32 %v5829, 7
      %v5831 = vsub.s32 %v5828, %v5830
      %v5832 = vrot.slane %v5519, %v5831
      %v5834 = vunpack.c.l.s4 1983009808
      %v5835 = vunpack.c.0.s8 %v5834
      %v5836 = vlaneseq
      %v5837 = vshrl.u32 %v5836, 7
      %v5838 = vsub.s32 %v5835, %v5837
      %v5839 = vrot.slane %v5825, %v5838
      %v5840 = vcombine.high %v5832, %v5832
      %v5841 = vcombine.high %v5839, %v5839
      %v5842 = vcombine.high %v5520, %v5520
      %v5844 = vunpack.c.l.s4 1983009808
      %v5845 = vunpack.c.0.s8 %v5844
      %v5846 = vlaneseq
      %v5847 = vshrl.u32 %v5846, 7
      %v5848 = vsub.s32 %v5845, %v5847
      %v5849 = vrot.slane %v5520, %v5848
      %v5851 = vunpack.c.l.s4 1983009808
      %v5852 = vunpack.c.0.s8 %v5851
      %v5853 = vlaneseq
      %v5854 = vshrl.u32 %v5853, 7
      %v5855 = vsub.s32 %v5852, %v5854
      %v5856 = vrot.slane %v5842, %v5855
      %v5857 = vcombine.high %v5849, %v5849
      %v5858 = vcombine.high %v5856, %v5856
      %v5859 = vcombine.high %v5521, %v5521
      %v5861 = vunpack.c.l.s4 1983009808
      %v5862 = vunpack.c.0.s8 %v5861
      %v5863 = vlaneseq
      %v5864 = vshrl.u32 %v5863, 7
      %v5865 = vsub.s32 %v5862, %v5864
      %v5866 = vrot.slane %v5521, %v5865
      %v5868 = vunpack.c.l.s4 1983009808
      %v5869 = vunpack.c.0.s8 %v5868
      %v5870 = vlaneseq
      %v5871 = vshrl.u32 %v5870, 7
      %v5872 = vsub.s32 %v5869, %v5871
      %v5873 = vrot.slane %v5859, %v5872
      %v5874 = vcombine.high %v5866, %v5866
      %v5875 = vcombine.high %v5873, %v5873
      %v5876 = vcombine.high %v5522, %v5522
      %v5878 = vunpack.c.l.s4 1983009808
      %v5879 = vunpack.c.0.s8 %v5878
      %v5880 = vlaneseq
      %v5881 = vshrl.u32 %v5880, 7
      %v5882 = vsub.s32 %v5879, %v5881
      %v5883 = vrot.slane %v5522, %v5882
      %v5885 = vunpack.c.l.s4 1983009808
      %v5886 = vunpack.c.0.s8 %v5885
      %v5887 = vlaneseq
      %v5888 = vshrl.u32 %v5887, 7
      %v5889 = vsub.s32 %v5886, %v5888
      %v5890 = vrot.slane %v5876, %v5889
      %v5891 = vcombine.high %v5883, %v5883
      %v5892 = vcombine.high %v5890, %v5890
      %v5893 = vcombine.high %v5523, %v5523
      %v5895 = vunpack.c.l.s4 1983009808
      %v5896 = vunpack.c.0.s8 %v5895
      %v5897 = vlaneseq
      %v5898 = vshrl.u32 %v5897, 7
      %v5899 = vsub.s32 %v5896, %v5898
      %v5900 = vrot.slane %v5523, %v5899
      %v5902 = vunpack.c.l.s4 1983009808
      %v5903 = vunpack.c.0.s8 %v5902
      %v5904 = vlaneseq
      %v5905 = vshrl.u32 %v5904, 7
      %v5906 = vsub.s32 %v5903, %v5905
      %v5907 = vrot.slane %v5893, %v5906
      %v5908 = vcombine.high %v5900, %v5900
      %v5909 = vcombine.high %v5907, %v5907
      %v5910 = vcombine.high %v5524, %v5524
      %v5912 = vunpack.c.l.s4 1983009808
      %v5913 = vunpack.c.0.s8 %v5912
      %v5914 = vlaneseq
      %v5915 = vshrl.u32 %v5914, 7
      %v5916 = vsub.s32 %v5913, %v5915
      %v5917 = vrot.slane %v5524, %v5916
      %v5919 = vunpack.c.l.s4 1983009808
      %v5920 = vunpack.c.0.s8 %v5919
      %v5921 = vlaneseq
      %v5922 = vshrl.u32 %v5921, 7
      %v5923 = vsub.s32 %v5920, %v5922
      %v5924 = vrot.slane %v5910, %v5923
      %v5925 = vcombine.high %v5917, %v5917
      %v5926 = vcombine.high %v5924, %v5924
      %v5927 = vcombine.high %v5525, %v5525
      %v5929 = vunpack.c.l.s4 1983009808
      %v5930 = vunpack.c.0.s8 %v5929
      %v5931 = vlaneseq
      %v5932 = vshrl.u32 %v5931, 7
      %v5933 = vsub.s32 %v5930, %v5932
      %v5934 = vrot.slane %v5525, %v5933
      %v5936 = vunpack.c.l.s4 1983009808
      %v5937 = vunpack.c.0.s8 %v5936
      %v5938 = vlaneseq
      %v5939 = vshrl.u32 %v5938, 7
      %v5940 = vsub.s32 %v5937, %v5939
      %v5941 = vrot.slane %v5927, %v5940
      %v5942 = vcombine.high %v5934, %v5934
      %v5943 = vcombine.high %v5941, %v5941
      %v5944 = vcombine.high %v5526, %v5526
      %v5946 = vunpack.c.l.s4 1983009808
      %v5947 = vunpack.c.0.s8 %v5946
      %v5948 = vlaneseq
      %v5949 = vshrl.u32 %v5948, 7
      %v5950 = vsub.s32 %v5947, %v5949
      %v5951 = vrot.slane %v5526, %v5950
      %v5953 = vunpack.c.l.s4 1983009808
      %v5954 = vunpack.c.0.s8 %v5953
      %v5955 = vlaneseq
      %v5956 = vshrl.u32 %v5955, 7
      %v5957 = vsub.s32 %v5954, %v5956
      %v5958 = vrot.slane %v5944, %v5957
      %v5959 = vcombine.high %v5951, %v5951
      %v5960 = vcombine.high %v5958, %v5958
      %v5962 = vunpack.c.l.s4 1983009808
      %v5963 = vunpack.c.0.s8 %v5962
      %v5964 = vlaneseq
      %v5965 = vshrl.u32 %v5964, 7
      %v5966 = vsub.s32 %v5963, %v5965
      %v5967 = vrot.slane %v5527, %v5966
      %v5968 = vcombine.high %v5967, %v5967
      %v5969 = vld [vmem:[%s3] sm:$0xf]
      %v5970 = vld [vmem:[%s3 + $0x4] sm:$0xf]
      %v5971 = vld [vmem:[%s3 + $0x8] sm:$0xf]
      %v5972 = vld [vmem:[%s3 + $0xc] sm:$0xf]
      %v5973 = vld [vmem:[%s3 + $0x10] sm:$0xf]
      %v5974 = vld [vmem:[%s3 + $0x14] sm:$0xf]
      %v5975 = vld [vmem:[%s3 + $0x18] sm:$0xf]
      %v5976 = vld [vmem:[%s3 + $0x1c] sm:$0xf]
      %v5977 = vld [vmem:[%s3 + $0x20] sm:$0xf]
      %v5978 = vld [vmem:[%s3 + $0x24] sm:$0xf]
      %v5979 = vld [vmem:[%s3 + $0x28] sm:$0xf]
      %v5980 = vld [vmem:[%s3 + $0x2c] sm:$0xf]
      %v5981 = vld [vmem:[%s3 + $0x30] sm:$0xf]
      %v5982 = vld [vmem:[%s3 + $0x34] sm:$0xf]
      %v5983 = vld [vmem:[%s3 + $0x38] sm:$0xf]
      %v5984 = vld [vmem:[%s3 + $0x3c] sm:$0xf]
      %v5985 = vld [vmem:[%s3 + $0x40] sm:$0xf]
      %v5986 = vld [vmem:[%s3 + $0x44] sm:$0xf]
      %v5987 = vld [vmem:[%s3 + $0x48] sm:$0xf]
      %v5988 = vld [vmem:[%s3 + $0x4c] sm:$0xf]
      %v5989 = vld [vmem:[%s3 + $0x50] sm:$0xf]
      %v5990 = vld [vmem:[%s3 + $0x54] sm:$0xf]
      %v5991 = vld [vmem:[%s3 + $0x58] sm:$0xf]
      %v5992 = vld [vmem:[%s3 + $0x5c] sm:$0xf]
      %v5993 = vld [vmem:[%s3 + $0x60] sm:$0xf]
      %v5994 = vld [vmem:[%s3 + $0x64] sm:$0xf]
      %v5995 = vld [vmem:[%s3 + $0x68] sm:$0xf]
      %v5996 = vld [vmem:[%s3 + $0x6c] sm:$0xf]
      %v5997 = vld [vmem:[%s3 + $0x70] sm:$0xf]
      %v5998 = vld [vmem:[%s3 + $0x74] sm:$0xf]
      %v5999 = vld [vmem:[%s3 + $0x78] sm:$0xf]
      %v6000 = vld [vmem:[%s3 + $0x7c] sm:$0xf]
      %v6001 = vld [vmem:[%s3 + $0x80] sm:$0xf]
      %v6002 = vld [vmem:[%s3 + $0x84] sm:$0xf]
      %v6003 = vld [vmem:[%s3 + $0x88] sm:$0xf]
      %v6004 = vld [vmem:[%s3 + $0x8c] sm:$0xf]
      %v6005 = vld [vmem:[%s4] sm:$0x1]
      %v6006 = vcombine.low %v5560, %v5568
      %v6007 = vcombine.low %v5567, %v5569
      %v6009 = vunpack.c.l.s4 1983009808
      %v6010 = vunpack.c.0.s8 %v6009
      %v6011 = vlaneseq
      %v6012 = vshrl.u32 %v6011, 7
      %v6013 = vsub.s32 %v6010, %v6012
      %v6014 = vrot.slane %v6006, %v6013
      %v6016 = vunpack.c.l.s4 1983009808
      %v6017 = vunpack.c.0.s8 %v6016
      %v6018 = vlaneseq
      %v6019 = vshrl.u32 %v6018, 7
      %v6020 = vsub.s32 %v6017, %v6019
      %v6021 = vrot.slane %v6007, %v6020
      %v6022 = vcombine.low %v6014, %v6021
      %v6023 = vcombine.low %v5577, %v5585
      %v6024 = vcombine.low %v5586, %v5594
      %v6026 = vunpack.c.l.s4 1983009808
      %v6027 = vunpack.c.0.s8 %v6026
      %v6028 = vlaneseq
      %v6029 = vshrl.u32 %v6028, 7
      %v6030 = vsub.s32 %v6027, %v6029
      %v6031 = vrot.slane %v6023, %v6030
      %v6033 = vunpack.c.l.s4 1983009808
      %v6034 = vunpack.c.0.s8 %v6033
      %v6035 = vlaneseq
      %v6036 = vshrl.u32 %v6035, 7
      %v6037 = vsub.s32 %v6034, %v6036
      %v6038 = vrot.slane %v6024, %v6037
      %v6039 = vcombine.low %v6031, %v6038
      %v6040 = vcombine.low %v5602, %v5601
      %v6041 = vcombine.low %v5603, %v5611
      %v6043 = vunpack.c.l.s4 1983009808
      %v6044 = vunpack.c.0.s8 %v6043
      %v6045 = vlaneseq
      %v6046 = vshrl.u32 %v6045, 7
      %v6047 = vsub.s32 %v6044, %v6046
      %v6048 = vrot.slane %v6040, %v6047
      %v6050 = vunpack.c.l.s4 1983009808
      %v6051 = vunpack.c.0.s8 %v6050
      %v6052 = vlaneseq
      %v6053 = vshrl.u32 %v6052, 7
      %v6054 = vsub.s32 %v6051, %v6053
      %v6055 = vrot.slane %v6041, %v6054
      %v6056 = vcombine.low %v6048, %v6055
      %v6057 = vcombine.low %v5618, %v5620
      %v6058 = vcombine.low %v5628, %v5636
      %v6060 = vunpack.c.l.s4 1983009808
      %v6061 = vunpack.c.0.s8 %v6060
      %v6062 = vlaneseq
      %v6063 = vshrl.u32 %v6062, 7
      %v6064 = vsub.s32 %v6061, %v6063
      %v6065 = vrot.slane %v6057, %v6064
      %v6067 = vunpack.c.l.s4 1983009808
      %v6068 = vunpack.c.0.s8 %v6067
      %v6069 = vlaneseq
      %v6070 = vshrl.u32 %v6069, 7
      %v6071 = vsub.s32 %v6068, %v6070
      %v6072 = vrot.slane %v6058, %v6071
      %v6073 = vcombine.low %v6065, %v6072
      %v6074 = vcombine.low %v5635, %v5637
      %v6075 = vcombine.low %v5653, %v5652
      %v6077 = vunpack.c.l.s4 1983009808
      %v6078 = vunpack.c.0.s8 %v6077
      %v6079 = vlaneseq
      %v6080 = vshrl.u32 %v6079, 7
      %v6081 = vsub.s32 %v6078, %v6080
      %v6082 = vrot.slane %v6074, %v6081
      %v6084 = vunpack.c.l.s4 1983009808
      %v6085 = vunpack.c.0.s8 %v6084
      %v6086 = vlaneseq
      %v6087 = vshrl.u32 %v6086, 7
      %v6088 = vsub.s32 %v6085, %v6087
      %v6089 = vrot.slane %v6075, %v6088
      %v6090 = vcombine.low %v6082, %v6089
      %v6091 = vcombine.low %v5654, %v5662
      %v6092 = vcombine.low %v5670, %v5669
      %v6094 = vunpack.c.l.s4 1983009808
      %v6095 = vunpack.c.0.s8 %v6094
      %v6096 = vlaneseq
      %v6097 = vshrl.u32 %v6096, 7
      %v6098 = vsub.s32 %v6095, %v6097
      %v6099 = vrot.slane %v6091, %v6098
      %v6101 = vunpack.c.l.s4 1983009808
      %v6102 = vunpack.c.0.s8 %v6101
      %v6103 = vlaneseq
      %v6104 = vshrl.u32 %v6103, 7
      %v6105 = vsub.s32 %v6102, %v6104
      %v6106 = vrot.slane %v6092, %v6105
      %v6107 = vcombine.low %v6099, %v6106
      %v6108 = vcombine.low %v5679, %v5687
      %v6109 = vcombine.low %v5686, %v5688
      %v6111 = vunpack.c.l.s4 1983009808
      %v6112 = vunpack.c.0.s8 %v6111
      %v6113 = vlaneseq
      %v6114 = vshrl.u32 %v6113, 7
      %v6115 = vsub.s32 %v6112, %v6114
      %v6116 = vrot.slane %v6108, %v6115
      %v6118 = vunpack.c.l.s4 1983009808
      %v6119 = vunpack.c.0.s8 %v6118
      %v6120 = vlaneseq
      %v6121 = vshrl.u32 %v6120, 7
      %v6122 = vsub.s32 %v6119, %v6121
      %v6123 = vrot.slane %v6109, %v6122
      %v6124 = vcombine.low %v6116, %v6123
      %v6125 = vcombine.low %v5696, %v5704
      %v6126 = vcombine.low %v5705, %v5713
      %v6128 = vunpack.c.l.s4 1983009808
      %v6129 = vunpack.c.0.s8 %v6128
      %v6130 = vlaneseq
      %v6131 = vshrl.u32 %v6130, 7
      %v6132 = vsub.s32 %v6129, %v6131
      %v6133 = vrot.slane %v6125, %v6132
      %v6135 = vunpack.c.l.s4 1983009808
      %v6136 = vunpack.c.0.s8 %v6135
      %v6137 = vlaneseq
      %v6138 = vshrl.u32 %v6137, 7
      %v6139 = vsub.s32 %v6136, %v6138
      %v6140 = vrot.slane %v6126, %v6139
      %v6141 = vcombine.low %v6133, %v6140
      %v6142 = vcombine.low %v5721, %v5720
      %v6143 = vcombine.low %v5722, %v5730
      %v6145 = vunpack.c.l.s4 1983009808
      %v6146 = vunpack.c.0.s8 %v6145
      %v6147 = vlaneseq
      %v6148 = vshrl.u32 %v6147, 7
      %v6149 = vsub.s32 %v6146, %v6148
      %v6150 = vrot.slane %v6142, %v6149
      %v6152 = vunpack.c.l.s4 1983009808
      %v6153 = vunpack.c.0.s8 %v6152
      %v6154 = vlaneseq
      %v6155 = vshrl.u32 %v6154, 7
      %v6156 = vsub.s32 %v6153, %v6155
      %v6157 = vrot.slane %v6143, %v6156
      %v6158 = vcombine.low %v6150, %v6157
      %v6159 = vcombine.low %v5737, %v5739
      %v6160 = vcombine.low %v5747, %v5755
      %v6162 = vunpack.c.l.s4 1983009808
      %v6163 = vunpack.c.0.s8 %v6162
      %v6164 = vlaneseq
      %v6165 = vshrl.u32 %v6164, 7
      %v6166 = vsub.s32 %v6163, %v6165
      %v6167 = vrot.slane %v6159, %v6166
      %v6169 = vunpack.c.l.s4 1983009808
      %v6170 = vunpack.c.0.s8 %v6169
      %v6171 = vlaneseq
      %v6172 = vshrl.u32 %v6171, 7
      %v6173 = vsub.s32 %v6170, %v6172
      %v6174 = vrot.slane %v6160, %v6173
      %v6175 = vcombine.low %v6167, %v6174
      %v6176 = vcombine.low %v5754, %v5756
      %v6177 = vcombine.low %v5772, %v5771
      %v6179 = vunpack.c.l.s4 1983009808
      %v6180 = vunpack.c.0.s8 %v6179
      %v6181 = vlaneseq
      %v6182 = vshrl.u32 %v6181, 7
      %v6183 = vsub.s32 %v6180, %v6182
      %v6184 = vrot.slane %v6176, %v6183
      %v6186 = vunpack.c.l.s4 1983009808
      %v6187 = vunpack.c.0.s8 %v6186
      %v6188 = vlaneseq
      %v6189 = vshrl.u32 %v6188, 7
      %v6190 = vsub.s32 %v6187, %v6189
      %v6191 = vrot.slane %v6177, %v6190
      %v6192 = vcombine.low %v6184, %v6191
      %v6193 = vcombine.low %v5773, %v5781
      %v6194 = vcombine.low %v5789, %v5788
      %v6196 = vunpack.c.l.s4 1983009808
      %v6197 = vunpack.c.0.s8 %v6196
      %v6198 = vlaneseq
      %v6199 = vshrl.u32 %v6198, 7
      %v6200 = vsub.s32 %v6197, %v6199
      %v6201 = vrot.slane %v6193, %v6200
      %v6203 = vunpack.c.l.s4 1983009808
      %v6204 = vunpack.c.0.s8 %v6203
      %v6205 = vlaneseq
      %v6206 = vshrl.u32 %v6205, 7
      %v6207 = vsub.s32 %v6204, %v6206
      %v6208 = vrot.slane %v6194, %v6207
      %v6209 = vcombine.low %v6201, %v6208
      %v6210 = vcombine.low %v5798, %v5806
      %v6211 = vcombine.low %v5805, %v5807
      %v6213 = vunpack.c.l.s4 1983009808
      %v6214 = vunpack.c.0.s8 %v6213
      %v6215 = vlaneseq
      %v6216 = vshrl.u32 %v6215, 7
      %v6217 = vsub.s32 %v6214, %v6216
      %v6218 = vrot.slane %v6210, %v6217
      %v6220 = vunpack.c.l.s4 1983009808
      %v6221 = vunpack.c.0.s8 %v6220
      %v6222 = vlaneseq
      %v6223 = vshrl.u32 %v6222, 7
      %v6224 = vsub.s32 %v6221, %v6223
      %v6225 = vrot.slane %v6211, %v6224
      %v6226 = vcombine.low %v6218, %v6225
      %v6227 = vcombine.low %v5815, %v5823
      %v6228 = vcombine.low %v5824, %v5832
      %v6230 = vunpack.c.l.s4 1983009808
      %v6231 = vunpack.c.0.s8 %v6230
      %v6232 = vlaneseq
      %v6233 = vshrl.u32 %v6232, 7
      %v6234 = vsub.s32 %v6231, %v6233
      %v6235 = vrot.slane %v6227, %v6234
      %v6237 = vunpack.c.l.s4 1983009808
      %v6238 = vunpack.c.0.s8 %v6237
      %v6239 = vlaneseq
      %v6240 = vshrl.u32 %v6239, 7
      %v6241 = vsub.s32 %v6238, %v6240
      %v6242 = vrot.slane %v6228, %v6241
      %v6243 = vcombine.low %v6235, %v6242
      %v6244 = vcombine.low %v5840, %v5839
      %v6245 = vcombine.low %v5841, %v5849
      %v6247 = vunpack.c.l.s4 1983009808
      %v6248 = vunpack.c.0.s8 %v6247
      %v6249 = vlaneseq
      %v6250 = vshrl.u32 %v6249, 7
      %v6251 = vsub.s32 %v6248, %v6250
      %v6252 = vrot.slane %v6244, %v6251
      %v6254 = vunpack.c.l.s4 1983009808
      %v6255 = vunpack.c.0.s8 %v6254
      %v6256 = vlaneseq
      %v6257 = vshrl.u32 %v6256, 7
      %v6258 = vsub.s32 %v6255, %v6257
      %v6259 = vrot.slane %v6245, %v6258
      %v6260 = vcombine.low %v6252, %v6259
      %v6261 = vcombine.low %v5856, %v5858
      %v6262 = vcombine.low %v5866, %v5874
      %v6264 = vunpack.c.l.s4 1983009808
      %v6265 = vunpack.c.0.s8 %v6264
      %v6266 = vlaneseq
      %v6267 = vshrl.u32 %v6266, 7
      %v6268 = vsub.s32 %v6265, %v6267
      %v6269 = vrot.slane %v6261, %v6268
      %v6271 = vunpack.c.l.s4 1983009808
      %v6272 = vunpack.c.0.s8 %v6271
      %v6273 = vlaneseq
      %v6274 = vshrl.u32 %v6273, 7
      %v6275 = vsub.s32 %v6272, %v6274
      %v6276 = vrot.slane %v6262, %v6275
      %v6277 = vcombine.low %v6269, %v6276
      %v6278 = vcombine.low %v5873, %v5875
      %v6279 = vcombine.low %v5891, %v5890
      %v6281 = vunpack.c.l.s4 1983009808
      %v6282 = vunpack.c.0.s8 %v6281
      %v6283 = vlaneseq
      %v6284 = vshrl.u32 %v6283, 7
      %v6285 = vsub.s32 %v6282, %v6284
      %v6286 = vrot.slane %v6278, %v6285
      %v6288 = vunpack.c.l.s4 1983009808
      %v6289 = vunpack.c.0.s8 %v6288
      %v6290 = vlaneseq
      %v6291 = vshrl.u32 %v6290, 7
      %v6292 = vsub.s32 %v6289, %v6291
      %v6293 = vrot.slane %v6279, %v6292
      %v6294 = vcombine.low %v6286, %v6293
      %v6295 = vcombine.low %v5892, %v5900
      %v6296 = vcombine.low %v5908, %v5907
      %v6298 = vunpack.c.l.s4 1983009808
      %v6299 = vunpack.c.0.s8 %v6298
      %v6300 = vlaneseq
      %v6301 = vshrl.u32 %v6300, 7
      %v6302 = vsub.s32 %v6299, %v6301
      %v6303 = vrot.slane %v6295, %v6302
      %v6305 = vunpack.c.l.s4 1983009808
      %v6306 = vunpack.c.0.s8 %v6305
      %v6307 = vlaneseq
      %v6308 = vshrl.u32 %v6307, 7
      %v6309 = vsub.s32 %v6306, %v6308
      %v6310 = vrot.slane %v6296, %v6309
      %v6311 = vcombine.low %v6303, %v6310
      %v6330 = vpack.c.bf16 %v6039, %v6022
      %v6331 = vpack.c.bf16 %v6073, %v6056
      %v6332 = vpack.c.bf16 %v6107, %v6090
      %v6333 = vpack.c.bf16 %v6141, %v6124
      %v6334 = vpack.c.bf16 %v6175, %v6158
      %v6335 = vpack.c.bf16 %v6209, %v6192
      %v6336 = vpack.c.bf16 %v6243, %v6226
      %v6337 = vpack.c.bf16 %v6277, %v6260
      %v6338 = vpack.c.bf16 %v6311, %v6294
      %v6339 = vrot.slane %v5560, 7
      %v6340 = vrot.slane %v6339, 2
      %v6341 = vrot.slane %v5568, 7
      %v6342 = vsel %vm1228, %v6340, %v6341
      %v6343 = vrot.slane %v6341, 2
      %v6344 = vrot.slane %v5567, 7
      %v6345 = vsel %vm1228, %v6343, %v6344
      %v6346 = vrot.slane %v6344, 2
      %v6347 = vrot.slane %v5569, 7
      %v6348 = vsel %vm1228, %v6346, %v6347
      %v6349 = vrot.slane %v6347, 2
      %v6350 = vrot.slane %v5577, 7
      %v6351 = vsel %vm1228, %v6349, %v6350
      %v6352 = vrot.slane %v6350, 2
      %v6353 = vrot.slane %v5585, 7
      %v6354 = vsel %vm1228, %v6352, %v6353
      %v6355 = vrot.slane %v6353, 2
      %v6356 = vrot.slane %v5584, 7
      %v6357 = vsel %vm1228, %v6355, %v6356
      %v6358 = vrot.slane %v5586, 7
      %v6359 = vrot.slane %v6358, 2
      %v6360 = vrot.slane %v5594, 7
      %v6361 = vsel %vm1228, %v6359, %v6360
      %v6362 = vrot.slane %v6360, 2
      %v6363 = vrot.slane %v5602, 7
      %v6364 = vsel %vm1228, %v6362, %v6363
      %v6365 = vrot.slane %v6363, 2
      %v6366 = vrot.slane %v5601, 7
      %v6367 = vsel %vm1228, %v6365, %v6366
      %v6368 = vrot.slane %v6366, 2
      %v6369 = vrot.slane %v5603, 7
      %v6370 = vsel %vm1228, %v6368, %v6369
      %v6371 = vrot.slane %v6369, 2
      %v6372 = vrot.slane %v5611, 7
      %v6373 = vsel %vm1228, %v6371, %v6372
      %v6374 = vrot.slane %v6372, 2
      %v6375 = vrot.slane %v5619, 7
      %v6376 = vsel %vm1228, %v6374, %v6375
      %v6377 = vrot.slane %v5618, 7
      %v6378 = vrot.slane %v6377, 2
      %v6379 = vrot.slane %v5620, 7
      %v6380 = vsel %vm1228, %v6378, %v6379
      %v6381 = vrot.slane %v6379, 2
      %v6382 = vrot.slane %v5628, 7
      %v6383 = vsel %vm1228, %v6381, %v6382
      %v6384 = vrot.slane %v6382, 2
      %v6385 = vrot.slane %v5636, 7
      %v6386 = vsel %vm1228, %v6384, %v6385
      %v6387 = vrot.slane %v6385, 2
      %v6388 = vrot.slane %v5635, 7
      %v6389 = vsel %vm1228, %v6387, %v6388
      %v6390 = vrot.slane %v6388, 2
      %v6391 = vrot.slane %v5637, 7
      %v6392 = vsel %vm1228, %v6390, %v6391
      %v6393 = vrot.slane %v6391, 2
      %v6394 = vrot.slane %v5645, 7
      %v6395 = vsel %vm1228, %v6393, %v6394
      %v6396 = vrot.slane %v5653, 7
      %v6397 = vrot.slane %v6396, 2
      %v6398 = vrot.slane %v5652, 7
      %v6399 = vsel %vm1228, %v6397, %v6398
      %v6400 = vrot.slane %v6398, 2
      %v6401 = vrot.slane %v5654, 7
      %v6402 = vsel %vm1228, %v6400, %v6401
      %v6403 = vrot.slane %v6401, 2
      %v6404 = vrot.slane %v5662, 7
      %v6405 = vsel %vm1228, %v6403, %v6404
      %v6406 = vrot.slane %v6404, 2
      %v6407 = vrot.slane %v5670, 7
      %v6408 = vsel %vm1228, %v6406, %v6407
      %v6409 = vrot.slane %v6407, 2
      %v6410 = vrot.slane %v5669, 7
      %v6411 = vsel %vm1228, %v6409, %v6410
      %v6412 = vrot.slane %v6410, 2
      %v6413 = vrot.slane %v5671, 7
      %v6414 = vsel %vm1228, %v6412, %v6413
      %v6415 = vrot.slane %v5679, 7
      %v6416 = vrot.slane %v6415, 2
      %v6417 = vrot.slane %v5687, 7
      %v6418 = vsel %vm1228, %v6416, %v6417
      %v6419 = vrot.slane %v6417, 2
      %v6420 = vrot.slane %v5686, 7
      %v6421 = vsel %vm1228, %v6419, %v6420
      %v6422 = vrot.slane %v6420, 2
      %v6423 = vrot.slane %v5688, 7
      %v6424 = vsel %vm1228, %v6422, %v6423
      %v6425 = vrot.slane %v6423, 2
      %v6426 = vrot.slane %v5696, 7
      %v6427 = vsel %vm1228, %v6425, %v6426
      %v6428 = vrot.slane %v6426, 2
      %v6429 = vrot.slane %v5704, 7
      %v6430 = vsel %vm1228, %v6428, %v6429
      %v6431 = vrot.slane %v6429, 2
      %v6432 = vrot.slane %v5703, 7
      %v6433 = vsel %vm1228, %v6431, %v6432
      %v6434 = vrot.slane %v5705, 7
      %v6435 = vrot.slane %v6434, 2
      %v6436 = vrot.slane %v5713, 7
      %v6437 = vsel %vm1228, %v6435, %v6436
      %v6438 = vrot.slane %v6436, 2
      %v6439 = vrot.slane %v5721, 7
      %v6440 = vsel %vm1228, %v6438, %v6439
      %v6441 = vrot.slane %v6439, 2
      %v6442 = vrot.slane %v5720, 7
      %v6443 = vsel %vm1228, %v6441, %v6442
      %v6444 = vrot.slane %v6442, 2
      %v6445 = vrot.slane %v5722, 7
      %v6446 = vsel %vm1228, %v6444, %v6445
      %v6447 = vrot.slane %v6445, 2
      %v6448 = vrot.slane %v5730, 7
      %v6449 = vsel %vm1228, %v6447, %v6448
      %v6450 = vrot.slane %v6448, 2
      %v6451 = vrot.slane %v5738, 7
      %v6452 = vsel %vm1228, %v6450, %v6451
      %v6453 = vrot.slane %v5737, 7
      %v6454 = vrot.slane %v6453, 2
      %v6455 = vrot.slane %v5739, 7
      %v6456 = vsel %vm1228, %v6454, %v6455
      %v6457 = vrot.slane %v6455, 2
      %v6458 = vrot.slane %v5747, 7
      %v6459 = vsel %vm1228, %v6457, %v6458
      %v6460 = vrot.slane %v6458, 2
      %v6461 = vrot.slane %v5755, 7
      %v6462 = vsel %vm1228, %v6460, %v6461
      %v6463 = vrot.slane %v6461, 2
      %v6464 = vrot.slane %v5754, 7
      %v6465 = vsel %vm1228, %v6463, %v6464
      %v6466 = vrot.slane %v6464, 2
      %v6467 = vrot.slane %v5756, 7
      %v6468 = vsel %vm1228, %v6466, %v6467
      %v6469 = vrot.slane %v6467, 2
      %v6470 = vrot.slane %v5764, 7
      %v6471 = vsel %vm1228, %v6469, %v6470
      %v6472 = vrot.slane %v5772, 7
      %v6473 = vrot.slane %v6472, 2
      %v6474 = vrot.slane %v5771, 7
      %v6475 = vsel %vm1228, %v6473, %v6474
      %v6476 = vrot.slane %v6474, 2
      %v6477 = vrot.slane %v5773, 7
      %v6478 = vsel %vm1228, %v6476, %v6477
      %v6479 = vrot.slane %v6477, 2
      %v6480 = vrot.slane %v5781, 7
      %v6481 = vsel %vm1228, %v6479, %v6480
      %v6482 = vrot.slane %v6480, 2
      %v6483 = vrot.slane %v5789, 7
      %v6484 = vsel %vm1228, %v6482, %v6483
      %v6485 = vrot.slane %v6483, 2
      %v6486 = vrot.slane %v5788, 7
      %v6487 = vsel %vm1228, %v6485, %v6486
      %v6488 = vrot.slane %v6486, 2
      %v6489 = vrot.slane %v5790, 7
      %v6490 = vsel %vm1228, %v6488, %v6489
      %v6491 = vrot.slane %v5798, 7
      %v6492 = vrot.slane %v6491, 2
      %v6493 = vrot.slane %v5806, 7
      %v6494 = vsel %vm1228, %v6492, %v6493
      %v6495 = vrot.slane %v6493, 2
      %v6496 = vrot.slane %v5805, 7
      %v6497 = vsel %vm1228, %v6495, %v6496
      %v6498 = vrot.slane %v6496, 2
      %v6499 = vrot.slane %v5807, 7
      %v6500 = vsel %vm1228, %v6498, %v6499
      %v6501 = vrot.slane %v6499, 2
      %v6502 = vrot.slane %v5815, 7
      %v6503 = vsel %vm1228, %v6501, %v6502
      %v6504 = vrot.slane %v6502, 2
      %v6505 = vrot.slane %v5823, 7
      %v6506 = vsel %vm1228, %v6504, %v6505
      %v6507 = vrot.slane %v6505, 2
      %v6508 = vrot.slane %v5822, 7
      %v6509 = vsel %vm1228, %v6507, %v6508
      %v6510 = vrot.slane %v5824, 7
      %v6511 = vrot.slane %v6510, 2
      %v6512 = vrot.slane %v5832, 7
      %v6513 = vsel %vm1228, %v6511, %v6512
      %v6514 = vrot.slane %v6512, 2
      %v6515 = vrot.slane %v5840, 7
      %v6516 = vsel %vm1228, %v6514, %v6515
      %v6517 = vrot.slane %v6515, 2
      %v6518 = vrot.slane %v5839, 7
      %v6519 = vsel %vm1228, %v6517, %v6518
      %v6520 = vrot.slane %v6518, 2
      %v6521 = vrot.slane %v5841, 7
      %v6522 = vsel %vm1228, %v6520, %v6521
      %v6523 = vrot.slane %v6521, 2
      %v6524 = vrot.slane %v5849, 7
      %v6525 = vsel %vm1228, %v6523, %v6524
      %v6526 = vrot.slane %v6524, 2
      %v6527 = vrot.slane %v5857, 7
      %v6528 = vsel %vm1228, %v6526, %v6527
      %v6529 = vrot.slane %v5856, 7
      %v6530 = vrot.slane %v6529, 2
      %v6531 = vrot.slane %v5858, 7
      %v6532 = vsel %vm1228, %v6530, %v6531
      %v6533 = vrot.slane %v6531, 2
      %v6534 = vrot.slane %v5866, 7
      %v6535 = vsel %vm1228, %v6533, %v6534
      %v6536 = vrot.slane %v6534, 2
      %v6537 = vrot.slane %v5874, 7
      %v6538 = vsel %vm1228, %v6536, %v6537
      %v6539 = vrot.slane %v6537, 2
      %v6540 = vrot.slane %v5873, 7
      %v6541 = vsel %vm1228, %v6539, %v6540
      %v6542 = vrot.slane %v6540, 2
      %v6543 = vrot.slane %v5875, 7
      %v6544 = vsel %vm1228, %v6542, %v6543
      %v6545 = vrot.slane %v6543, 2
      %v6546 = vrot.slane %v5883, 7
      %v6547 = vsel %vm1228, %v6545, %v6546
      %v6548 = vrot.slane %v5891, 7
      %v6549 = vrot.slane %v6548, 2
      %v6550 = vrot.slane %v5890, 7
      %v6551 = vsel %vm1228, %v6549, %v6550
      %v6552 = vrot.slane %v6550, 2
      %v6553 = vrot.slane %v5892, 7
      %v6554 = vsel %vm1228, %v6552, %v6553
      %v6555 = vrot.slane %v6553, 2
      %v6556 = vrot.slane %v5900, 7
      %v6557 = vsel %vm1228, %v6555, %v6556
      %v6558 = vrot.slane %v6556, 2
      %v6559 = vrot.slane %v5908, 7
      %v6560 = vsel %vm1228, %v6558, %v6559
      %v6561 = vrot.slane %v6559, 2
      %v6562 = vrot.slane %v5907, 7
      %v6563 = vsel %vm1228, %v6561, %v6562
      %v6564 = vrot.slane %v6562, 2
      %v6565 = vrot.slane %v5909, 7
      %v6566 = vsel %vm1228, %v6564, %v6565
      %v6567 = vcombine.low %v6342, %v6345
      %v6568 = vcombine.low %v6348, %v6351
      %v6570 = vunpack.c.l.s4 1983009808
      %v6571 = vunpack.c.0.s8 %v6570
      %v6572 = vlaneseq
      %v6573 = vshrl.u32 %v6572, 7
      %v6574 = vsub.s32 %v6571, %v6573
      %v6575 = vrot.slane %v6567, %v6574
      %v6577 = vunpack.c.l.s4 1983009808
      %v6578 = vunpack.c.0.s8 %v6577
      %v6579 = vlaneseq
      %v6580 = vshrl.u32 %v6579, 7
      %v6581 = vsub.s32 %v6578, %v6580
      %v6582 = vrot.slane %v6568, %v6581
      %v6583 = vcombine.low %v6575, %v6582
      %v6584 = vcombine.low %v6354, %v6357
      %v6585 = vcombine.low %v6361, %v6364
      %v6587 = vunpack.c.l.s4 1983009808
      %v6588 = vunpack.c.0.s8 %v6587
      %v6589 = vlaneseq
      %v6590 = vshrl.u32 %v6589, 7
      %v6591 = vsub.s32 %v6588, %v6590
      %v6592 = vrot.slane %v6584, %v6591
      %v6594 = vunpack.c.l.s4 1983009808
      %v6595 = vunpack.c.0.s8 %v6594
      %v6596 = vlaneseq
      %v6597 = vshrl.u32 %v6596, 7
      %v6598 = vsub.s32 %v6595, %v6597
      %v6599 = vrot.slane %v6585, %v6598
      %v6600 = vcombine.low %v6592, %v6599
      %v6601 = vcombine.low %v6367, %v6370
      %v6602 = vcombine.low %v6373, %v6376
      %v6604 = vunpack.c.l.s4 1983009808
      %v6605 = vunpack.c.0.s8 %v6604
      %v6606 = vlaneseq
      %v6607 = vshrl.u32 %v6606, 7
      %v6608 = vsub.s32 %v6605, %v6607
      %v6609 = vrot.slane %v6601, %v6608
      %v6611 = vunpack.c.l.s4 1983009808
      %v6612 = vunpack.c.0.s8 %v6611
      %v6613 = vlaneseq
      %v6614 = vshrl.u32 %v6613, 7
      %v6615 = vsub.s32 %v6612, %v6614
      %v6616 = vrot.slane %v6602, %v6615
      %v6617 = vcombine.low %v6609, %v6616
      %v6618 = vcombine.low %v6380, %v6383
      %v6619 = vcombine.low %v6386, %v6389
      %v6621 = vunpack.c.l.s4 1983009808
      %v6622 = vunpack.c.0.s8 %v6621
      %v6623 = vlaneseq
      %v6624 = vshrl.u32 %v6623, 7
      %v6625 = vsub.s32 %v6622, %v6624
      %v6626 = vrot.slane %v6618, %v6625
      %v6628 = vunpack.c.l.s4 1983009808
      %v6629 = vunpack.c.0.s8 %v6628
      %v6630 = vlaneseq
      %v6631 = vshrl.u32 %v6630, 7
      %v6632 = vsub.s32 %v6629, %v6631
      %v6633 = vrot.slane %v6619, %v6632
      %v6634 = vcombine.low %v6626, %v6633
      %v6635 = vcombine.low %v6392, %v6395
      %v6636 = vcombine.low %v6399, %v6402
      %v6638 = vunpack.c.l.s4 1983009808
      %v6639 = vunpack.c.0.s8 %v6638
      %v6640 = vlaneseq
      %v6641 = vshrl.u32 %v6640, 7
      %v6642 = vsub.s32 %v6639, %v6641
      %v6643 = vrot.slane %v6635, %v6642
      %v6645 = vunpack.c.l.s4 1983009808
      %v6646 = vunpack.c.0.s8 %v6645
      %v6647 = vlaneseq
      %v6648 = vshrl.u32 %v6647, 7
      %v6649 = vsub.s32 %v6646, %v6648
      %v6650 = vrot.slane %v6636, %v6649
      %v6651 = vcombine.low %v6643, %v6650
      %v6652 = vcombine.low %v6405, %v6408
      %v6653 = vcombine.low %v6411, %v6414
      %v6655 = vunpack.c.l.s4 1983009808
      %v6656 = vunpack.c.0.s8 %v6655
      %v6657 = vlaneseq
      %v6658 = vshrl.u32 %v6657, 7
      %v6659 = vsub.s32 %v6656, %v6658
      %v6660 = vrot.slane %v6652, %v6659
      %v6662 = vunpack.c.l.s4 1983009808
      %v6663 = vunpack.c.0.s8 %v6662
      %v6664 = vlaneseq
      %v6665 = vshrl.u32 %v6664, 7
      %v6666 = vsub.s32 %v6663, %v6665
      %v6667 = vrot.slane %v6653, %v6666
      %v6668 = vcombine.low %v6660, %v6667
      %v6669 = vcombine.low %v6418, %v6421
      %v6670 = vcombine.low %v6424, %v6427
      %v6672 = vunpack.c.l.s4 1983009808
      %v6673 = vunpack.c.0.s8 %v6672
      %v6674 = vlaneseq
      %v6675 = vshrl.u32 %v6674, 7
      %v6676 = vsub.s32 %v6673, %v6675
      %v6677 = vrot.slane %v6669, %v6676
      %v6679 = vunpack.c.l.s4 1983009808
      %v6680 = vunpack.c.0.s8 %v6679
      %v6681 = vlaneseq
      %v6682 = vshrl.u32 %v6681, 7
      %v6683 = vsub.s32 %v6680, %v6682
      %v6684 = vrot.slane %v6670, %v6683
      %v6685 = vcombine.low %v6677, %v6684
      %v6686 = vcombine.low %v6430, %v6433
      %v6687 = vcombine.low %v6437, %v6440
      %v6689 = vunpack.c.l.s4 1983009808
      %v6690 = vunpack.c.0.s8 %v6689
      %v6691 = vlaneseq
      %v6692 = vshrl.u32 %v6691, 7
      %v6693 = vsub.s32 %v6690, %v6692
      %v6694 = vrot.slane %v6686, %v6693
      %v6696 = vunpack.c.l.s4 1983009808
      %v6697 = vunpack.c.0.s8 %v6696
      %v6698 = vlaneseq
      %v6699 = vshrl.u32 %v6698, 7
      %v6700 = vsub.s32 %v6697, %v6699
      %v6701 = vrot.slane %v6687, %v6700
      %v6702 = vcombine.low %v6694, %v6701
      %v6703 = vcombine.low %v6443, %v6446
      %v6704 = vcombine.low %v6449, %v6452
      %v6706 = vunpack.c.l.s4 1983009808
      %v6707 = vunpack.c.0.s8 %v6706
      %v6708 = vlaneseq
      %v6709 = vshrl.u32 %v6708, 7
      %v6710 = vsub.s32 %v6707, %v6709
      %v6711 = vrot.slane %v6703, %v6710
      %v6713 = vunpack.c.l.s4 1983009808
      %v6714 = vunpack.c.0.s8 %v6713
      %v6715 = vlaneseq
      %v6716 = vshrl.u32 %v6715, 7
      %v6717 = vsub.s32 %v6714, %v6716
      %v6718 = vrot.slane %v6704, %v6717
      %v6719 = vcombine.low %v6711, %v6718
      %v6720 = vcombine.low %v6456, %v6459
      %v6721 = vcombine.low %v6462, %v6465
      %v6723 = vunpack.c.l.s4 1983009808
      %v6724 = vunpack.c.0.s8 %v6723
      %v6725 = vlaneseq
      %v6726 = vshrl.u32 %v6725, 7
      %v6727 = vsub.s32 %v6724, %v6726
      %v6728 = vrot.slane %v6720, %v6727
      %v6730 = vunpack.c.l.s4 1983009808
      %v6731 = vunpack.c.0.s8 %v6730
      %v6732 = vlaneseq
      %v6733 = vshrl.u32 %v6732, 7
      %v6734 = vsub.s32 %v6731, %v6733
      %v6735 = vrot.slane %v6721, %v6734
      %v6736 = vcombine.low %v6728, %v6735
      %v6737 = vcombine.low %v6468, %v6471
      %v6738 = vcombine.low %v6475, %v6478
      %v6740 = vunpack.c.l.s4 1983009808
      %v6741 = vunpack.c.0.s8 %v6740
      %v6742 = vlaneseq
      %v6743 = vshrl.u32 %v6742, 7
      %v6744 = vsub.s32 %v6741, %v6743
      %v6745 = vrot.slane %v6737, %v6744
      %v6747 = vunpack.c.l.s4 1983009808
      %v6748 = vunpack.c.0.s8 %v6747
      %v6749 = vlaneseq
      %v6750 = vshrl.u32 %v6749, 7
      %v6751 = vsub.s32 %v6748, %v6750
      %v6752 = vrot.slane %v6738, %v6751
      %v6753 = vcombine.low %v6745, %v6752
      %v6754 = vcombine.low %v6481, %v6484
      %v6755 = vcombine.low %v6487, %v6490
      %v6757 = vunpack.c.l.s4 1983009808
      %v6758 = vunpack.c.0.s8 %v6757
      %v6759 = vlaneseq
      %v6760 = vshrl.u32 %v6759, 7
      %v6761 = vsub.s32 %v6758, %v6760
      %v6762 = vrot.slane %v6754, %v6761
      %v6764 = vunpack.c.l.s4 1983009808
      %v6765 = vunpack.c.0.s8 %v6764
      %v6766 = vlaneseq
      %v6767 = vshrl.u32 %v6766, 7
      %v6768 = vsub.s32 %v6765, %v6767
      %v6769 = vrot.slane %v6755, %v6768
      %v6770 = vcombine.low %v6762, %v6769
      %v6771 = vcombine.low %v6494, %v6497
      %v6772 = vcombine.low %v6500, %v6503
      %v6774 = vunpack.c.l.s4 1983009808
      %v6775 = vunpack.c.0.s8 %v6774
      %v6776 = vlaneseq
      %v6777 = vshrl.u32 %v6776, 7
      %v6778 = vsub.s32 %v6775, %v6777
      %v6779 = vrot.slane %v6771, %v6778
      %v6781 = vunpack.c.l.s4 1983009808
      %v6782 = vunpack.c.0.s8 %v6781
      %v6783 = vlaneseq
      %v6784 = vshrl.u32 %v6783, 7
      %v6785 = vsub.s32 %v6782, %v6784
      %v6786 = vrot.slane %v6772, %v6785
      %v6787 = vcombine.low %v6779, %v6786
      %v6788 = vcombine.low %v6506, %v6509
      %v6789 = vcombine.low %v6513, %v6516
      %v6791 = vunpack.c.l.s4 1983009808
      %v6792 = vunpack.c.0.s8 %v6791
      %v6793 = vlaneseq
      %v6794 = vshrl.u32 %v6793, 7
      %v6795 = vsub.s32 %v6792, %v6794
      %v6796 = vrot.slane %v6788, %v6795
      %v6798 = vunpack.c.l.s4 1983009808
      %v6799 = vunpack.c.0.s8 %v6798
      %v6800 = vlaneseq
      %v6801 = vshrl.u32 %v6800, 7
      %v6802 = vsub.s32 %v6799, %v6801
      %v6803 = vrot.slane %v6789, %v6802
      %v6804 = vcombine.low %v6796, %v6803
      %v6805 = vcombine.low %v6519, %v6522
      %v6806 = vcombine.low %v6525, %v6528
      %v6808 = vunpack.c.l.s4 1983009808
      %v6809 = vunpack.c.0.s8 %v6808
      %v6810 = vlaneseq
      %v6811 = vshrl.u32 %v6810, 7
      %v6812 = vsub.s32 %v6809, %v6811
      %v6813 = vrot.slane %v6805, %v6812
      %v6815 = vunpack.c.l.s4 1983009808
      %v6816 = vunpack.c.0.s8 %v6815
      %v6817 = vlaneseq
      %v6818 = vshrl.u32 %v6817, 7
      %v6819 = vsub.s32 %v6816, %v6818
      %v6820 = vrot.slane %v6806, %v6819
      %v6821 = vcombine.low %v6813, %v6820
      %v6822 = vcombine.low %v6532, %v6535
      %v6823 = vcombine.low %v6538, %v6541
      %v6825 = vunpack.c.l.s4 1983009808
      %v6826 = vunpack.c.0.s8 %v6825
      %v6827 = vlaneseq
      %v6828 = vshrl.u32 %v6827, 7
      %v6829 = vsub.s32 %v6826, %v6828
      %v6830 = vrot.slane %v6822, %v6829
      %v6832 = vunpack.c.l.s4 1983009808
      %v6833 = vunpack.c.0.s8 %v6832
      %v6834 = vlaneseq
      %v6835 = vshrl.u32 %v6834, 7
      %v6836 = vsub.s32 %v6833, %v6835
      %v6837 = vrot.slane %v6823, %v6836
      %v6838 = vcombine.low %v6830, %v6837
      %v6839 = vcombine.low %v6544, %v6547
      %v6840 = vcombine.low %v6551, %v6554
      %v6842 = vunpack.c.l.s4 1983009808
      %v6843 = vunpack.c.0.s8 %v6842
      %v6844 = vlaneseq
      %v6845 = vshrl.u32 %v6844, 7
      %v6846 = vsub.s32 %v6843, %v6845
      %v6847 = vrot.slane %v6839, %v6846
      %v6849 = vunpack.c.l.s4 1983009808
      %v6850 = vunpack.c.0.s8 %v6849
      %v6851 = vlaneseq
      %v6852 = vshrl.u32 %v6851, 7
      %v6853 = vsub.s32 %v6850, %v6852
      %v6854 = vrot.slane %v6840, %v6853
      %v6855 = vcombine.low %v6847, %v6854
      %v6856 = vcombine.low %v6557, %v6560
      %v6857 = vcombine.low %v6563, %v6566
      %v6859 = vunpack.c.l.s4 1983009808
      %v6860 = vunpack.c.0.s8 %v6859
      %v6861 = vlaneseq
      %v6862 = vshrl.u32 %v6861, 7
      %v6863 = vsub.s32 %v6860, %v6862
      %v6864 = vrot.slane %v6856, %v6863
      %v6866 = vunpack.c.l.s4 1983009808
      %v6867 = vunpack.c.0.s8 %v6866
      %v6868 = vlaneseq
      %v6869 = vshrl.u32 %v6868, 7
      %v6870 = vsub.s32 %v6867, %v6869
      %v6871 = vrot.slane %v6857, %v6870
      %v6872 = vcombine.low %v6864, %v6871
      %v6891 = vpack.c.bf16 %v6600, %v6583
      %v6892 = vpack.c.bf16 %v6634, %v6617
      %v6893 = vpack.c.bf16 %v6668, %v6651
      %v6894 = vpack.c.bf16 %v6702, %v6685
      %v6895 = vpack.c.bf16 %v6736, %v6719
      %v6896 = vpack.c.bf16 %v6770, %v6753
      %v6897 = vpack.c.bf16 %v6804, %v6787
      %v6898 = vpack.c.bf16 %v6838, %v6821
      %v6899 = vpack.c.bf16 %v6872, %v6855
      %v6904 = vunpack.c.l.b16 %v5973
      %v6905 = vunpack.c.l.b16 %v5974
      %v6906 = vunpack.c.l.b16 %v5975
      %v6907 = vunpack.c.l.b16 %v5976
      %v6908 = vpack.c.b16 %v6905, %v6904
      %v6909 = vpack.c.b16 %v6907, %v6906
      %vm6912 = vcmask 261120
      %v6914 = vsel %vm6912, %v6891, 0
      %v6917 = vsel %vm6912, %v6892, 0
      %v6920 = vsel %vm6912, %v6893, 0
      %v6923 = vsel %vm6912, %v6894, 0
      %v6926 = vsel %vm6912, %v6895, 0
      %v6929 = vsel %vm6912, %v6896, 0
      %v6932 = vsel %vm6912, %v6897, 0
      %v6935 = vsel %vm6912, %v6898, 0
      %v6938 = vsel %vm6912, %v6899, 0
      %6940 = vmatprep.subr.bf16.mxu0 0
      %6941 = vmatpush1.bf16.msra.mxu0 %v6908
      %6942 = vmatprep.subr.bf16.mxu0 0
      %6943 = vmatpush1.bf16.msra.mxu0 %v6909
      %6944 = vmatprep.subr.bf16.mxu0 0
      %6945 = vmatpush1.bf16.msra.mxu0 0
      %6946 = vmatprep.subr.bf16.mxu0 0
      %6947 = vmatpush1.bf16.msra.mxu0 0
      %6948 = vmatprep.subr.bf16.mxu0 0
      %6949 = vmatpush1.bf16.msra.mxu0 0
      %6950 = vmatprep.subr.bf16.mxu0 0
      %6951 = vmatpush1.bf16.msra.mxu0 0
      %6952 = vmatprep.subr.bf16.mxu0 0
      %6953 = vmatpush1.bf16.msra.mxu0 0
      %6954 = vmatprep.subr.bf16.mxu0 0
      %6955 = vmatpush1.bf16.msra.mxu0 0
      %6956 = vmatprep.subr.bf16.mxu0 0
      %6957 = vmatpush1.bf16.msra.mxu0 0
      %6958 = vmatprep.subr.bf16.mxu0 0
      %6959 = vmatpush1.bf16.msra.mxu0 0
      %6960 = vmatprep.subr.bf16.mxu0 0
      %6961 = vmatpush1.bf16.msra.mxu0 0
      %6962 = vmatprep.subr.bf16.mxu0 0
      %6963 = vmatpush1.bf16.msra.mxu0 0
      %6964 = vmatprep.subr.bf16.mxu0 0
      %6965 = vmatpush1.bf16.msra.mxu0 0
      %6966 = vmatprep.subr.bf16.mxu0 0
      %6967 = vmatpush1.bf16.msra.mxu0 0
      %6968 = vmatprep.subr.bf16.mxu0 0
      %6969 = vmatpush1.bf16.msra.mxu0 0
      %6970 = vmatprep.subr.bf16.mxu0 0
      %6971 = vmatpush1.bf16.msra.mxu0 0
      %6972 = vmatprep.mubr.bf16.mxu0 0
      %6973 = vmatmul.mubr.bf16.gmra.mrb[0].mxu0 %v6914
      %v6974 = vpop.f32.mrb[0].mxu0
      %v6975 = vadd.f32 0.0, %v6974
      %v6976 = vpop.f32.mrb[0].mxu0
      %v6977 = vpop.f32.mrb[0].mxu0
      %v6978 = vadd.f32 0.0, %v6977
      %v6979 = vpop.f32.mrb[0].mxu0
      %6980 = vmatprep.mubr.bf16.mxu0 0
      %6981 = vmatmul.mubr.bf16.gmra.mrb[0].mxu0 %v6917
      %v6982 = vpop.f32.mrb[0].mxu0
      %v6983 = vadd.f32 0.0, %v6982
      %v6984 = vpop.f32.mrb[0].mxu0
      %v6985 = vpop.f32.mrb[0].mxu0
      %v6986 = vadd.f32 0.0, %v6985
      %v6987 = vpop.f32.mrb[0].mxu0
      %6988 = vmatprep.mubr.bf16.mxu0 0
      %6989 = vmatmul.mubr.bf16.gmra.mrb[0].mxu0 %v6920
      %v6990 = vpop.f32.mrb[0].mxu0
      %v6991 = vadd.f32 0.0, %v6990
      %v6992 = vpop.f32.mrb[0].mxu0
      %v6993 = vpop.f32.mrb[0].mxu0
      %v6994 = vadd.f32 0.0, %v6993
      %v6995 = vpop.f32.mrb[0].mxu0
      %6996 = vmatprep.mubr.bf16.mxu0 0
      %6997 = vmatmul.mubr.bf16.gmra.mrb[0].mxu0 %v6923
      %v6998 = vpop.f32.mrb[0].mxu0
      %v6999 = vadd.f32 0.0, %v6998
      %v7000 = vpop.f32.mrb[0].mxu0
      %v7001 = vpop.f32.mrb[0].mxu0
      %v7002 = vadd.f32 0.0, %v7001
      %v7003 = vpop.f32.mrb[0].mxu0
      %7004 = vmatprep.mubr.bf16.mxu0 0
      %7005 = vmatmul.mubr.bf16.gmra.mrb[0].mxu0 %v6926
      %v7006 = vpop.f32.mrb[0].mxu0
      %v7007 = vadd.f32 0.0, %v7006
      %v7008 = vpop.f32.mrb[0].mxu0
      %v7009 = vpop.f32.mrb[0].mxu0
      %v7010 = vadd.f32 0.0, %v7009
      %v7011 = vpop.f32.mrb[0].mxu0
      %7012 = vmatprep.mubr.bf16.mxu0 0
      %7013 = vmatmul.mubr.bf16.gmra.mrb[0].mxu0 %v6929
      %v7014 = vpop.f32.mrb[0].mxu0
      %v7015 = vadd.f32 0.0, %v7014
      %v7016 = vpop.f32.mrb[0].mxu0
      %v7017 = vpop.f32.mrb[0].mxu0
      %v7018 = vadd.f32 0.0, %v7017
      %v7019 = vpop.f32.mrb[0].mxu0
      %7020 = vmatprep.mubr.bf16.mxu0 0
      %7021 = vmatmul.mubr.bf16.gmra.mrb[0].mxu0 %v6932
      %v7022 = vpop.f32.mrb[0].mxu0
      %v7023 = vadd.f32 0.0, %v7022
      %v7024 = vpop.f32.mrb[0].mxu0
      %v7025 = vpop.f32.mrb[0].mxu0
      %v7026 = vadd.f32 0.0, %v7025
      %v7027 = vpop.f32.mrb[0].mxu0
      %7028 = vmatprep.mubr.bf16.mxu0 0
      %7029 = vmatmul.mubr.bf16.gmra.mrb[0].mxu0 %v6935
      %v7030 = vpop.f32.mrb[0].mxu0
      %v7031 = vadd.f32 0.0, %v7030
      %v7032 = vpop.f32.mrb[0].mxu0
      %v7033 = vpop.f32.mrb[0].mxu0
      %v7034 = vadd.f32 0.0, %v7033
      %v7035 = vpop.f32.mrb[0].mxu0
      %7036 = vmatprep.mubr.bf16.mxu0 0
      %7037 = vmatmul.mubr.bf16.gmra.mrb[0].mxu0 %v6938
      %v7038 = vpop.f32.mrb[0].mxu0
      %v7039 = vadd.f32 0.0, %v7038
      %v7040 = vpop.f32.mrb[0].mxu0
      %v7041 = vpop.f32.mrb[0].mxu0
      %v7042 = vadd.f32 0.0, %v7041
      %v7043 = vpop.f32.mrb[0].mxu0
      %7044 = vdwg.mxu0
      %v7049 = vunpack.c.l.b16 %v5969
      %v7050 = vunpack.c.l.b16 %v5970
      %v7051 = vunpack.c.l.b16 %v5971
      %v7052 = vunpack.c.l.b16 %v5972
      %v7053 = vpack.c.b16 %v7050, %v7049
      %v7054 = vpack.c.b16 %v7052, %v7051
      %v7058 = vsel %vm6912, %v6330, 0
      %v7061 = vsel %vm6912, %v6331, 0
      %v7064 = vsel %vm6912, %v6332, 0
      %v7067 = vsel %vm6912, %v6333, 0
      %v7070 = vsel %vm6912, %v6334, 0
      %v7073 = vsel %vm6912, %v6335, 0
      %v7076 = vsel %vm6912, %v6336, 0
      %v7079 = vsel %vm6912, %v6337, 0
      %v7082 = vsel %vm6912, %v6338, 0
      %7084 = vmatprep.subr.bf16.mxu0 0
      %7085 = vmatpush1.bf16.msra.mxu0 %v7053
      %7086 = vmatprep.subr.bf16.mxu0 0
      %7087 = vmatpush1.bf16.msra.mxu0 %v7054
      %7088 = vmatprep.subr.bf16.mxu0 0
      %7089 = vmatpush1.bf16.msra.mxu0 0
      %7090 = vmatprep.subr.bf16.mxu0 0
      %7091 = vmatpush1.bf16.msra.mxu0 0
      %7092 = vmatprep.subr.bf16.mxu0 0
      %7093 = vmatpush1.bf16.msra.mxu0 0
      %7094 = vmatprep.subr.bf16.mxu0 0
      %7095 = vmatpush1.bf16.msra.mxu0 0
      %7096 = vmatprep.subr.bf16.mxu0 0
      %7097 = vmatpush1.bf16.msra.mxu0 0
      %7098 = vmatprep.subr.bf16.mxu0 0
      %7099 = vmatpush1.bf16.msra.mxu0 0
      %7100 = vmatprep.subr.bf16.mxu0 0
      %7101 = vmatpush1.bf16.msra.mxu0 0
      %7102 = vmatprep.subr.bf16.mxu0 0
      %7103 = vmatpush1.bf16.msra.mxu0 0
      %7104 = vmatprep.subr.bf16.mxu0 0
      %7105 = vmatpush1.bf16.msra.mxu0 0
      %7106 = vmatprep.subr.bf16.mxu0 0
      %7107 = vmatpush1.bf16.msra.mxu0 0
      %7108 = vmatprep.subr.bf16.mxu0 0
      %7109 = vmatpush1.bf16.msra.mxu0 0
      %7110 = vmatprep.subr.bf16.mxu0 0
      %7111 = vmatpush1.bf16.msra.mxu0 0
      %7112 = vmatprep.subr.bf16.mxu0 0
      %7113 = vmatpush1.bf16.msra.mxu0 0
      %7114 = vmatprep.subr.bf16.mxu0 0
      %7115 = vmatpush1.bf16.msra.mxu0 0
      %7116 = vmatprep.mubr.bf16.mxu0 0
      %7117 = vmatmul.mubr.bf16.gmra.mrb[0].mxu0 %v7058
      %v7118 = vpop.f32.mrb[0].mxu0
      %v7119 = vadd.f32 %v6975, %v7118
      %v7120 = vpop.f32.mrb[0].mxu0
      %v7121 = vpop.f32.mrb[0].mxu0
      %v7122 = vadd.f32 %v6978, %v7121
      %v7123 = vpop.f32.mrb[0].mxu0
      %7124 = vmatprep.mubr.bf16.mxu0 0
      %7125 = vmatmul.mubr.bf16.gmra.mrb[0].mxu0 %v7061
      %v7126 = vpop.f32.mrb[0].mxu0
      %v7127 = vadd.f32 %v6983, %v7126
      %v7128 = vpop.f32.mrb[0].mxu0
      %v7129 = vpop.f32.mrb[0].mxu0
      %v7130 = vadd.f32 %v6986, %v7129
      %v7131 = vpop.f32.mrb[0].mxu0
      %7132 = vmatprep.mubr.bf16.mxu0 0
      %7133 = vmatmul.mubr.bf16.gmra.mrb[0].mxu0 %v7064
      %v7134 = vpop.f32.mrb[0].mxu0
      %v7135 = vadd.f32 %v6991, %v7134
      %v7136 = vpop.f32.mrb[0].mxu0
      %v7137 = vpop.f32.mrb[0].mxu0
      %v7138 = vadd.f32 %v6994, %v7137
      %v7139 = vpop.f32.mrb[0].mxu0
      %7140 = vmatprep.mubr.bf16.mxu0 0
      %7141 = vmatmul.mubr.bf16.gmra.mrb[0].mxu0 %v7067
      %v7142 = vpop.f32.mrb[0].mxu0
      %v7143 = vadd.f32 %v6999, %v7142
      %v7144 = vpop.f32.mrb[0].mxu0
      %v7145 = vpop.f32.mrb[0].mxu0
      %v7146 = vadd.f32 %v7002, %v7145
      %v7147 = vpop.f32.mrb[0].mxu0
      %7148 = vmatprep.mubr.bf16.mxu0 0
      %7149 = vmatmul.mubr.bf16.gmra.mrb[0].mxu0 %v7070
      %v7150 = vpop.f32.mrb[0].mxu0
      %v7151 = vadd.f32 %v7007, %v7150
      %v7152 = vpop.f32.mrb[0].mxu0
      %v7153 = vpop.f32.mrb[0].mxu0
      %v7154 = vadd.f32 %v7010, %v7153
      %v7155 = vpop.f32.mrb[0].mxu0
      %7156 = vmatprep.mubr.bf16.mxu0 0
      %7157 = vmatmul.mubr.bf16.gmra.mrb[0].mxu0 %v7073
      %v7158 = vpop.f32.mrb[0].mxu0
      %v7159 = vadd.f32 %v7015, %v7158
      %v7160 = vpop.f32.mrb[0].mxu0
      %v7161 = vpop.f32.mrb[0].mxu0
      %v7162 = vadd.f32 %v7018, %v7161
      %v7163 = vpop.f32.mrb[0].mxu0
      %7164 = vmatprep.mubr.bf16.mxu0 0
      %7165 = vmatmul.mubr.bf16.gmra.mrb[0].mxu0 %v7076
      %v7166 = vpop.f32.mrb[0].mxu0
      %v7167 = vadd.f32 %v7023, %v7166
      %v7168 = vpop.f32.mrb[0].mxu0
      %v7169 = vpop.f32.mrb[0].mxu0
      %v7170 = vadd.f32 %v7026, %v7169
      %v7171 = vpop.f32.mrb[0].mxu0
      %7172 = vmatprep.mubr.bf16.mxu0 0
      %7173 = vmatmul.mubr.bf16.gmra.mrb[0].mxu0 %v7079
      %v7174 = vpop.f32.mrb[0].mxu0
      %v7175 = vadd.f32 %v7031, %v7174
      %v7176 = vpop.f32.mrb[0].mxu0
      %v7177 = vpop.f32.mrb[0].mxu0
      %v7178 = vadd.f32 %v7034, %v7177
      %v7179 = vpop.f32.mrb[0].mxu0
      %7180 = vmatprep.mubr.bf16.mxu0 0
      %7181 = vmatmul.mubr.bf16.gmra.mrb[0].mxu0 %v7082
      %v7182 = vpop.f32.mrb[0].mxu0
      %v7183 = vadd.f32 %v7039, %v7182
      %v7184 = vpop.f32.mrb[0].mxu0
      %v7185 = vpop.f32.mrb[0].mxu0
      %v7186 = vadd.f32 %v7042, %v7185
      %v7187 = vpop.f32.mrb[0].mxu0
      %7188 = vdwg.mxu0
      %v7189 = vcombine.low %v5568, %v5567
      %v7190 = vcombine.low %v5569, %v5577
      %v7192 = vunpack.c.l.s4 1983009808
      %v7193 = vunpack.c.0.s8 %v7192
      %v7194 = vlaneseq
      %v7195 = vshrl.u32 %v7194, 7
      %v7196 = vsub.s32 %v7193, %v7195
      %v7197 = vrot.slane %v7189, %v7196
      %v7199 = vunpack.c.l.s4 1983009808
      %v7200 = vunpack.c.0.s8 %v7199
      %v7201 = vlaneseq
      %v7202 = vshrl.u32 %v7201, 7
      %v7203 = vsub.s32 %v7200, %v7202
      %v7204 = vrot.slane %v7190, %v7203
      %v7205 = vcombine.low %v7197, %v7204
      %v7206 = vcombine.low %v5585, %v5584
      %v7207 = vcombine.low %v5594, %v5602
      %v7209 = vunpack.c.l.s4 1983009808
      %v7210 = vunpack.c.0.s8 %v7209
      %v7211 = vlaneseq
      %v7212 = vshrl.u32 %v7211, 7
      %v7213 = vsub.s32 %v7210, %v7212
      %v7214 = vrot.slane %v7206, %v7213
      %v7216 = vunpack.c.l.s4 1983009808
      %v7217 = vunpack.c.0.s8 %v7216
      %v7218 = vlaneseq
      %v7219 = vshrl.u32 %v7218, 7
      %v7220 = vsub.s32 %v7217, %v7219
      %v7221 = vrot.slane %v7207, %v7220
      %v7222 = vcombine.low %v7214, %v7221
      %v7223 = vcombine.low %v5601, %v5603
      %v7224 = vcombine.low %v5611, %v5619
      %v7226 = vunpack.c.l.s4 1983009808
      %v7227 = vunpack.c.0.s8 %v7226
      %v7228 = vlaneseq
      %v7229 = vshrl.u32 %v7228, 7
      %v7230 = vsub.s32 %v7227, %v7229
      %v7231 = vrot.slane %v7223, %v7230
      %v7233 = vunpack.c.l.s4 1983009808
      %v7234 = vunpack.c.0.s8 %v7233
      %v7235 = vlaneseq
      %v7236 = vshrl.u32 %v7235, 7
      %v7237 = vsub.s32 %v7234, %v7236
      %v7238 = vrot.slane %v7224, %v7237
      %v7239 = vcombine.low %v7231, %v7238
      %v7240 = vcombine.low %v5620, %v5628
      %v7241 = vcombine.low %v5636, %v5635
      %v7243 = vunpack.c.l.s4 1983009808
      %v7244 = vunpack.c.0.s8 %v7243
      %v7245 = vlaneseq
      %v7246 = vshrl.u32 %v7245, 7
      %v7247 = vsub.s32 %v7244, %v7246
      %v7248 = vrot.slane %v7240, %v7247
      %v7250 = vunpack.c.l.s4 1983009808
      %v7251 = vunpack.c.0.s8 %v7250
      %v7252 = vlaneseq
      %v7253 = vshrl.u32 %v7252, 7
      %v7254 = vsub.s32 %v7251, %v7253
      %v7255 = vrot.slane %v7241, %v7254
      %v7256 = vcombine.low %v7248, %v7255
      %v7257 = vcombine.low %v5637, %v5645
      %v7258 = vcombine.low %v5652, %v5654
      %v7260 = vunpack.c.l.s4 1983009808
      %v7261 = vunpack.c.0.s8 %v7260
      %v7262 = vlaneseq
      %v7263 = vshrl.u32 %v7262, 7
      %v7264 = vsub.s32 %v7261, %v7263
      %v7265 = vrot.slane %v7257, %v7264
      %v7267 = vunpack.c.l.s4 1983009808
      %v7268 = vunpack.c.0.s8 %v7267
      %v7269 = vlaneseq
      %v7270 = vshrl.u32 %v7269, 7
      %v7271 = vsub.s32 %v7268, %v7270
      %v7272 = vrot.slane %v7258, %v7271
      %v7273 = vcombine.low %v7265, %v7272
      %v7274 = vcombine.low %v5662, %v5670
      %v7275 = vcombine.low %v5669, %v5671
      %v7277 = vunpack.c.l.s4 1983009808
      %v7278 = vunpack.c.0.s8 %v7277
      %v7279 = vlaneseq
      %v7280 = vshrl.u32 %v7279, 7
      %v7281 = vsub.s32 %v7278, %v7280
      %v7282 = vrot.slane %v7274, %v7281
      %v7284 = vunpack.c.l.s4 1983009808
      %v7285 = vunpack.c.0.s8 %v7284
      %v7286 = vlaneseq
      %v7287 = vshrl.u32 %v7286, 7
      %v7288 = vsub.s32 %v7285, %v7287
      %v7289 = vrot.slane %v7275, %v7288
      %v7290 = vcombine.low %v7282, %v7289
      %v7291 = vcombine.low %v5687, %v5686
      %v7292 = vcombine.low %v5688, %v5696
      %v7294 = vunpack.c.l.s4 1983009808
      %v7295 = vunpack.c.0.s8 %v7294
      %v7296 = vlaneseq
      %v7297 = vshrl.u32 %v7296, 7
      %v7298 = vsub.s32 %v7295, %v7297
      %v7299 = vrot.slane %v7291, %v7298
      %v7301 = vunpack.c.l.s4 1983009808
      %v7302 = vunpack.c.0.s8 %v7301
      %v7303 = vlaneseq
      %v7304 = vshrl.u32 %v7303, 7
      %v7305 = vsub.s32 %v7302, %v7304
      %v7306 = vrot.slane %v7292, %v7305
      %v7307 = vcombine.low %v7299, %v7306
      %v7308 = vcombine.low %v5704, %v5703
      %v7309 = vcombine.low %v5713, %v5721
      %v7311 = vunpack.c.l.s4 1983009808
      %v7312 = vunpack.c.0.s8 %v7311
      %v7313 = vlaneseq
      %v7314 = vshrl.u32 %v7313, 7
      %v7315 = vsub.s32 %v7312, %v7314
      %v7316 = vrot.slane %v7308, %v7315
      %v7318 = vunpack.c.l.s4 1983009808
      %v7319 = vunpack.c.0.s8 %v7318
      %v7320 = vlaneseq
      %v7321 = vshrl.u32 %v7320, 7
      %v7322 = vsub.s32 %v7319, %v7321
      %v7323 = vrot.slane %v7309, %v7322
      %v7324 = vcombine.low %v7316, %v7323
      %v7325 = vcombine.low %v5720, %v5722
      %v7326 = vcombine.low %v5730, %v5738
      %v7328 = vunpack.c.l.s4 1983009808
      %v7329 = vunpack.c.0.s8 %v7328
      %v7330 = vlaneseq
      %v7331 = vshrl.u32 %v7330, 7
      %v7332 = vsub.s32 %v7329, %v7331
      %v7333 = vrot.slane %v7325, %v7332
      %v7335 = vunpack.c.l.s4 1983009808
      %v7336 = vunpack.c.0.s8 %v7335
      %v7337 = vlaneseq
      %v7338 = vshrl.u32 %v7337, 7
      %v7339 = vsub.s32 %v7336, %v7338
      %v7340 = vrot.slane %v7326, %v7339
      %v7341 = vcombine.low %v7333, %v7340
      %v7342 = vcombine.low %v5739, %v5747
      %v7343 = vcombine.low %v5755, %v5754
      %v7345 = vunpack.c.l.s4 1983009808
      %v7346 = vunpack.c.0.s8 %v7345
      %v7347 = vlaneseq
      %v7348 = vshrl.u32 %v7347, 7
      %v7349 = vsub.s32 %v7346, %v7348
      %v7350 = vrot.slane %v7342, %v7349
      %v7352 = vunpack.c.l.s4 1983009808
      %v7353 = vunpack.c.0.s8 %v7352
      %v7354 = vlaneseq
      %v7355 = vshrl.u32 %v7354, 7
      %v7356 = vsub.s32 %v7353, %v7355
      %v7357 = vrot.slane %v7343, %v7356
      %v7358 = vcombine.low %v7350, %v7357
      %v7359 = vcombine.low %v5756, %v5764
      %v7360 = vcombine.low %v5771, %v5773
      %v7362 = vunpack.c.l.s4 1983009808
      %v7363 = vunpack.c.0.s8 %v7362
      %v7364 = vlaneseq
      %v7365 = vshrl.u32 %v7364, 7
      %v7366 = vsub.s32 %v7363, %v7365
      %v7367 = vrot.slane %v7359, %v7366
      %v7369 = vunpack.c.l.s4 1983009808
      %v7370 = vunpack.c.0.s8 %v7369
      %v7371 = vlaneseq
      %v7372 = vshrl.u32 %v7371, 7
      %v7373 = vsub.s32 %v7370, %v7372
      %v7374 = vrot.slane %v7360, %v7373
      %v7375 = vcombine.low %v7367, %v7374
      %v7376 = vcombine.low %v5781, %v5789
      %v7377 = vcombine.low %v5788, %v5790
      %v7379 = vunpack.c.l.s4 1983009808
      %v7380 = vunpack.c.0.s8 %v7379
      %v7381 = vlaneseq
      %v7382 = vshrl.u32 %v7381, 7
      %v7383 = vsub.s32 %v7380, %v7382
      %v7384 = vrot.slane %v7376, %v7383
      %v7386 = vunpack.c.l.s4 1983009808
      %v7387 = vunpack.c.0.s8 %v7386
      %v7388 = vlaneseq
      %v7389 = vshrl.u32 %v7388, 7
      %v7390 = vsub.s32 %v7387, %v7389
      %v7391 = vrot.slane %v7377, %v7390
      %v7392 = vcombine.low %v7384, %v7391
      %v7393 = vcombine.low %v5806, %v5805
      %v7394 = vcombine.low %v5807, %v5815
      %v7396 = vunpack.c.l.s4 1983009808
      %v7397 = vunpack.c.0.s8 %v7396
      %v7398 = vlaneseq
      %v7399 = vshrl.u32 %v7398, 7
      %v7400 = vsub.s32 %v7397, %v7399
      %v7401 = vrot.slane %v7393, %v7400
      %v7403 = vunpack.c.l.s4 1983009808
      %v7404 = vunpack.c.0.s8 %v7403
      %v7405 = vlaneseq
      %v7406 = vshrl.u32 %v7405, 7
      %v7407 = vsub.s32 %v7404, %v7406
      %v7408 = vrot.slane %v7394, %v7407
      %v7409 = vcombine.low %v7401, %v7408
      %v7410 = vcombine.low %v5823, %v5822
      %v7411 = vcombine.low %v5832, %v5840
      %v7413 = vunpack.c.l.s4 1983009808
      %v7414 = vunpack.c.0.s8 %v7413
      %v7415 = vlaneseq
      %v7416 = vshrl.u32 %v7415, 7
      %v7417 = vsub.s32 %v7414, %v7416
      %v7418 = vrot.slane %v7410, %v7417
      %v7420 = vunpack.c.l.s4 1983009808
      %v7421 = vunpack.c.0.s8 %v7420
      %v7422 = vlaneseq
      %v7423 = vshrl.u32 %v7422, 7
      %v7424 = vsub.s32 %v7421, %v7423
      %v7425 = vrot.slane %v7411, %v7424
      %v7426 = vcombine.low %v7418, %v7425
      %v7427 = vcombine.low %v5839, %v5841
      %v7428 = vcombine.low %v5849, %v5857
      %v7430 = vunpack.c.l.s4 1983009808
      %v7431 = vunpack.c.0.s8 %v7430
      %v7432 = vlaneseq
      %v7433 = vshrl.u32 %v7432, 7
      %v7434 = vsub.s32 %v7431, %v7433
      %v7435 = vrot.slane %v7427, %v7434
      %v7437 = vunpack.c.l.s4 1983009808
      %v7438 = vunpack.c.0.s8 %v7437
      %v7439 = vlaneseq
      %v7440 = vshrl.u32 %v7439, 7
      %v7441 = vsub.s32 %v7438, %v7440
      %v7442 = vrot.slane %v7428, %v7441
      %v7443 = vcombine.low %v7435, %v7442
      %v7444 = vcombine.low %v5858, %v5866
      %v7445 = vcombine.low %v5874, %v5873
      %v7447 = vunpack.c.l.s4 1983009808
      %v7448 = vunpack.c.0.s8 %v7447
      %v7449 = vlaneseq
      %v7450 = vshrl.u32 %v7449, 7
      %v7451 = vsub.s32 %v7448, %v7450
      %v7452 = vrot.slane %v7444, %v7451
      %v7454 = vunpack.c.l.s4 1983009808
      %v7455 = vunpack.c.0.s8 %v7454
      %v7456 = vlaneseq
      %v7457 = vshrl.u32 %v7456, 7
      %v7458 = vsub.s32 %v7455, %v7457
      %v7459 = vrot.slane %v7445, %v7458
      %v7460 = vcombine.low %v7452, %v7459
      %v7461 = vcombine.low %v5875, %v5883
      %v7462 = vcombine.low %v5890, %v5892
      %v7464 = vunpack.c.l.s4 1983009808
      %v7465 = vunpack.c.0.s8 %v7464
      %v7466 = vlaneseq
      %v7467 = vshrl.u32 %v7466, 7
      %v7468 = vsub.s32 %v7465, %v7467
      %v7469 = vrot.slane %v7461, %v7468
      %v7471 = vunpack.c.l.s4 1983009808
      %v7472 = vunpack.c.0.s8 %v7471
      %v7473 = vlaneseq
      %v7474 = vshrl.u32 %v7473, 7
      %v7475 = vsub.s32 %v7472, %v7474
      %v7476 = vrot.slane %v7462, %v7475
      %v7477 = vcombine.low %v7469, %v7476
      %v7478 = vcombine.low %v5900, %v5908
      %v7479 = vcombine.low %v5907, %v5909
      %v7481 = vunpack.c.l.s4 1983009808
      %v7482 = vunpack.c.0.s8 %v7481
      %v7483 = vlaneseq
      %v7484 = vshrl.u32 %v7483, 7
      %v7485 = vsub.s32 %v7482, %v7484
      %v7486 = vrot.slane %v7478, %v7485
      %v7488 = vunpack.c.l.s4 1983009808
      %v7489 = vunpack.c.0.s8 %v7488
      %v7490 = vlaneseq
      %v7491 = vshrl.u32 %v7490, 7
      %v7492 = vsub.s32 %v7489, %v7491
      %v7493 = vrot.slane %v7479, %v7492
      %v7494 = vcombine.low %v7486, %v7493
      %v7513 = vpack.c.bf16 %v7222, %v7205
      %v7514 = vpack.c.bf16 %v7256, %v7239
      %v7515 = vpack.c.bf16 %v7290, %v7273
      %v7516 = vpack.c.bf16 %v7324, %v7307
      %v7517 = vpack.c.bf16 %v7358, %v7341
      %v7518 = vpack.c.bf16 %v7392, %v7375
      %v7519 = vpack.c.bf16 %v7426, %v7409
      %v7520 = vpack.c.bf16 %v7460, %v7443
      %v7521 = vpack.c.bf16 %v7494, %v7477
      %v7526 = vunpack.c.l.b16 %v5977
      %v7527 = vunpack.c.l.b16 %v5978
      %v7528 = vunpack.c.l.b16 %v5979
      %v7529 = vunpack.c.l.b16 %v5980
      %v7530 = vpack.c.b16 %v7527, %v7526
      %v7531 = vpack.c.b16 %v7529, %v7528
      %v7535 = vsel %vm6912, %v7513, 0
      %v7538 = vsel %vm6912, %v7514, 0
      %v7541 = vsel %vm6912, %v7515, 0
      %v7544 = vsel %vm6912, %v7516, 0
      %v7547 = vsel %vm6912, %v7517, 0
      %v7550 = vsel %vm6912, %v7518, 0
      %v7553 = vsel %vm6912, %v7519, 0
      %v7556 = vsel %vm6912, %v7520, 0
      %v7559 = vsel %vm6912, %v7521, 0
      %7561 = vmatprep.subr.bf16.mxu0 0
      %7562 = vmatpush1.bf16.msra.mxu0 %v7530
      %7563 = vmatprep.subr.bf16.mxu0 0
      %7564 = vmatpush1.bf16.msra.mxu0 %v7531
      %7565 = vmatprep.subr.bf16.mxu0 0
      %7566 = vmatpush1.bf16.msra.mxu0 0
      %7567 = vmatprep.subr.bf16.mxu0 0
      %7568 = vmatpush1.bf16.msra.mxu0 0
      %7569 = vmatprep.subr.bf16.mxu0 0
      %7570 = vmatpush1.bf16.msra.mxu0 0
      %7571 = vmatprep.subr.bf16.mxu0 0
      %7572 = vmatpush1.bf16.msra.mxu0 0
      %7573 = vmatprep.subr.bf16.mxu0 0
      %7574 = vmatpush1.bf16.msra.mxu0 0
      %7575 = vmatprep.subr.bf16.mxu0 0
      %7576 = vmatpush1.bf16.msra.mxu0 0
      %7577 = vmatprep.subr.bf16.mxu0 0
      %7578 = vmatpush1.bf16.msra.mxu0 0
      %7579 = vmatprep.subr.bf16.mxu0 0
      %7580 = vmatpush1.bf16.msra.mxu0 0
      %7581 = vmatprep.subr.bf16.mxu0 0
      %7582 = vmatpush1.bf16.msra.mxu0 0
      %7583 = vmatprep.subr.bf16.mxu0 0
      %7584 = vmatpush1.bf16.msra.mxu0 0
      %7585 = vmatprep.subr.bf16.mxu0 0
      %7586 = vmatpush1.bf16.msra.mxu0 0
      %7587 = vmatprep.subr.bf16.mxu0 0
      %7588 = vmatpush1.bf16.msra.mxu0 0
      %7589 = vmatprep.subr.bf16.mxu0 0
      %7590 = vmatpush1.bf16.msra.mxu0 0
      %7591 = vmatprep.subr.bf16.mxu0 0
      %7592 = vmatpush1.bf16.msra.mxu0 0
      %7593 = vmatprep.mubr.bf16.mxu0 0
      %7594 = vmatmul.mubr.bf16.gmra.mrb[0].mxu0 %v7535
      %v7595 = vpop.f32.mrb[0].mxu0
      %v7596 = vadd.f32 0.0, %v7595
      %v7597 = vpop.f32.mrb[0].mxu0
      %v7598 = vpop.f32.mrb[0].mxu0
      %v7599 = vadd.f32 0.0, %v7598
      %v7600 = vpop.f32.mrb[0].mxu0
      %7601 = vmatprep.mubr.bf16.mxu0 0
      %7602 = vmatmul.mubr.bf16.gmra.mrb[0].mxu0 %v7538
      %v7603 = vpop.f32.mrb[0].mxu0
      %v7604 = vadd.f32 0.0, %v7603
      %v7605 = vpop.f32.mrb[0].mxu0
      %v7606 = vpop.f32.mrb[0].mxu0
      %v7607 = vadd.f32 0.0, %v7606
      %v7608 = vpop.f32.mrb[0].mxu0
      %7609 = vmatprep.mubr.bf16.mxu0 0
      %7610 = vmatmul.mubr.bf16.gmra.mrb[0].mxu0 %v7541
      %v7611 = vpop.f32.mrb[0].mxu0
      %v7612 = vadd.f32 0.0, %v7611
      %v7613 = vpop.f32.mrb[0].mxu0
      %v7614 = vpop.f32.mrb[0].mxu0
      %v7615 = vadd.f32 0.0, %v7614
      %v7616 = vpop.f32.mrb[0].mxu0
      %7617 = vmatprep.mubr.bf16.mxu0 0
      %7618 = vmatmul.mubr.bf16.gmra.mrb[0].mxu0 %v7544
      %v7619 = vpop.f32.mrb[0].mxu0
      %v7620 = vadd.f32 0.0, %v7619
      %v7621 = vpop.f32.mrb[0].mxu0
      %v7622 = vpop.f32.mrb[0].mxu0
      %v7623 = vadd.f32 0.0, %v7622
      %v7624 = vpop.f32.mrb[0].mxu0
      %7625 = vmatprep.mubr.bf16.mxu0 0
      %7626 = vmatmul.mubr.bf16.gmra.mrb[0].mxu0 %v7547
      %v7627 = vpop.f32.mrb[0].mxu0
      %v7628 = vadd.f32 0.0, %v7627
      %v7629 = vpop.f32.mrb[0].mxu0
      %v7630 = vpop.f32.mrb[0].mxu0
      %v7631 = vadd.f32 0.0, %v7630
      %v7632 = vpop.f32.mrb[0].mxu0
      %7633 = vmatprep.mubr.bf16.mxu0 0
      %7634 = vmatmul.mubr.bf16.gmra.mrb[0].mxu0 %v7550
      %v7635 = vpop.f32.mrb[0].mxu0
      %v7636 = vadd.f32 0.0, %v7635
      %v7637 = vpop.f32.mrb[0].mxu0
      %v7638 = vpop.f32.mrb[0].mxu0
      %v7639 = vadd.f32 0.0, %v7638
      %v7640 = vpop.f32.mrb[0].mxu0
      %7641 = vmatprep.mubr.bf16.mxu0 0
      %7642 = vmatmul.mubr.bf16.gmra.mrb[0].mxu0 %v7553
      %v7643 = vpop.f32.mrb[0].mxu0
      %v7644 = vadd.f32 0.0, %v7643
      %v7645 = vpop.f32.mrb[0].mxu0
      %v7646 = vpop.f32.mrb[0].mxu0
      %v7647 = vadd.f32 0.0, %v7646
      %v7648 = vpop.f32.mrb[0].mxu0
      %7649 = vmatprep.mubr.bf16.mxu0 0
      %7650 = vmatmul.mubr.bf16.gmra.mrb[0].mxu0 %v7556
      %v7651 = vpop.f32.mrb[0].mxu0
      %v7652 = vadd.f32 0.0, %v7651
      %v7653 = vpop.f32.mrb[0].mxu0
      %v7654 = vpop.f32.mrb[0].mxu0
      %v7655 = vadd.f32 0.0, %v7654
      %v7656 = vpop.f32.mrb[0].mxu0
      %7657 = vmatprep.mubr.bf16.mxu0 0
      %7658 = vmatmul.mubr.bf16.gmra.mrb[0].mxu0 %v7559
      %v7659 = vpop.f32.mrb[0].mxu0
      %v7660 = vadd.f32 0.0, %v7659
      %v7661 = vpop.f32.mrb[0].mxu0
      %v7662 = vpop.f32.mrb[0].mxu0
      %v7663 = vadd.f32 0.0, %v7662
      %v7664 = vpop.f32.mrb[0].mxu0
      %7665 = vdwg.mxu0
      %v7666 = vadd.f32 %v7119, %v7596
      %v7667 = vadd.f32 %v7122, %v7599
      %v7668 = vadd.f32 %v7127, %v7604
      %v7669 = vadd.f32 %v7130, %v7607
      %v7670 = vadd.f32 %v7135, %v7612
      %v7671 = vadd.f32 %v7138, %v7615
      %v7672 = vadd.f32 %v7143, %v7620
      %v7673 = vadd.f32 %v7146, %v7623
      %v7674 = vadd.f32 %v7151, %v7628
      %v7675 = vadd.f32 %v7154, %v7631
      %v7676 = vadd.f32 %v7159, %v7636
      %v7677 = vadd.f32 %v7162, %v7639
      %v7678 = vadd.f32 %v7167, %v7644
      %v7679 = vadd.f32 %v7170, %v7647
      %v7680 = vadd.f32 %v7175, %v7652
      %v7681 = vadd.f32 %v7178, %v7655
      %v7682 = vadd.f32 %v7183, %v7660
      %v7683 = vadd.f32 %v7186, %v7663
      %v7684 = vcombine.low %v6038, %v6048
      %v7685 = vcombine.low %v6055, %v6065
      %v7686 = vcombine.low %v6072, %v6082
      %v7687 = vcombine.low %v6089, %v6099
      %v7688 = vcombine.low %v6106, %v6116
      %v7689 = vcombine.low %v6123, %v6133
      %v7690 = vcombine.low %v6140, %v6150
      %v7691 = vcombine.low %v6157, %v6167
      %v7692 = vcombine.low %v6174, %v6184
      %v7693 = vcombine.low %v6191, %v6201
      %v7694 = vcombine.low %v6208, %v6218
      %v7695 = vcombine.low %v6225, %v6235
      %v7696 = vcombine.low %v6242, %v6252
      %v7697 = vcombine.low %v6259, %v6269
      %v7698 = vcombine.low %v6276, %v6286
      %v7699 = vcombine.low %v6293, %v6303
      %v7700 = vcombine.low %v5917, %v5925
      %v7702 = vunpack.c.l.s4 1983009808
      %v7703 = vunpack.c.0.s8 %v7702
      %v7704 = vlaneseq
      %v7705 = vshrl.u32 %v7704, 7
      %v7706 = vsub.s32 %v7703, %v7705
      %v7707 = vrot.slane %v7700, %v7706
      %v7708 = vcombine.low %v6310, %v7707
      %v7709 = vcombine.low %v5924, %v5926
      %v7710 = vcombine.low %v5934, %v5942
      %v7712 = vunpack.c.l.s4 1983009808
      %v7713 = vunpack.c.0.s8 %v7712
      %v7714 = vlaneseq
      %v7715 = vshrl.u32 %v7714, 7
      %v7716 = vsub.s32 %v7713, %v7715
      %v7717 = vrot.slane %v7709, %v7716
      %v7719 = vunpack.c.l.s4 1983009808
      %v7720 = vunpack.c.0.s8 %v7719
      %v7721 = vlaneseq
      %v7722 = vshrl.u32 %v7721, 7
      %v7723 = vsub.s32 %v7720, %v7722
      %v7724 = vrot.slane %v7710, %v7723
      %v7725 = vcombine.low %v7717, %v7724
      %v7744 = vpack.c.bf16 %v7685, %v7684
      %v7745 = vpack.c.bf16 %v7687, %v7686
      %v7746 = vpack.c.bf16 %v7689, %v7688
      %v7747 = vpack.c.bf16 %v7691, %v7690
      %v7748 = vpack.c.bf16 %v7693, %v7692
      %v7749 = vpack.c.bf16 %v7695, %v7694
      %v7750 = vpack.c.bf16 %v7697, %v7696
      %v7751 = vpack.c.bf16 %v7699, %v7698
      %v7752 = vpack.c.bf16 %v7725, %v7708
      %v7757 = vunpack.c.l.b16 %v5981
      %v7758 = vunpack.c.l.b16 %v5982
      %v7759 = vunpack.c.l.b16 %v5983
      %v7760 = vunpack.c.l.b16 %v5984
      %v7761 = vpack.c.b16 %v7758, %v7757
      %v7762 = vpack.c.b16 %v7760, %v7759
      %v7766 = vsel %vm6912, %v7744, 0
      %v7769 = vsel %vm6912, %v7745, 0
      %v7772 = vsel %vm6912, %v7746, 0
      %v7775 = vsel %vm6912, %v7747, 0
      %v7778 = vsel %vm6912, %v7748, 0
      %v7781 = vsel %vm6912, %v7749, 0
      %v7784 = vsel %vm6912, %v7750, 0
      %v7787 = vsel %vm6912, %v7751, 0
      %v7790 = vsel %vm6912, %v7752, 0
      %7792 = vmatprep.subr.bf16.mxu0 0
      %7793 = vmatpush1.bf16.msra.mxu0 %v7761
      %7794 = vmatprep.subr.bf16.mxu0 0
      %7795 = vmatpush1.bf16.msra.mxu0 %v7762
      %7796 = vmatprep.subr.bf16.mxu0 0
      %7797 = vmatpush1.bf16.msra.mxu0 0
      %7798 = vmatprep.subr.bf16.mxu0 0
      %7799 = vmatpush1.bf16.msra.mxu0 0
      %7800 = vmatprep.subr.bf16.mxu0 0
      %7801 = vmatpush1.bf16.msra.mxu0 0
      %7802 = vmatprep.subr.bf16.mxu0 0
      %7803 = vmatpush1.bf16.msra.mxu0 0
      %7804 = vmatprep.subr.bf16.mxu0 0
      %7805 = vmatpush1.bf16.msra.mxu0 0
      %7806 = vmatprep.subr.bf16.mxu0 0
      %7807 = vmatpush1.bf16.msra.mxu0 0
      %7808 = vmatprep.subr.bf16.mxu0 0
      %7809 = vmatpush1.bf16.msra.mxu0 0
      %7810 = vmatprep.subr.bf16.mxu0 0
      %7811 = vmatpush1.bf16.msra.mxu0 0
      %7812 = vmatprep.subr.bf16.mxu0 0
      %7813 = vmatpush1.bf16.msra.mxu0 0
      %7814 = vmatprep.subr.bf16.mxu0 0
      %7815 = vmatpush1.bf16.msra.mxu0 0
      %7816 = vmatprep.subr.bf16.mxu0 0
      %7817 = vmatpush1.bf16.msra.mxu0 0
      %7818 = vmatprep.subr.bf16.mxu0 0
      %7819 = vmatpush1.bf16.msra.mxu0 0
      %7820 = vmatprep.subr.bf16.mxu0 0
      %7821 = vmatpush1.bf16.msra.mxu0 0
      %7822 = vmatprep.subr.bf16.mxu0 0
      %7823 = vmatpush1.bf16.msra.mxu0 0
      %7824 = vmatprep.mubr.bf16.mxu0 0
      %7825 = vmatmul.mubr.bf16.gmra.mrb[0].mxu0 %v7766
      %v7826 = vpop.f32.mrb[0].mxu0
      %v7827 = vadd.f32 0.0, %v7826
      %v7828 = vpop.f32.mrb[0].mxu0
      %v7829 = vpop.f32.mrb[0].mxu0
      %v7830 = vadd.f32 0.0, %v7829
      %v7831 = vpop.f32.mrb[0].mxu0
      %7832 = vmatprep.mubr.bf16.mxu0 0
      %7833 = vmatmul.mubr.bf16.gmra.mrb[0].mxu0 %v7769
      %v7834 = vpop.f32.mrb[0].mxu0
      %v7835 = vadd.f32 0.0, %v7834
      %v7836 = vpop.f32.mrb[0].mxu0
      %v7837 = vpop.f32.mrb[0].mxu0
      %v7838 = vadd.f32 0.0, %v7837
      %v7839 = vpop.f32.mrb[0].mxu0
      %7840 = vmatprep.mubr.bf16.mxu0 0
      %7841 = vmatmul.mubr.bf16.gmra.mrb[0].mxu0 %v7772
      %v7842 = vpop.f32.mrb[0].mxu0
      %v7843 = vadd.f32 0.0, %v7842
      %v7844 = vpop.f32.mrb[0].mxu0
      %v7845 = vpop.f32.mrb[0].mxu0
      %v7846 = vadd.f32 0.0, %v7845
      %v7847 = vpop.f32.mrb[0].mxu0
      %7848 = vmatprep.mubr.bf16.mxu0 0
      %7849 = vmatmul.mubr.bf16.gmra.mrb[0].mxu0 %v7775
      %v7850 = vpop.f32.mrb[0].mxu0
      %v7851 = vadd.f32 0.0, %v7850
      %v7852 = vpop.f32.mrb[0].mxu0
      %v7853 = vpop.f32.mrb[0].mxu0
      %v7854 = vadd.f32 0.0, %v7853
      %v7855 = vpop.f32.mrb[0].mxu0
      %7856 = vmatprep.mubr.bf16.mxu0 0
      %7857 = vmatmul.mubr.bf16.gmra.mrb[0].mxu0 %v7778
      %v7858 = vpop.f32.mrb[0].mxu0
      %v7859 = vadd.f32 0.0, %v7858
      %v7860 = vpop.f32.mrb[0].mxu0
      %v7861 = vpop.f32.mrb[0].mxu0
      %v7862 = vadd.f32 0.0, %v7861
      %v7863 = vpop.f32.mrb[0].mxu0
      %7864 = vmatprep.mubr.bf16.mxu0 0
      %7865 = vmatmul.mubr.bf16.gmra.mrb[0].mxu0 %v7781
      %v7866 = vpop.f32.mrb[0].mxu0
      %v7867 = vadd.f32 0.0, %v7866
      %v7868 = vpop.f32.mrb[0].mxu0
      %v7869 = vpop.f32.mrb[0].mxu0
      %v7870 = vadd.f32 0.0, %v7869
      %v7871 = vpop.f32.mrb[0].mxu0
      %7872 = vmatprep.mubr.bf16.mxu0 0
      %7873 = vmatmul.mubr.bf16.gmra.mrb[0].mxu0 %v7784
      %v7874 = vpop.f32.mrb[0].mxu0
      %v7875 = vadd.f32 0.0, %v7874
      %v7876 = vpop.f32.mrb[0].mxu0
      %v7877 = vpop.f32.mrb[0].mxu0
      %v7878 = vadd.f32 0.0, %v7877
      %v7879 = vpop.f32.mrb[0].mxu0
      %7880 = vmatprep.mubr.bf16.mxu0 0
      %7881 = vmatmul.mubr.bf16.gmra.mrb[0].mxu0 %v7787
      %v7882 = vpop.f32.mrb[0].mxu0
      %v7883 = vadd.f32 0.0, %v7882
      %v7884 = vpop.f32.mrb[0].mxu0
      %v7885 = vpop.f32.mrb[0].mxu0
      %v7886 = vadd.f32 0.0, %v7885
      %v7887 = vpop.f32.mrb[0].mxu0
      %7888 = vmatprep.mubr.bf16.mxu0 0
      %7889 = vmatmul.mubr.bf16.gmra.mrb[0].mxu0 %v7790
      %v7890 = vpop.f32.mrb[0].mxu0
      %v7891 = vadd.f32 0.0, %v7890
      %v7892 = vpop.f32.mrb[0].mxu0
      %v7893 = vpop.f32.mrb[0].mxu0
      %v7894 = vadd.f32 0.0, %v7893
      %v7895 = vpop.f32.mrb[0].mxu0
      %7896 = vdwg.mxu0
      %v7897 = vadd.f32 %v7666, %v7827
      %v7898 = vadd.f32 %v7667, %v7830
      %v7899 = vadd.f32 %v7668, %v7835
      %v7900 = vadd.f32 %v7669, %v7838
      %v7901 = vadd.f32 %v7670, %v7843
      %v7902 = vadd.f32 %v7671, %v7846
      %v7903 = vadd.f32 %v7672, %v7851
      %v7904 = vadd.f32 %v7673, %v7854
      %v7905 = vadd.f32 %v7674, %v7859
      %v7906 = vadd.f32 %v7675, %v7862
      %v7907 = vadd.f32 %v7676, %v7867
      %v7908 = vadd.f32 %v7677, %v7870
      %v7909 = vadd.f32 %v7678, %v7875
      %v7910 = vadd.f32 %v7679, %v7878
      %v7911 = vadd.f32 %v7680, %v7883
      %v7912 = vadd.f32 %v7681, %v7886
      %v7913 = vadd.f32 %v7682, %v7891
      %v7914 = vadd.f32 %v7683, %v7894
      %v7915 = vrot.slane %v5917, 7
      %v7916 = vrot.slane %v7915, 2
      %v7917 = vrot.slane %v5925, 7
      %v7918 = vsel %vm1228, %v7916, %v7917
      %v7919 = vrot.slane %v7917, 2
      %v7920 = vrot.slane %v5924, 7
      %v7921 = vsel %vm1228, %v7919, %v7920
      %v7922 = vrot.slane %v7920, 2
      %v7923 = vrot.slane %v5926, 7
      %v7924 = vsel %vm1228, %v7922, %v7923
      %v7925 = vrot.slane %v7923, 2
      %v7926 = vrot.slane %v5934, 7
      %v7927 = vsel %vm1228, %v7925, %v7926
      %v7928 = vrot.slane %v7926, 2
      %v7929 = vrot.slane %v5942, 7
      %v7930 = vsel %vm1228, %v7928, %v7929
      %v7931 = vrot.slane %v7929, 2
      %v7932 = vrot.slane %v5941, 7
      %v7933 = vsel %vm1228, %v7931, %v7932
      %v7934 = vcombine.low %v6599, %v6609
      %v7935 = vcombine.low %v6616, %v6626
      %v7936 = vcombine.low %v6633, %v6643
      %v7937 = vcombine.low %v6650, %v6660
      %v7938 = vcombine.low %v6667, %v6677
      %v7939 = vcombine.low %v6684, %v6694
      %v7940 = vcombine.low %v6701, %v6711
      %v7941 = vcombine.low %v6718, %v6728
      %v7942 = vcombine.low %v6735, %v6745
      %v7943 = vcombine.low %v6752, %v6762
      %v7944 = vcombine.low %v6769, %v6779
      %v7945 = vcombine.low %v6786, %v6796
      %v7946 = vcombine.low %v6803, %v6813
      %v7947 = vcombine.low %v6820, %v6830
      %v7948 = vcombine.low %v6837, %v6847
      %v7949 = vcombine.low %v6854, %v6864
      %v7950 = vcombine.low %v7918, %v7921
      %v7952 = vunpack.c.l.s4 1983009808
      %v7953 = vunpack.c.0.s8 %v7952
      %v7954 = vlaneseq
      %v7955 = vshrl.u32 %v7954, 7
      %v7956 = vsub.s32 %v7953, %v7955
      %v7957 = vrot.slane %v7950, %v7956
      %v7958 = vcombine.low %v6871, %v7957
      %v7959 = vcombine.low %v7924, %v7927
      %v7960 = vcombine.low %v7930, %v7933
      %v7962 = vunpack.c.l.s4 1983009808
      %v7963 = vunpack.c.0.s8 %v7962
      %v7964 = vlaneseq
      %v7965 = vshrl.u32 %v7964, 7
      %v7966 = vsub.s32 %v7963, %v7965
      %v7967 = vrot.slane %v7959, %v7966
      %v7969 = vunpack.c.l.s4 1983009808
      %v7970 = vunpack.c.0.s8 %v7969
      %v7971 = vlaneseq
      %v7972 = vshrl.u32 %v7971, 7
      %v7973 = vsub.s32 %v7970, %v7972
      %v7974 = vrot.slane %v7960, %v7973
      %v7975 = vcombine.low %v7967, %v7974
      %v7994 = vpack.c.bf16 %v7935, %v7934
      %v7995 = vpack.c.bf16 %v7937, %v7936
      %v7996 = vpack.c.bf16 %v7939, %v7938
      %v7997 = vpack.c.bf16 %v7941, %v7940
      %v7998 = vpack.c.bf16 %v7943, %v7942
      %v7999 = vpack.c.bf16 %v7945, %v7944
      %v8000 = vpack.c.bf16 %v7947, %v7946
      %v8001 = vpack.c.bf16 %v7949, %v7948
      %v8002 = vpack.c.bf16 %v7975, %v7958
      %v8007 = vunpack.c.l.b16 %v5985
      %v8008 = vunpack.c.l.b16 %v5986
      %v8009 = vunpack.c.l.b16 %v5987
      %v8010 = vunpack.c.l.b16 %v5988
      %v8011 = vpack.c.b16 %v8008, %v8007
      %v8012 = vpack.c.b16 %v8010, %v8009
      %v8016 = vsel %vm6912, %v7994, 0
      %v8019 = vsel %vm6912, %v7995, 0
      %v8022 = vsel %vm6912, %v7996, 0
      %v8025 = vsel %vm6912, %v7997, 0
      %v8028 = vsel %vm6912, %v7998, 0
      %v8031 = vsel %vm6912, %v7999, 0
      %v8034 = vsel %vm6912, %v8000, 0
      %v8037 = vsel %vm6912, %v8001, 0
      %v8040 = vsel %vm6912, %v8002, 0
      %8042 = vmatprep.subr.bf16.mxu0 0
      %8043 = vmatpush1.bf16.msra.mxu0 %v8011
      %8044 = vmatprep.subr.bf16.mxu0 0
      %8045 = vmatpush1.bf16.msra.mxu0 %v8012
      %8046 = vmatprep.subr.bf16.mxu0 0
      %8047 = vmatpush1.bf16.msra.mxu0 0
      %8048 = vmatprep.subr.bf16.mxu0 0
      %8049 = vmatpush1.bf16.msra.mxu0 0
      %8050 = vmatprep.subr.bf16.mxu0 0
      %8051 = vmatpush1.bf16.msra.mxu0 0
      %8052 = vmatprep.subr.bf16.mxu0 0
      %8053 = vmatpush1.bf16.msra.mxu0 0
      %8054 = vmatprep.subr.bf16.mxu0 0
      %8055 = vmatpush1.bf16.msra.mxu0 0
      %8056 = vmatprep.subr.bf16.mxu0 0
      %8057 = vmatpush1.bf16.msra.mxu0 0
      %8058 = vmatprep.subr.bf16.mxu0 0
      %8059 = vmatpush1.bf16.msra.mxu0 0
      %8060 = vmatprep.subr.bf16.mxu0 0
      %8061 = vmatpush1.bf16.msra.mxu0 0
      %8062 = vmatprep.subr.bf16.mxu0 0
      %8063 = vmatpush1.bf16.msra.mxu0 0
      %8064 = vmatprep.subr.bf16.mxu0 0
      %8065 = vmatpush1.bf16.msra.mxu0 0
      %8066 = vmatprep.subr.bf16.mxu0 0
      %8067 = vmatpush1.bf16.msra.mxu0 0
      %8068 = vmatprep.subr.bf16.mxu0 0
      %8069 = vmatpush1.bf16.msra.mxu0 0
      %8070 = vmatprep.subr.bf16.mxu0 0
      %8071 = vmatpush1.bf16.msra.mxu0 0
      %8072 = vmatprep.subr.bf16.mxu0 0
      %8073 = vmatpush1.bf16.msra.mxu0 0
      %8074 = vmatprep.mubr.bf16.mxu0 0
      %8075 = vmatmul.mubr.bf16.gmra.mrb[0].mxu0 %v8016
      %v8076 = vpop.f32.mrb[0].mxu0
      %v8077 = vadd.f32 0.0, %v8076
      %v8078 = vpop.f32.mrb[0].mxu0
      %v8079 = vpop.f32.mrb[0].mxu0
      %v8080 = vadd.f32 0.0, %v8079
      %v8081 = vpop.f32.mrb[0].mxu0
      %8082 = vmatprep.mubr.bf16.mxu0 0
      %8083 = vmatmul.mubr.bf16.gmra.mrb[0].mxu0 %v8019
      %v8084 = vpop.f32.mrb[0].mxu0
      %v8085 = vadd.f32 0.0, %v8084
      %v8086 = vpop.f32.mrb[0].mxu0
      %v8087 = vpop.f32.mrb[0].mxu0
      %v8088 = vadd.f32 0.0, %v8087
      %v8089 = vpop.f32.mrb[0].mxu0
      %8090 = vmatprep.mubr.bf16.mxu0 0
      %8091 = vmatmul.mubr.bf16.gmra.mrb[0].mxu0 %v8022
      %v8092 = vpop.f32.mrb[0].mxu0
      %v8093 = vadd.f32 0.0, %v8092
      %v8094 = vpop.f32.mrb[0].mxu0
      %v8095 = vpop.f32.mrb[0].mxu0
      %v8096 = vadd.f32 0.0, %v8095
      %v8097 = vpop.f32.mrb[0].mxu0
      %8098 = vmatprep.mubr.bf16.mxu0 0
      %8099 = vmatmul.mubr.bf16.gmra.mrb[0].mxu0 %v8025
      %v8100 = vpop.f32.mrb[0].mxu0
      %v8101 = vadd.f32 0.0, %v8100
      %v8102 = vpop.f32.mrb[0].mxu0
      %v8103 = vpop.f32.mrb[0].mxu0
      %v8104 = vadd.f32 0.0, %v8103
      %v8105 = vpop.f32.mrb[0].mxu0
      %8106 = vmatprep.mubr.bf16.mxu0 0
      %8107 = vmatmul.mubr.bf16.gmra.mrb[0].mxu0 %v8028
      %v8108 = vpop.f32.mrb[0].mxu0
      %v8109 = vadd.f32 0.0, %v8108
      %v8110 = vpop.f32.mrb[0].mxu0
      %v8111 = vpop.f32.mrb[0].mxu0
      %v8112 = vadd.f32 0.0, %v8111
      %v8113 = vpop.f32.mrb[0].mxu0
      %8114 = vmatprep.mubr.bf16.mxu0 0
      %8115 = vmatmul.mubr.bf16.gmra.mrb[0].mxu0 %v8031
      %v8116 = vpop.f32.mrb[0].mxu0
      %v8117 = vadd.f32 0.0, %v8116
      %v8118 = vpop.f32.mrb[0].mxu0
      %v8119 = vpop.f32.mrb[0].mxu0
      %v8120 = vadd.f32 0.0, %v8119
      %v8121 = vpop.f32.mrb[0].mxu0
      %8122 = vmatprep.mubr.bf16.mxu0 0
      %8123 = vmatmul.mubr.bf16.gmra.mrb[0].mxu0 %v8034
      %v8124 = vpop.f32.mrb[0].mxu0
      %v8125 = vadd.f32 0.0, %v8124
      %v8126 = vpop.f32.mrb[0].mxu0
      %v8127 = vpop.f32.mrb[0].mxu0
      %v8128 = vadd.f32 0.0, %v8127
      %v8129 = vpop.f32.mrb[0].mxu0
      %8130 = vmatprep.mubr.bf16.mxu0 0
      %8131 = vmatmul.mubr.bf16.gmra.mrb[0].mxu0 %v8037
      %v8132 = vpop.f32.mrb[0].mxu0
      %v8133 = vadd.f32 0.0, %v8132
      %v8134 = vpop.f32.mrb[0].mxu0
      %v8135 = vpop.f32.mrb[0].mxu0
      %v8136 = vadd.f32 0.0, %v8135
      %v8137 = vpop.f32.mrb[0].mxu0
      %8138 = vmatprep.mubr.bf16.mxu0 0
      %8139 = vmatmul.mubr.bf16.gmra.mrb[0].mxu0 %v8040
      %v8140 = vpop.f32.mrb[0].mxu0
      %v8141 = vadd.f32 0.0, %v8140
      %v8142 = vpop.f32.mrb[0].mxu0
      %v8143 = vpop.f32.mrb[0].mxu0
      %v8144 = vadd.f32 0.0, %v8143
      %v8145 = vpop.f32.mrb[0].mxu0
      %8146 = vdwg.mxu0
      %v8147 = vadd.f32 %v7897, %v8077
      %v8148 = vadd.f32 %v7898, %v8080
      %v8149 = vadd.f32 %v7899, %v8085
      %v8150 = vadd.f32 %v7900, %v8088
      %v8151 = vadd.f32 %v7901, %v8093
      %v8152 = vadd.f32 %v7902, %v8096
      %v8153 = vadd.f32 %v7903, %v8101
      %v8154 = vadd.f32 %v7904, %v8104
      %v8155 = vadd.f32 %v7905, %v8109
      %v8156 = vadd.f32 %v7906, %v8112
      %v8157 = vadd.f32 %v7907, %v8117
      %v8158 = vadd.f32 %v7908, %v8120
      %v8159 = vadd.f32 %v7909, %v8125
      %v8160 = vadd.f32 %v7910, %v8128
      %v8161 = vadd.f32 %v7911, %v8133
      %v8162 = vadd.f32 %v7912, %v8136
      %v8163 = vadd.f32 %v7913, %v8141
      %v8164 = vadd.f32 %v7914, %v8144
      %v8165 = vcombine.low %v7221, %v7231
      %v8166 = vcombine.low %v7238, %v7248
      %v8167 = vcombine.low %v7255, %v7265
      %v8168 = vcombine.low %v7272, %v7282
      %v8169 = vcombine.low %v7289, %v7299
      %v8170 = vcombine.low %v7306, %v7316
      %v8171 = vcombine.low %v7323, %v7333
      %v8172 = vcombine.low %v7340, %v7350
      %v8173 = vcombine.low %v7357, %v7367
      %v8174 = vcombine.low %v7374, %v7384
      %v8175 = vcombine.low %v7391, %v7401
      %v8176 = vcombine.low %v7408, %v7418
      %v8177 = vcombine.low %v7425, %v7435
      %v8178 = vcombine.low %v7442, %v7452
      %v8179 = vcombine.low %v7459, %v7469
      %v8180 = vcombine.low %v7476, %v7486
      %v8181 = vcombine.low %v5925, %v5924
      %v8183 = vunpack.c.l.s4 1983009808
      %v8184 = vunpack.c.0.s8 %v8183
      %v8185 = vlaneseq
      %v8186 = vshrl.u32 %v8185, 7
      %v8187 = vsub.s32 %v8184, %v8186
      %v8188 = vrot.slane %v8181, %v8187
      %v8189 = vcombine.low %v7493, %v8188
      %v8190 = vcombine.low %v5926, %v5934
      %v8191 = vcombine.low %v5942, %v5941
      %v8193 = vunpack.c.l.s4 1983009808
      %v8194 = vunpack.c.0.s8 %v8193
      %v8195 = vlaneseq
      %v8196 = vshrl.u32 %v8195, 7
      %v8197 = vsub.s32 %v8194, %v8196
      %v8198 = vrot.slane %v8190, %v8197
      %v8200 = vunpack.c.l.s4 1983009808
      %v8201 = vunpack.c.0.s8 %v8200
      %v8202 = vlaneseq
      %v8203 = vshrl.u32 %v8202, 7
      %v8204 = vsub.s32 %v8201, %v8203
      %v8205 = vrot.slane %v8191, %v8204
      %v8206 = vcombine.low %v8198, %v8205
      %v8225 = vpack.c.bf16 %v8166, %v8165
      %v8226 = vpack.c.bf16 %v8168, %v8167
      %v8227 = vpack.c.bf16 %v8170, %v8169
      %v8228 = vpack.c.bf16 %v8172, %v8171
      %v8229 = vpack.c.bf16 %v8174, %v8173
      %v8230 = vpack.c.bf16 %v8176, %v8175
      %v8231 = vpack.c.bf16 %v8178, %v8177
      %v8232 = vpack.c.bf16 %v8180, %v8179
      %v8233 = vpack.c.bf16 %v8206, %v8189
      %v8238 = vunpack.c.l.b16 %v5989
      %v8239 = vunpack.c.l.b16 %v5990
      %v8240 = vunpack.c.l.b16 %v5991
      %v8241 = vunpack.c.l.b16 %v5992
      %v8242 = vpack.c.b16 %v8239, %v8238
      %v8243 = vpack.c.b16 %v8241, %v8240
      %v8247 = vsel %vm6912, %v8225, 0
      %v8250 = vsel %vm6912, %v8226, 0
      %v8253 = vsel %vm6912, %v8227, 0
      %v8256 = vsel %vm6912, %v8228, 0
      %v8259 = vsel %vm6912, %v8229, 0
      %v8262 = vsel %vm6912, %v8230, 0
      %v8265 = vsel %vm6912, %v8231, 0
      %v8268 = vsel %vm6912, %v8232, 0
      %v8271 = vsel %vm6912, %v8233, 0
      %8273 = vmatprep.subr.bf16.mxu0 0
      %8274 = vmatpush1.bf16.msra.mxu0 %v8242
      %8275 = vmatprep.subr.bf16.mxu0 0
      %8276 = vmatpush1.bf16.msra.mxu0 %v8243
      %8277 = vmatprep.subr.bf16.mxu0 0
      %8278 = vmatpush1.bf16.msra.mxu0 0
      %8279 = vmatprep.subr.bf16.mxu0 0
      %8280 = vmatpush1.bf16.msra.mxu0 0
      %8281 = vmatprep.subr.bf16.mxu0 0
      %8282 = vmatpush1.bf16.msra.mxu0 0
      %8283 = vmatprep.subr.bf16.mxu0 0
      %8284 = vmatpush1.bf16.msra.mxu0 0
      %8285 = vmatprep.subr.bf16.mxu0 0
      %8286 = vmatpush1.bf16.msra.mxu0 0
      %8287 = vmatprep.subr.bf16.mxu0 0
      %8288 = vmatpush1.bf16.msra.mxu0 0
      %8289 = vmatprep.subr.bf16.mxu0 0
      %8290 = vmatpush1.bf16.msra.mxu0 0
      %8291 = vmatprep.subr.bf16.mxu0 0
      %8292 = vmatpush1.bf16.msra.mxu0 0
      %8293 = vmatprep.subr.bf16.mxu0 0
      %8294 = vmatpush1.bf16.msra.mxu0 0
      %8295 = vmatprep.subr.bf16.mxu0 0
      %8296 = vmatpush1.bf16.msra.mxu0 0
      %8297 = vmatprep.subr.bf16.mxu0 0
      %8298 = vmatpush1.bf16.msra.mxu0 0
      %8299 = vmatprep.subr.bf16.mxu0 0
      %8300 = vmatpush1.bf16.msra.mxu0 0
      %8301 = vmatprep.subr.bf16.mxu0 0
      %8302 = vmatpush1.bf16.msra.mxu0 0
      %8303 = vmatprep.subr.bf16.mxu0 0
      %8304 = vmatpush1.bf16.msra.mxu0 0
      %8305 = vmatprep.mubr.bf16.mxu0 0
      %8306 = vmatmul.mubr.bf16.gmra.mrb[0].mxu0 %v8247
      %v8307 = vpop.f32.mrb[0].mxu0
      %v8308 = vadd.f32 0.0, %v8307
      %v8309 = vpop.f32.mrb[0].mxu0
      %v8310 = vpop.f32.mrb[0].mxu0
      %v8311 = vadd.f32 0.0, %v8310
      %v8312 = vpop.f32.mrb[0].mxu0
      %8313 = vmatprep.mubr.bf16.mxu0 0
      %8314 = vmatmul.mubr.bf16.gmra.mrb[0].mxu0 %v8250
      %v8315 = vpop.f32.mrb[0].mxu0
      %v8316 = vadd.f32 0.0, %v8315
      %v8317 = vpop.f32.mrb[0].mxu0
      %v8318 = vpop.f32.mrb[0].mxu0
      %v8319 = vadd.f32 0.0, %v8318
      %v8320 = vpop.f32.mrb[0].mxu0
      %8321 = vmatprep.mubr.bf16.mxu0 0
      %8322 = vmatmul.mubr.bf16.gmra.mrb[0].mxu0 %v8253
      %v8323 = vpop.f32.mrb[0].mxu0
      %v8324 = vadd.f32 0.0, %v8323
      %v8325 = vpop.f32.mrb[0].mxu0
      %v8326 = vpop.f32.mrb[0].mxu0
      %v8327 = vadd.f32 0.0, %v8326
      %v8328 = vpop.f32.mrb[0].mxu0
      %8329 = vmatprep.mubr.bf16.mxu0 0
      %8330 = vmatmul.mubr.bf16.gmra.mrb[0].mxu0 %v8256
      %v8331 = vpop.f32.mrb[0].mxu0
      %v8332 = vadd.f32 0.0, %v8331
      %v8333 = vpop.f32.mrb[0].mxu0
      %v8334 = vpop.f32.mrb[0].mxu0
      %v8335 = vadd.f32 0.0, %v8334
      %v8336 = vpop.f32.mrb[0].mxu0
      %8337 = vmatprep.mubr.bf16.mxu0 0
      %8338 = vmatmul.mubr.bf16.gmra.mrb[0].mxu0 %v8259
      %v8339 = vpop.f32.mrb[0].mxu0
      %v8340 = vadd.f32 0.0, %v8339
      %v8341 = vpop.f32.mrb[0].mxu0
      %v8342 = vpop.f32.mrb[0].mxu0
      %v8343 = vadd.f32 0.0, %v8342
      %v8344 = vpop.f32.mrb[0].mxu0
      %8345 = vmatprep.mubr.bf16.mxu0 0
      %8346 = vmatmul.mubr.bf16.gmra.mrb[0].mxu0 %v8262
      %v8347 = vpop.f32.mrb[0].mxu0
      %v8348 = vadd.f32 0.0, %v8347
      %v8349 = vpop.f32.mrb[0].mxu0
      %v8350 = vpop.f32.mrb[0].mxu0
      %v8351 = vadd.f32 0.0, %v8350
      %v8352 = vpop.f32.mrb[0].mxu0
      %8353 = vmatprep.mubr.bf16.mxu0 0
      %8354 = vmatmul.mubr.bf16.gmra.mrb[0].mxu0 %v8265
      %v8355 = vpop.f32.mrb[0].mxu0
      %v8356 = vadd.f32 0.0, %v8355
      %v8357 = vpop.f32.mrb[0].mxu0
      %v8358 = vpop.f32.mrb[0].mxu0
      %v8359 = vadd.f32 0.0, %v8358
      %v8360 = vpop.f32.mrb[0].mxu0
      %8361 = vmatprep.mubr.bf16.mxu0 0
      %8362 = vmatmul.mubr.bf16.gmra.mrb[0].mxu0 %v8268
      %v8363 = vpop.f32.mrb[0].mxu0
      %v8364 = vadd.f32 0.0, %v8363
      %v8365 = vpop.f32.mrb[0].mxu0
      %v8366 = vpop.f32.mrb[0].mxu0
      %v8367 = vadd.f32 0.0, %v8366
      %v8368 = vpop.f32.mrb[0].mxu0
      %8369 = vmatprep.mubr.bf16.mxu0 0
      %8370 = vmatmul.mubr.bf16.gmra.mrb[0].mxu0 %v8271
      %v8371 = vpop.f32.mrb[0].mxu0
      %v8372 = vadd.f32 0.0, %v8371
      %v8373 = vpop.f32.mrb[0].mxu0
      %v8374 = vpop.f32.mrb[0].mxu0
      %v8375 = vadd.f32 0.0, %v8374
      %v8376 = vpop.f32.mrb[0].mxu0
      %8377 = vdwg.mxu0
      %v8378 = vadd.f32 %v8147, %v8308
      %v8379 = vadd.f32 %v8148, %v8311
      %v8380 = vadd.f32 %v8149, %v8316
      %v8381 = vadd.f32 %v8150, %v8319
      %v8382 = vadd.f32 %v8151, %v8324
      %v8383 = vadd.f32 %v8152, %v8327
      %v8384 = vadd.f32 %v8153, %v8332
      %v8385 = vadd.f32 %v8154, %v8335
      %v8386 = vadd.f32 %v8155, %v8340
      %v8387 = vadd.f32 %v8156, %v8343
      %v8388 = vadd.f32 %v8157, %v8348
      %v8389 = vadd.f32 %v8158, %v8351
      %v8390 = vadd.f32 %v8159, %v8356
      %v8391 = vadd.f32 %v8160, %v8359
      %v8392 = vadd.f32 %v8161, %v8364
      %v8393 = vadd.f32 %v8162, %v8367
      %v8394 = vadd.f32 %v8163, %v8372
      %v8395 = vadd.f32 %v8164, %v8375
      %v8396 = vcombine.low %v7707, %v7717
      %v8397 = vcombine.low %v5943, %v5951
      %v8399 = vunpack.c.l.s4 1983009808
      %v8400 = vunpack.c.0.s8 %v8399
      %v8401 = vlaneseq
      %v8402 = vshrl.u32 %v8401, 7
      %v8403 = vsub.s32 %v8400, %v8402
      %v8404 = vrot.slane %v8397, %v8403
      %v8405 = vcombine.low %v7724, %v8404
      %v8406 = vcombine.low %v5959, %v5958
      %v8407 = vcombine.low %v5960, %v5967
      %v8409 = vunpack.c.l.s4 1983009808
      %v8410 = vunpack.c.0.s8 %v8409
      %v8411 = vlaneseq
      %v8412 = vshrl.u32 %v8411, 7
      %v8413 = vsub.s32 %v8410, %v8412
      %v8414 = vrot.slane %v8406, %v8413
      %v8416 = vunpack.c.l.s4 1983009808
      %v8417 = vunpack.c.0.s8 %v8416
      %v8418 = vlaneseq
      %v8419 = vshrl.u32 %v8418, 7
      %v8420 = vsub.s32 %v8417, %v8419
      %v8421 = vrot.slane %v8407, %v8420
      %v8422 = vcombine.low %v8414, %v8421
      %v8426 = vpack.c.bf16 %v6090, %v6073
      %v8427 = vpack.c.bf16 %v6124, %v6107
      %v8428 = vpack.c.bf16 %v6158, %v6141
      %v8429 = vpack.c.bf16 %v6192, %v6175
      %v8430 = vpack.c.bf16 %v6226, %v6209
      %v8431 = vpack.c.bf16 %v6260, %v6243
      %v8432 = vpack.c.bf16 %v6294, %v6277
      %v8433 = vpack.c.bf16 %v8396, %v6311
      %v8434 = vpack.c.bf16 %v8422, %v8405
      %v8439 = vunpack.c.l.b16 %v5993
      %v8440 = vunpack.c.l.b16 %v5994
      %v8441 = vunpack.c.l.b16 %v5995
      %v8442 = vunpack.c.l.b16 %v5996
      %v8443 = vpack.c.b16 %v8440, %v8439
      %v8444 = vpack.c.b16 %v8442, %v8441
      %v8448 = vsel %vm6912, %v8426, 0
      %v8451 = vsel %vm6912, %v8427, 0
      %v8454 = vsel %vm6912, %v8428, 0
      %v8457 = vsel %vm6912, %v8429, 0
      %v8460 = vsel %vm6912, %v8430, 0
      %v8463 = vsel %vm6912, %v8431, 0
      %v8466 = vsel %vm6912, %v8432, 0
      %v8469 = vsel %vm6912, %v8433, 0
      %v8472 = vsel %vm6912, %v8434, 0
      %8474 = vmatprep.subr.bf16.mxu0 0
      %8475 = vmatpush1.bf16.msra.mxu0 %v8443
      %8476 = vmatprep.subr.bf16.mxu0 0
      %8477 = vmatpush1.bf16.msra.mxu0 %v8444
      %8478 = vmatprep.subr.bf16.mxu0 0
      %8479 = vmatpush1.bf16.msra.mxu0 0
      %8480 = vmatprep.subr.bf16.mxu0 0
      %8481 = vmatpush1.bf16.msra.mxu0 0
      %8482 = vmatprep.subr.bf16.mxu0 0
      %8483 = vmatpush1.bf16.msra.mxu0 0
      %8484 = vmatprep.subr.bf16.mxu0 0
      %8485 = vmatpush1.bf16.msra.mxu0 0
      %8486 = vmatprep.subr.bf16.mxu0 0
      %8487 = vmatpush1.bf16.msra.mxu0 0
      %8488 = vmatprep.subr.bf16.mxu0 0
      %8489 = vmatpush1.bf16.msra.mxu0 0
      %8490 = vmatprep.subr.bf16.mxu0 0
      %8491 = vmatpush1.bf16.msra.mxu0 0
      %8492 = vmatprep.subr.bf16.mxu0 0
      %8493 = vmatpush1.bf16.msra.mxu0 0
      %8494 = vmatprep.subr.bf16.mxu0 0
      %8495 = vmatpush1.bf16.msra.mxu0 0
      %8496 = vmatprep.subr.bf16.mxu0 0
      %8497 = vmatpush1.bf16.msra.mxu0 0
      %8498 = vmatprep.subr.bf16.mxu0 0
      %8499 = vmatpush1.bf16.msra.mxu0 0
      %8500 = vmatprep.subr.bf16.mxu0 0
      %8501 = vmatpush1.bf16.msra.mxu0 0
      %8502 = vmatprep.subr.bf16.mxu0 0
      %8503 = vmatpush1.bf16.msra.mxu0 0
      %8504 = vmatprep.subr.bf16.mxu0 0
      %8505 = vmatpush1.bf16.msra.mxu0 0
      %8506 = vmatprep.mubr.bf16.mxu0 0
      %8507 = vmatmul.mubr.bf16.gmra.mrb[0].mxu0 %v8448
      %v8508 = vpop.f32.mrb[0].mxu0
      %v8509 = vadd.f32 0.0, %v8508
      %v8510 = vpop.f32.mrb[0].mxu0
      %v8511 = vpop.f32.mrb[0].mxu0
      %v8512 = vadd.f32 0.0, %v8511
      %v8513 = vpop.f32.mrb[0].mxu0
      %8514 = vmatprep.mubr.bf16.mxu0 0
      %8515 = vmatmul.mubr.bf16.gmra.mrb[0].mxu0 %v8451
      %v8516 = vpop.f32.mrb[0].mxu0
      %v8517 = vadd.f32 0.0, %v8516
      %v8518 = vpop.f32.mrb[0].mxu0
      %v8519 = vpop.f32.mrb[0].mxu0
      %v8520 = vadd.f32 0.0, %v8519
      %v8521 = vpop.f32.mrb[0].mxu0
      %8522 = vmatprep.mubr.bf16.mxu0 0
      %8523 = vmatmul.mubr.bf16.gmra.mrb[0].mxu0 %v8454
      %v8524 = vpop.f32.mrb[0].mxu0
      %v8525 = vadd.f32 0.0, %v8524
      %v8526 = vpop.f32.mrb[0].mxu0
      %v8527 = vpop.f32.mrb[0].mxu0
      %v8528 = vadd.f32 0.0, %v8527
      %v8529 = vpop.f32.mrb[0].mxu0
      %8530 = vmatprep.mubr.bf16.mxu0 0
      %8531 = vmatmul.mubr.bf16.gmra.mrb[0].mxu0 %v8457
      %v8532 = vpop.f32.mrb[0].mxu0
      %v8533 = vadd.f32 0.0, %v8532
      %v8534 = vpop.f32.mrb[0].mxu0
      %v8535 = vpop.f32.mrb[0].mxu0
      %v8536 = vadd.f32 0.0, %v8535
      %v8537 = vpop.f32.mrb[0].mxu0
      %8538 = vmatprep.mubr.bf16.mxu0 0
      %8539 = vmatmul.mubr.bf16.gmra.mrb[0].mxu0 %v8460
      %v8540 = vpop.f32.mrb[0].mxu0
      %v8541 = vadd.f32 0.0, %v8540
      %v8542 = vpop.f32.mrb[0].mxu0
      %v8543 = vpop.f32.mrb[0].mxu0
      %v8544 = vadd.f32 0.0, %v8543
      %v8545 = vpop.f32.mrb[0].mxu0
      %8546 = vmatprep.mubr.bf16.mxu0 0
      %8547 = vmatmul.mubr.bf16.gmra.mrb[0].mxu0 %v8463
      %v8548 = vpop.f32.mrb[0].mxu0
      %v8549 = vadd.f32 0.0, %v8548
      %v8550 = vpop.f32.mrb[0].mxu0
      %v8551 = vpop.f32.mrb[0].mxu0
      %v8552 = vadd.f32 0.0, %v8551
      %v8553 = vpop.f32.mrb[0].mxu0
      %8554 = vmatprep.mubr.bf16.mxu0 0
      %8555 = vmatmul.mubr.bf16.gmra.mrb[0].mxu0 %v8466
      %v8556 = vpop.f32.mrb[0].mxu0
      %v8557 = vadd.f32 0.0, %v8556
      %v8558 = vpop.f32.mrb[0].mxu0
      %v8559 = vpop.f32.mrb[0].mxu0
      %v8560 = vadd.f32 0.0, %v8559
      %v8561 = vpop.f32.mrb[0].mxu0
      %8562 = vmatprep.mubr.bf16.mxu0 0
      %8563 = vmatmul.mubr.bf16.gmra.mrb[0].mxu0 %v8469
      %v8564 = vpop.f32.mrb[0].mxu0
      %v8565 = vadd.f32 0.0, %v8564
      %v8566 = vpop.f32.mrb[0].mxu0
      %v8567 = vpop.f32.mrb[0].mxu0
      %v8568 = vadd.f32 0.0, %v8567
      %v8569 = vpop.f32.mrb[0].mxu0
      %8570 = vmatprep.mubr.bf16.mxu0 0
      %8571 = vmatmul.mubr.bf16.gmra.mrb[0].mxu0 %v8472
      %v8572 = vpop.f32.mrb[0].mxu0
      %v8573 = vadd.f32 0.0, %v8572
      %v8574 = vpop.f32.mrb[0].mxu0
      %v8575 = vpop.f32.mrb[0].mxu0
      %v8576 = vadd.f32 0.0, %v8575
      %v8577 = vpop.f32.mrb[0].mxu0
      %8578 = vdwg.mxu0
      %v8579 = vadd.f32 %v8378, %v8509
      %v8580 = vadd.f32 %v8379, %v8512
      %v8581 = vadd.f32 %v8380, %v8517
      %v8582 = vadd.f32 %v8381, %v8520
      %v8583 = vadd.f32 %v8382, %v8525
      %v8584 = vadd.f32 %v8383, %v8528
      %v8585 = vadd.f32 %v8384, %v8533
      %v8586 = vadd.f32 %v8385, %v8536
      %v8587 = vadd.f32 %v8386, %v8541
      %v8588 = vadd.f32 %v8387, %v8544
      %v8589 = vadd.f32 %v8388, %v8549
      %v8590 = vadd.f32 %v8389, %v8552
      %v8591 = vadd.f32 %v8390, %v8557
      %v8592 = vadd.f32 %v8391, %v8560
      %v8593 = vadd.f32 %v8392, %v8565
      %v8594 = vadd.f32 %v8393, %v8568
      %v8595 = vadd.f32 %v8394, %v8573
      %v8596 = vadd.f32 %v8395, %v8576
      %v8597 = vrot.slane %v5943, 7
      %v8598 = vrot.slane %v8597, 2
      %v8599 = vrot.slane %v5951, 7
      %v8600 = vsel %vm1228, %v8598, %v8599
      %v8601 = vrot.slane %v8599, 2
      %v8602 = vrot.slane %v5959, 7
      %v8603 = vsel %vm1228, %v8601, %v8602
      %v8604 = vrot.slane %v8602, 2
      %v8605 = vrot.slane %v5958, 7
      %v8606 = vsel %vm1228, %v8604, %v8605
      %v8607 = vrot.slane %v8605, 2
      %v8608 = vrot.slane %v5960, 7
      %v8609 = vsel %vm1228, %v8607, %v8608
      %v8610 = vrot.slane %v8608, 2
      %v8611 = vrot.slane %v5967, 7
      %v8612 = vsel %vm1228, %v8610, %v8611
      %v8613 = vrot.slane %v8611, 2
      %v8614 = vrot.slane %v5968, 7
      %v8615 = vsel %vm1228, %v8613, %v8614
      %v8616 = vcombine.low %v7957, %v7967
      %v8617 = vcombine.low %v8600, %v8603
      %v8619 = vunpack.c.l.s4 1983009808
      %v8620 = vunpack.c.0.s8 %v8619
      %v8621 = vlaneseq
      %v8622 = vshrl.u32 %v8621, 7
      %v8623 = vsub.s32 %v8620, %v8622
      %v8624 = vrot.slane %v8617, %v8623
      %v8625 = vcombine.low %v7974, %v8624
      %v8626 = vcombine.low %v8606, %v8609
      %v8627 = vcombine.low %v8612, %v8615
      %v8629 = vunpack.c.l.s4 1983009808
      %v8630 = vunpack.c.0.s8 %v8629
      %v8631 = vlaneseq
      %v8632 = vshrl.u32 %v8631, 7
      %v8633 = vsub.s32 %v8630, %v8632
      %v8634 = vrot.slane %v8626, %v8633
      %v8636 = vunpack.c.l.s4 1983009808
      %v8637 = vunpack.c.0.s8 %v8636
      %v8638 = vlaneseq
      %v8639 = vshrl.u32 %v8638, 7
      %v8640 = vsub.s32 %v8637, %v8639
      %v8641 = vrot.slane %v8627, %v8640
      %v8642 = vcombine.low %v8634, %v8641
      %v8646 = vpack.c.bf16 %v6651, %v6634
      %v8647 = vpack.c.bf16 %v6685, %v6668
      %v8648 = vpack.c.bf16 %v6719, %v6702
      %v8649 = vpack.c.bf16 %v6753, %v6736
      %v8650 = vpack.c.bf16 %v6787, %v6770
      %v8651 = vpack.c.bf16 %v6821, %v6804
      %v8652 = vpack.c.bf16 %v6855, %v6838
      %v8653 = vpack.c.bf16 %v8616, %v6872
      %v8654 = vpack.c.bf16 %v8642, %v8625
      %v8659 = vunpack.c.l.b16 %v5997
      %v8660 = vunpack.c.l.b16 %v5998
      %v8661 = vunpack.c.l.b16 %v5999
      %v8662 = vunpack.c.l.b16 %v6000
      %v8663 = vpack.c.b16 %v8660, %v8659
      %v8664 = vpack.c.b16 %v8662, %v8661
      %v8668 = vsel %vm6912, %v8646, 0
      %v8671 = vsel %vm6912, %v8647, 0
      %v8674 = vsel %vm6912, %v8648, 0
      %v8677 = vsel %vm6912, %v8649, 0
      %v8680 = vsel %vm6912, %v8650, 0
      %v8683 = vsel %vm6912, %v8651, 0
      %v8686 = vsel %vm6912, %v8652, 0
      %v8689 = vsel %vm6912, %v8653, 0
      %v8692 = vsel %vm6912, %v8654, 0
      %8694 = vmatprep.subr.bf16.mxu0 0
      %8695 = vmatpush1.bf16.msra.mxu0 %v8663
      %8696 = vmatprep.subr.bf16.mxu0 0
      %8697 = vmatpush1.bf16.msra.mxu0 %v8664
      %8698 = vmatprep.subr.bf16.mxu0 0
      %8699 = vmatpush1.bf16.msra.mxu0 0
      %8700 = vmatprep.subr.bf16.mxu0 0
      %8701 = vmatpush1.bf16.msra.mxu0 0
      %8702 = vmatprep.subr.bf16.mxu0 0
      %8703 = vmatpush1.bf16.msra.mxu0 0
      %8704 = vmatprep.subr.bf16.mxu0 0
      %8705 = vmatpush1.bf16.msra.mxu0 0
      %8706 = vmatprep.subr.bf16.mxu0 0
      %8707 = vmatpush1.bf16.msra.mxu0 0
      %8708 = vmatprep.subr.bf16.mxu0 0
      %8709 = vmatpush1.bf16.msra.mxu0 0
      %8710 = vmatprep.subr.bf16.mxu0 0
      %8711 = vmatpush1.bf16.msra.mxu0 0
      %8712 = vmatprep.subr.bf16.mxu0 0
      %8713 = vmatpush1.bf16.msra.mxu0 0
      %8714 = vmatprep.subr.bf16.mxu0 0
      %8715 = vmatpush1.bf16.msra.mxu0 0
      %8716 = vmatprep.subr.bf16.mxu0 0
      %8717 = vmatpush1.bf16.msra.mxu0 0
      %8718 = vmatprep.subr.bf16.mxu0 0
      %8719 = vmatpush1.bf16.msra.mxu0 0
      %8720 = vmatprep.subr.bf16.mxu0 0
      %8721 = vmatpush1.bf16.msra.mxu0 0
      %8722 = vmatprep.subr.bf16.mxu0 0
      %8723 = vmatpush1.bf16.msra.mxu0 0
      %8724 = vmatprep.subr.bf16.mxu0 0
      %8725 = vmatpush1.bf16.msra.mxu0 0
      %8726 = vmatprep.mubr.bf16.mxu0 0
      %8727 = vmatmul.mubr.bf16.gmra.mrb[0].mxu0 %v8668
      %v8728 = vpop.f32.mrb[0].mxu0
      %v8729 = vadd.f32 0.0, %v8728
      %v8730 = vpop.f32.mrb[0].mxu0
      %v8731 = vpop.f32.mrb[0].mxu0
      %v8732 = vadd.f32 0.0, %v8731
      %v8733 = vpop.f32.mrb[0].mxu0
      %8734 = vmatprep.mubr.bf16.mxu0 0
      %8735 = vmatmul.mubr.bf16.gmra.mrb[0].mxu0 %v8671
      %v8736 = vpop.f32.mrb[0].mxu0
      %v8737 = vadd.f32 0.0, %v8736
      %v8738 = vpop.f32.mrb[0].mxu0
      %v8739 = vpop.f32.mrb[0].mxu0
      %v8740 = vadd.f32 0.0, %v8739
      %v8741 = vpop.f32.mrb[0].mxu0
      %8742 = vmatprep.mubr.bf16.mxu0 0
      %8743 = vmatmul.mubr.bf16.gmra.mrb[0].mxu0 %v8674
      %v8744 = vpop.f32.mrb[0].mxu0
      %v8745 = vadd.f32 0.0, %v8744
      %v8746 = vpop.f32.mrb[0].mxu0
      %v8747 = vpop.f32.mrb[0].mxu0
      %v8748 = vadd.f32 0.0, %v8747
      %v8749 = vpop.f32.mrb[0].mxu0
      %8750 = vmatprep.mubr.bf16.mxu0 0
      %8751 = vmatmul.mubr.bf16.gmra.mrb[0].mxu0 %v8677
      %v8752 = vpop.f32.mrb[0].mxu0
      %v8753 = vadd.f32 0.0, %v8752
      %v8754 = vpop.f32.mrb[0].mxu0
      %v8755 = vpop.f32.mrb[0].mxu0
      %v8756 = vadd.f32 0.0, %v8755
      %v8757 = vpop.f32.mrb[0].mxu0
      %8758 = vmatprep.mubr.bf16.mxu0 0
      %8759 = vmatmul.mubr.bf16.gmra.mrb[0].mxu0 %v8680
      %v8760 = vpop.f32.mrb[0].mxu0
      %v8761 = vadd.f32 0.0, %v8760
      %v8762 = vpop.f32.mrb[0].mxu0
      %v8763 = vpop.f32.mrb[0].mxu0
      %v8764 = vadd.f32 0.0, %v8763
      %v8765 = vpop.f32.mrb[0].mxu0
      %8766 = vmatprep.mubr.bf16.mxu0 0
      %8767 = vmatmul.mubr.bf16.gmra.mrb[0].mxu0 %v8683
      %v8768 = vpop.f32.mrb[0].mxu0
      %v8769 = vadd.f32 0.0, %v8768
      %v8770 = vpop.f32.mrb[0].mxu0
      %v8771 = vpop.f32.mrb[0].mxu0
      %v8772 = vadd.f32 0.0, %v8771
      %v8773 = vpop.f32.mrb[0].mxu0
      %8774 = vmatprep.mubr.bf16.mxu0 0
      %8775 = vmatmul.mubr.bf16.gmra.mrb[0].mxu0 %v8686
      %v8776 = vpop.f32.mrb[0].mxu0
      %v8777 = vadd.f32 0.0, %v8776
      %v8778 = vpop.f32.mrb[0].mxu0
      %v8779 = vpop.f32.mrb[0].mxu0
      %v8780 = vadd.f32 0.0, %v8779
      %v8781 = vpop.f32.mrb[0].mxu0
      %8782 = vmatprep.mubr.bf16.mxu0 0
      %8783 = vmatmul.mubr.bf16.gmra.mrb[0].mxu0 %v8689
      %v8784 = vpop.f32.mrb[0].mxu0
      %v8785 = vadd.f32 0.0, %v8784
      %v8786 = vpop.f32.mrb[0].mxu0
      %v8787 = vpop.f32.mrb[0].mxu0
      %v8788 = vadd.f32 0.0, %v8787
      %v8789 = vpop.f32.mrb[0].mxu0
      %8790 = vmatprep.mubr.bf16.mxu0 0
      %8791 = vmatmul.mubr.bf16.gmra.mrb[0].mxu0 %v8692
      %v8792 = vpop.f32.mrb[0].mxu0
      %v8793 = vadd.f32 0.0, %v8792
      %v8794 = vpop.f32.mrb[0].mxu0
      %v8795 = vpop.f32.mrb[0].mxu0
      %v8796 = vadd.f32 0.0, %v8795
      %v8797 = vpop.f32.mrb[0].mxu0
      %8798 = vdwg.mxu0
      %v8799 = vadd.f32 %v8579, %v8729
      %v8800 = vadd.f32 %v8580, %v8732
      %v8801 = vadd.f32 %v8581, %v8737
      %v8802 = vadd.f32 %v8582, %v8740
      %v8803 = vadd.f32 %v8583, %v8745
      %v8804 = vadd.f32 %v8584, %v8748
      %v8805 = vadd.f32 %v8585, %v8753
      %v8806 = vadd.f32 %v8586, %v8756
      %v8807 = vadd.f32 %v8587, %v8761
      %v8808 = vadd.f32 %v8588, %v8764
      %v8809 = vadd.f32 %v8589, %v8769
      %v8810 = vadd.f32 %v8590, %v8772
      %v8811 = vadd.f32 %v8591, %v8777
      %v8812 = vadd.f32 %v8592, %v8780
      %v8813 = vadd.f32 %v8593, %v8785
      %v8814 = vadd.f32 %v8594, %v8788
      %v8815 = vadd.f32 %v8595, %v8793
      %v8816 = vadd.f32 %v8596, %v8796
      %v8817 = vcombine.low %v8188, %v8198
      %v8818 = vcombine.low %v5951, %v5959
      %v8820 = vunpack.c.l.s4 1983009808
      %v8821 = vunpack.c.0.s8 %v8820
      %v8822 = vlaneseq
      %v8823 = vshrl.u32 %v8822, 7
      %v8824 = vsub.s32 %v8821, %v8823
      %v8825 = vrot.slane %v8818, %v8824
      %v8826 = vcombine.low %v8205, %v8825
      %v8827 = vcombine.low %v5958, %v5960
      %v8828 = vcombine.low %v5967, %v5968
      %v8830 = vunpack.c.l.s4 1983009808
      %v8831 = vunpack.c.0.s8 %v8830
      %v8832 = vlaneseq
      %v8833 = vshrl.u32 %v8832, 7
      %v8834 = vsub.s32 %v8831, %v8833
      %v8835 = vrot.slane %v8827, %v8834
      %v8837 = vunpack.c.l.s4 1983009808
      %v8838 = vunpack.c.0.s8 %v8837
      %v8839 = vlaneseq
      %v8840 = vshrl.u32 %v8839, 7
      %v8841 = vsub.s32 %v8838, %v8840
      %v8842 = vrot.slane %v8828, %v8841
      %v8843 = vcombine.low %v8835, %v8842
      %v8847 = vpack.c.bf16 %v7273, %v7256
      %v8848 = vpack.c.bf16 %v7307, %v7290
      %v8849 = vpack.c.bf16 %v7341, %v7324
      %v8850 = vpack.c.bf16 %v7375, %v7358
      %v8851 = vpack.c.bf16 %v7409, %v7392
      %v8852 = vpack.c.bf16 %v7443, %v7426
      %v8853 = vpack.c.bf16 %v7477, %v7460
      %v8854 = vpack.c.bf16 %v8817, %v7494
      %v8855 = vpack.c.bf16 %v8843, %v8826
      %v8860 = vunpack.c.l.b16 %v6001
      %v8861 = vunpack.c.l.b16 %v6002
      %v8862 = vunpack.c.l.b16 %v6003
      %v8863 = vunpack.c.l.b16 %v6004
      %v8864 = vpack.c.b16 %v8861, %v8860
      %v8865 = vpack.c.b16 %v8863, %v8862
      %v8869 = vsel %vm6912, %v8847, 0
      %v8872 = vsel %vm6912, %v8848, 0
      %v8875 = vsel %vm6912, %v8849, 0
      %v8878 = vsel %vm6912, %v8850, 0
      %v8881 = vsel %vm6912, %v8851, 0
      %v8884 = vsel %vm6912, %v8852, 0
      %v8887 = vsel %vm6912, %v8853, 0
      %v8890 = vsel %vm6912, %v8854, 0
      %v8893 = vsel %vm6912, %v8855, 0
      %8895 = vmatprep.subr.bf16.mxu0 0
      %8896 = vmatpush1.bf16.msra.mxu0 %v8864
      %8897 = vmatprep.subr.bf16.mxu0 0
      %8898 = vmatpush1.bf16.msra.mxu0 %v8865
      %8899 = vmatprep.subr.bf16.mxu0 0
      %8900 = vmatpush1.bf16.msra.mxu0 0
      %8901 = vmatprep.subr.bf16.mxu0 0
      %8902 = vmatpush1.bf16.msra.mxu0 0
      %8903 = vmatprep.subr.bf16.mxu0 0
      %8904 = vmatpush1.bf16.msra.mxu0 0
      %8905 = vmatprep.subr.bf16.mxu0 0
      %8906 = vmatpush1.bf16.msra.mxu0 0
      %8907 = vmatprep.subr.bf16.mxu0 0
      %8908 = vmatpush1.bf16.msra.mxu0 0
      %8909 = vmatprep.subr.bf16.mxu0 0
      %8910 = vmatpush1.bf16.msra.mxu0 0
      %8911 = vmatprep.subr.bf16.mxu0 0
      %8912 = vmatpush1.bf16.msra.mxu0 0
      %8913 = vmatprep.subr.bf16.mxu0 0
      %8914 = vmatpush1.bf16.msra.mxu0 0
      %8915 = vmatprep.subr.bf16.mxu0 0
      %8916 = vmatpush1.bf16.msra.mxu0 0
      %8917 = vmatprep.subr.bf16.mxu0 0
      %8918 = vmatpush1.bf16.msra.mxu0 0
      %8919 = vmatprep.subr.bf16.mxu0 0
      %8920 = vmatpush1.bf16.msra.mxu0 0
      %8921 = vmatprep.subr.bf16.mxu0 0
      %8922 = vmatpush1.bf16.msra.mxu0 0
      %8923 = vmatprep.subr.bf16.mxu0 0
      %8924 = vmatpush1.bf16.msra.mxu0 0
      %8925 = vmatprep.subr.bf16.mxu0 0
      %8926 = vmatpush1.bf16.msra.mxu0 0
      %8927 = vmatprep.mubr.bf16.mxu0 0
      %8928 = vmatmul.mubr.bf16.gmra.mrb[0].mxu0 %v8869
      %v8929 = vpop.f32.mrb[0].mxu0
      %v8930 = vadd.f32 0.0, %v8929
      %v8931 = vpop.f32.mrb[0].mxu0
      %v8932 = vpop.f32.mrb[0].mxu0
      %v8933 = vadd.f32 0.0, %v8932
      %v8934 = vpop.f32.mrb[0].mxu0
      %8935 = vmatprep.mubr.bf16.mxu0 0
      %8936 = vmatmul.mubr.bf16.gmra.mrb[0].mxu0 %v8872
      %v8937 = vpop.f32.mrb[0].mxu0
      %v8938 = vadd.f32 0.0, %v8937
      %v8939 = vpop.f32.mrb[0].mxu0
      %v8940 = vpop.f32.mrb[0].mxu0
      %v8941 = vadd.f32 0.0, %v8940
      %v8942 = vpop.f32.mrb[0].mxu0
      %8943 = vmatprep.mubr.bf16.mxu0 0
      %8944 = vmatmul.mubr.bf16.gmra.mrb[0].mxu0 %v8875
      %v8945 = vpop.f32.mrb[0].mxu0
      %v8946 = vadd.f32 0.0, %v8945
      %v8947 = vpop.f32.mrb[0].mxu0
      %v8948 = vpop.f32.mrb[0].mxu0
      %v8949 = vadd.f32 0.0, %v8948
      %v8950 = vpop.f32.mrb[0].mxu0
      %8951 = vmatprep.mubr.bf16.mxu0 0
      %8952 = vmatmul.mubr.bf16.gmra.mrb[0].mxu0 %v8878
      %v8953 = vpop.f32.mrb[0].mxu0
      %v8954 = vadd.f32 0.0, %v8953
      %v8955 = vpop.f32.mrb[0].mxu0
      %v8956 = vpop.f32.mrb[0].mxu0
      %v8957 = vadd.f32 0.0, %v8956
      %v8958 = vpop.f32.mrb[0].mxu0
      %8959 = vmatprep.mubr.bf16.mxu0 0
      %8960 = vmatmul.mubr.bf16.gmra.mrb[0].mxu0 %v8881
      %v8961 = vpop.f32.mrb[0].mxu0
      %v8962 = vadd.f32 0.0, %v8961
      %v8963 = vpop.f32.mrb[0].mxu0
      %v8964 = vpop.f32.mrb[0].mxu0
      %v8965 = vadd.f32 0.0, %v8964
      %v8966 = vpop.f32.mrb[0].mxu0
      %8967 = vmatprep.mubr.bf16.mxu0 0
      %8968 = vmatmul.mubr.bf16.gmra.mrb[0].mxu0 %v8884
      %v8969 = vpop.f32.mrb[0].mxu0
      %v8970 = vadd.f32 0.0, %v8969
      %v8971 = vpop.f32.mrb[0].mxu0
      %v8972 = vpop.f32.mrb[0].mxu0
      %v8973 = vadd.f32 0.0, %v8972
      %v8974 = vpop.f32.mrb[0].mxu0
      %8975 = vmatprep.mubr.bf16.mxu0 0
      %8976 = vmatmul.mubr.bf16.gmra.mrb[0].mxu0 %v8887
      %v8977 = vpop.f32.mrb[0].mxu0
      %v8978 = vadd.f32 0.0, %v8977
      %v8979 = vpop.f32.mrb[0].mxu0
      %v8980 = vpop.f32.mrb[0].mxu0
      %v8981 = vadd.f32 0.0, %v8980
      %v8982 = vpop.f32.mrb[0].mxu0
      %8983 = vmatprep.mubr.bf16.mxu0 0
      %8984 = vmatmul.mubr.bf16.gmra.mrb[0].mxu0 %v8890
      %v8985 = vpop.f32.mrb[0].mxu0
      %v8986 = vadd.f32 0.0, %v8985
      %v8987 = vpop.f32.mrb[0].mxu0
      %v8988 = vpop.f32.mrb[0].mxu0
      %v8989 = vadd.f32 0.0, %v8988
      %v8990 = vpop.f32.mrb[0].mxu0
      %8991 = vmatprep.mubr.bf16.mxu0 0
      %8992 = vmatmul.mubr.bf16.gmra.mrb[0].mxu0 %v8893
      %v8993 = vpop.f32.mrb[0].mxu0
      %v8994 = vadd.f32 0.0, %v8993
      %v8995 = vpop.f32.mrb[0].mxu0
      %v8996 = vpop.f32.mrb[0].mxu0
      %v8997 = vadd.f32 0.0, %v8996
      %v8998 = vpop.f32.mrb[0].mxu0
      %8999 = vdwg.mxu0
      %v9000 = vadd.f32 %v8799, %v8930
      %v9001 = vadd.f32 %v8800, %v8933
      %v9002 = vadd.f32 %v8801, %v8938
      %v9003 = vadd.f32 %v8802, %v8941
      %v9004 = vadd.f32 %v8803, %v8946
      %v9005 = vadd.f32 %v8804, %v8949
      %v9006 = vadd.f32 %v8805, %v8954
      %v9007 = vadd.f32 %v8806, %v8957
      %v9008 = vadd.f32 %v8807, %v8962
      %v9009 = vadd.f32 %v8808, %v8965
      %v9010 = vadd.f32 %v8809, %v8970
      %v9011 = vadd.f32 %v8810, %v8973
      %v9012 = vadd.f32 %v8811, %v8978
      %v9013 = vadd.f32 %v8812, %v8981
      %v9014 = vadd.f32 %v8813, %v8986
      %v9015 = vadd.f32 %v8814, %v8989
      %v9016 = vadd.f32 %v8815, %v8994
      %v9017 = vadd.f32 %v8816, %v8997
      %v9019 = vlaneseq
      %v9020 = vshrl.u32 %v9019, 7
      %v9021 = vsub.s32 0, %v9020
      %v9022 = vrot.slane %v6005, %v9021
      %v9024 = vadd.f32 %v9000, %v9022
      %v9025 = vadd.f32 %v9001, %v9022
      %v9026 = vadd.f32 %v9002, %v9022
      %v9027 = vadd.f32 %v9003, %v9022
      %v9028 = vadd.f32 %v9004, %v9022
      %v9029 = vadd.f32 %v9005, %v9022
      %v9030 = vadd.f32 %v9006, %v9022
      %v9031 = vadd.f32 %v9007, %v9022
      %v9032 = vadd.f32 %v9008, %v9022
      %v9033 = vadd.f32 %v9009, %v9022
      %v9034 = vadd.f32 %v9010, %v9022
      %v9035 = vadd.f32 %v9011, %v9022
      %v9036 = vadd.f32 %v9012, %v9022
      %v9037 = vadd.f32 %v9013, %v9022
      %v9038 = vadd.f32 %v9014, %v9022
      %v9039 = vadd.f32 %v9015, %v9022
      %v9040 = vadd.f32 %v9016, %v9022
      %v9041 = vadd.f32 %v9017, %v9022
      %v9042 = vmax.f32 %v9024, 0.0
      %v9043 = vmax.f32 %v9025, 0.0
      %v9044 = vmax.f32 %v9026, 0.0
      %v9045 = vmax.f32 %v9027, 0.0
      %v9046 = vmax.f32 %v9028, 0.0
      %v9047 = vmax.f32 %v9029, 0.0
      %v9048 = vmax.f32 %v9030, 0.0
      %v9049 = vmax.f32 %v9031, 0.0
      %v9050 = vmax.f32 %v9032, 0.0
      %v9051 = vmax.f32 %v9033, 0.0
      %v9052 = vmax.f32 %v9034, 0.0
      %v9053 = vmax.f32 %v9035, 0.0
      %v9054 = vmax.f32 %v9036, 0.0
      %v9055 = vmax.f32 %v9037, 0.0
      %v9056 = vmax.f32 %v9038, 0.0
      %v9057 = vmax.f32 %v9039, 0.0
      %v9058 = vmax.f32 %v9040, 0.0
      %v9059 = vmax.f32 %v9041, 0.0
      %9060 = vst.msk [vmem:[%s224] sm:$0xff] %vm6912, %v9042
      %9061 = vst.msk [vmem:[%s224 + $0x8] sm:$0xff] %vm6912, %v9043
      %9062 = vst.msk [vmem:[%s224 + $0x10] sm:$0xff] %vm6912, %v9044
      %9063 = vst.msk [vmem:[%s224 + $0x18] sm:$0xff] %vm6912, %v9045
      %9064 = vst.msk [vmem:[%s224 + $0x20] sm:$0xff] %vm6912, %v9046
      %9065 = vst.msk [vmem:[%s224 + $0x28] sm:$0xff] %vm6912, %v9047
      %9066 = vst.msk [vmem:[%s224 + $0x30] sm:$0xff] %vm6912, %v9048
      %9067 = vst.msk [vmem:[%s224 + $0x38] sm:$0xff] %vm6912, %v9049
      %9068 = vst.msk [vmem:[%s224 + $0x40] sm:$0xff] %vm6912, %v9050
      %9069 = vst.msk [vmem:[%s224 + $0x48] sm:$0xff] %vm6912, %v9051
      %9070 = vst.msk [vmem:[%s224 + $0x50] sm:$0xff] %vm6912, %v9052
      %9071 = vst.msk [vmem:[%s224 + $0x58] sm:$0xff] %vm6912, %v9053
      %9072 = vst.msk [vmem:[%s224 + $0x60] sm:$0xff] %vm6912, %v9054
      %9073 = vst.msk [vmem:[%s224 + $0x68] sm:$0xff] %vm6912, %v9055
      %9074 = vst.msk [vmem:[%s224 + $0x70] sm:$0xff] %vm6912, %v9056
      %9075 = vst.msk [vmem:[%s224 + $0x78] sm:$0xff] %vm6912, %v9057
      %9076 = vst.msk [vmem:[%s224 + $0x80] sm:$0xff] %vm6912, %v9058
      %9077 = vst.msk [vmem:[%s224 + $0x88] sm:$0xff] %vm6912, %v9059
      %p9078 = scmp.lt.s32.totalorder %s16, 1
      %s9079 = scalar_select %p9078, %s16, 1
      %s9080 = smul.addr %s9079, 18
      %s9081 = smul.addr %s9080, 8
      %s9082 = scalar_lea.vmem %s5, %s9081
      // Predicated region
      $region41: #{block_forward.1} parent=39 // pred_check
        %p9083 = pneg %p144
      $region42: #{block_forward.1} parent=39 // pred_check_branch
        %9085 = sbr.rel (%p9083) target = $region44
      $region43: #{block_forward.1} parent=39 // pred_region
        _
      $region44: #{block_forward.1} parent=39 // pred_fallthru
        _
    $region40: #{block_forward.1} parent=5 // pred_fallthru
      _
    %p9086 = scmp.le.s32.totalorder 2, %s11
    // Predicated region
    $region45: #{block_forward.1} parent=5 // pred_check
      %p9087 = pneg %p9086
    $region46: #{block_forward.1} parent=5 // pred_check_branch
      %9089 = sbr.rel (%p9087) target = $region48
    $region47: #{block_forward.1} parent=5 // pred_region
      %s9090 = ssub.s32 %s11, 2
      // Predicated region
      $region49: #{block_forward.1} parent=47 // pred_check
        %p9091 = pneg %p150
      $region50: #{block_forward.1} parent=47 // pred_check_branch
        %9093 = sbr.rel (%p9091) target = $region52
      $region51: #{block_forward.1} parent=47 // pred_region
        %p9094 = scmp.lt.s32.totalorder %s17, 1
        %s9095 = scalar_select %p9094, %s17, 1
        %s9096 = smul.addr %s9095, 18
        %s9097 = smul.addr %s9096, 8
        %s9098 = scalar_lea.vmem %s5, %s9097
      $region52: #{block_forward.1} parent=47 // pred_fallthru
        _
    $region48: #{block_forward.1} parent=5 // pred_fallthru
      _
  $region6: #{block_forward.1} parent=0 // loop_footer
    %s15 = sadd.s32 1, %s11
  $region7: #{block_forward.1} parent=0 // loop_footer_branch
    %10 = sbr.rel target = $region3
  $region8: #{block_forward.1} parent=0 // loop_exit
    _

</llo_original>
